<compile_context>
chip_gen: v6e
topology: v6e:2x2x1
jax: 0.10.0
libtpu: 0.0.40
codegen_flags: <defaults>
</compile_context>

<pallas_src>
import functools

import jax
import jax.numpy as jnp
from jax import lax
from jax.experimental import pallas as pl
from jax.experimental.pallas import tpu as pltpu

# modest scoped-VMEM budget; actual per-step use is a few MiB, safe on v5e/v6e/v7x
_VMEM_LIMIT_BYTES = 32 * 1024 * 1024


# --------------------- kernel 1: masked-log pair scores + tile maxima ----------------
def _pair_scores_loop_kernel(ng_ref, ngt_ref, coef_ref, l_ref, max_ref, *, num_groups):
    """Exact path (arbitrary node_groups values).

    L[i,j]   = where(raw > 0, log(raw + 1), 0)
    raw[i,j] = len_i * len_j * sum_g coef[g] * ((ng[i,g] > 0) & (ng[i,g] == ng[j,g]))
    max_ref  <- per-tile max(raw), broadcast into an (8,128) lane-dense block.
    """
    ng_i = ng_ref[...]                               # (TR, Gp)
    ngt = ngt_ref[...]                               # (Gp, TC)
    coef = coef_ref[...]                             # (1, Gp)

    len_i = jnp.sum(ng_i, axis=1, keepdims=True)     # (TR, 1)
    len_j = jnp.sum(ngt, axis=0, keepdims=True)      # (1, TC)

    # Narrow (TR, G) precompute folds the ">0" test and the coef multiply out of the
    # full-width path: per group only compare + select + add remain on (TR, TC).
    w = jnp.where(ng_i > 0.0, coef, 0.0)             # (TR, Gp)

    tr = ng_i.shape[0]
    tc = ngt.shape[1]
    factor = jnp.zeros((tr, tc), jnp.float32)
    for g in range(num_groups):                      # static unroll over the small group axis
        vi = ng_i[:, g:g + 1]                        # (TR, 1)
        vj = ngt[g:g + 1, :]                         # (1, TC)
        wg = w[:, g:g + 1]                           # (TR, 1)
        factor = factor + jnp.where(vi == vj, wg, 0.0)

    raw = len_i * len_j * factor
    l_ref[...] = jnp.where(raw > 0.0, jnp.log(raw + 1.0), 0.0).astype(l_ref.dtype)
    max_ref[...] = jnp.broadcast_to(jnp.max(raw, keepdims=True), max_ref.shape)


def _pair_scores_binary_kernel(ng_ref, ngt_ref, coef_ref, l_ref, max_ref):
    """Fast path for a {0,1} membership matrix:
    (ng[i,g]>0) & (ng[i,g]==ng[j,g])  ==  ng[i,g]*ng[j,g], so factor = (ng_i*coef) @ ng^T (MXU)."""
    ng_i = ng_ref[...]                               # (TR, Gp)
    ngt = ngt_ref[...]                               # (Gp, TC)
    coef = coef_ref[...]                             # (1, Gp)

    len_i = jnp.sum(ng_i, axis=1, keepdims=True)
    len_j = jnp.sum(ngt, axis=0, keepdims=True)

    factor = jnp.dot(ng_i * coef, ngt, preferred_element_type=jnp.float32)

    raw = len_i * len_j * factor
    l_ref[...] = jnp.where(raw > 0.0, jnp.log(raw + 1.0), 0.0).astype(l_ref.dtype)
    max_ref[...] = jnp.broadcast_to(jnp.max(raw, keepdims=True), max_ref.shape)


# --------------------- kernel 2: out = (L @ L.T) * inv_scale -------------------------
def _matmul_nt_scale_kernel(inv_ref, a_ref, b_ref, o_ref):
    """Accumulates directly into the resident f32 output block; the scalar rescale
    1/log(max_raw+1)^2 (== the folded normalization of M) is applied on the last k step."""
    k = pl.program_id(2)

    @pl.when(k == 0)
    def _():
        o_ref[...] = jnp.zeros_like(o_ref)

    o_ref[...] += lax.dot_general(
        a_ref[...], b_ref[...], (((1,), (1,)), ((), ())),
        preferred_element_type=jnp.float32)

    @pl.when(k == pl.num_programs(2) - 1)
    def _():
        o_ref[...] = o_ref[...] * inv_ref[0, 0]


# --------------------------- pallas_call wrappers ------------------------------------
def _make_pair_scores_call(n_pad, gp, tr, tc, num_groups, assume_binary, out_dtype):
    if assume_binary:
        kernel = _pair_scores_binary_kernel
    else:
        kernel = functools.partial(_pair_scores_loop_kernel, num_groups=num_groups)

    nr, nc = n_pad // tr, n_pad // tc
    return pl.pallas_call(
        kernel,
        grid=(nr, nc),
        in_specs=[
            pl.BlockSpec((tr, gp), lambda i, j: (i, 0)),    # node_groups rows
            pl.BlockSpec((gp, tc), lambda i, j: (0, j)),    # node_groups^T columns (lane-dense)
            pl.BlockSpec((1, gp), lambda i, j: (0, 0)),     # 1/log(groups_size)
        ],
        out_specs=(
            pl.BlockSpec((tr, tc), lambda i, j: (i, j)),    # L (masked log pair scores)
            pl.BlockSpec((8, 128), lambda i, j: (i, j)),    # per-tile maxima (lane-dense)
        ),
        out_shape=(
            jax.ShapeDtypeStruct((n_pad, n_pad), out_dtype),
            jax.ShapeDtypeStruct((nr * 8, nc * 128), jnp.float32),
        ),
        compiler_params=pltpu.CompilerParams(
            dimension_semantics=("parallel", "parallel"),   # no carried state -> megacore-friendly
            vmem_limit_bytes=_VMEM_LIMIT_BYTES),
    )


def _make_matmul_nt_call(n_pad, tm, tn, tk):
    return pl.pallas_call(
        _matmul_nt_scale_kernel,
        grid=(n_pad // tm, n_pad // tn, n_pad // tk),
        in_specs=[
            pl.BlockSpec(memory_space=pltpu.MemorySpace.SMEM),      # (1,1) inv_scale scalar
            pl.BlockSpec((tm, tk), lambda i, j, k: (i, k)),
            pl.BlockSpec((tn, tk), lambda i, j, k: (j, k)),
        ],
        out_specs=pl.BlockSpec((tm, tn), lambda i, j, k: (i, j)),
        out_shape=jax.ShapeDtypeStruct((n_pad, n_pad), jnp.float32),
        compiler_params=pltpu.CompilerParams(
            dimension_semantics=("parallel", "parallel", "arbitrary"),
            vmem_limit_bytes=_VMEM_LIMIT_BYTES),
    )


# ------------------------------- forward pass ----------------------------------------
def _round_up(x, m):
    return ((x + m - 1) // m) * m


def _pick_tile(n, candidates):
    for c in candidates:
        if c <= n and n % c == 0:
            return c
    return n


@functools.partial(jax.jit, static_argnames=("assume_binary_groups", "operand_dtype"))
def _leroy_forward(node_groups, groups_size, *, assume_binary_groups=False,
                   operand_dtype=jnp.bfloat16):
    ng = node_groups.astype(jnp.float32)
    gs = groups_size.astype(jnp.float32).reshape(1, -1)
    n, g = ng.shape

    # coef = 1/log(groups_size); groups of size 1 give inf exactly like the reference.
    coef = 1.0 / jnp.log(gs)                               # (1, G)

    # Pad nodes to a multiple of 256: keeps every block (8,128)-aligned and pipelined
    # (padded rows/cols have len = 0 -> raw = 0 -> L = 0 -> contribute nothing).
    n_pad = _round_up(n, 256)
    if n_pad != n:
        ng = jnp.pad(ng, ((0, n_pad - n), (0, 0)))

    # For the MXU fast path, pad the group axis to a lane multiple (zero coef => no effect).
    gp = _round_up(g, 128) if assume_binary_groups else g
    if gp != g:
        ng = jnp.pad(ng, ((0, 0), (0, gp - g)))
        coef = jnp.pad(coef, ((0, 0), (0, gp - g)))

    ngt = ng.T                                             # (Gp, n_pad), lane-dense over nodes

    # ---- kernel 1: L + per-tile maxima ----
    tr = 256
    tc = _pick_tile(n_pad, (1024, 512, 256))
    l_mat, maxima = _make_pair_scores_call(
        n_pad, gp, tr, tc, g, assume_binary_groups, operand_dtype)(ng, ngt, coef)

    # Folded rescale:  out = M @ M.T  with  M = L / log(max_raw + 1)
    #                     == (L @ L.T) * 1/log(max_raw + 1)^2
    raw_max = jnp.max(maxima)
    max_log = jnp.log(raw_max + 1.0)
    # TODO(synk): max_log == 0 (no positive pair score) divides by zero, exactly as the reference.
    inv_scale = (1.0 / (max_log * max_log)).reshape(1, 1).astype(jnp.float32)

    # ---- kernel 2: MXU matmul with scalar epilogue ----
    tm = tn = 256
    tk = _pick_tile(n_pad, (512, 256))
    out = _make_matmul_nt_call(n_pad, tm, tn, tk)(inv_scale, l_mat, l_mat)

    if n_pad != n:
        out = out[:n, :n]
    return out


class LeroyPallas:
    """Forward-only Pallas TPU equivalent of the PyTorch `Leroy` module.

    assume_binary_groups=True enables an exact MXU shortcut valid only when node_groups
    is a {0,1} membership matrix; operand_dtype controls the stored intermediate / matmul
    operand precision (bfloat16 default, float32 for bit-tight results)."""

    def __init__(self, device_id=None, assume_binary_groups=False,
                 operand_dtype=jnp.bfloat16):
        self.device_id = device_id            # kept for API parity; unused on TPU
        self.assume_binary_groups = bool(assume_binary_groups)
        self.operand_dtype = operand_dtype

    def forward(self, graph, inference=False):
        del inference                          # unused, as in the reference
        ng = jnp.asarray(graph["node_groups"], jnp.float32)
        gs = jnp.asarray(graph["groups_size"], jnp.float32)
        return _leroy_forward(ng, gs,
                              assume_binary_groups=self.assume_binary_groups,
                              operand_dtype=self.operand_dtype)

    __call__ = forward


# --------------------------- pure-JAX reference --------------------------------------
def _leroy_reference(node_groups, groups_size):
    ng = node_groups.astype(jnp.float32)
    gs = groups_size.astype(jnp.float32).reshape(-1)
    lens = jnp.sum(ng, axis=1)
    pair = lens[:, None] * lens[None, :]
    coef = 1.0 / jnp.log(gs)
    mask = (ng[:, None, :] > 0.0) & (ng[:, None, :] == ng[None, :, :])     # (N, N, G)
    factor = jnp.sum(jnp.where(mask, coef[None, None, :], 0.0), axis=-1)
    pair = pair * factor
    nn = jnp.where(pair > 0.0, 1.0, 0.0)
    max_log = jnp.log(jnp.max(pair) + 1.0)
    ps = jnp.where(pair > -1.0, jnp.log(pair + 1.0) / max_log, 0.0)
    m = nn * ps
    return m @ m.T


# ------------------------------------ demo -------------------------------------------
if __name__ == "__main__":
    n_nodes, n_groups = 256, 16

    key = jax.random.PRNGKey(0)
    # binary group-membership matrix; guarantee every group has >= 2 members so
    # log(groups_size) > 0 (required by the reference's 1/log(groups_size)).
    node_groups = (jax.random.uniform(key, (n_nodes, n_groups)) < 0.2).astype(jnp.float32)
    node_groups = node_groups.at[0, :].set(1.0).at[1, :].set(1.0)
    groups_size = jnp.sum(node_groups, axis=0)                      # (G,)

    graph = {"node_groups": node_groups, "groups_size": groups_size}
    ref = jax.block_until_ready(_leroy_reference(node_groups, groups_size))

    # 1) default config: exact group loop, bf16 matmul operands (f32 accumulation)
    out_bf16 = jax.block_until_ready(LeroyPallas()(graph))
    assert out_bf16.shape == (n_nodes, n_nodes)
    assert bool(jnp.allclose(out_bf16, ref, rtol=2e-2, atol=2e-2)), (
        "bf16 path mismatch: max abs err = "
        f"{float(jnp.max(jnp.abs(out_bf16 - ref)))}")

    # 2) float32 operands: bit-tight against the reference
    out_f32 = jax.block_until_ready(LeroyPallas(operand_dtype=jnp.float32)(graph))
    assert bool(jnp.allclose(out_f32, ref, rtol=5e-3, atol=5e-3)), (
        "f32 path mismatch: max abs err = "
        f"{float(jnp.max(jnp.abs(out_f32 - ref)))}")

    # 3) binary-membership MXU fast path (inputs here are {0,1}, so it is exact)
    out_bin = jax.block_until_ready(
        LeroyPallas(assume_binary_groups=True, operand_dtype=jnp.float32)(graph))
    assert bool(jnp.allclose(out_bin, ref, rtol=2e-2, atol=2e-2)), (
        "binary fast-path mismatch: max abs err = "
        f"{float(jnp.max(jnp.abs(out_bin - ref)))}")

    print("KERNEL_OK")
</pallas_src>

<mosaic_0001>
module attributes {stable_mosaic.version = 11 : i64} {
  func.func @_pair_scores_loop_kernel(%arg0: i32, %arg1: i32, %arg2: memref<256x16xf32, #tpu.memory_space<vmem>>, %arg3: memref<16x256xf32, #tpu.memory_space<vmem>>, %arg4: memref<1x16xf32, #tpu.memory_space<vmem>>, %arg5: memref<256x256xbf16, #tpu.memory_space<vmem>>, %arg6: memref<8x128xf32, #tpu.memory_space<vmem>>) attributes {dimension_semantics = [#tpu.dimension_semantics<parallel>, #tpu.dimension_semantics<parallel>], iteration_bounds = array<i64: 1, 1>, scalar_prefetch = 0 : i64, scratch_operands = 0 : i64, tpu.core_type = #tpu.core_type<tc>, window_params = [{transform_indices = @transform_0, window_bounds = array<i64: 256, 16>}, {transform_indices = @transform_1, window_bounds = array<i64: 16, 256>}, {pipeline_mode = #tpu.pipeline_mode<synchronous>, transform_indices = @transform_2, window_bounds = array<i64: 1, 16>}, {transform_indices = @transform_3, window_bounds = array<i64: 256, 256>}, {transform_indices = @transform_4, window_bounds = array<i64: 8, 128>}]} {
    %c0 = arith.constant 0 : index
    %c0_0 = arith.constant 0 : index
    %0 = vector.load %arg2[%c0, %c0_0] : memref<256x16xf32, #tpu.memory_space<vmem>>, vector<256x16xf32>
    %c0_1 = arith.constant 0 : index
    %c0_2 = arith.constant 0 : index
    %1 = vector.load %arg3[%c0_1, %c0_2] : memref<16x256xf32, #tpu.memory_space<vmem>>, vector<16x256xf32>
    %c0_3 = arith.constant 0 : index
    %c0_4 = arith.constant 0 : index
    %2 = vector.load %arg4[%c0_3, %c0_4] : memref<1x16xf32, #tpu.memory_space<vmem>>, vector<1x16xf32>
    %cst = arith.constant dense<0.000000e+00> : vector<256xf32>
    %3 = vector.multi_reduction <add>, %0, %cst [1] : vector<256x16xf32> to vector<256xf32>
    %4 = vector.shape_cast %3 : vector<256xf32> to vector<256x1xf32>
    %cst_5 = arith.constant dense<0.000000e+00> : vector<256xf32>
    %5 = vector.multi_reduction <add>, %1, %cst_5 [0] : vector<16x256xf32> to vector<256xf32>
    %6 = vector.shape_cast %5 : vector<256xf32> to vector<1x256xf32>
    %cst_6 = arith.constant 0.000000e+00 : f32
    %7 = vector.broadcast %cst_6 : f32 to vector<256x16xf32>
    %8 = arith.cmpf ogt, %0, %7 : vector<256x16xf32>
    %cst_7 = arith.constant 0.000000e+00 : f32
    %9 = vector.shape_cast %2 : vector<1x16xf32> to vector<1x16xf32>
    %10 = vector.broadcast %9 : vector<1x16xf32> to vector<256x16xf32>
    %11 = vector.broadcast %cst_7 : f32 to vector<256x16xf32>
    %12 = arith.select %8, %10, %11 : vector<256x16xi1>, vector<256x16xf32>
    %cst_8 = arith.constant 0.000000e+00 : f32
    %13 = vector.broadcast %cst_8 : f32 to vector<256x256xf32>
    %14 = vector.extract_strided_slice %0 {offsets = [0, 0], sizes = [256, 1], strides = [1, 1]} : vector<256x16xf32> to vector<256x1xf32>
    %15 = vector.extract_strided_slice %1 {offsets = [0, 0], sizes = [1, 256], strides = [1, 1]} : vector<16x256xf32> to vector<1x256xf32>
    %16 = vector.extract_strided_slice %12 {offsets = [0, 0], sizes = [256, 1], strides = [1, 1]} : vector<256x16xf32> to vector<256x1xf32>
    %17 = vector.broadcast %14 : vector<256x1xf32> to vector<256x256xf32>
    %18 = vector.broadcast %15 : vector<1x256xf32> to vector<256x256xf32>
    %19 = arith.cmpf oeq, %17, %18 : vector<256x256xf32>
    %cst_9 = arith.constant 0.000000e+00 : f32
    %20 = vector.shape_cast %16 : vector<256x1xf32> to vector<256x1xf32>
    %21 = vector.broadcast %20 : vector<256x1xf32> to vector<256x256xf32>
    %22 = vector.broadcast %cst_9 : f32 to vector<256x256xf32>
    %23 = arith.select %19, %21, %22 : vector<256x256xi1>, vector<256x256xf32>
    %24 = arith.addf %13, %23 : vector<256x256xf32>
    %25 = vector.extract_strided_slice %0 {offsets = [0, 1], sizes = [256, 1], strides = [1, 1]} : vector<256x16xf32> to vector<256x1xf32>
    %26 = vector.extract_strided_slice %1 {offsets = [1, 0], sizes = [1, 256], strides = [1, 1]} : vector<16x256xf32> to vector<1x256xf32>
    %27 = vector.extract_strided_slice %12 {offsets = [0, 1], sizes = [256, 1], strides = [1, 1]} : vector<256x16xf32> to vector<256x1xf32>
    %28 = vector.broadcast %25 : vector<256x1xf32> to vector<256x256xf32>
    %29 = vector.broadcast %26 : vector<1x256xf32> to vector<256x256xf32>
    %30 = arith.cmpf oeq, %28, %29 : vector<256x256xf32>
    %cst_10 = arith.constant 0.000000e+00 : f32
    %31 = vector.shape_cast %27 : vector<256x1xf32> to vector<256x1xf32>
    %32 = vector.broadcast %31 : vector<256x1xf32> to vector<256x256xf32>
    %33 = vector.broadcast %cst_10 : f32 to vector<256x256xf32>
    %34 = arith.select %30, %32, %33 : vector<256x256xi1>, vector<256x256xf32>
    %35 = arith.addf %24, %34 : vector<256x256xf32>
    %36 = vector.extract_strided_slice %0 {offsets = [0, 2], sizes = [256, 1], strides = [1, 1]} : vector<256x16xf32> to vector<256x1xf32>
    %37 = vector.extract_strided_slice %1 {offsets = [2, 0], sizes = [1, 256], strides = [1, 1]} : vector<16x256xf32> to vector<1x256xf32>
    %38 = vector.extract_strided_slice %12 {offsets = [0, 2], sizes = [256, 1], strides = [1, 1]} : vector<256x16xf32> to vector<256x1xf32>
    %39 = vector.broadcast %36 : vector<256x1xf32> to vector<256x256xf32>
    %40 = vector.broadcast %37 : vector<1x256xf32> to vector<256x256xf32>
    %41 = arith.cmpf oeq, %39, %40 : vector<256x256xf32>
    %cst_11 = arith.constant 0.000000e+00 : f32
    %42 = vector.shape_cast %38 : vector<256x1xf32> to vector<256x1xf32>
    %43 = vector.broadcast %42 : vector<256x1xf32> to vector<256x256xf32>
    %44 = vector.broadcast %cst_11 : f32 to vector<256x256xf32>
    %45 = arith.select %41, %43, %44 : vector<256x256xi1>, vector<256x256xf32>
    %46 = arith.addf %35, %45 : vector<256x256xf32>
    %47 = vector.extract_strided_slice %0 {offsets = [0, 3], sizes = [256, 1], strides = [1, 1]} : vector<256x16xf32> to vector<256x1xf32>
    %48 = vector.extract_strided_slice %1 {offsets = [3, 0], sizes = [1, 256], strides = [1, 1]} : vector<16x256xf32> to vector<1x256xf32>
    %49 = vector.extract_strided_slice %12 {offsets = [0, 3], sizes = [256, 1], strides = [1, 1]} : vector<256x16xf32> to vector<256x1xf32>
    %50 = vector.broadcast %47 : vector<256x1xf32> to vector<256x256xf32>
    %51 = vector.broadcast %48 : vector<1x256xf32> to vector<256x256xf32>
    %52 = arith.cmpf oeq, %50, %51 : vector<256x256xf32>
    %cst_12 = arith.constant 0.000000e+00 : f32
    %53 = vector.shape_cast %49 : vector<256x1xf32> to vector<256x1xf32>
    %54 = vector.broadcast %53 : vector<256x1xf32> to vector<256x256xf32>
    %55 = vector.broadcast %cst_12 : f32 to vector<256x256xf32>
    %56 = arith.select %52, %54, %55 : vector<256x256xi1>, vector<256x256xf32>
    %57 = arith.addf %46, %56 : vector<256x256xf32>
    %58 = vector.extract_strided_slice %0 {offsets = [0, 4], sizes = [256, 1], strides = [1, 1]} : vector<256x16xf32> to vector<256x1xf32>
    %59 = vector.extract_strided_slice %1 {offsets = [4, 0], sizes = [1, 256], strides = [1, 1]} : vector<16x256xf32> to vector<1x256xf32>
    %60 = vector.extract_strided_slice %12 {offsets = [0, 4], sizes = [256, 1], strides = [1, 1]} : vector<256x16xf32> to vector<256x1xf32>
    %61 = vector.broadcast %58 : vector<256x1xf32> to vector<256x256xf32>
    %62 = vector.broadcast %59 : vector<1x256xf32> to vector<256x256xf32>
    %63 = arith.cmpf oeq, %61, %62 : vector<256x256xf32>
    %cst_13 = arith.constant 0.000000e+00 : f32
    %64 = vector.shape_cast %60 : vector<256x1xf32> to vector<256x1xf32>
    %65 = vector.broadcast %64 : vector<256x1xf32> to vector<256x256xf32>
    %66 = vector.broadcast %cst_13 : f32 to vector<256x256xf32>
    %67 = arith.select %63, %65, %66 : vector<256x256xi1>, vector<256x256xf32>
    %68 = arith.addf %57, %67 : vector<256x256xf32>
    %69 = vector.extract_strided_slice %0 {offsets = [0, 5], sizes = [256, 1], strides = [1, 1]} : vector<256x16xf32> to vector<256x1xf32>
    %70 = vector.extract_strided_slice %1 {offsets = [5, 0], sizes = [1, 256], strides = [1, 1]} : vector<16x256xf32> to vector<1x256xf32>
    %71 = vector.extract_strided_slice %12 {offsets = [0, 5], sizes = [256, 1], strides = [1, 1]} : vector<256x16xf32> to vector<256x1xf32>
    %72 = vector.broadcast %69 : vector<256x1xf32> to vector<256x256xf32>
    %73 = vector.broadcast %70 : vector<1x256xf32> to vector<256x256xf32>
    %74 = arith.cmpf oeq, %72, %73 : vector<256x256xf32>
    %cst_14 = arith.constant 0.000000e+00 : f32
    %75 = vector.shape_cast %71 : vector<256x1xf32> to vector<256x1xf32>
    %76 = vector.broadcast %75 : vector<256x1xf32> to vector<256x256xf32>
    %77 = vector.broadcast %cst_14 : f32 to vector<256x256xf32>
    %78 = arith.select %74, %76, %77 : vector<256x256xi1>, vector<256x256xf32>
    %79 = arith.addf %68, %78 : vector<256x256xf32>
    %80 = vector.extract_strided_slice %0 {offsets = [0, 6], sizes = [256, 1], strides = [1, 1]} : vector<256x16xf32> to vector<256x1xf32>
    %81 = vector.extract_strided_slice %1 {offsets = [6, 0], sizes = [1, 256], strides = [1, 1]} : vector<16x256xf32> to vector<1x256xf32>
    %82 = vector.extract_strided_slice %12 {offsets = [0, 6], sizes = [256, 1], strides = [1, 1]} : vector<256x16xf32> to vector<256x1xf32>
    %83 = vector.broadcast %80 : vector<256x1xf32> to vector<256x256xf32>
    %84 = vector.broadcast %81 : vector<1x256xf32> to vector<256x256xf32>
    %85 = arith.cmpf oeq, %83, %84 : vector<256x256xf32>
    %cst_15 = arith.constant 0.000000e+00 : f32
    %86 = vector.shape_cast %82 : vector<256x1xf32> to vector<256x1xf32>
    %87 = vector.broadcast %86 : vector<256x1xf32> to vector<256x256xf32>
    %88 = vector.broadcast %cst_15 : f32 to vector<256x256xf32>
    %89 = arith.select %85, %87, %88 : vector<256x256xi1>, vector<256x256xf32>
    %90 = arith.addf %79, %89 : vector<256x256xf32>
    %91 = vector.extract_strided_slice %0 {offsets = [0, 7], sizes = [256, 1], strides = [1, 1]} : vector<256x16xf32> to vector<256x1xf32>
    %92 = vector.extract_strided_slice %1 {offsets = [7, 0], sizes = [1, 256], strides = [1, 1]} : vector<16x256xf32> to vector<1x256xf32>
    %93 = vector.extract_strided_slice %12 {offsets = [0, 7], sizes = [256, 1], strides = [1, 1]} : vector<256x16xf32> to vector<256x1xf32>
    %94 = vector.broadcast %91 : vector<256x1xf32> to vector<256x256xf32>
    %95 = vector.broadcast %92 : vector<1x256xf32> to vector<256x256xf32>
    %96 = arith.cmpf oeq, %94, %95 : vector<256x256xf32>
    %cst_16 = arith.constant 0.000000e+00 : f32
    %97 = vector.shape_cast %93 : vector<256x1xf32> to vector<256x1xf32>
    %98 = vector.broadcast %97 : vector<256x1xf32> to vector<256x256xf32>
    %99 = vector.broadcast %cst_16 : f32 to vector<256x256xf32>
    %100 = arith.select %96, %98, %99 : vector<256x256xi1>, vector<256x256xf32>
    %101 = arith.addf %90, %100 : vector<256x256xf32>
    %102 = vector.extract_strided_slice %0 {offsets = [0, 8], sizes = [256, 1], strides = [1, 1]} : vector<256x16xf32> to vector<256x1xf32>
    %103 = vector.extract_strided_slice %1 {offsets = [8, 0], sizes = [1, 256], strides = [1, 1]} : vector<16x256xf32> to vector<1x256xf32>
    %104 = vector.extract_strided_slice %12 {offsets = [0, 8], sizes = [256, 1], strides = [1, 1]} : vector<256x16xf32> to vector<256x1xf32>
    %105 = vector.broadcast %102 : vector<256x1xf32> to vector<256x256xf32>
    %106 = vector.broadcast %103 : vector<1x256xf32> to vector<256x256xf32>
    %107 = arith.cmpf oeq, %105, %106 : vector<256x256xf32>
    %cst_17 = arith.constant 0.000000e+00 : f32
    %108 = vector.shape_cast %104 : vector<256x1xf32> to vector<256x1xf32>
    %109 = vector.broadcast %108 : vector<256x1xf32> to vector<256x256xf32>
    %110 = vector.broadcast %cst_17 : f32 to vector<256x256xf32>
    %111 = arith.select %107, %109, %110 : vector<256x256xi1>, vector<256x256xf32>
    %112 = arith.addf %101, %111 : vector<256x256xf32>
    %113 = vector.extract_strided_slice %0 {offsets = [0, 9], sizes = [256, 1], strides = [1, 1]} : vector<256x16xf32> to vector<256x1xf32>
    %114 = vector.extract_strided_slice %1 {offsets = [9, 0], sizes = [1, 256], strides = [1, 1]} : vector<16x256xf32> to vector<1x256xf32>
    %115 = vector.extract_strided_slice %12 {offsets = [0, 9], sizes = [256, 1], strides = [1, 1]} : vector<256x16xf32> to vector<256x1xf32>
    %116 = vector.broadcast %113 : vector<256x1xf32> to vector<256x256xf32>
    %117 = vector.broadcast %114 : vector<1x256xf32> to vector<256x256xf32>
    %118 = arith.cmpf oeq, %116, %117 : vector<256x256xf32>
    %cst_18 = arith.constant 0.000000e+00 : f32
    %119 = vector.shape_cast %115 : vector<256x1xf32> to vector<256x1xf32>
    %120 = vector.broadcast %119 : vector<256x1xf32> to vector<256x256xf32>
    %121 = vector.broadcast %cst_18 : f32 to vector<256x256xf32>
    %122 = arith.select %118, %120, %121 : vector<256x256xi1>, vector<256x256xf32>
    %123 = arith.addf %112, %122 : vector<256x256xf32>
    %124 = vector.extract_strided_slice %0 {offsets = [0, 10], sizes = [256, 1], strides = [1, 1]} : vector<256x16xf32> to vector<256x1xf32>
    %125 = vector.extract_strided_slice %1 {offsets = [10, 0], sizes = [1, 256], strides = [1, 1]} : vector<16x256xf32> to vector<1x256xf32>
    %126 = vector.extract_strided_slice %12 {offsets = [0, 10], sizes = [256, 1], strides = [1, 1]} : vector<256x16xf32> to vector<256x1xf32>
    %127 = vector.broadcast %124 : vector<256x1xf32> to vector<256x256xf32>
    %128 = vector.broadcast %125 : vector<1x256xf32> to vector<256x256xf32>
    %129 = arith.cmpf oeq, %127, %128 : vector<256x256xf32>
    %cst_19 = arith.constant 0.000000e+00 : f32
    %130 = vector.shape_cast %126 : vector<256x1xf32> to vector<256x1xf32>
    %131 = vector.broadcast %130 : vector<256x1xf32> to vector<256x256xf32>
    %132 = vector.broadcast %cst_19 : f32 to vector<256x256xf32>
    %133 = arith.select %129, %131, %132 : vector<256x256xi1>, vector<256x256xf32>
    %134 = arith.addf %123, %133 : vector<256x256xf32>
    %135 = vector.extract_strided_slice %0 {offsets = [0, 11], sizes = [256, 1], strides = [1, 1]} : vector<256x16xf32> to vector<256x1xf32>
    %136 = vector.extract_strided_slice %1 {offsets = [11, 0], sizes = [1, 256], strides = [1, 1]} : vector<16x256xf32> to vector<1x256xf32>
    %137 = vector.extract_strided_slice %12 {offsets = [0, 11], sizes = [256, 1], strides = [1, 1]} : vector<256x16xf32> to vector<256x1xf32>
    %138 = vector.broadcast %135 : vector<256x1xf32> to vector<256x256xf32>
    %139 = vector.broadcast %136 : vector<1x256xf32> to vector<256x256xf32>
    %140 = arith.cmpf oeq, %138, %139 : vector<256x256xf32>
    %cst_20 = arith.constant 0.000000e+00 : f32
    %141 = vector.shape_cast %137 : vector<256x1xf32> to vector<256x1xf32>
    %142 = vector.broadcast %141 : vector<256x1xf32> to vector<256x256xf32>
    %143 = vector.broadcast %cst_20 : f32 to vector<256x256xf32>
    %144 = arith.select %140, %142, %143 : vector<256x256xi1>, vector<256x256xf32>
    %145 = arith.addf %134, %144 : vector<256x256xf32>
    %146 = vector.extract_strided_slice %0 {offsets = [0, 12], sizes = [256, 1], strides = [1, 1]} : vector<256x16xf32> to vector<256x1xf32>
    %147 = vector.extract_strided_slice %1 {offsets = [12, 0], sizes = [1, 256], strides = [1, 1]} : vector<16x256xf32> to vector<1x256xf32>
    %148 = vector.extract_strided_slice %12 {offsets = [0, 12], sizes = [256, 1], strides = [1, 1]} : vector<256x16xf32> to vector<256x1xf32>
    %149 = vector.broadcast %146 : vector<256x1xf32> to vector<256x256xf32>
    %150 = vector.broadcast %147 : vector<1x256xf32> to vector<256x256xf32>
    %151 = arith.cmpf oeq, %149, %150 : vector<256x256xf32>
    %cst_21 = arith.constant 0.000000e+00 : f32
    %152 = vector.shape_cast %148 : vector<256x1xf32> to vector<256x1xf32>
    %153 = vector.broadcast %152 : vector<256x1xf32> to vector<256x256xf32>
    %154 = vector.broadcast %cst_21 : f32 to vector<256x256xf32>
    %155 = arith.select %151, %153, %154 : vector<256x256xi1>, vector<256x256xf32>
    %156 = arith.addf %145, %155 : vector<256x256xf32>
    %157 = vector.extract_strided_slice %0 {offsets = [0, 13], sizes = [256, 1], strides = [1, 1]} : vector<256x16xf32> to vector<256x1xf32>
    %158 = vector.extract_strided_slice %1 {offsets = [13, 0], sizes = [1, 256], strides = [1, 1]} : vector<16x256xf32> to vector<1x256xf32>
    %159 = vector.extract_strided_slice %12 {offsets = [0, 13], sizes = [256, 1], strides = [1, 1]} : vector<256x16xf32> to vector<256x1xf32>
    %160 = vector.broadcast %157 : vector<256x1xf32> to vector<256x256xf32>
    %161 = vector.broadcast %158 : vector<1x256xf32> to vector<256x256xf32>
    %162 = arith.cmpf oeq, %160, %161 : vector<256x256xf32>
    %cst_22 = arith.constant 0.000000e+00 : f32
    %163 = vector.shape_cast %159 : vector<256x1xf32> to vector<256x1xf32>
    %164 = vector.broadcast %163 : vector<256x1xf32> to vector<256x256xf32>
    %165 = vector.broadcast %cst_22 : f32 to vector<256x256xf32>
    %166 = arith.select %162, %164, %165 : vector<256x256xi1>, vector<256x256xf32>
    %167 = arith.addf %156, %166 : vector<256x256xf32>
    %168 = vector.extract_strided_slice %0 {offsets = [0, 14], sizes = [256, 1], strides = [1, 1]} : vector<256x16xf32> to vector<256x1xf32>
    %169 = vector.extract_strided_slice %1 {offsets = [14, 0], sizes = [1, 256], strides = [1, 1]} : vector<16x256xf32> to vector<1x256xf32>
    %170 = vector.extract_strided_slice %12 {offsets = [0, 14], sizes = [256, 1], strides = [1, 1]} : vector<256x16xf32> to vector<256x1xf32>
    %171 = vector.broadcast %168 : vector<256x1xf32> to vector<256x256xf32>
    %172 = vector.broadcast %169 : vector<1x256xf32> to vector<256x256xf32>
    %173 = arith.cmpf oeq, %171, %172 : vector<256x256xf32>
    %cst_23 = arith.constant 0.000000e+00 : f32
    %174 = vector.shape_cast %170 : vector<256x1xf32> to vector<256x1xf32>
    %175 = vector.broadcast %174 : vector<256x1xf32> to vector<256x256xf32>
    %176 = vector.broadcast %cst_23 : f32 to vector<256x256xf32>
    %177 = arith.select %173, %175, %176 : vector<256x256xi1>, vector<256x256xf32>
    %178 = arith.addf %167, %177 : vector<256x256xf32>
    %179 = vector.extract_strided_slice %0 {offsets = [0, 15], sizes = [256, 1], strides = [1, 1]} : vector<256x16xf32> to vector<256x1xf32>
    %180 = vector.extract_strided_slice %1 {offsets = [15, 0], sizes = [1, 256], strides = [1, 1]} : vector<16x256xf32> to vector<1x256xf32>
    %181 = vector.extract_strided_slice %12 {offsets = [0, 15], sizes = [256, 1], strides = [1, 1]} : vector<256x16xf32> to vector<256x1xf32>
    %182 = vector.broadcast %179 : vector<256x1xf32> to vector<256x256xf32>
    %183 = vector.broadcast %180 : vector<1x256xf32> to vector<256x256xf32>
    %184 = arith.cmpf oeq, %182, %183 : vector<256x256xf32>
    %cst_24 = arith.constant 0.000000e+00 : f32
    %185 = vector.shape_cast %181 : vector<256x1xf32> to vector<256x1xf32>
    %186 = vector.broadcast %185 : vector<256x1xf32> to vector<256x256xf32>
    %187 = vector.broadcast %cst_24 : f32 to vector<256x256xf32>
    %188 = arith.select %184, %186, %187 : vector<256x256xi1>, vector<256x256xf32>
    %189 = arith.addf %178, %188 : vector<256x256xf32>
    %190 = vector.broadcast %4 : vector<256x1xf32> to vector<256x256xf32>
    %191 = vector.broadcast %6 : vector<1x256xf32> to vector<256x256xf32>
    %192 = arith.mulf %190, %191 : vector<256x256xf32>
    %193 = arith.mulf %192, %189 : vector<256x256xf32>
    %cst_25 = arith.constant 0.000000e+00 : f32
    %194 = vector.broadcast %cst_25 : f32 to vector<256x256xf32>
    %195 = arith.cmpf ogt, %193, %194 : vector<256x256xf32>
    %cst_26 = arith.constant 1.000000e+00 : f32
    %196 = vector.broadcast %cst_26 : f32 to vector<256x256xf32>
    %197 = arith.addf %193, %196 : vector<256x256xf32>
    %198 = math.log %197 : vector<256x256xf32>
    %cst_27 = arith.constant 0.000000e+00 : f32
    %199 = vector.broadcast %cst_27 : f32 to vector<256x256xf32>
    %200 = arith.select %195, %198, %199 : vector<256x256xi1>, vector<256x256xf32>
    %201 = arith.truncf %200 : vector<256x256xf32> to vector<256x256xbf16>
    %c0_28 = arith.constant 0 : index
    %c0_29 = arith.constant 0 : index
    %202 = vector.load %arg5[%c0_28, %c0_29] : memref<256x256xbf16, #tpu.memory_space<vmem>>, vector<256x256xbf16>
    tpu.vector_store %arg5[%c0_28, %c0_29], %201 {strides = array<i32>} : memref<256x256xbf16, #tpu.memory_space<vmem>>, vector<256x256xbf16>,
    %203 = vector.shape_cast %193 : vector<256x256xf32> to vector<1x256x256xf32>
    %cst_30 = arith.constant dense<0xFF800000> : vector<1xf32>
    %204 = vector.multi_reduction <maximumf>, %203, %cst_30 [1, 2] : vector<1x256x256xf32> to vector<1xf32>
    %205 = vector.shape_cast %204 : vector<1xf32> to vector<1x1x1xf32>
    %206 = vector.extract %205[0, 0, 0] : f32 from vector<1x1x1xf32>
    %207 = vector.broadcast %206 : f32 to vector<1x1xf32>
    %208 = vector.shape_cast %207 : vector<1x1xf32> to vector<1x1xf32>
    %209 = vector.broadcast %208 : vector<1x1xf32> to vector<8x128xf32>
    %c0_31 = arith.constant 0 : index
    %c0_32 = arith.constant 0 : index
    %210 = vector.load %arg6[%c0_31, %c0_32] : memref<8x128xf32, #tpu.memory_space<vmem>>, vector<8x128xf32>
    tpu.vector_store %arg6[%c0_31, %c0_32], %209 {strides = array<i32>} : memref<8x128xf32, #tpu.memory_space<vmem>>, vector<8x128xf32>,
    return
  }
  func.func @transform_0(%arg0: i32, %arg1: i32) -> (i32, i32) {
    %c0_i32 = arith.constant 0 : i32
    %c0_i32_0 = arith.constant 0 : i32
    return %arg0, %c0_i32 : i32, i32
  }
  func.func @transform_1(%arg0: i32, %arg1: i32) -> (i32, i32) {
    %c0_i32 = arith.constant 0 : i32
    %c0_i32_0 = arith.constant 0 : i32
    return %c0_i32, %arg1 : i32, i32
  }
  func.func @transform_2(%arg0: i32, %arg1: i32) -> (i32, i32) {
    %c0_i32 = arith.constant 0 : i32
    %c0_i32_0 = arith.constant 0 : i32
    %c0_i32_1 = arith.constant 0 : i32
    return %c0_i32, %c0_i32_0 : i32, i32
  }
  func.func @transform_3(%arg0: i32, %arg1: i32) -> (i32, i32) {
    %c0_i32 = arith.constant 0 : i32
    return %arg0, %arg1 : i32, i32
  }
  func.func @transform_4(%arg0: i32, %arg1: i32) -> (i32, i32) {
    %c0_i32 = arith.constant 0 : i32
    return %arg0, %arg1 : i32, i32
  }
}

module attributes {stable_mosaic.version = 11 : i64} {
  func.func @_matmul_nt_scale_kernel(%arg0: i32, %arg1: i32, %arg2: i32, %arg3: memref<1x1xf32, #tpu.memory_space<smem>>, %arg4: memref<256x256xbf16, #tpu.memory_space<vmem>>, %arg5: memref<256x256xbf16, #tpu.memory_space<vmem>>, %arg6: memref<256x256xf32, #tpu.memory_space<vmem>>) attributes {dimension_semantics = [#tpu.dimension_semantics<parallel>, #tpu.dimension_semantics<parallel>, #tpu.dimension_semantics<arbitrary>], iteration_bounds = array<i64: 1, 1, 1>, scalar_prefetch = 0 : i64, scratch_operands = 0 : i64, tpu.core_type = #tpu.core_type<tc>, window_params = [{transform_indices = @transform_0, window_bounds = array<i64: 1, 1>}, {transform_indices = @transform_1, window_bounds = array<i64: 256, 256>}, {transform_indices = @transform_2, window_bounds = array<i64: 256, 256>}, {transform_indices = @transform_3, window_bounds = array<i64: 256, 256>}]} {
    %c0_i32 = arith.constant 0 : i32
    %0 = arith.cmpi eq, %arg2, %c0_i32 : i32
    %1 = arith.extui %0 : i1 to i32
    %c0_i32_0 = arith.constant 0 : i32
    %2 = arith.cmpi ne, %1, %c0_i32_0 : i32
    scf.if %2 {
      %cst_10 = arith.constant 0.000000e+00 : f32
      %12 = vector.broadcast %cst_10 : f32 to vector<256x256xf32>
      %c0_11 = arith.constant 0 : index
      %c0_12 = arith.constant 0 : index
      %13 = vector.load %arg6[%c0_11, %c0_12] : memref<256x256xf32, #tpu.memory_space<vmem>>, vector<256x256xf32>
      tpu.vector_store %arg6[%c0_11, %c0_12], %12 {strides = array<i32>} : memref<256x256xf32, #tpu.memory_space<vmem>>, vector<256x256xf32>,
    } else {
    }
    %c0 = arith.constant 0 : index
    %c0_1 = arith.constant 0 : index
    %3 = vector.load %arg6[%c0, %c0_1] : memref<256x256xf32, #tpu.memory_space<vmem>>, vector<256x256xf32>
    %c0_2 = arith.constant 0 : index
    %c0_3 = arith.constant 0 : index
    %4 = vector.load %arg4[%c0_2, %c0_3] : memref<256x256xbf16, #tpu.memory_space<vmem>>, vector<256x256xbf16>
    %c0_4 = arith.constant 0 : index
    %c0_5 = arith.constant 0 : index
    %5 = vector.load %arg5[%c0_4, %c0_5] : memref<256x256xbf16, #tpu.memory_space<vmem>>, vector<256x256xbf16>
    %cst = arith.constant dense<0.000000e+00> : vector<256x256xf32>
    %6 = tpu.matmul %4, %5, %cst {dimension_numbers = #tpu.dot_dimension_numbers<[1], [1], [0], [0], [0, 0, 1, 0], [], []>} : vector<256x256xbf16>, vector<256x256xbf16>, vector<256x256xf32> -> vector<256x256xf32>
    %7 = arith.addf %3, %6 : vector<256x256xf32>
    %c0_6 = arith.constant 0 : index
    %c0_7 = arith.constant 0 : index
    %8 = vector.load %arg6[%c0_6, %c0_7] : memref<256x256xf32, #tpu.memory_space<vmem>>, vector<256x256xf32>
    tpu.vector_store %arg6[%c0_6, %c0_7], %7 {strides = array<i32>} : memref<256x256xf32, #tpu.memory_space<vmem>>, vector<256x256xf32>,
    %c0_i32_8 = arith.constant 0 : i32
    %9 = arith.cmpi eq, %arg2, %c0_i32_8 : i32
    %10 = arith.extui %9 : i1 to i32
    %c0_i32_9 = arith.constant 0 : i32
    %11 = arith.cmpi ne, %10, %c0_i32_9 : i32
    scf.if %11 {
      %c0_10 = arith.constant 0 : index
      %c0_11 = arith.constant 0 : index
      %12 = vector.load %arg6[%c0_10, %c0_11] : memref<256x256xf32, #tpu.memory_space<vmem>>, vector<256x256xf32>
      %c0_12 = arith.constant 0 : index
      %c0_13 = arith.constant 0 : index
      %13 = memref.load %arg3[%c0_12, %c0_13] : memref<1x1xf32, #tpu.memory_space<smem>>
      %14 = vector.broadcast %13 : f32 to vector<256x256xf32>
      %15 = arith.mulf %12, %14 : vector<256x256xf32>
      %c0_14 = arith.constant 0 : index
      %c0_15 = arith.constant 0 : index
      %16 = vector.load %arg6[%c0_14, %c0_15] : memref<256x256xf32, #tpu.memory_space<vmem>>, vector<256x256xf32>
      tpu.vector_store %arg6[%c0_14, %c0_15], %15 {strides = array<i32>} : memref<256x256xf32, #tpu.memory_space<vmem>>, vector<256x256xf32>,
    } else {
    }
    return
  }
  func.func @transform_0(%arg0: i32, %arg1: i32, %arg2: i32) -> (i32, i32) {
    %c0_i32 = arith.constant 0 : i32
    %c0_i32_0 = arith.constant 0 : i32
    %c0_i32_1 = arith.constant 0 : i32
    return %c0_i32, %c0_i32_0 : i32, i32
  }
  func.func @transform_1(%arg0: i32, %arg1: i32, %arg2: i32) -> (i32, i32) {
    %c0_i32 = arith.constant 0 : i32
    return %arg0, %arg2 : i32, i32
  }
  func.func @transform_2(%arg0: i32, %arg1: i32, %arg2: i32) -> (i32, i32) {
    %c0_i32 = arith.constant 0 : i32
    return %arg1, %arg2 : i32, i32
  }
  func.func @transform_3(%arg0: i32, %arg1: i32, %arg2: i32) -> (i32, i32) {
    %c0_i32 = arith.constant 0 : i32
    return %arg0, %arg1 : i32, i32
  }
}

</mosaic_0001>

<llo_original>
// kernel: _leroy_forward.3
$region0: #{_leroy_forward.3}
  #allocation0 [shape = 'u32[]', space=smem, size = 0x4, offset = 0x4, fixed_abs, tag = 'smem constant byte address 0x4 - core index']
  #allocation1 [shape = 'u32[144,128]{1,0:T(1,128)}', space=vmem, size = 0x12000, scoped, tag = 'internal scratch']
  #allocation2 [shape = 'f32[1,1]{1,0:T(1,128)S(6)}', space=smem, size = 0x200, scoped, tag = 'scoped memory for _leroy_forward.3']
  %s0 = inlined_call_operand.<no memory space> [shape: f32[1,1], index: 0, kind: input, shape index: {}]
  %s1 = inlined_call_operand.vmem [shape: bf16[256,256], index: 1, kind: input, shape index: {}, may-alias: {1,2}]
  %s2 = inlined_call_operand.vmem [shape: bf16[256,256], index: 2, kind: input, shape index: {}, may-alias: {1,2}]
  %s3 = inlined_call_operand.hbm [shape: f32[256,256], index: 3, kind: output, shape index: {}]
  %s4 = sld [smem:[#allocation0]]
  $region30: #{_leroy_forward.3} parent=0
    _
  %s6 = ssub.s32 1, %s4
  %s7 = scalar_select 0, %s6, %s4
  %8 = sst [smem:[#allocation2]] %s0
  $region1: #{_leroy_forward.3} parent=0
    #allocation3 [shape = 'u8[262144]{0}', space=vmem, size = 0x40000, scoped, tag = 'output window, operand 0, single buffered']
    #allocation4 [shape = 's32[1]{0}', space=sflag, size = 0x4, scoped, tag = 'scoped memory for _leroy_forward.3']
    %9 = vsyncpa [#allocation4], 0
    // Predicated region
    $region2: #{_leroy_forward.3} parent=1 // pred_check
      _
    $region3: #{_leroy_forward.3} parent=1 // pred_check_branch
      %11 = sbr.rel (0) target = $region5
    $region4: #{_leroy_forward.3} parent=1 // pred_region
      _
    $region5: #{_leroy_forward.3} parent=1 // pred_fallthru
      _
    // Predicated region
    $region6: #{_leroy_forward.3} parent=1 // pred_check
      _
    $region7: #{_leroy_forward.3} parent=1 // pred_check_branch
      %13 = sbr.rel (0) target = $region9
    $region8: #{_leroy_forward.3} parent=1 // pred_region
      _
    $region9: #{_leroy_forward.3} parent=1 // pred_fallthru
      _
    // Predicated region
    $region10: #{_leroy_forward.3} parent=1 // pred_check
      _
    $region11: #{_leroy_forward.3} parent=1 // pred_check_branch
      %15 = sbr.rel (0) target = $region13
    $region12: #{_leroy_forward.3} parent=1 // pred_region
      _
    $region13: #{_leroy_forward.3} parent=1 // pred_fallthru
      _
    %p16 = scmp.eq.s32.totalorder 0, 0
    // Predicated region
    $region14: #{_leroy_forward.3} parent=1 // pred_check
      %p17 = pneg %p16
    $region15: #{_leroy_forward.3} parent=1 // pred_check_branch
      %19 = sbr.rel (%p17) target = $region17
    $region16: #{_leroy_forward.3} parent=1 // pred_region
      %20 = vst [vmem:[#allocation3] sm:$0xff] 0.0
      %21 = vst [vmem:[#allocation3 + $0x8] sm:$0xff] 0.0
      %22 = vst [vmem:[#allocation3 + $0x10] sm:$0xff] 0.0
      %23 = vst [vmem:[#allocation3 + $0x18] sm:$0xff] 0.0
      %24 = vst [vmem:[#allocation3 + $0x20] sm:$0xff] 0.0
      %25 = vst [vmem:[#allocation3 + $0x28] sm:$0xff] 0.0
      %26 = vst [vmem:[#allocation3 + $0x30] sm:$0xff] 0.0
      %27 = vst [vmem:[#allocation3 + $0x38] sm:$0xff] 0.0
      %28 = vst [vmem:[#allocation3 + $0x40] sm:$0xff] 0.0
      %29 = vst [vmem:[#allocation3 + $0x48] sm:$0xff] 0.0
      %30 = vst [vmem:[#allocation3 + $0x50] sm:$0xff] 0.0
      %31 = vst [vmem:[#allocation3 + $0x58] sm:$0xff] 0.0
      %32 = vst [vmem:[#allocation3 + $0x60] sm:$0xff] 0.0
      %33 = vst [vmem:[#allocation3 + $0x68] sm:$0xff] 0.0
      %34 = vst [vmem:[#allocation3 + $0x70] sm:$0xff] 0.0
      %35 = vst [vmem:[#allocation3 + $0x78] sm:$0xff] 0.0
      %36 = vst [vmem:[#allocation3 + $0x80] sm:$0xff] 0.0
      %37 = vst [vmem:[#allocation3 + $0x88] sm:$0xff] 0.0
      %38 = vst [vmem:[#allocation3 + $0x90] sm:$0xff] 0.0
      %39 = vst [vmem:[#allocation3 + $0x98] sm:$0xff] 0.0
      %40 = vst [vmem:[#allocation3 + $0xa0] sm:$0xff] 0.0
      %41 = vst [vmem:[#allocation3 + $0xa8] sm:$0xff] 0.0
      %42 = vst [vmem:[#allocation3 + $0xb0] sm:$0xff] 0.0
      %43 = vst [vmem:[#allocation3 + $0xb8] sm:$0xff] 0.0
      %44 = vst [vmem:[#allocation3 + $0xc0] sm:$0xff] 0.0
      %45 = vst [vmem:[#allocation3 + $0xc8] sm:$0xff] 0.0
      %46 = vst [vmem:[#allocation3 + $0xd0] sm:$0xff] 0.0
      %47 = vst [vmem:[#allocation3 + $0xd8] sm:$0xff] 0.0
      %48 = vst [vmem:[#allocation3 + $0xe0] sm:$0xff] 0.0
      %49 = vst [vmem:[#allocation3 + $0xe8] sm:$0xff] 0.0
      %50 = vst [vmem:[#allocation3 + $0xf0] sm:$0xff] 0.0
      %51 = vst [vmem:[#allocation3 + $0xf8] sm:$0xff] 0.0
      %52 = vst [vmem:[#allocation3 + $0x100] sm:$0xff] 0.0
      %53 = vst [vmem:[#allocation3 + $0x108] sm:$0xff] 0.0
      %54 = vst [vmem:[#allocation3 + $0x110] sm:$0xff] 0.0
      %55 = vst [vmem:[#allocation3 + $0x118] sm:$0xff] 0.0
      %56 = vst [vmem:[#allocation3 + $0x120] sm:$0xff] 0.0
      %57 = vst [vmem:[#allocation3 + $0x128] sm:$0xff] 0.0
      %58 = vst [vmem:[#allocation3 + $0x130] sm:$0xff] 0.0
      %59 = vst [vmem:[#allocation3 + $0x138] sm:$0xff] 0.0
      %60 = vst [vmem:[#allocation3 + $0x140] sm:$0xff] 0.0
      %61 = vst [vmem:[#allocation3 + $0x148] sm:$0xff] 0.0
      %62 = vst [vmem:[#allocation3 + $0x150] sm:$0xff] 0.0
      %63 = vst [vmem:[#allocation3 + $0x158] sm:$0xff] 0.0
      %64 = vst [vmem:[#allocation3 + $0x160] sm:$0xff] 0.0
      %65 = vst [vmem:[#allocation3 + $0x168] sm:$0xff] 0.0
      %66 = vst [vmem:[#allocation3 + $0x170] sm:$0xff] 0.0
      %67 = vst [vmem:[#allocation3 + $0x178] sm:$0xff] 0.0
      %68 = vst [vmem:[#allocation3 + $0x180] sm:$0xff] 0.0
      %69 = vst [vmem:[#allocation3 + $0x188] sm:$0xff] 0.0
      %70 = vst [vmem:[#allocation3 + $0x190] sm:$0xff] 0.0
      %71 = vst [vmem:[#allocation3 + $0x198] sm:$0xff] 0.0
      %72 = vst [vmem:[#allocation3 + $0x1a0] sm:$0xff] 0.0
      %73 = vst [vmem:[#allocation3 + $0x1a8] sm:$0xff] 0.0
      %74 = vst [vmem:[#allocation3 + $0x1b0] sm:$0xff] 0.0
      %75 = vst [vmem:[#allocation3 + $0x1b8] sm:$0xff] 0.0
      %76 = vst [vmem:[#allocation3 + $0x1c0] sm:$0xff] 0.0
      %77 = vst [vmem:[#allocation3 + $0x1c8] sm:$0xff] 0.0
      %78 = vst [vmem:[#allocation3 + $0x1d0] sm:$0xff] 0.0
      %79 = vst [vmem:[#allocation3 + $0x1d8] sm:$0xff] 0.0
      %80 = vst [vmem:[#allocation3 + $0x1e0] sm:$0xff] 0.0
      %81 = vst [vmem:[#allocation3 + $0x1e8] sm:$0xff] 0.0
      %82 = vst [vmem:[#allocation3 + $0x1f0] sm:$0xff] 0.0
      %83 = vst [vmem:[#allocation3 + $0x1f8] sm:$0xff] 0.0
    $region17: #{_leroy_forward.3} parent=1 // pred_fallthru
      _
    %v84 = vld [vmem:[#allocation3] sm:$0xff]
    %v85 = vld [vmem:[#allocation3 + $0x8] sm:$0xff]
    %v86 = vld [vmem:[#allocation3 + $0x10] sm:$0xff]
    %v87 = vld [vmem:[#allocation3 + $0x18] sm:$0xff]
    %v88 = vld [vmem:[#allocation3 + $0x20] sm:$0xff]
    %v89 = vld [vmem:[#allocation3 + $0x28] sm:$0xff]
    %v90 = vld [vmem:[#allocation3 + $0x30] sm:$0xff]
    %v91 = vld [vmem:[#allocation3 + $0x38] sm:$0xff]
    %v92 = vld [vmem:[#allocation3 + $0x40] sm:$0xff]
    %v93 = vld [vmem:[#allocation3 + $0x48] sm:$0xff]
    %v94 = vld [vmem:[#allocation3 + $0x50] sm:$0xff]
    %v95 = vld [vmem:[#allocation3 + $0x58] sm:$0xff]
    %v96 = vld [vmem:[#allocation3 + $0x60] sm:$0xff]
    %v97 = vld [vmem:[#allocation3 + $0x68] sm:$0xff]
    %v98 = vld [vmem:[#allocation3 + $0x70] sm:$0xff]
    %v99 = vld [vmem:[#allocation3 + $0x78] sm:$0xff]
    %v100 = vld [vmem:[#allocation3 + $0x80] sm:$0xff]
    %v101 = vld [vmem:[#allocation3 + $0x88] sm:$0xff]
    %v102 = vld [vmem:[#allocation3 + $0x90] sm:$0xff]
    %v103 = vld [vmem:[#allocation3 + $0x98] sm:$0xff]
    %v104 = vld [vmem:[#allocation3 + $0xa0] sm:$0xff]
    %v105 = vld [vmem:[#allocation3 + $0xa8] sm:$0xff]
    %v106 = vld [vmem:[#allocation3 + $0xb0] sm:$0xff]
    %v107 = vld [vmem:[#allocation3 + $0xb8] sm:$0xff]
    %v108 = vld [vmem:[#allocation3 + $0xc0] sm:$0xff]
    %v109 = vld [vmem:[#allocation3 + $0xc8] sm:$0xff]
    %v110 = vld [vmem:[#allocation3 + $0xd0] sm:$0xff]
    %v111 = vld [vmem:[#allocation3 + $0xd8] sm:$0xff]
    %v112 = vld [vmem:[#allocation3 + $0xe0] sm:$0xff]
    %v113 = vld [vmem:[#allocation3 + $0xe8] sm:$0xff]
    %v114 = vld [vmem:[#allocation3 + $0xf0] sm:$0xff]
    %v115 = vld [vmem:[#allocation3 + $0xf8] sm:$0xff]
    %v116 = vld [vmem:[#allocation3 + $0x100] sm:$0xff]
    %v117 = vld [vmem:[#allocation3 + $0x108] sm:$0xff]
    %v118 = vld [vmem:[#allocation3 + $0x110] sm:$0xff]
    %v119 = vld [vmem:[#allocation3 + $0x118] sm:$0xff]
    %v120 = vld [vmem:[#allocation3 + $0x120] sm:$0xff]
    %v121 = vld [vmem:[#allocation3 + $0x128] sm:$0xff]
    %v122 = vld [vmem:[#allocation3 + $0x130] sm:$0xff]
    %v123 = vld [vmem:[#allocation3 + $0x138] sm:$0xff]
    %v124 = vld [vmem:[#allocation3 + $0x140] sm:$0xff]
    %v125 = vld [vmem:[#allocation3 + $0x148] sm:$0xff]
    %v126 = vld [vmem:[#allocation3 + $0x150] sm:$0xff]
    %v127 = vld [vmem:[#allocation3 + $0x158] sm:$0xff]
    %v128 = vld [vmem:[#allocation3 + $0x160] sm:$0xff]
    %v129 = vld [vmem:[#allocation3 + $0x168] sm:$0xff]
    %v130 = vld [vmem:[#allocation3 + $0x170] sm:$0xff]
    %v131 = vld [vmem:[#allocation3 + $0x178] sm:$0xff]
    %v132 = vld [vmem:[#allocation3 + $0x180] sm:$0xff]
    %v133 = vld [vmem:[#allocation3 + $0x188] sm:$0xff]
    %v134 = vld [vmem:[#allocation3 + $0x190] sm:$0xff]
    %v135 = vld [vmem:[#allocation3 + $0x198] sm:$0xff]
    %v136 = vld [vmem:[#allocation3 + $0x1a0] sm:$0xff]
    %v137 = vld [vmem:[#allocation3 + $0x1a8] sm:$0xff]
    %v138 = vld [vmem:[#allocation3 + $0x1b0] sm:$0xff]
    %v139 = vld [vmem:[#allocation3 + $0x1b8] sm:$0xff]
    %v140 = vld [vmem:[#allocation3 + $0x1c0] sm:$0xff]
    %v141 = vld [vmem:[#allocation3 + $0x1c8] sm:$0xff]
    %v142 = vld [vmem:[#allocation3 + $0x1d0] sm:$0xff]
    %v143 = vld [vmem:[#allocation3 + $0x1d8] sm:$0xff]
    %v144 = vld [vmem:[#allocation3 + $0x1e0] sm:$0xff]
    %v145 = vld [vmem:[#allocation3 + $0x1e8] sm:$0xff]
    %v146 = vld [vmem:[#allocation3 + $0x1f0] sm:$0xff]
    %v147 = vld [vmem:[#allocation3 + $0x1f8] sm:$0xff]
    %v148 = vld [vmem:[%s1] sm:$0xff]
    %v149 = vld [vmem:[%s1 + $0x8] sm:$0xff]
    %v150 = vld [vmem:[%s1 + $0x10] sm:$0xff]
    %v151 = vld [vmem:[%s1 + $0x18] sm:$0xff]
    %v152 = vld [vmem:[%s1 + $0x20] sm:$0xff]
    %v153 = vld [vmem:[%s1 + $0x28] sm:$0xff]
    %v154 = vld [vmem:[%s1 + $0x30] sm:$0xff]
    %v155 = vld [vmem:[%s1 + $0x38] sm:$0xff]
    %v156 = vld [vmem:[%s1 + $0x40] sm:$0xff]
    %v157 = vld [vmem:[%s1 + $0x48] sm:$0xff]
    %v158 = vld [vmem:[%s1 + $0x50] sm:$0xff]
    %v159 = vld [vmem:[%s1 + $0x58] sm:$0xff]
    %v160 = vld [vmem:[%s1 + $0x60] sm:$0xff]
    %v161 = vld [vmem:[%s1 + $0x68] sm:$0xff]
    %v162 = vld [vmem:[%s1 + $0x70] sm:$0xff]
    %v163 = vld [vmem:[%s1 + $0x78] sm:$0xff]
    %v164 = vld [vmem:[%s1 + $0x80] sm:$0xff]
    %v165 = vld [vmem:[%s1 + $0x88] sm:$0xff]
    %v166 = vld [vmem:[%s1 + $0x90] sm:$0xff]
    %v167 = vld [vmem:[%s1 + $0x98] sm:$0xff]
    %v168 = vld [vmem:[%s1 + $0xa0] sm:$0xff]
    %v169 = vld [vmem:[%s1 + $0xa8] sm:$0xff]
    %v170 = vld [vmem:[%s1 + $0xb0] sm:$0xff]
    %v171 = vld [vmem:[%s1 + $0xb8] sm:$0xff]
    %v172 = vld [vmem:[%s1 + $0xc0] sm:$0xff]
    %v173 = vld [vmem:[%s1 + $0xc8] sm:$0xff]
    %v174 = vld [vmem:[%s1 + $0xd0] sm:$0xff]
    %v175 = vld [vmem:[%s1 + $0xd8] sm:$0xff]
    %v176 = vld [vmem:[%s1 + $0xe0] sm:$0xff]
    %v177 = vld [vmem:[%s1 + $0xe8] sm:$0xff]
    %v178 = vld [vmem:[%s1 + $0xf0] sm:$0xff]
    %v179 = vld [vmem:[%s1 + $0xf8] sm:$0xff]
    %v180 = vld [vmem:[%s2] sm:$0xff]
    %v181 = vld [vmem:[%s2 + $0x8] sm:$0xff]
    %v182 = vld [vmem:[%s2 + $0x10] sm:$0xff]
    %v183 = vld [vmem:[%s2 + $0x18] sm:$0xff]
    %v184 = vld [vmem:[%s2 + $0x20] sm:$0xff]
    %v185 = vld [vmem:[%s2 + $0x28] sm:$0xff]
    %v186 = vld [vmem:[%s2 + $0x30] sm:$0xff]
    %v187 = vld [vmem:[%s2 + $0x38] sm:$0xff]
    %v188 = vld [vmem:[%s2 + $0x40] sm:$0xff]
    %v189 = vld [vmem:[%s2 + $0x48] sm:$0xff]
    %v190 = vld [vmem:[%s2 + $0x50] sm:$0xff]
    %v191 = vld [vmem:[%s2 + $0x58] sm:$0xff]
    %v192 = vld [vmem:[%s2 + $0x60] sm:$0xff]
    %v193 = vld [vmem:[%s2 + $0x68] sm:$0xff]
    %v194 = vld [vmem:[%s2 + $0x70] sm:$0xff]
    %v195 = vld [vmem:[%s2 + $0x78] sm:$0xff]
    %v196 = vld [vmem:[%s2 + $0x80] sm:$0xff]
    %v197 = vld [vmem:[%s2 + $0x88] sm:$0xff]
    %v198 = vld [vmem:[%s2 + $0x90] sm:$0xff]
    %v199 = vld [vmem:[%s2 + $0x98] sm:$0xff]
    %v200 = vld [vmem:[%s2 + $0xa0] sm:$0xff]
    %v201 = vld [vmem:[%s2 + $0xa8] sm:$0xff]
    %v202 = vld [vmem:[%s2 + $0xb0] sm:$0xff]
    %v203 = vld [vmem:[%s2 + $0xb8] sm:$0xff]
    %v204 = vld [vmem:[%s2 + $0xc0] sm:$0xff]
    %v205 = vld [vmem:[%s2 + $0xc8] sm:$0xff]
    %v206 = vld [vmem:[%s2 + $0xd0] sm:$0xff]
    %v207 = vld [vmem:[%s2 + $0xd8] sm:$0xff]
    %v208 = vld [vmem:[%s2 + $0xe0] sm:$0xff]
    %v209 = vld [vmem:[%s2 + $0xe8] sm:$0xff]
    %v210 = vld [vmem:[%s2 + $0xf0] sm:$0xff]
    %v211 = vld [vmem:[%s2 + $0xf8] sm:$0xff]
    %v244 = vunpack.c.l.b16 %v148
    %v245 = vunpack.c.h.b16 %v148
    %v246 = vunpack.c.l.b16 %v149
    %v247 = vunpack.c.h.b16 %v149
    %v248 = vunpack.c.l.b16 %v150
    %v249 = vunpack.c.h.b16 %v150
    %v250 = vunpack.c.l.b16 %v151
    %v251 = vunpack.c.h.b16 %v151
    %v252 = vunpack.c.l.b16 %v152
    %v253 = vunpack.c.h.b16 %v152
    %v254 = vunpack.c.l.b16 %v153
    %v255 = vunpack.c.h.b16 %v153
    %v256 = vunpack.c.l.b16 %v154
    %v257 = vunpack.c.h.b16 %v154
    %v258 = vunpack.c.l.b16 %v155
    %v259 = vunpack.c.h.b16 %v155
    %v260 = vunpack.c.l.b16 %v156
    %v261 = vunpack.c.h.b16 %v156
    %v262 = vunpack.c.l.b16 %v157
    %v263 = vunpack.c.h.b16 %v157
    %v264 = vunpack.c.l.b16 %v158
    %v265 = vunpack.c.h.b16 %v158
    %v266 = vunpack.c.l.b16 %v159
    %v267 = vunpack.c.h.b16 %v159
    %v268 = vunpack.c.l.b16 %v160
    %v269 = vunpack.c.h.b16 %v160
    %v270 = vunpack.c.l.b16 %v161
    %v271 = vunpack.c.h.b16 %v161
    %v272 = vunpack.c.l.b16 %v162
    %v273 = vunpack.c.h.b16 %v162
    %v274 = vunpack.c.l.b16 %v163
    %v275 = vunpack.c.h.b16 %v163
    %v276 = vunpack.c.l.b16 %v164
    %v277 = vunpack.c.h.b16 %v164
    %v278 = vunpack.c.l.b16 %v165
    %v279 = vunpack.c.h.b16 %v165
    %v280 = vunpack.c.l.b16 %v166
    %v281 = vunpack.c.h.b16 %v166
    %v282 = vunpack.c.l.b16 %v167
    %v283 = vunpack.c.h.b16 %v167
    %v284 = vunpack.c.l.b16 %v168
    %v285 = vunpack.c.h.b16 %v168
    %v286 = vunpack.c.l.b16 %v169
    %v287 = vunpack.c.h.b16 %v169
    %v288 = vunpack.c.l.b16 %v170
    %v289 = vunpack.c.h.b16 %v170
    %v290 = vunpack.c.l.b16 %v171
    %v291 = vunpack.c.h.b16 %v171
    %v292 = vunpack.c.l.b16 %v172
    %v293 = vunpack.c.h.b16 %v172
    %v294 = vunpack.c.l.b16 %v173
    %v295 = vunpack.c.h.b16 %v173
    %v296 = vunpack.c.l.b16 %v174
    %v297 = vunpack.c.h.b16 %v174
    %v298 = vunpack.c.l.b16 %v175
    %v299 = vunpack.c.h.b16 %v175
    %v300 = vunpack.c.l.b16 %v176
    %v301 = vunpack.c.h.b16 %v176
    %v302 = vunpack.c.l.b16 %v177
    %v303 = vunpack.c.h.b16 %v177
    %v304 = vunpack.c.l.b16 %v178
    %v305 = vunpack.c.h.b16 %v178
    %v306 = vunpack.c.l.b16 %v179
    %v307 = vunpack.c.h.b16 %v179
    %v308 = vpack.c.b16 %v246, %v244
    %v309 = vpack.c.b16 %v247, %v245
    %v310 = vpack.c.b16 %v250, %v248
    %v311 = vpack.c.b16 %v251, %v249
    %v312 = vpack.c.b16 %v254, %v252
    %v313 = vpack.c.b16 %v255, %v253
    %v314 = vpack.c.b16 %v258, %v256
    %v315 = vpack.c.b16 %v259, %v257
    %v316 = vpack.c.b16 %v262, %v260
    %v317 = vpack.c.b16 %v263, %v261
    %v318 = vpack.c.b16 %v266, %v264
    %v319 = vpack.c.b16 %v267, %v265
    %v320 = vpack.c.b16 %v270, %v268
    %v321 = vpack.c.b16 %v271, %v269
    %v322 = vpack.c.b16 %v274, %v272
    %v323 = vpack.c.b16 %v275, %v273
    %v324 = vpack.c.b16 %v278, %v276
    %v325 = vpack.c.b16 %v279, %v277
    %v326 = vpack.c.b16 %v282, %v280
    %v327 = vpack.c.b16 %v283, %v281
    %v328 = vpack.c.b16 %v286, %v284
    %v329 = vpack.c.b16 %v287, %v285
    %v330 = vpack.c.b16 %v290, %v288
    %v331 = vpack.c.b16 %v291, %v289
    %v332 = vpack.c.b16 %v294, %v292
    %v333 = vpack.c.b16 %v295, %v293
    %v334 = vpack.c.b16 %v298, %v296
    %v335 = vpack.c.b16 %v299, %v297
    %v336 = vpack.c.b16 %v302, %v300
    %v337 = vpack.c.b16 %v303, %v301
    %v338 = vpack.c.b16 %v306, %v304
    %v339 = vpack.c.b16 %v307, %v305
    %v404 = vunpack.c.l.b16 %v180
    %v405 = vunpack.c.h.b16 %v180
    %v406 = vunpack.c.l.b16 %v181
    %v407 = vunpack.c.h.b16 %v181
    %v408 = vunpack.c.l.b16 %v182
    %v409 = vunpack.c.h.b16 %v182
    %v410 = vunpack.c.l.b16 %v183
    %v411 = vunpack.c.h.b16 %v183
    %v412 = vunpack.c.l.b16 %v184
    %v413 = vunpack.c.h.b16 %v184
    %v414 = vunpack.c.l.b16 %v185
    %v415 = vunpack.c.h.b16 %v185
    %v416 = vunpack.c.l.b16 %v186
    %v417 = vunpack.c.h.b16 %v186
    %v418 = vunpack.c.l.b16 %v187
    %v419 = vunpack.c.h.b16 %v187
    %v420 = vunpack.c.l.b16 %v188
    %v421 = vunpack.c.h.b16 %v188
    %v422 = vunpack.c.l.b16 %v189
    %v423 = vunpack.c.h.b16 %v189
    %v424 = vunpack.c.l.b16 %v190
    %v425 = vunpack.c.h.b16 %v190
    %v426 = vunpack.c.l.b16 %v191
    %v427 = vunpack.c.h.b16 %v191
    %v428 = vunpack.c.l.b16 %v192
    %v429 = vunpack.c.h.b16 %v192
    %v430 = vunpack.c.l.b16 %v193
    %v431 = vunpack.c.h.b16 %v193
    %v432 = vunpack.c.l.b16 %v194
    %v433 = vunpack.c.h.b16 %v194
    %v434 = vunpack.c.l.b16 %v195
    %v435 = vunpack.c.h.b16 %v195
    %v436 = vunpack.c.l.b16 %v196
    %v437 = vunpack.c.h.b16 %v196
    %v438 = vunpack.c.l.b16 %v197
    %v439 = vunpack.c.h.b16 %v197
    %v440 = vunpack.c.l.b16 %v198
    %v441 = vunpack.c.h.b16 %v198
    %v442 = vunpack.c.l.b16 %v199
    %v443 = vunpack.c.h.b16 %v199
    %v444 = vunpack.c.l.b16 %v200
    %v445 = vunpack.c.h.b16 %v200
    %v446 = vunpack.c.l.b16 %v201
    %v447 = vunpack.c.h.b16 %v201
    %v448 = vunpack.c.l.b16 %v202
    %v449 = vunpack.c.h.b16 %v202
    %v450 = vunpack.c.l.b16 %v203
    %v451 = vunpack.c.h.b16 %v203
    %v452 = vunpack.c.l.b16 %v204
    %v453 = vunpack.c.h.b16 %v204
    %v454 = vunpack.c.l.b16 %v205
    %v455 = vunpack.c.h.b16 %v205
    %v456 = vunpack.c.l.b16 %v206
    %v457 = vunpack.c.h.b16 %v206
    %v458 = vunpack.c.l.b16 %v207
    %v459 = vunpack.c.h.b16 %v207
    %v460 = vunpack.c.l.b16 %v208
    %v461 = vunpack.c.h.b16 %v208
    %v462 = vunpack.c.l.b16 %v209
    %v463 = vunpack.c.h.b16 %v209
    %v464 = vunpack.c.l.b16 %v210
    %v465 = vunpack.c.h.b16 %v210
    %v466 = vunpack.c.l.b16 %v211
    %v467 = vunpack.c.h.b16 %v211
    %v468 = vpack.c.b16 %v406, %v404
    %v469 = vpack.c.b16 %v407, %v405
    %v470 = vpack.c.b16 %v410, %v408
    %v471 = vpack.c.b16 %v411, %v409
    %v472 = vpack.c.b16 %v414, %v412
    %v473 = vpack.c.b16 %v415, %v413
    %v474 = vpack.c.b16 %v418, %v416
    %v475 = vpack.c.b16 %v419, %v417
    %v476 = vpack.c.b16 %v422, %v420
    %v477 = vpack.c.b16 %v423, %v421
    %v478 = vpack.c.b16 %v426, %v424
    %v479 = vpack.c.b16 %v427, %v425
    %v480 = vpack.c.b16 %v430, %v428
    %v481 = vpack.c.b16 %v431, %v429
    %v482 = vpack.c.b16 %v434, %v432
    %v483 = vpack.c.b16 %v435, %v433
    %v484 = vpack.c.b16 %v438, %v436
    %v485 = vpack.c.b16 %v439, %v437
    %v486 = vpack.c.b16 %v442, %v440
    %v487 = vpack.c.b16 %v443, %v441
    %v488 = vpack.c.b16 %v446, %v444
    %v489 = vpack.c.b16 %v447, %v445
    %v490 = vpack.c.b16 %v450, %v448
    %v491 = vpack.c.b16 %v451, %v449
    %v492 = vpack.c.b16 %v454, %v452
    %v493 = vpack.c.b16 %v455, %v453
    %v494 = vpack.c.b16 %v458, %v456
    %v495 = vpack.c.b16 %v459, %v457
    %v496 = vpack.c.b16 %v462, %v460
    %v497 = vpack.c.b16 %v463, %v461
    %v498 = vpack.c.b16 %v466, %v464
    %v499 = vpack.c.b16 %v467, %v465
    %532 = vmatprep.subr.bf16.mxu0 %v483
    %533 = vmatpush1.bf16.xpose.msra.mxu0 %v482
    %534 = vmatprep.subr.bf16.mxu0 %v481
    %535 = vmatpush1.bf16.xpose.msra.mxu0 %v480
    %536 = vmatprep.subr.bf16.mxu0 %v479
    %537 = vmatpush1.bf16.xpose.msra.mxu0 %v478
    %538 = vmatprep.subr.bf16.mxu0 %v477
    %539 = vmatpush1.bf16.xpose.msra.mxu0 %v476
    %540 = vmatprep.subr.bf16.mxu0 %v475
    %541 = vmatpush1.bf16.xpose.msra.mxu0 %v474
    %542 = vmatprep.subr.bf16.mxu0 %v473
    %543 = vmatpush1.bf16.xpose.msra.mxu0 %v472
    %544 = vmatprep.subr.bf16.mxu0 %v471
    %545 = vmatpush1.bf16.xpose.msra.mxu0 %v470
    %546 = vmatprep.subr.bf16.mxu0 %v469
    %547 = vmatpush1.bf16.xpose.msra.mxu0 %v468
    %548 = vmatprep.subr.bf16.mxu0 %v499
    %549 = vmatpush2.bf16.xpose.msra.mxu0 %v498
    %550 = vmatprep.subr.bf16.mxu0 %v497
    %551 = vmatpush2.bf16.xpose.msra.mxu0 %v496
    %552 = vmatprep.subr.bf16.mxu0 %v495
    %553 = vmatpush2.bf16.xpose.msra.mxu0 %v494
    %554 = vmatprep.subr.bf16.mxu0 %v493
    %555 = vmatpush2.bf16.xpose.msra.mxu0 %v492
    %556 = vmatprep.subr.bf16.mxu0 %v491
    %557 = vmatpush2.bf16.xpose.msra.mxu0 %v490
    %558 = vmatprep.subr.bf16.mxu0 %v489
    %559 = vmatpush2.bf16.xpose.msra.mxu0 %v488
    %560 = vmatprep.subr.bf16.mxu0 %v487
    %561 = vmatpush2.bf16.xpose.msra.mxu0 %v486
    %562 = vmatprep.subr.bf16.mxu0 %v485
    %563 = vmatpush2.bf16.xpose.msra.mxu0 %v484
    %564 = vmatprep.mubr.bf16.mxu0 %v309
    %565 = vmatmul.mubr.bf16.gmra.mxu0 %v308
    %v566 = vpop.f32.mrf.mxu0
    %v567 = vadd.f32 0.0, %v566
    %v568 = vpop.f32.mrf.mxu0
    %v569 = vadd.f32 0.0, %v568
    %v570 = vpop.f32.mrf.mxu0
    %v571 = vadd.f32 0.0, %v570
    %v572 = vpop.f32.mrf.mxu0
    %v573 = vadd.f32 0.0, %v572
    %574 = vmatprep.mubr.bf16.mxu0 %v311
    %575 = vmatmul.mubr.bf16.gmra.mxu0 %v310
    %v576 = vpop.f32.mrf.mxu0
    %v577 = vadd.f32 0.0, %v576
    %v578 = vpop.f32.mrf.mxu0
    %v579 = vadd.f32 0.0, %v578
    %v580 = vpop.f32.mrf.mxu0
    %v581 = vadd.f32 0.0, %v580
    %v582 = vpop.f32.mrf.mxu0
    %v583 = vadd.f32 0.0, %v582
    %584 = vmatprep.mubr.bf16.mxu0 %v313
    %585 = vmatmul.mubr.bf16.gmra.mxu0 %v312
    %v586 = vpop.f32.mrf.mxu0
    %v587 = vadd.f32 0.0, %v586
    %v588 = vpop.f32.mrf.mxu0
    %v589 = vadd.f32 0.0, %v588
    %v590 = vpop.f32.mrf.mxu0
    %v591 = vadd.f32 0.0, %v590
    %v592 = vpop.f32.mrf.mxu0
    %v593 = vadd.f32 0.0, %v592
    %594 = vmatprep.mubr.bf16.mxu0 %v315
    %595 = vmatmul.mubr.bf16.gmra.mxu0 %v314
    %v596 = vpop.f32.mrf.mxu0
    %v597 = vadd.f32 0.0, %v596
    %v598 = vpop.f32.mrf.mxu0
    %v599 = vadd.f32 0.0, %v598
    %v600 = vpop.f32.mrf.mxu0
    %v601 = vadd.f32 0.0, %v600
    %v602 = vpop.f32.mrf.mxu0
    %v603 = vadd.f32 0.0, %v602
    %604 = vmatprep.mubr.bf16.mxu0 %v317
    %605 = vmatmul.mubr.bf16.gmra.mxu0 %v316
    %v606 = vpop.f32.mrf.mxu0
    %v607 = vadd.f32 0.0, %v606
    %v608 = vpop.f32.mrf.mxu0
    %v609 = vadd.f32 0.0, %v608
    %v610 = vpop.f32.mrf.mxu0
    %v611 = vadd.f32 0.0, %v610
    %v612 = vpop.f32.mrf.mxu0
    %v613 = vadd.f32 0.0, %v612
    %614 = vmatprep.mubr.bf16.mxu0 %v319
    %615 = vmatmul.mubr.bf16.gmra.mxu0 %v318
    %v616 = vpop.f32.mrf.mxu0
    %v617 = vadd.f32 0.0, %v616
    %v618 = vpop.f32.mrf.mxu0
    %v619 = vadd.f32 0.0, %v618
    %v620 = vpop.f32.mrf.mxu0
    %v621 = vadd.f32 0.0, %v620
    %v622 = vpop.f32.mrf.mxu0
    %v623 = vadd.f32 0.0, %v622
    %624 = vmatprep.mubr.bf16.mxu0 %v321
    %625 = vmatmul.mubr.bf16.gmra.mxu0 %v320
    %v626 = vpop.f32.mrf.mxu0
    %v627 = vadd.f32 0.0, %v626
    %v628 = vpop.f32.mrf.mxu0
    %v629 = vadd.f32 0.0, %v628
    %v630 = vpop.f32.mrf.mxu0
    %v631 = vadd.f32 0.0, %v630
    %v632 = vpop.f32.mrf.mxu0
    %v633 = vadd.f32 0.0, %v632
    %634 = vmatprep.mubr.bf16.mxu0 %v323
    %635 = vmatmul.mubr.bf16.gmra.mxu0 %v322
    %v636 = vpop.f32.mrf.mxu0
    %v637 = vadd.f32 0.0, %v636
    %v638 = vpop.f32.mrf.mxu0
    %v639 = vadd.f32 0.0, %v638
    %v640 = vpop.f32.mrf.mxu0
    %v641 = vadd.f32 0.0, %v640
    %v642 = vpop.f32.mrf.mxu0
    %v643 = vadd.f32 0.0, %v642
    %644 = vmatprep.mubr.bf16.mxu0 %v325
    %645 = vmatmul.mubr.bf16.gmra.mxu0 %v324
    %v646 = vpop.f32.mrf.mxu0
    %v647 = vadd.f32 0.0, %v646
    %v648 = vpop.f32.mrf.mxu0
    %v649 = vadd.f32 0.0, %v648
    %v650 = vpop.f32.mrf.mxu0
    %v651 = vadd.f32 0.0, %v650
    %v652 = vpop.f32.mrf.mxu0
    %v653 = vadd.f32 0.0, %v652
    %654 = vmatprep.mubr.bf16.mxu0 %v327
    %655 = vmatmul.mubr.bf16.gmra.mxu0 %v326
    %v656 = vpop.f32.mrf.mxu0
    %v657 = vadd.f32 0.0, %v656
    %v658 = vpop.f32.mrf.mxu0
    %v659 = vadd.f32 0.0, %v658
    %v660 = vpop.f32.mrf.mxu0
    %v661 = vadd.f32 0.0, %v660
    %v662 = vpop.f32.mrf.mxu0
    %v663 = vadd.f32 0.0, %v662
    %664 = vmatprep.mubr.bf16.mxu0 %v329
    %665 = vmatmul.mubr.bf16.gmra.mxu0 %v328
    %v666 = vpop.f32.mrf.mxu0
    %v667 = vadd.f32 0.0, %v666
    %v668 = vpop.f32.mrf.mxu0
    %v669 = vadd.f32 0.0, %v668
    %v670 = vpop.f32.mrf.mxu0
    %v671 = vadd.f32 0.0, %v670
    %v672 = vpop.f32.mrf.mxu0
    %v673 = vadd.f32 0.0, %v672
    %674 = vmatprep.mubr.bf16.mxu0 %v331
    %675 = vmatmul.mubr.bf16.gmra.mxu0 %v330
    %v676 = vpop.f32.mrf.mxu0
    %v677 = vadd.f32 0.0, %v676
    %v678 = vpop.f32.mrf.mxu0
    %v679 = vadd.f32 0.0, %v678
    %v680 = vpop.f32.mrf.mxu0
    %v681 = vadd.f32 0.0, %v680
    %v682 = vpop.f32.mrf.mxu0
    %v683 = vadd.f32 0.0, %v682
    %684 = vmatprep.mubr.bf16.mxu0 %v333
    %685 = vmatmul.mubr.bf16.gmra.mxu0 %v332
    %v686 = vpop.f32.mrf.mxu0
    %v687 = vadd.f32 0.0, %v686
    %v688 = vpop.f32.mrf.mxu0
    %v689 = vadd.f32 0.0, %v688
    %v690 = vpop.f32.mrf.mxu0
    %v691 = vadd.f32 0.0, %v690
    %v692 = vpop.f32.mrf.mxu0
    %v693 = vadd.f32 0.0, %v692
    %694 = vmatprep.mubr.bf16.mxu0 %v335
    %695 = vmatmul.mubr.bf16.gmra.mxu0 %v334
    %v696 = vpop.f32.mrf.mxu0
    %v697 = vadd.f32 0.0, %v696
    %v698 = vpop.f32.mrf.mxu0
    %v699 = vadd.f32 0.0, %v698
    %v700 = vpop.f32.mrf.mxu0
    %v701 = vadd.f32 0.0, %v700
    %v702 = vpop.f32.mrf.mxu0
    %v703 = vadd.f32 0.0, %v702
    %704 = vmatprep.mubr.bf16.mxu0 %v337
    %705 = vmatmul.mubr.bf16.gmra.mxu0 %v336
    %v706 = vpop.f32.mrf.mxu0
    %v707 = vadd.f32 0.0, %v706
    %v708 = vpop.f32.mrf.mxu0
    %v709 = vadd.f32 0.0, %v708
    %v710 = vpop.f32.mrf.mxu0
    %v711 = vadd.f32 0.0, %v710
    %v712 = vpop.f32.mrf.mxu0
    %v713 = vadd.f32 0.0, %v712
    %714 = vmatprep.mubr.bf16.mxu0 %v339
    %715 = vmatmul.mubr.bf16.gmra.mxu0 %v338
    %v716 = vpop.f32.mrf.mxu0
    %v717 = vadd.f32 0.0, %v716
    %v718 = vpop.f32.mrf.mxu0
    %v719 = vadd.f32 0.0, %v718
    %v720 = vpop.f32.mrf.mxu0
    %v721 = vadd.f32 0.0, %v720
    %v722 = vpop.f32.mrf.mxu0
    %v723 = vadd.f32 0.0, %v722
    %724 = vdwg.mxu0
    %v725 = vadd.f32 %v84, %v567
    %v726 = vadd.f32 %v85, %v569
    %v727 = vadd.f32 %v86, %v571
    %v728 = vadd.f32 %v87, %v573
    %v729 = vadd.f32 %v88, %v577
    %v730 = vadd.f32 %v89, %v579
    %v731 = vadd.f32 %v90, %v581
    %v732 = vadd.f32 %v91, %v583
    %v733 = vadd.f32 %v92, %v587
    %v734 = vadd.f32 %v93, %v589
    %v735 = vadd.f32 %v94, %v591
    %v736 = vadd.f32 %v95, %v593
    %v737 = vadd.f32 %v96, %v597
    %v738 = vadd.f32 %v97, %v599
    %v739 = vadd.f32 %v98, %v601
    %v740 = vadd.f32 %v99, %v603
    %v741 = vadd.f32 %v100, %v607
    %v742 = vadd.f32 %v101, %v609
    %v743 = vadd.f32 %v102, %v611
    %v744 = vadd.f32 %v103, %v613
    %v745 = vadd.f32 %v104, %v617
    %v746 = vadd.f32 %v105, %v619
    %v747 = vadd.f32 %v106, %v621
    %v748 = vadd.f32 %v107, %v623
    %v749 = vadd.f32 %v108, %v627
    %v750 = vadd.f32 %v109, %v629
    %v751 = vadd.f32 %v110, %v631
    %v752 = vadd.f32 %v111, %v633
    %v753 = vadd.f32 %v112, %v637
    %v754 = vadd.f32 %v113, %v639
    %v755 = vadd.f32 %v114, %v641
    %v756 = vadd.f32 %v115, %v643
    %v757 = vadd.f32 %v116, %v647
    %v758 = vadd.f32 %v117, %v649
    %v759 = vadd.f32 %v118, %v651
    %v760 = vadd.f32 %v119, %v653
    %v761 = vadd.f32 %v120, %v657
    %v762 = vadd.f32 %v121, %v659
    %v763 = vadd.f32 %v122, %v661
    %v764 = vadd.f32 %v123, %v663
    %v765 = vadd.f32 %v124, %v667
    %v766 = vadd.f32 %v125, %v669
    %v767 = vadd.f32 %v126, %v671
    %v768 = vadd.f32 %v127, %v673
    %v769 = vadd.f32 %v128, %v677
    %v770 = vadd.f32 %v129, %v679
    %v771 = vadd.f32 %v130, %v681
    %v772 = vadd.f32 %v131, %v683
    %v773 = vadd.f32 %v132, %v687
    %v774 = vadd.f32 %v133, %v689
    %v775 = vadd.f32 %v134, %v691
    %v776 = vadd.f32 %v135, %v693
    %v777 = vadd.f32 %v136, %v697
    %v778 = vadd.f32 %v137, %v699
    %v779 = vadd.f32 %v138, %v701
    %v780 = vadd.f32 %v139, %v703
    %v781 = vadd.f32 %v140, %v707
    %v782 = vadd.f32 %v141, %v709
    %v783 = vadd.f32 %v142, %v711
    %v784 = vadd.f32 %v143, %v713
    %v785 = vadd.f32 %v144, %v717
    %v786 = vadd.f32 %v145, %v719
    %v787 = vadd.f32 %v146, %v721
    %v788 = vadd.f32 %v147, %v723
    %789 = vst [vmem:[#allocation3] sm:$0xff] %v725
    %790 = vst [vmem:[#allocation3 + $0x8] sm:$0xff] %v726
    %791 = vst [vmem:[#allocation3 + $0x10] sm:$0xff] %v727
    %792 = vst [vmem:[#allocation3 + $0x18] sm:$0xff] %v728
    %793 = vst [vmem:[#allocation3 + $0x20] sm:$0xff] %v729
    %794 = vst [vmem:[#allocation3 + $0x28] sm:$0xff] %v730
    %795 = vst [vmem:[#allocation3 + $0x30] sm:$0xff] %v731
    %796 = vst [vmem:[#allocation3 + $0x38] sm:$0xff] %v732
    %797 = vst [vmem:[#allocation3 + $0x40] sm:$0xff] %v733
    %798 = vst [vmem:[#allocation3 + $0x48] sm:$0xff] %v734
    %799 = vst [vmem:[#allocation3 + $0x50] sm:$0xff] %v735
    %800 = vst [vmem:[#allocation3 + $0x58] sm:$0xff] %v736
    %801 = vst [vmem:[#allocation3 + $0x60] sm:$0xff] %v737
    %802 = vst [vmem:[#allocation3 + $0x68] sm:$0xff] %v738
    %803 = vst [vmem:[#allocation3 + $0x70] sm:$0xff] %v739
    %804 = vst [vmem:[#allocation3 + $0x78] sm:$0xff] %v740
    %805 = vst [vmem:[#allocation3 + $0x80] sm:$0xff] %v741
    %806 = vst [vmem:[#allocation3 + $0x88] sm:$0xff] %v742
    %807 = vst [vmem:[#allocation3 + $0x90] sm:$0xff] %v743
    %808 = vst [vmem:[#allocation3 + $0x98] sm:$0xff] %v744
    %809 = vst [vmem:[#allocation3 + $0xa0] sm:$0xff] %v745
    %810 = vst [vmem:[#allocation3 + $0xa8] sm:$0xff] %v746
    %811 = vst [vmem:[#allocation3 + $0xb0] sm:$0xff] %v747
    %812 = vst [vmem:[#allocation3 + $0xb8] sm:$0xff] %v748
    %813 = vst [vmem:[#allocation3 + $0xc0] sm:$0xff] %v749
    %814 = vst [vmem:[#allocation3 + $0xc8] sm:$0xff] %v750
    %815 = vst [vmem:[#allocation3 + $0xd0] sm:$0xff] %v751
    %816 = vst [vmem:[#allocation3 + $0xd8] sm:$0xff] %v752
    %817 = vst [vmem:[#allocation3 + $0xe0] sm:$0xff] %v753
    %818 = vst [vmem:[#allocation3 + $0xe8] sm:$0xff] %v754
    %819 = vst [vmem:[#allocation3 + $0xf0] sm:$0xff] %v755
    %820 = vst [vmem:[#allocation3 + $0xf8] sm:$0xff] %v756
    %821 = vst [vmem:[#allocation3 + $0x100] sm:$0xff] %v757
    %822 = vst [vmem:[#allocation3 + $0x108] sm:$0xff] %v758
    %823 = vst [vmem:[#allocation3 + $0x110] sm:$0xff] %v759
    %824 = vst [vmem:[#allocation3 + $0x118] sm:$0xff] %v760
    %825 = vst [vmem:[#allocation3 + $0x120] sm:$0xff] %v761
    %826 = vst [vmem:[#allocation3 + $0x128] sm:$0xff] %v762
    %827 = vst [vmem:[#allocation3 + $0x130] sm:$0xff] %v763
    %828 = vst [vmem:[#allocation3 + $0x138] sm:$0xff] %v764
    %829 = vst [vmem:[#allocation3 + $0x140] sm:$0xff] %v765
    %830 = vst [vmem:[#allocation3 + $0x148] sm:$0xff] %v766
    %831 = vst [vmem:[#allocation3 + $0x150] sm:$0xff] %v767
    %832 = vst [vmem:[#allocation3 + $0x158] sm:$0xff] %v768
    %833 = vst [vmem:[#allocation3 + $0x160] sm:$0xff] %v769
    %834 = vst [vmem:[#allocation3 + $0x168] sm:$0xff] %v770
    %835 = vst [vmem:[#allocation3 + $0x170] sm:$0xff] %v771
    %836 = vst [vmem:[#allocation3 + $0x178] sm:$0xff] %v772
    %837 = vst [vmem:[#allocation3 + $0x180] sm:$0xff] %v773
    %838 = vst [vmem:[#allocation3 + $0x188] sm:$0xff] %v774
    %839 = vst [vmem:[#allocation3 + $0x190] sm:$0xff] %v775
    %840 = vst [vmem:[#allocation3 + $0x198] sm:$0xff] %v776
    %841 = vst [vmem:[#allocation3 + $0x1a0] sm:$0xff] %v777
    %842 = vst [vmem:[#allocation3 + $0x1a8] sm:$0xff] %v778
    %843 = vst [vmem:[#allocation3 + $0x1b0] sm:$0xff] %v779
    %844 = vst [vmem:[#allocation3 + $0x1b8] sm:$0xff] %v780
    %845 = vst [vmem:[#allocation3 + $0x1c0] sm:$0xff] %v781
    %846 = vst [vmem:[#allocation3 + $0x1c8] sm:$0xff] %v782
    %847 = vst [vmem:[#allocation3 + $0x1d0] sm:$0xff] %v783
    %848 = vst [vmem:[#allocation3 + $0x1d8] sm:$0xff] %v784
    %849 = vst [vmem:[#allocation3 + $0x1e0] sm:$0xff] %v785
    %850 = vst [vmem:[#allocation3 + $0x1e8] sm:$0xff] %v786
    %851 = vst [vmem:[#allocation3 + $0x1f0] sm:$0xff] %v787
    %852 = vst [vmem:[#allocation3 + $0x1f8] sm:$0xff] %v788
    // Predicated region
    $region18: #{_leroy_forward.3} parent=1 // pred_check
      %p853 = pneg %p16
    $region19: #{_leroy_forward.3} parent=1 // pred_check_branch
      %855 = sbr.rel (%p853) target = $region21
    $region20: #{_leroy_forward.3} parent=1 // pred_region
      %v856 = vld [vmem:[#allocation3] sm:$0xff]
      %v857 = vld [vmem:[#allocation3 + $0x8] sm:$0xff]
      %v858 = vld [vmem:[#allocation3 + $0x10] sm:$0xff]
      %v859 = vld [vmem:[#allocation3 + $0x18] sm:$0xff]
      %v860 = vld [vmem:[#allocation3 + $0x20] sm:$0xff]
      %v861 = vld [vmem:[#allocation3 + $0x28] sm:$0xff]
      %v862 = vld [vmem:[#allocation3 + $0x30] sm:$0xff]
      %v863 = vld [vmem:[#allocation3 + $0x38] sm:$0xff]
      %v864 = vld [vmem:[#allocation3 + $0x40] sm:$0xff]
      %v865 = vld [vmem:[#allocation3 + $0x48] sm:$0xff]
      %v866 = vld [vmem:[#allocation3 + $0x50] sm:$0xff]
      %v867 = vld [vmem:[#allocation3 + $0x58] sm:$0xff]
      %v868 = vld [vmem:[#allocation3 + $0x60] sm:$0xff]
      %v869 = vld [vmem:[#allocation3 + $0x68] sm:$0xff]
      %v870 = vld [vmem:[#allocation3 + $0x70] sm:$0xff]
      %v871 = vld [vmem:[#allocation3 + $0x78] sm:$0xff]
      %v872 = vld [vmem:[#allocation3 + $0x80] sm:$0xff]
      %v873 = vld [vmem:[#allocation3 + $0x88] sm:$0xff]
      %v874 = vld [vmem:[#allocation3 + $0x90] sm:$0xff]
      %v875 = vld [vmem:[#allocation3 + $0x98] sm:$0xff]
      %v876 = vld [vmem:[#allocation3 + $0xa0] sm:$0xff]
      %v877 = vld [vmem:[#allocation3 + $0xa8] sm:$0xff]
      %v878 = vld [vmem:[#allocation3 + $0xb0] sm:$0xff]
      %v879 = vld [vmem:[#allocation3 + $0xb8] sm:$0xff]
      %v880 = vld [vmem:[#allocation3 + $0xc0] sm:$0xff]
      %v881 = vld [vmem:[#allocation3 + $0xc8] sm:$0xff]
      %v882 = vld [vmem:[#allocation3 + $0xd0] sm:$0xff]
      %v883 = vld [vmem:[#allocation3 + $0xd8] sm:$0xff]
      %v884 = vld [vmem:[#allocation3 + $0xe0] sm:$0xff]
      %v885 = vld [vmem:[#allocation3 + $0xe8] sm:$0xff]
      %v886 = vld [vmem:[#allocation3 + $0xf0] sm:$0xff]
      %v887 = vld [vmem:[#allocation3 + $0xf8] sm:$0xff]
      %v888 = vld [vmem:[#allocation3 + $0x100] sm:$0xff]
      %v889 = vld [vmem:[#allocation3 + $0x108] sm:$0xff]
      %v890 = vld [vmem:[#allocation3 + $0x110] sm:$0xff]
      %v891 = vld [vmem:[#allocation3 + $0x118] sm:$0xff]
      %v892 = vld [vmem:[#allocation3 + $0x120] sm:$0xff]
      %v893 = vld [vmem:[#allocation3 + $0x128] sm:$0xff]
      %v894 = vld [vmem:[#allocation3 + $0x130] sm:$0xff]
      %v895 = vld [vmem:[#allocation3 + $0x138] sm:$0xff]
      %v896 = vld [vmem:[#allocation3 + $0x140] sm:$0xff]
      %v897 = vld [vmem:[#allocation3 + $0x148] sm:$0xff]
      %v898 = vld [vmem:[#allocation3 + $0x150] sm:$0xff]
      %v899 = vld [vmem:[#allocation3 + $0x158] sm:$0xff]
      %v900 = vld [vmem:[#allocation3 + $0x160] sm:$0xff]
      %v901 = vld [vmem:[#allocation3 + $0x168] sm:$0xff]
      %v902 = vld [vmem:[#allocation3 + $0x170] sm:$0xff]
      %v903 = vld [vmem:[#allocation3 + $0x178] sm:$0xff]
      %v904 = vld [vmem:[#allocation3 + $0x180] sm:$0xff]
      %v905 = vld [vmem:[#allocation3 + $0x188] sm:$0xff]
      %v906 = vld [vmem:[#allocation3 + $0x190] sm:$0xff]
      %v907 = vld [vmem:[#allocation3 + $0x198] sm:$0xff]
      %v908 = vld [vmem:[#allocation3 + $0x1a0] sm:$0xff]
      %v909 = vld [vmem:[#allocation3 + $0x1a8] sm:$0xff]
      %v910 = vld [vmem:[#allocation3 + $0x1b0] sm:$0xff]
      %v911 = vld [vmem:[#allocation3 + $0x1b8] sm:$0xff]
      %v912 = vld [vmem:[#allocation3 + $0x1c0] sm:$0xff]
      %v913 = vld [vmem:[#allocation3 + $0x1c8] sm:$0xff]
      %v914 = vld [vmem:[#allocation3 + $0x1d0] sm:$0xff]
      %v915 = vld [vmem:[#allocation3 + $0x1d8] sm:$0xff]
      %v916 = vld [vmem:[#allocation3 + $0x1e0] sm:$0xff]
      %v917 = vld [vmem:[#allocation3 + $0x1e8] sm:$0xff]
      %v918 = vld [vmem:[#allocation3 + $0x1f0] sm:$0xff]
      %v919 = vld [vmem:[#allocation3 + $0x1f8] sm:$0xff]
      %s920 = sld [smem:[#allocation2]]
      %v921 = vstv %s920
      %v922 = vmul.f32 %v856, %v921
      %v923 = vmul.f32 %v857, %v921
      %v924 = vmul.f32 %v858, %v921
      %v925 = vmul.f32 %v859, %v921
      %v926 = vmul.f32 %v860, %v921
      %v927 = vmul.f32 %v861, %v921
      %v928 = vmul.f32 %v862, %v921
      %v929 = vmul.f32 %v863, %v921
      %v930 = vmul.f32 %v864, %v921
      %v931 = vmul.f32 %v865, %v921
      %v932 = vmul.f32 %v866, %v921
      %v933 = vmul.f32 %v867, %v921
      %v934 = vmul.f32 %v868, %v921
      %v935 = vmul.f32 %v869, %v921
      %v936 = vmul.f32 %v870, %v921
      %v937 = vmul.f32 %v871, %v921
      %v938 = vmul.f32 %v872, %v921
      %v939 = vmul.f32 %v873, %v921
      %v940 = vmul.f32 %v874, %v921
      %v941 = vmul.f32 %v875, %v921
      %v942 = vmul.f32 %v876, %v921
      %v943 = vmul.f32 %v877, %v921
      %v944 = vmul.f32 %v878, %v921
      %v945 = vmul.f32 %v879, %v921
      %v946 = vmul.f32 %v880, %v921
      %v947 = vmul.f32 %v881, %v921
      %v948 = vmul.f32 %v882, %v921
      %v949 = vmul.f32 %v883, %v921
      %v950 = vmul.f32 %v884, %v921
      %v951 = vmul.f32 %v885, %v921
      %v952 = vmul.f32 %v886, %v921
      %v953 = vmul.f32 %v887, %v921
      %v954 = vmul.f32 %v888, %v921
      %v955 = vmul.f32 %v889, %v921
      %v956 = vmul.f32 %v890, %v921
      %v957 = vmul.f32 %v891, %v921
      %v958 = vmul.f32 %v892, %v921
      %v959 = vmul.f32 %v893, %v921
      %v960 = vmul.f32 %v894, %v921
      %v961 = vmul.f32 %v895, %v921
      %v962 = vmul.f32 %v896, %v921
      %v963 = vmul.f32 %v897, %v921
      %v964 = vmul.f32 %v898, %v921
      %v965 = vmul.f32 %v899, %v921
      %v966 = vmul.f32 %v900, %v921
      %v967 = vmul.f32 %v901, %v921
      %v968 = vmul.f32 %v902, %v921
      %v969 = vmul.f32 %v903, %v921
      %v970 = vmul.f32 %v904, %v921
      %v971 = vmul.f32 %v905, %v921
      %v972 = vmul.f32 %v906, %v921
      %v973 = vmul.f32 %v907, %v921
      %v974 = vmul.f32 %v908, %v921
      %v975 = vmul.f32 %v909, %v921
      %v976 = vmul.f32 %v910, %v921
      %v977 = vmul.f32 %v911, %v921
      %v978 = vmul.f32 %v912, %v921
      %v979 = vmul.f32 %v913, %v921
      %v980 = vmul.f32 %v914, %v921
      %v981 = vmul.f32 %v915, %v921
      %v982 = vmul.f32 %v916, %v921
      %v983 = vmul.f32 %v917, %v921
      %v984 = vmul.f32 %v918, %v921
      %v985 = vmul.f32 %v919, %v921
      %986 = vst [vmem:[#allocation3] sm:$0xff] %v922
      %987 = vst [vmem:[#allocation3 + $0x8] sm:$0xff] %v923
      %988 = vst [vmem:[#allocation3 + $0x10] sm:$0xff] %v924
      %989 = vst [vmem:[#allocation3 + $0x18] sm:$0xff] %v925
      %990 = vst [vmem:[#allocation3 + $0x20] sm:$0xff] %v926
      %991 = vst [vmem:[#allocation3 + $0x28] sm:$0xff] %v927
      %992 = vst [vmem:[#allocation3 + $0x30] sm:$0xff] %v928
      %993 = vst [vmem:[#allocation3 + $0x38] sm:$0xff] %v929
      %994 = vst [vmem:[#allocation3 + $0x40] sm:$0xff] %v930
      %995 = vst [vmem:[#allocation3 + $0x48] sm:$0xff] %v931
      %996 = vst [vmem:[#allocation3 + $0x50] sm:$0xff] %v932
      %997 = vst [vmem:[#allocation3 + $0x58] sm:$0xff] %v933
      %998 = vst [vmem:[#allocation3 + $0x60] sm:$0xff] %v934
      %999 = vst [vmem:[#allocation3 + $0x68] sm:$0xff] %v935
      %1000 = vst [vmem:[#allocation3 + $0x70] sm:$0xff] %v936
      %1001 = vst [vmem:[#allocation3 + $0x78] sm:$0xff] %v937
      %1002 = vst [vmem:[#allocation3 + $0x80] sm:$0xff] %v938
      %1003 = vst [vmem:[#allocation3 + $0x88] sm:$0xff] %v939
      %1004 = vst [vmem:[#allocation3 + $0x90] sm:$0xff] %v940
      %1005 = vst [vmem:[#allocation3 + $0x98] sm:$0xff] %v941
      %1006 = vst [vmem:[#allocation3 + $0xa0] sm:$0xff] %v942
      %1007 = vst [vmem:[#allocation3 + $0xa8] sm:$0xff] %v943
      %1008 = vst [vmem:[#allocation3 + $0xb0] sm:$0xff] %v944
      %1009 = vst [vmem:[#allocation3 + $0xb8] sm:$0xff] %v945
      %1010 = vst [vmem:[#allocation3 + $0xc0] sm:$0xff] %v946
      %1011 = vst [vmem:[#allocation3 + $0xc8] sm:$0xff] %v947
      %1012 = vst [vmem:[#allocation3 + $0xd0] sm:$0xff] %v948
      %1013 = vst [vmem:[#allocation3 + $0xd8] sm:$0xff] %v949
      %1014 = vst [vmem:[#allocation3 + $0xe0] sm:$0xff] %v950
      %1015 = vst [vmem:[#allocation3 + $0xe8] sm:$0xff] %v951
      %1016 = vst [vmem:[#allocation3 + $0xf0] sm:$0xff] %v952
      %1017 = vst [vmem:[#allocation3 + $0xf8] sm:$0xff] %v953
      %1018 = vst [vmem:[#allocation3 + $0x100] sm:$0xff] %v954
      %1019 = vst [vmem:[#allocation3 + $0x108] sm:$0xff] %v955
      %1020 = vst [vmem:[#allocation3 + $0x110] sm:$0xff] %v956
      %1021 = vst [vmem:[#allocation3 + $0x118] sm:$0xff] %v957
      %1022 = vst [vmem:[#allocation3 + $0x120] sm:$0xff] %v958
      %1023 = vst [vmem:[#allocation3 + $0x128] sm:$0xff] %v959
      %1024 = vst [vmem:[#allocation3 + $0x130] sm:$0xff] %v960
      %1025 = vst [vmem:[#allocation3 + $0x138] sm:$0xff] %v961
      %1026 = vst [vmem:[#allocation3 + $0x140] sm:$0xff] %v962
      %1027 = vst [vmem:[#allocation3 + $0x148] sm:$0xff] %v963
      %1028 = vst [vmem:[#allocation3 + $0x150] sm:$0xff] %v964
      %1029 = vst [vmem:[#allocation3 + $0x158] sm:$0xff] %v965
      %1030 = vst [vmem:[#allocation3 + $0x160] sm:$0xff] %v966
      %1031 = vst [vmem:[#allocation3 + $0x168] sm:$0xff] %v967
      %1032 = vst [vmem:[#allocation3 + $0x170] sm:$0xff] %v968
      %1033 = vst [vmem:[#allocation3 + $0x178] sm:$0xff] %v969
      %1034 = vst [vmem:[#allocation3 + $0x180] sm:$0xff] %v970
      %1035 = vst [vmem:[#allocation3 + $0x188] sm:$0xff] %v971
      %1036 = vst [vmem:[#allocation3 + $0x190] sm:$0xff] %v972
      %1037 = vst [vmem:[#allocation3 + $0x198] sm:$0xff] %v973
      %1038 = vst [vmem:[#allocation3 + $0x1a0] sm:$0xff] %v974
      %1039 = vst [vmem:[#allocation3 + $0x1a8] sm:$0xff] %v975
      %1040 = vst [vmem:[#allocation3 + $0x1b0] sm:$0xff] %v976
      %1041 = vst [vmem:[#allocation3 + $0x1b8] sm:$0xff] %v977
      %1042 = vst [vmem:[#allocation3 + $0x1c0] sm:$0xff] %v978
      %1043 = vst [vmem:[#allocation3 + $0x1c8] sm:$0xff] %v979
      %1044 = vst [vmem:[#allocation3 + $0x1d0] sm:$0xff] %v980
      %1045 = vst [vmem:[#allocation3 + $0x1d8] sm:$0xff] %v981
      %1046 = vst [vmem:[#allocation3 + $0x1e0] sm:$0xff] %v982
      %1047 = vst [vmem:[#allocation3 + $0x1e8] sm:$0xff] %v983
      %1048 = vst [vmem:[#allocation3 + $0x1f0] sm:$0xff] %v984
      %1049 = vst [vmem:[#allocation3 + $0x1f8] sm:$0xff] %v985
    $region21: #{_leroy_forward.3} parent=1 // pred_fallthru
      _
    // Predicated region
    $region22: #{_leroy_forward.3} parent=1 // pred_check
      _
    $region23: #{_leroy_forward.3} parent=1 // pred_check_branch
      %1051 = sbr.rel (0) target = $region25
    $region24: #{_leroy_forward.3} parent=1 // pred_region
      %s1053 = ssub.s32 8192, 8192
      %1054 = vsyncadd [#allocation4], %s1053
      %s1055 = sshll.u32 [#allocation3], 4
      %s1056 = int_to_ptr.vmem [resolvable:$true] %s1055
      %1061 = dma.vmem_to_hbm [thread:$0]  %s1056, 8192, %s3, [#allocation4], 256, 256, 16
    $region25: #{_leroy_forward.3} parent=1 // pred_fallthru
      _
    // Predicated region
    $region26: #{_leroy_forward.3} parent=1 // pred_check
      _
    $region27: #{_leroy_forward.3} parent=1 // pred_check_branch
      %1063 = sbr.rel (0) target = $region29
    $region28: #{_leroy_forward.3} parent=1 // pred_region
      %1064 = dma.done [#allocation4], 8192
    $region29: #{_leroy_forward.3} parent=1 // pred_fallthru
      _
    %1065 = vsyncpa [#allocation4], 1

// kernel: _leroy_forward.2
$region0: #{_leroy_forward.2}
  #allocation0 [shape = 'u32[]', space=smem, size = 0x4, offset = 0x4, fixed_abs, tag = 'smem constant byte address 0x4 - core index']
  #allocation1 [shape = 'u32[144,128]{1,0:T(1,128)}', space=vmem, size = 0x12000, scoped, tag = 'internal scratch']
  %s0 = inlined_call_operand.vmem [shape: f32[256,16], index: 0, kind: input, shape index: {}]
  %s1 = inlined_call_operand.vmem [shape: f32[16,256], index: 1, kind: input, shape index: {}]
  %s2 = inlined_call_operand.vmem [shape: f32[1,16], index: 2, kind: input, shape index: {}]
  %s3 = inlined_call_operand.vmem [shape: bf16[256,256], index: 3, kind: output, shape index: {0}]
  %s4 = inlined_call_operand.vmem [shape: f32[8,128], index: 4, kind: output, shape index: {1}]
  %5 = xla_tuple %s3, %s4
  %s6 = sld [smem:[#allocation0]]
  $region30: #{_leroy_forward.2} parent=0
    _
  %s8 = ssub.s32 1, %s6
  %s9 = scalar_select 0, %s8, %s6
  // Predicated region
  $region2: #{_leroy_forward.2} parent=0 // pred_check
    _
  $region3: #{_leroy_forward.2} parent=0 // pred_check_branch
    %11 = sbr.rel (0) target = $region5
  $region4: #{_leroy_forward.2} parent=0 // pred_region
    _
  $region5: #{_leroy_forward.2} parent=0 // pred_fallthru
    _
  // Predicated region
  $region6: #{_leroy_forward.2} parent=0 // pred_check
    _
  $region7: #{_leroy_forward.2} parent=0 // pred_check_branch
    %13 = sbr.rel (0) target = $region9
  $region8: #{_leroy_forward.2} parent=0 // pred_region
    _
  $region9: #{_leroy_forward.2} parent=0 // pred_fallthru
    _
  // Predicated region
  $region10: #{_leroy_forward.2} parent=0 // pred_check
    _
  $region11: #{_leroy_forward.2} parent=0 // pred_check_branch
    %15 = sbr.rel (0) target = $region13
  $region12: #{_leroy_forward.2} parent=0 // pred_region
    _
  $region13: #{_leroy_forward.2} parent=0 // pred_fallthru
    _
  %v16 = vld [vmem:[%s0] sm:$0xff]
  %v17 = vld [vmem:[%s0 + $0x8] sm:$0xff]
  %v18 = vld [vmem:[%s0 + $0x10] sm:$0xff]
  %v19 = vld [vmem:[%s0 + $0x18] sm:$0xff]
  %v20 = vld [vmem:[%s0 + $0x20] sm:$0xff]
  %v21 = vld [vmem:[%s0 + $0x28] sm:$0xff]
  %v22 = vld [vmem:[%s0 + $0x30] sm:$0xff]
  %v23 = vld [vmem:[%s0 + $0x38] sm:$0xff]
  %v24 = vld [vmem:[%s0 + $0x40] sm:$0xff]
  %v25 = vld [vmem:[%s0 + $0x48] sm:$0xff]
  %v26 = vld [vmem:[%s0 + $0x50] sm:$0xff]
  %v27 = vld [vmem:[%s0 + $0x58] sm:$0xff]
  %v28 = vld [vmem:[%s0 + $0x60] sm:$0xff]
  %v29 = vld [vmem:[%s0 + $0x68] sm:$0xff]
  %v30 = vld [vmem:[%s0 + $0x70] sm:$0xff]
  %v31 = vld [vmem:[%s0 + $0x78] sm:$0xff]
  %v32 = vld [vmem:[%s0 + $0x80] sm:$0xff]
  %v33 = vld [vmem:[%s0 + $0x88] sm:$0xff]
  %v34 = vld [vmem:[%s0 + $0x90] sm:$0xff]
  %v35 = vld [vmem:[%s0 + $0x98] sm:$0xff]
  %v36 = vld [vmem:[%s0 + $0xa0] sm:$0xff]
  %v37 = vld [vmem:[%s0 + $0xa8] sm:$0xff]
  %v38 = vld [vmem:[%s0 + $0xb0] sm:$0xff]
  %v39 = vld [vmem:[%s0 + $0xb8] sm:$0xff]
  %v40 = vld [vmem:[%s0 + $0xc0] sm:$0xff]
  %v41 = vld [vmem:[%s0 + $0xc8] sm:$0xff]
  %v42 = vld [vmem:[%s0 + $0xd0] sm:$0xff]
  %v43 = vld [vmem:[%s0 + $0xd8] sm:$0xff]
  %v44 = vld [vmem:[%s0 + $0xe0] sm:$0xff]
  %v45 = vld [vmem:[%s0 + $0xe8] sm:$0xff]
  %v46 = vld [vmem:[%s0 + $0xf0] sm:$0xff]
  %v47 = vld [vmem:[%s0 + $0xf8] sm:$0xff]
  %v48 = vld [vmem:[%s1] sm:$0xff]
  %v49 = vld [vmem:[%s1 + $0x8] sm:$0xff]
  %v50 = vld [vmem:[%s1 + $0x10] sm:$0xff]
  %v51 = vld [vmem:[%s1 + $0x18] sm:$0xff]
  %v52 = vld [vmem:[%s2] sm:$0x1]
  %vm53 = vcmask 130048
  %v54 = vsel %vm53, %v16, 0.0
  %55 = vadd.xlane.f32.xlu0 %v54
  %v56 = vpop.xlane.xlu0 %55
  %v57 = vsel %vm53, %v17, 0.0
  %58 = vadd.xlane.f32.xlu0 %v57
  %v59 = vpop.xlane.xlu0 %58
  %v60 = vsel %vm53, %v18, 0.0
  %61 = vadd.xlane.f32.xlu0 %v60
  %v62 = vpop.xlane.xlu0 %61
  %v63 = vsel %vm53, %v19, 0.0
  %64 = vadd.xlane.f32.xlu0 %v63
  %v65 = vpop.xlane.xlu0 %64
  %v66 = vsel %vm53, %v20, 0.0
  %67 = vadd.xlane.f32.xlu0 %v66
  %v68 = vpop.xlane.xlu0 %67
  %v69 = vsel %vm53, %v21, 0.0
  %70 = vadd.xlane.f32.xlu0 %v69
  %v71 = vpop.xlane.xlu0 %70
  %v72 = vsel %vm53, %v22, 0.0
  %73 = vadd.xlane.f32.xlu0 %v72
  %v74 = vpop.xlane.xlu0 %73
  %v75 = vsel %vm53, %v23, 0.0
  %76 = vadd.xlane.f32.xlu0 %v75
  %v77 = vpop.xlane.xlu0 %76
  %v78 = vsel %vm53, %v24, 0.0
  %79 = vadd.xlane.f32.xlu0 %v78
  %v80 = vpop.xlane.xlu0 %79
  %v81 = vsel %vm53, %v25, 0.0
  %82 = vadd.xlane.f32.xlu0 %v81
  %v83 = vpop.xlane.xlu0 %82
  %v84 = vsel %vm53, %v26, 0.0
  %85 = vadd.xlane.f32.xlu0 %v84
  %v86 = vpop.xlane.xlu0 %85
  %v87 = vsel %vm53, %v27, 0.0
  %88 = vadd.xlane.f32.xlu0 %v87
  %v89 = vpop.xlane.xlu0 %88
  %v90 = vsel %vm53, %v28, 0.0
  %91 = vadd.xlane.f32.xlu0 %v90
  %v92 = vpop.xlane.xlu0 %91
  %v93 = vsel %vm53, %v29, 0.0
  %94 = vadd.xlane.f32.xlu0 %v93
  %v95 = vpop.xlane.xlu0 %94
  %v96 = vsel %vm53, %v30, 0.0
  %97 = vadd.xlane.f32.xlu0 %v96
  %v98 = vpop.xlane.xlu0 %97
  %v99 = vsel %vm53, %v31, 0.0
  %100 = vadd.xlane.f32.xlu0 %v99
  %v101 = vpop.xlane.xlu0 %100
  %v102 = vsel %vm53, %v32, 0.0
  %103 = vadd.xlane.f32.xlu0 %v102
  %v104 = vpop.xlane.xlu0 %103
  %v105 = vsel %vm53, %v33, 0.0
  %106 = vadd.xlane.f32.xlu0 %v105
  %v107 = vpop.xlane.xlu0 %106
  %v108 = vsel %vm53, %v34, 0.0
  %109 = vadd.xlane.f32.xlu0 %v108
  %v110 = vpop.xlane.xlu0 %109
  %v111 = vsel %vm53, %v35, 0.0
  %112 = vadd.xlane.f32.xlu0 %v111
  %v113 = vpop.xlane.xlu0 %112
  %v114 = vsel %vm53, %v36, 0.0
  %115 = vadd.xlane.f32.xlu0 %v114
  %v116 = vpop.xlane.xlu0 %115
  %v117 = vsel %vm53, %v37, 0.0
  %118 = vadd.xlane.f32.xlu0 %v117
  %v119 = vpop.xlane.xlu0 %118
  %v120 = vsel %vm53, %v38, 0.0
  %121 = vadd.xlane.f32.xlu0 %v120
  %v122 = vpop.xlane.xlu0 %121
  %v123 = vsel %vm53, %v39, 0.0
  %124 = vadd.xlane.f32.xlu0 %v123
  %v125 = vpop.xlane.xlu0 %124
  %v126 = vsel %vm53, %v40, 0.0
  %127 = vadd.xlane.f32.xlu0 %v126
  %v128 = vpop.xlane.xlu0 %127
  %v129 = vsel %vm53, %v41, 0.0
  %130 = vadd.xlane.f32.xlu0 %v129
  %v131 = vpop.xlane.xlu0 %130
  %v132 = vsel %vm53, %v42, 0.0
  %133 = vadd.xlane.f32.xlu0 %v132
  %v134 = vpop.xlane.xlu0 %133
  %v135 = vsel %vm53, %v43, 0.0
  %136 = vadd.xlane.f32.xlu0 %v135
  %v137 = vpop.xlane.xlu0 %136
  %v138 = vsel %vm53, %v44, 0.0
  %139 = vadd.xlane.f32.xlu0 %v138
  %v140 = vpop.xlane.xlu0 %139
  %v141 = vsel %vm53, %v45, 0.0
  %142 = vadd.xlane.f32.xlu0 %v141
  %v143 = vpop.xlane.xlu0 %142
  %v144 = vsel %vm53, %v46, 0.0
  %145 = vadd.xlane.f32.xlu0 %v144
  %v146 = vpop.xlane.xlu0 %145
  %v147 = vsel %vm53, %v47, 0.0
  %148 = vadd.xlane.f32.xlu0 %v147
  %v149 = vpop.xlane.xlu0 %148
  %v150 = vadd.f32 %v48, %v50
  %v151 = vrot.slane %v150, 4
  %v152 = vadd.f32 %v150, %v151
  %v153 = vrot.slane %v152, 2
  %v154 = vadd.f32 %v152, %v153
  %v155 = vrot.slane %v154, 1
  %v156 = vadd.f32 %v154, %v155
  %v157 = vadd.f32 %v49, %v51
  %v158 = vrot.slane %v157, 4
  %v159 = vadd.f32 %v157, %v158
  %v160 = vrot.slane %v159, 2
  %v161 = vadd.f32 %v159, %v160
  %v162 = vrot.slane %v161, 1
  %v163 = vadd.f32 %v161, %v162
  %vm164 = vcmp.gt.f32.partialorder %v16, 0.0
  %vm165 = vcmp.gt.f32.partialorder %v17, 0.0
  %vm166 = vcmp.gt.f32.partialorder %v18, 0.0
  %vm167 = vcmp.gt.f32.partialorder %v19, 0.0
  %vm168 = vcmp.gt.f32.partialorder %v20, 0.0
  %vm169 = vcmp.gt.f32.partialorder %v21, 0.0
  %vm170 = vcmp.gt.f32.partialorder %v22, 0.0
  %vm171 = vcmp.gt.f32.partialorder %v23, 0.0
  %vm172 = vcmp.gt.f32.partialorder %v24, 0.0
  %vm173 = vcmp.gt.f32.partialorder %v25, 0.0
  %vm174 = vcmp.gt.f32.partialorder %v26, 0.0
  %vm175 = vcmp.gt.f32.partialorder %v27, 0.0
  %vm176 = vcmp.gt.f32.partialorder %v28, 0.0
  %vm177 = vcmp.gt.f32.partialorder %v29, 0.0
  %vm178 = vcmp.gt.f32.partialorder %v30, 0.0
  %vm179 = vcmp.gt.f32.partialorder %v31, 0.0
  %vm180 = vcmp.gt.f32.partialorder %v32, 0.0
  %vm181 = vcmp.gt.f32.partialorder %v33, 0.0
  %vm182 = vcmp.gt.f32.partialorder %v34, 0.0
  %vm183 = vcmp.gt.f32.partialorder %v35, 0.0
  %vm184 = vcmp.gt.f32.partialorder %v36, 0.0
  %vm185 = vcmp.gt.f32.partialorder %v37, 0.0
  %vm186 = vcmp.gt.f32.partialorder %v38, 0.0
  %vm187 = vcmp.gt.f32.partialorder %v39, 0.0
  %vm188 = vcmp.gt.f32.partialorder %v40, 0.0
  %vm189 = vcmp.gt.f32.partialorder %v41, 0.0
  %vm190 = vcmp.gt.f32.partialorder %v42, 0.0
  %vm191 = vcmp.gt.f32.partialorder %v43, 0.0
  %vm192 = vcmp.gt.f32.partialorder %v44, 0.0
  %vm193 = vcmp.gt.f32.partialorder %v45, 0.0
  %vm194 = vcmp.gt.f32.partialorder %v46, 0.0
  %vm195 = vcmp.gt.f32.partialorder %v47, 0.0
  %v197 = vlaneseq
  %v198 = vshrl.u32 %v197, 7
  %v199 = vsub.s32 0, %v198
  %v200 = vrot.slane %v52, %v199
  %v202 = vsel %vm164, %v200, 0.0
  %v203 = vsel %vm165, %v200, 0.0
  %v204 = vsel %vm166, %v200, 0.0
  %v205 = vsel %vm167, %v200, 0.0
  %v206 = vsel %vm168, %v200, 0.0
  %v207 = vsel %vm169, %v200, 0.0
  %v208 = vsel %vm170, %v200, 0.0
  %v209 = vsel %vm171, %v200, 0.0
  %v210 = vsel %vm172, %v200, 0.0
  %v211 = vsel %vm173, %v200, 0.0
  %v212 = vsel %vm174, %v200, 0.0
  %v213 = vsel %vm175, %v200, 0.0
  %v214 = vsel %vm176, %v200, 0.0
  %v215 = vsel %vm177, %v200, 0.0
  %v216 = vsel %vm178, %v200, 0.0
  %v217 = vsel %vm179, %v200, 0.0
  %v218 = vsel %vm180, %v200, 0.0
  %v219 = vsel %vm181, %v200, 0.0
  %v220 = vsel %vm182, %v200, 0.0
  %v221 = vsel %vm183, %v200, 0.0
  %v222 = vsel %vm184, %v200, 0.0
  %v223 = vsel %vm185, %v200, 0.0
  %v224 = vsel %vm186, %v200, 0.0
  %v225 = vsel %vm187, %v200, 0.0
  %v226 = vsel %vm188, %v200, 0.0
  %v227 = vsel %vm189, %v200, 0.0
  %v228 = vsel %vm190, %v200, 0.0
  %v229 = vsel %vm191, %v200, 0.0
  %v230 = vsel %vm192, %v200, 0.0
  %v231 = vsel %vm193, %v200, 0.0
  %v232 = vsel %vm194, %v200, 0.0
  %v233 = vsel %vm195, %v200, 0.0
  %235 = vset.pattern.permute.xlu0 0
  %236 = vperm.xlu0 %235, %v16
  %v237 = vpop.permute.xlu0 %236
  %240 = vset.pattern.permute.xlu0 0
  %241 = vperm.xlu0 %240, %v17
  %v242 = vpop.permute.xlu0 %241
  %245 = vset.pattern.permute.xlu0 0
  %246 = vperm.xlu0 %245, %v18
  %v247 = vpop.permute.xlu0 %246
  %250 = vset.pattern.permute.xlu0 0
  %251 = vperm.xlu0 %250, %v19
  %v252 = vpop.permute.xlu0 %251
  %255 = vset.pattern.permute.xlu0 0
  %256 = vperm.xlu0 %255, %v20
  %v257 = vpop.permute.xlu0 %256
  %260 = vset.pattern.permute.xlu0 0
  %261 = vperm.xlu0 %260, %v21
  %v262 = vpop.permute.xlu0 %261
  %265 = vset.pattern.permute.xlu0 0
  %266 = vperm.xlu0 %265, %v22
  %v267 = vpop.permute.xlu0 %266
  %270 = vset.pattern.permute.xlu0 0
  %271 = vperm.xlu0 %270, %v23
  %v272 = vpop.permute.xlu0 %271
  %275 = vset.pattern.permute.xlu0 0
  %276 = vperm.xlu0 %275, %v24
  %v277 = vpop.permute.xlu0 %276
  %280 = vset.pattern.permute.xlu0 0
  %281 = vperm.xlu0 %280, %v25
  %v282 = vpop.permute.xlu0 %281
  %285 = vset.pattern.permute.xlu0 0
  %286 = vperm.xlu0 %285, %v26
  %v287 = vpop.permute.xlu0 %286
  %290 = vset.pattern.permute.xlu0 0
  %291 = vperm.xlu0 %290, %v27
  %v292 = vpop.permute.xlu0 %291
  %295 = vset.pattern.permute.xlu0 0
  %296 = vperm.xlu0 %295, %v28
  %v297 = vpop.permute.xlu0 %296
  %300 = vset.pattern.permute.xlu0 0
  %301 = vperm.xlu0 %300, %v29
  %v302 = vpop.permute.xlu0 %301
  %305 = vset.pattern.permute.xlu0 0
  %306 = vperm.xlu0 %305, %v30
  %v307 = vpop.permute.xlu0 %306
  %310 = vset.pattern.permute.xlu0 0
  %311 = vperm.xlu0 %310, %v31
  %v312 = vpop.permute.xlu0 %311
  %315 = vset.pattern.permute.xlu0 0
  %316 = vperm.xlu0 %315, %v32
  %v317 = vpop.permute.xlu0 %316
  %320 = vset.pattern.permute.xlu0 0
  %321 = vperm.xlu0 %320, %v33
  %v322 = vpop.permute.xlu0 %321
  %325 = vset.pattern.permute.xlu0 0
  %326 = vperm.xlu0 %325, %v34
  %v327 = vpop.permute.xlu0 %326
  %330 = vset.pattern.permute.xlu0 0
  %331 = vperm.xlu0 %330, %v35
  %v332 = vpop.permute.xlu0 %331
  %335 = vset.pattern.permute.xlu0 0
  %336 = vperm.xlu0 %335, %v36
  %v337 = vpop.permute.xlu0 %336
  %340 = vset.pattern.permute.xlu0 0
  %341 = vperm.xlu0 %340, %v37
  %v342 = vpop.permute.xlu0 %341
  %345 = vset.pattern.permute.xlu0 0
  %346 = vperm.xlu0 %345, %v38
  %v347 = vpop.permute.xlu0 %346
  %350 = vset.pattern.permute.xlu0 0
  %351 = vperm.xlu0 %350, %v39
  %v352 = vpop.permute.xlu0 %351
  %355 = vset.pattern.permute.xlu0 0
  %356 = vperm.xlu0 %355, %v40
  %v357 = vpop.permute.xlu0 %356
  %360 = vset.pattern.permute.xlu0 0
  %361 = vperm.xlu0 %360, %v41
  %v362 = vpop.permute.xlu0 %361
  %365 = vset.pattern.permute.xlu0 0
  %366 = vperm.xlu0 %365, %v42
  %v367 = vpop.permute.xlu0 %366
  %370 = vset.pattern.permute.xlu0 0
  %371 = vperm.xlu0 %370, %v43
  %v372 = vpop.permute.xlu0 %371
  %375 = vset.pattern.permute.xlu0 0
  %376 = vperm.xlu0 %375, %v44
  %v377 = vpop.permute.xlu0 %376
  %380 = vset.pattern.permute.xlu0 0
  %381 = vperm.xlu0 %380, %v45
  %v382 = vpop.permute.xlu0 %381
  %385 = vset.pattern.permute.xlu0 0
  %386 = vperm.xlu0 %385, %v46
  %v387 = vpop.permute.xlu0 %386
  %390 = vset.pattern.permute.xlu0 0
  %391 = vperm.xlu0 %390, %v47
  %v392 = vpop.permute.xlu0 %391
  %v394 = vlaneseq
  %v395 = vshrl.u32 %v394, 7
  %v396 = vsub.s32 0, %v395
  %v397 = vrot.slane %v48, %v396
  %v398 = vlaneseq
  %v399 = vshrl.u32 %v398, 7
  %v400 = vsub.s32 0, %v399
  %v401 = vrot.slane %v49, %v400
  %vm402 = vcmp.eq.f32.partialorder %v237, %v397
  %vm403 = vcmp.eq.f32.partialorder %v237, %v401
  %vm404 = vcmp.eq.f32.partialorder %v242, %v397
  %vm405 = vcmp.eq.f32.partialorder %v242, %v401
  %vm406 = vcmp.eq.f32.partialorder %v247, %v397
  %vm407 = vcmp.eq.f32.partialorder %v247, %v401
  %vm408 = vcmp.eq.f32.partialorder %v252, %v397
  %vm409 = vcmp.eq.f32.partialorder %v252, %v401
  %vm410 = vcmp.eq.f32.partialorder %v257, %v397
  %vm411 = vcmp.eq.f32.partialorder %v257, %v401
  %vm412 = vcmp.eq.f32.partialorder %v262, %v397
  %vm413 = vcmp.eq.f32.partialorder %v262, %v401
  %vm414 = vcmp.eq.f32.partialorder %v267, %v397
  %vm415 = vcmp.eq.f32.partialorder %v267, %v401
  %vm416 = vcmp.eq.f32.partialorder %v272, %v397
  %vm417 = vcmp.eq.f32.partialorder %v272, %v401
  %vm418 = vcmp.eq.f32.partialorder %v277, %v397
  %vm419 = vcmp.eq.f32.partialorder %v277, %v401
  %vm420 = vcmp.eq.f32.partialorder %v282, %v397
  %vm421 = vcmp.eq.f32.partialorder %v282, %v401
  %vm422 = vcmp.eq.f32.partialorder %v287, %v397
  %vm423 = vcmp.eq.f32.partialorder %v287, %v401
  %vm424 = vcmp.eq.f32.partialorder %v292, %v397
  %vm425 = vcmp.eq.f32.partialorder %v292, %v401
  %vm426 = vcmp.eq.f32.partialorder %v297, %v397
  %vm427 = vcmp.eq.f32.partialorder %v297, %v401
  %vm428 = vcmp.eq.f32.partialorder %v302, %v397
  %vm429 = vcmp.eq.f32.partialorder %v302, %v401
  %vm430 = vcmp.eq.f32.partialorder %v307, %v397
  %vm431 = vcmp.eq.f32.partialorder %v307, %v401
  %vm432 = vcmp.eq.f32.partialorder %v312, %v397
  %vm433 = vcmp.eq.f32.partialorder %v312, %v401
  %vm434 = vcmp.eq.f32.partialorder %v317, %v397
  %vm435 = vcmp.eq.f32.partialorder %v317, %v401
  %vm436 = vcmp.eq.f32.partialorder %v322, %v397
  %vm437 = vcmp.eq.f32.partialorder %v322, %v401
  %vm438 = vcmp.eq.f32.partialorder %v327, %v397
  %vm439 = vcmp.eq.f32.partialorder %v327, %v401
  %vm440 = vcmp.eq.f32.partialorder %v332, %v397
  %vm441 = vcmp.eq.f32.partialorder %v332, %v401
  %vm442 = vcmp.eq.f32.partialorder %v337, %v397
  %vm443 = vcmp.eq.f32.partialorder %v337, %v401
  %vm444 = vcmp.eq.f32.partialorder %v342, %v397
  %vm445 = vcmp.eq.f32.partialorder %v342, %v401
  %vm446 = vcmp.eq.f32.partialorder %v347, %v397
  %vm447 = vcmp.eq.f32.partialorder %v347, %v401
  %vm448 = vcmp.eq.f32.partialorder %v352, %v397
  %vm449 = vcmp.eq.f32.partialorder %v352, %v401
  %vm450 = vcmp.eq.f32.partialorder %v357, %v397
  %vm451 = vcmp.eq.f32.partialorder %v357, %v401
  %vm452 = vcmp.eq.f32.partialorder %v362, %v397
  %vm453 = vcmp.eq.f32.partialorder %v362, %v401
  %vm454 = vcmp.eq.f32.partialorder %v367, %v397
  %vm455 = vcmp.eq.f32.partialorder %v367, %v401
  %vm456 = vcmp.eq.f32.partialorder %v372, %v397
  %vm457 = vcmp.eq.f32.partialorder %v372, %v401
  %vm458 = vcmp.eq.f32.partialorder %v377, %v397
  %vm459 = vcmp.eq.f32.partialorder %v377, %v401
  %vm460 = vcmp.eq.f32.partialorder %v382, %v397
  %vm461 = vcmp.eq.f32.partialorder %v382, %v401
  %vm462 = vcmp.eq.f32.partialorder %v387, %v397
  %vm463 = vcmp.eq.f32.partialorder %v387, %v401
  %vm464 = vcmp.eq.f32.partialorder %v392, %v397
  %vm465 = vcmp.eq.f32.partialorder %v392, %v401
  %467 = vset.pattern.permute.xlu0 0
  %468 = vperm.xlu0 %467, %v202
  %v469 = vpop.permute.xlu0 %468
  %472 = vset.pattern.permute.xlu0 0
  %473 = vperm.xlu0 %472, %v203
  %v474 = vpop.permute.xlu0 %473
  %477 = vset.pattern.permute.xlu0 0
  %478 = vperm.xlu0 %477, %v204
  %v479 = vpop.permute.xlu0 %478
  %482 = vset.pattern.permute.xlu0 0
  %483 = vperm.xlu0 %482, %v205
  %v484 = vpop.permute.xlu0 %483
  %487 = vset.pattern.permute.xlu0 0
  %488 = vperm.xlu0 %487, %v206
  %v489 = vpop.permute.xlu0 %488
  %492 = vset.pattern.permute.xlu0 0
  %493 = vperm.xlu0 %492, %v207
  %v494 = vpop.permute.xlu0 %493
  %497 = vset.pattern.permute.xlu0 0
  %498 = vperm.xlu0 %497, %v208
  %v499 = vpop.permute.xlu0 %498
  %502 = vset.pattern.permute.xlu0 0
  %503 = vperm.xlu0 %502, %v209
  %v504 = vpop.permute.xlu0 %503
  %507 = vset.pattern.permute.xlu0 0
  %508 = vperm.xlu0 %507, %v210
  %v509 = vpop.permute.xlu0 %508
  %512 = vset.pattern.permute.xlu0 0
  %513 = vperm.xlu0 %512, %v211
  %v514 = vpop.permute.xlu0 %513
  %517 = vset.pattern.permute.xlu0 0
  %518 = vperm.xlu0 %517, %v212
  %v519 = vpop.permute.xlu0 %518
  %522 = vset.pattern.permute.xlu0 0
  %523 = vperm.xlu0 %522, %v213
  %v524 = vpop.permute.xlu0 %523
  %527 = vset.pattern.permute.xlu0 0
  %528 = vperm.xlu0 %527, %v214
  %v529 = vpop.permute.xlu0 %528
  %532 = vset.pattern.permute.xlu0 0
  %533 = vperm.xlu0 %532, %v215
  %v534 = vpop.permute.xlu0 %533
  %537 = vset.pattern.permute.xlu0 0
  %538 = vperm.xlu0 %537, %v216
  %v539 = vpop.permute.xlu0 %538
  %542 = vset.pattern.permute.xlu0 0
  %543 = vperm.xlu0 %542, %v217
  %v544 = vpop.permute.xlu0 %543
  %547 = vset.pattern.permute.xlu0 0
  %548 = vperm.xlu0 %547, %v218
  %v549 = vpop.permute.xlu0 %548
  %552 = vset.pattern.permute.xlu0 0
  %553 = vperm.xlu0 %552, %v219
  %v554 = vpop.permute.xlu0 %553
  %557 = vset.pattern.permute.xlu0 0
  %558 = vperm.xlu0 %557, %v220
  %v559 = vpop.permute.xlu0 %558
  %562 = vset.pattern.permute.xlu0 0
  %563 = vperm.xlu0 %562, %v221
  %v564 = vpop.permute.xlu0 %563
  %567 = vset.pattern.permute.xlu0 0
  %568 = vperm.xlu0 %567, %v222
  %v569 = vpop.permute.xlu0 %568
  %572 = vset.pattern.permute.xlu0 0
  %573 = vperm.xlu0 %572, %v223
  %v574 = vpop.permute.xlu0 %573
  %577 = vset.pattern.permute.xlu0 0
  %578 = vperm.xlu0 %577, %v224
  %v579 = vpop.permute.xlu0 %578
  %582 = vset.pattern.permute.xlu0 0
  %583 = vperm.xlu0 %582, %v225
  %v584 = vpop.permute.xlu0 %583
  %587 = vset.pattern.permute.xlu0 0
  %588 = vperm.xlu0 %587, %v226
  %v589 = vpop.permute.xlu0 %588
  %592 = vset.pattern.permute.xlu0 0
  %593 = vperm.xlu0 %592, %v227
  %v594 = vpop.permute.xlu0 %593
  %597 = vset.pattern.permute.xlu0 0
  %598 = vperm.xlu0 %597, %v228
  %v599 = vpop.permute.xlu0 %598
  %602 = vset.pattern.permute.xlu0 0
  %603 = vperm.xlu0 %602, %v229
  %v604 = vpop.permute.xlu0 %603
  %607 = vset.pattern.permute.xlu0 0
  %608 = vperm.xlu0 %607, %v230
  %v609 = vpop.permute.xlu0 %608
  %612 = vset.pattern.permute.xlu0 0
  %613 = vperm.xlu0 %612, %v231
  %v614 = vpop.permute.xlu0 %613
  %617 = vset.pattern.permute.xlu0 0
  %618 = vperm.xlu0 %617, %v232
  %v619 = vpop.permute.xlu0 %618
  %622 = vset.pattern.permute.xlu0 0
  %623 = vperm.xlu0 %622, %v233
  %v624 = vpop.permute.xlu0 %623
  %v626 = vsel %vm402, %v469, 0.0
  %v627 = vsel %vm403, %v469, 0.0
  %v628 = vsel %vm404, %v474, 0.0
  %v629 = vsel %vm405, %v474, 0.0
  %v630 = vsel %vm406, %v479, 0.0
  %v631 = vsel %vm407, %v479, 0.0
  %v632 = vsel %vm408, %v484, 0.0
  %v633 = vsel %vm409, %v484, 0.0
  %v634 = vsel %vm410, %v489, 0.0
  %v635 = vsel %vm411, %v489, 0.0
  %v636 = vsel %vm412, %v494, 0.0
  %v637 = vsel %vm413, %v494, 0.0
  %v638 = vsel %vm414, %v499, 0.0
  %v639 = vsel %vm415, %v499, 0.0
  %v640 = vsel %vm416, %v504, 0.0
  %v641 = vsel %vm417, %v504, 0.0
  %v642 = vsel %vm418, %v509, 0.0
  %v643 = vsel %vm419, %v509, 0.0
  %v644 = vsel %vm420, %v514, 0.0
  %v645 = vsel %vm421, %v514, 0.0
  %v646 = vsel %vm422, %v519, 0.0
  %v647 = vsel %vm423, %v519, 0.0
  %v648 = vsel %vm424, %v524, 0.0
  %v649 = vsel %vm425, %v524, 0.0
  %v650 = vsel %vm426, %v529, 0.0
  %v651 = vsel %vm427, %v529, 0.0
  %v652 = vsel %vm428, %v534, 0.0
  %v653 = vsel %vm429, %v534, 0.0
  %v654 = vsel %vm430, %v539, 0.0
  %v655 = vsel %vm431, %v539, 0.0
  %v656 = vsel %vm432, %v544, 0.0
  %v657 = vsel %vm433, %v544, 0.0
  %v658 = vsel %vm434, %v549, 0.0
  %v659 = vsel %vm435, %v549, 0.0
  %v660 = vsel %vm436, %v554, 0.0
  %v661 = vsel %vm437, %v554, 0.0
  %v662 = vsel %vm438, %v559, 0.0
  %v663 = vsel %vm439, %v559, 0.0
  %v664 = vsel %vm440, %v564, 0.0
  %v665 = vsel %vm441, %v564, 0.0
  %v666 = vsel %vm442, %v569, 0.0
  %v667 = vsel %vm443, %v569, 0.0
  %v668 = vsel %vm444, %v574, 0.0
  %v669 = vsel %vm445, %v574, 0.0
  %v670 = vsel %vm446, %v579, 0.0
  %v671 = vsel %vm447, %v579, 0.0
  %v672 = vsel %vm448, %v584, 0.0
  %v673 = vsel %vm449, %v584, 0.0
  %v674 = vsel %vm450, %v589, 0.0
  %v675 = vsel %vm451, %v589, 0.0
  %v676 = vsel %vm452, %v594, 0.0
  %v677 = vsel %vm453, %v594, 0.0
  %v678 = vsel %vm454, %v599, 0.0
  %v679 = vsel %vm455, %v599, 0.0
  %v680 = vsel %vm456, %v604, 0.0
  %v681 = vsel %vm457, %v604, 0.0
  %v682 = vsel %vm458, %v609, 0.0
  %v683 = vsel %vm459, %v609, 0.0
  %v684 = vsel %vm460, %v614, 0.0
  %v685 = vsel %vm461, %v614, 0.0
  %v686 = vsel %vm462, %v619, 0.0
  %v687 = vsel %vm463, %v619, 0.0
  %v688 = vsel %vm464, %v624, 0.0
  %v689 = vsel %vm465, %v624, 0.0
  %v690 = vadd.f32 %v626, 0.0
  %v691 = vadd.f32 %v627, 0.0
  %v692 = vadd.f32 %v628, 0.0
  %v693 = vadd.f32 %v629, 0.0
  %v694 = vadd.f32 %v630, 0.0
  %v695 = vadd.f32 %v631, 0.0
  %v696 = vadd.f32 %v632, 0.0
  %v697 = vadd.f32 %v633, 0.0
  %v698 = vadd.f32 %v634, 0.0
  %v699 = vadd.f32 %v635, 0.0
  %v700 = vadd.f32 %v636, 0.0
  %v701 = vadd.f32 %v637, 0.0
  %v702 = vadd.f32 %v638, 0.0
  %v703 = vadd.f32 %v639, 0.0
  %v704 = vadd.f32 %v640, 0.0
  %v705 = vadd.f32 %v641, 0.0
  %v706 = vadd.f32 %v642, 0.0
  %v707 = vadd.f32 %v643, 0.0
  %v708 = vadd.f32 %v644, 0.0
  %v709 = vadd.f32 %v645, 0.0
  %v710 = vadd.f32 %v646, 0.0
  %v711 = vadd.f32 %v647, 0.0
  %v712 = vadd.f32 %v648, 0.0
  %v713 = vadd.f32 %v649, 0.0
  %v714 = vadd.f32 %v650, 0.0
  %v715 = vadd.f32 %v651, 0.0
  %v716 = vadd.f32 %v652, 0.0
  %v717 = vadd.f32 %v653, 0.0
  %v718 = vadd.f32 %v654, 0.0
  %v719 = vadd.f32 %v655, 0.0
  %v720 = vadd.f32 %v656, 0.0
  %v721 = vadd.f32 %v657, 0.0
  %v722 = vadd.f32 %v658, 0.0
  %v723 = vadd.f32 %v659, 0.0
  %v724 = vadd.f32 %v660, 0.0
  %v725 = vadd.f32 %v661, 0.0
  %v726 = vadd.f32 %v662, 0.0
  %v727 = vadd.f32 %v663, 0.0
  %v728 = vadd.f32 %v664, 0.0
  %v729 = vadd.f32 %v665, 0.0
  %v730 = vadd.f32 %v666, 0.0
  %v731 = vadd.f32 %v667, 0.0
  %v732 = vadd.f32 %v668, 0.0
  %v733 = vadd.f32 %v669, 0.0
  %v734 = vadd.f32 %v670, 0.0
  %v735 = vadd.f32 %v671, 0.0
  %v736 = vadd.f32 %v672, 0.0
  %v737 = vadd.f32 %v673, 0.0
  %v738 = vadd.f32 %v674, 0.0
  %v739 = vadd.f32 %v675, 0.0
  %v740 = vadd.f32 %v676, 0.0
  %v741 = vadd.f32 %v677, 0.0
  %v742 = vadd.f32 %v678, 0.0
  %v743 = vadd.f32 %v679, 0.0
  %v744 = vadd.f32 %v680, 0.0
  %v745 = vadd.f32 %v681, 0.0
  %v746 = vadd.f32 %v682, 0.0
  %v747 = vadd.f32 %v683, 0.0
  %v748 = vadd.f32 %v684, 0.0
  %v749 = vadd.f32 %v685, 0.0
  %v750 = vadd.f32 %v686, 0.0
  %v751 = vadd.f32 %v687, 0.0
  %v752 = vadd.f32 %v688, 0.0
  %v753 = vadd.f32 %v689, 0.0
  %754 = vset.pattern.permute.xlu0 1
  %755 = vperm.xlu0 %754, %v16
  %v756 = vpop.permute.xlu0 %755
  %758 = vset.pattern.permute.xlu0 1
  %759 = vperm.xlu0 %758, %v17
  %v760 = vpop.permute.xlu0 %759
  %762 = vset.pattern.permute.xlu0 1
  %763 = vperm.xlu0 %762, %v18
  %v764 = vpop.permute.xlu0 %763
  %766 = vset.pattern.permute.xlu0 1
  %767 = vperm.xlu0 %766, %v19
  %v768 = vpop.permute.xlu0 %767
  %770 = vset.pattern.permute.xlu0 1
  %771 = vperm.xlu0 %770, %v20
  %v772 = vpop.permute.xlu0 %771
  %774 = vset.pattern.permute.xlu0 1
  %775 = vperm.xlu0 %774, %v21
  %v776 = vpop.permute.xlu0 %775
  %778 = vset.pattern.permute.xlu0 1
  %779 = vperm.xlu0 %778, %v22
  %v780 = vpop.permute.xlu0 %779
  %782 = vset.pattern.permute.xlu0 1
  %783 = vperm.xlu0 %782, %v23
  %v784 = vpop.permute.xlu0 %783
  %786 = vset.pattern.permute.xlu0 1
  %787 = vperm.xlu0 %786, %v24
  %v788 = vpop.permute.xlu0 %787
  %790 = vset.pattern.permute.xlu0 1
  %791 = vperm.xlu0 %790, %v25
  %v792 = vpop.permute.xlu0 %791
  %794 = vset.pattern.permute.xlu0 1
  %795 = vperm.xlu0 %794, %v26
  %v796 = vpop.permute.xlu0 %795
  %798 = vset.pattern.permute.xlu0 1
  %799 = vperm.xlu0 %798, %v27
  %v800 = vpop.permute.xlu0 %799
  %802 = vset.pattern.permute.xlu0 1
  %803 = vperm.xlu0 %802, %v28
  %v804 = vpop.permute.xlu0 %803
  %806 = vset.pattern.permute.xlu0 1
  %807 = vperm.xlu0 %806, %v29
  %v808 = vpop.permute.xlu0 %807
  %810 = vset.pattern.permute.xlu0 1
  %811 = vperm.xlu0 %810, %v30
  %v812 = vpop.permute.xlu0 %811
  %814 = vset.pattern.permute.xlu0 1
  %815 = vperm.xlu0 %814, %v31
  %v816 = vpop.permute.xlu0 %815
  %818 = vset.pattern.permute.xlu0 1
  %819 = vperm.xlu0 %818, %v32
  %v820 = vpop.permute.xlu0 %819
  %822 = vset.pattern.permute.xlu0 1
  %823 = vperm.xlu0 %822, %v33
  %v824 = vpop.permute.xlu0 %823
  %826 = vset.pattern.permute.xlu0 1
  %827 = vperm.xlu0 %826, %v34
  %v828 = vpop.permute.xlu0 %827
  %830 = vset.pattern.permute.xlu0 1
  %831 = vperm.xlu0 %830, %v35
  %v832 = vpop.permute.xlu0 %831
  %834 = vset.pattern.permute.xlu0 1
  %835 = vperm.xlu0 %834, %v36
  %v836 = vpop.permute.xlu0 %835
  %838 = vset.pattern.permute.xlu0 1
  %839 = vperm.xlu0 %838, %v37
  %v840 = vpop.permute.xlu0 %839
  %842 = vset.pattern.permute.xlu0 1
  %843 = vperm.xlu0 %842, %v38
  %v844 = vpop.permute.xlu0 %843
  %846 = vset.pattern.permute.xlu0 1
  %847 = vperm.xlu0 %846, %v39
  %v848 = vpop.permute.xlu0 %847
  %850 = vset.pattern.permute.xlu0 1
  %851 = vperm.xlu0 %850, %v40
  %v852 = vpop.permute.xlu0 %851
  %854 = vset.pattern.permute.xlu0 1
  %855 = vperm.xlu0 %854, %v41
  %v856 = vpop.permute.xlu0 %855
  %858 = vset.pattern.permute.xlu0 1
  %859 = vperm.xlu0 %858, %v42
  %v860 = vpop.permute.xlu0 %859
  %862 = vset.pattern.permute.xlu0 1
  %863 = vperm.xlu0 %862, %v43
  %v864 = vpop.permute.xlu0 %863
  %866 = vset.pattern.permute.xlu0 1
  %867 = vperm.xlu0 %866, %v44
  %v868 = vpop.permute.xlu0 %867
  %870 = vset.pattern.permute.xlu0 1
  %871 = vperm.xlu0 %870, %v45
  %v872 = vpop.permute.xlu0 %871
  %874 = vset.pattern.permute.xlu0 1
  %875 = vperm.xlu0 %874, %v46
  %v876 = vpop.permute.xlu0 %875
  %878 = vset.pattern.permute.xlu0 1
  %879 = vperm.xlu0 %878, %v47
  %v880 = vpop.permute.xlu0 %879
  %v882 = vlaneseq
  %v883 = vshrl.u32 %v882, 7
  %v884 = vsub.s32 1, %v883
  %v885 = vrot.slane %v48, %v884
  %v886 = vlaneseq
  %v887 = vshrl.u32 %v886, 7
  %v888 = vsub.s32 1, %v887
  %v889 = vrot.slane %v49, %v888
  %vm890 = vcmp.eq.f32.partialorder %v756, %v885
  %vm891 = vcmp.eq.f32.partialorder %v756, %v889
  %vm892 = vcmp.eq.f32.partialorder %v760, %v885
  %vm893 = vcmp.eq.f32.partialorder %v760, %v889
  %vm894 = vcmp.eq.f32.partialorder %v764, %v885
  %vm895 = vcmp.eq.f32.partialorder %v764, %v889
  %vm896 = vcmp.eq.f32.partialorder %v768, %v885
  %vm897 = vcmp.eq.f32.partialorder %v768, %v889
  %vm898 = vcmp.eq.f32.partialorder %v772, %v885
  %vm899 = vcmp.eq.f32.partialorder %v772, %v889
  %vm900 = vcmp.eq.f32.partialorder %v776, %v885
  %vm901 = vcmp.eq.f32.partialorder %v776, %v889
  %vm902 = vcmp.eq.f32.partialorder %v780, %v885
  %vm903 = vcmp.eq.f32.partialorder %v780, %v889
  %vm904 = vcmp.eq.f32.partialorder %v784, %v885
  %vm905 = vcmp.eq.f32.partialorder %v784, %v889
  %vm906 = vcmp.eq.f32.partialorder %v788, %v885
  %vm907 = vcmp.eq.f32.partialorder %v788, %v889
  %vm908 = vcmp.eq.f32.partialorder %v792, %v885
  %vm909 = vcmp.eq.f32.partialorder %v792, %v889
  %vm910 = vcmp.eq.f32.partialorder %v796, %v885
  %vm911 = vcmp.eq.f32.partialorder %v796, %v889
  %vm912 = vcmp.eq.f32.partialorder %v800, %v885
  %vm913 = vcmp.eq.f32.partialorder %v800, %v889
  %vm914 = vcmp.eq.f32.partialorder %v804, %v885
  %vm915 = vcmp.eq.f32.partialorder %v804, %v889
  %vm916 = vcmp.eq.f32.partialorder %v808, %v885
  %vm917 = vcmp.eq.f32.partialorder %v808, %v889
  %vm918 = vcmp.eq.f32.partialorder %v812, %v885
  %vm919 = vcmp.eq.f32.partialorder %v812, %v889
  %vm920 = vcmp.eq.f32.partialorder %v816, %v885
  %vm921 = vcmp.eq.f32.partialorder %v816, %v889
  %vm922 = vcmp.eq.f32.partialorder %v820, %v885
  %vm923 = vcmp.eq.f32.partialorder %v820, %v889
  %vm924 = vcmp.eq.f32.partialorder %v824, %v885
  %vm925 = vcmp.eq.f32.partialorder %v824, %v889
  %vm926 = vcmp.eq.f32.partialorder %v828, %v885
  %vm927 = vcmp.eq.f32.partialorder %v828, %v889
  %vm928 = vcmp.eq.f32.partialorder %v832, %v885
  %vm929 = vcmp.eq.f32.partialorder %v832, %v889
  %vm930 = vcmp.eq.f32.partialorder %v836, %v885
  %vm931 = vcmp.eq.f32.partialorder %v836, %v889
  %vm932 = vcmp.eq.f32.partialorder %v840, %v885
  %vm933 = vcmp.eq.f32.partialorder %v840, %v889
  %vm934 = vcmp.eq.f32.partialorder %v844, %v885
  %vm935 = vcmp.eq.f32.partialorder %v844, %v889
  %vm936 = vcmp.eq.f32.partialorder %v848, %v885
  %vm937 = vcmp.eq.f32.partialorder %v848, %v889
  %vm938 = vcmp.eq.f32.partialorder %v852, %v885
  %vm939 = vcmp.eq.f32.partialorder %v852, %v889
  %vm940 = vcmp.eq.f32.partialorder %v856, %v885
  %vm941 = vcmp.eq.f32.partialorder %v856, %v889
  %vm942 = vcmp.eq.f32.partialorder %v860, %v885
  %vm943 = vcmp.eq.f32.partialorder %v860, %v889
  %vm944 = vcmp.eq.f32.partialorder %v864, %v885
  %vm945 = vcmp.eq.f32.partialorder %v864, %v889
  %vm946 = vcmp.eq.f32.partialorder %v868, %v885
  %vm947 = vcmp.eq.f32.partialorder %v868, %v889
  %vm948 = vcmp.eq.f32.partialorder %v872, %v885
  %vm949 = vcmp.eq.f32.partialorder %v872, %v889
  %vm950 = vcmp.eq.f32.partialorder %v876, %v885
  %vm951 = vcmp.eq.f32.partialorder %v876, %v889
  %vm952 = vcmp.eq.f32.partialorder %v880, %v885
  %vm953 = vcmp.eq.f32.partialorder %v880, %v889
  %954 = vset.pattern.permute.xlu0 1
  %955 = vperm.xlu0 %954, %v202
  %v956 = vpop.permute.xlu0 %955
  %958 = vset.pattern.permute.xlu0 1
  %959 = vperm.xlu0 %958, %v203
  %v960 = vpop.permute.xlu0 %959
  %962 = vset.pattern.permute.xlu0 1
  %963 = vperm.xlu0 %962, %v204
  %v964 = vpop.permute.xlu0 %963
  %966 = vset.pattern.permute.xlu0 1
  %967 = vperm.xlu0 %966, %v205
  %v968 = vpop.permute.xlu0 %967
  %970 = vset.pattern.permute.xlu0 1
  %971 = vperm.xlu0 %970, %v206
  %v972 = vpop.permute.xlu0 %971
  %974 = vset.pattern.permute.xlu0 1
  %975 = vperm.xlu0 %974, %v207
  %v976 = vpop.permute.xlu0 %975
  %978 = vset.pattern.permute.xlu0 1
  %979 = vperm.xlu0 %978, %v208
  %v980 = vpop.permute.xlu0 %979
  %982 = vset.pattern.permute.xlu0 1
  %983 = vperm.xlu0 %982, %v209
  %v984 = vpop.permute.xlu0 %983
  %986 = vset.pattern.permute.xlu0 1
  %987 = vperm.xlu0 %986, %v210
  %v988 = vpop.permute.xlu0 %987
  %990 = vset.pattern.permute.xlu0 1
  %991 = vperm.xlu0 %990, %v211
  %v992 = vpop.permute.xlu0 %991
  %994 = vset.pattern.permute.xlu0 1
  %995 = vperm.xlu0 %994, %v212
  %v996 = vpop.permute.xlu0 %995
  %998 = vset.pattern.permute.xlu0 1
  %999 = vperm.xlu0 %998, %v213
  %v1000 = vpop.permute.xlu0 %999
  %1002 = vset.pattern.permute.xlu0 1
  %1003 = vperm.xlu0 %1002, %v214
  %v1004 = vpop.permute.xlu0 %1003
  %1006 = vset.pattern.permute.xlu0 1
  %1007 = vperm.xlu0 %1006, %v215
  %v1008 = vpop.permute.xlu0 %1007
  %1010 = vset.pattern.permute.xlu0 1
  %1011 = vperm.xlu0 %1010, %v216
  %v1012 = vpop.permute.xlu0 %1011
  %1014 = vset.pattern.permute.xlu0 1
  %1015 = vperm.xlu0 %1014, %v217
  %v1016 = vpop.permute.xlu0 %1015
  %1018 = vset.pattern.permute.xlu0 1
  %1019 = vperm.xlu0 %1018, %v218
  %v1020 = vpop.permute.xlu0 %1019
  %1022 = vset.pattern.permute.xlu0 1
  %1023 = vperm.xlu0 %1022, %v219
  %v1024 = vpop.permute.xlu0 %1023
  %1026 = vset.pattern.permute.xlu0 1
  %1027 = vperm.xlu0 %1026, %v220
  %v1028 = vpop.permute.xlu0 %1027
  %1030 = vset.pattern.permute.xlu0 1
  %1031 = vperm.xlu0 %1030, %v221
  %v1032 = vpop.permute.xlu0 %1031
  %1034 = vset.pattern.permute.xlu0 1
  %1035 = vperm.xlu0 %1034, %v222
  %v1036 = vpop.permute.xlu0 %1035
  %1038 = vset.pattern.permute.xlu0 1
  %1039 = vperm.xlu0 %1038, %v223
  %v1040 = vpop.permute.xlu0 %1039
  %1042 = vset.pattern.permute.xlu0 1
  %1043 = vperm.xlu0 %1042, %v224
  %v1044 = vpop.permute.xlu0 %1043
  %1046 = vset.pattern.permute.xlu0 1
  %1047 = vperm.xlu0 %1046, %v225
  %v1048 = vpop.permute.xlu0 %1047
  %1050 = vset.pattern.permute.xlu0 1
  %1051 = vperm.xlu0 %1050, %v226
  %v1052 = vpop.permute.xlu0 %1051
  %1054 = vset.pattern.permute.xlu0 1
  %1055 = vperm.xlu0 %1054, %v227
  %v1056 = vpop.permute.xlu0 %1055
  %1058 = vset.pattern.permute.xlu0 1
  %1059 = vperm.xlu0 %1058, %v228
  %v1060 = vpop.permute.xlu0 %1059
  %1062 = vset.pattern.permute.xlu0 1
  %1063 = vperm.xlu0 %1062, %v229
  %v1064 = vpop.permute.xlu0 %1063
  %1066 = vset.pattern.permute.xlu0 1
  %1067 = vperm.xlu0 %1066, %v230
  %v1068 = vpop.permute.xlu0 %1067
  %1070 = vset.pattern.permute.xlu0 1
  %1071 = vperm.xlu0 %1070, %v231
  %v1072 = vpop.permute.xlu0 %1071
  %1074 = vset.pattern.permute.xlu0 1
  %1075 = vperm.xlu0 %1074, %v232
  %v1076 = vpop.permute.xlu0 %1075
  %1078 = vset.pattern.permute.xlu0 1
  %1079 = vperm.xlu0 %1078, %v233
  %v1080 = vpop.permute.xlu0 %1079
  %v1082 = vsel %vm890, %v956, 0.0
  %v1083 = vsel %vm891, %v956, 0.0
  %v1084 = vsel %vm892, %v960, 0.0
  %v1085 = vsel %vm893, %v960, 0.0
  %v1086 = vsel %vm894, %v964, 0.0
  %v1087 = vsel %vm895, %v964, 0.0
  %v1088 = vsel %vm896, %v968, 0.0
  %v1089 = vsel %vm897, %v968, 0.0
  %v1090 = vsel %vm898, %v972, 0.0
  %v1091 = vsel %vm899, %v972, 0.0
  %v1092 = vsel %vm900, %v976, 0.0
  %v1093 = vsel %vm901, %v976, 0.0
  %v1094 = vsel %vm902, %v980, 0.0
  %v1095 = vsel %vm903, %v980, 0.0
  %v1096 = vsel %vm904, %v984, 0.0
  %v1097 = vsel %vm905, %v984, 0.0
  %v1098 = vsel %vm906, %v988, 0.0
  %v1099 = vsel %vm907, %v988, 0.0
  %v1100 = vsel %vm908, %v992, 0.0
  %v1101 = vsel %vm909, %v992, 0.0
  %v1102 = vsel %vm910, %v996, 0.0
  %v1103 = vsel %vm911, %v996, 0.0
  %v1104 = vsel %vm912, %v1000, 0.0
  %v1105 = vsel %vm913, %v1000, 0.0
  %v1106 = vsel %vm914, %v1004, 0.0
  %v1107 = vsel %vm915, %v1004, 0.0
  %v1108 = vsel %vm916, %v1008, 0.0
  %v1109 = vsel %vm917, %v1008, 0.0
  %v1110 = vsel %vm918, %v1012, 0.0
  %v1111 = vsel %vm919, %v1012, 0.0
  %v1112 = vsel %vm920, %v1016, 0.0
  %v1113 = vsel %vm921, %v1016, 0.0
  %v1114 = vsel %vm922, %v1020, 0.0
  %v1115 = vsel %vm923, %v1020, 0.0
  %v1116 = vsel %vm924, %v1024, 0.0
  %v1117 = vsel %vm925, %v1024, 0.0
  %v1118 = vsel %vm926, %v1028, 0.0
  %v1119 = vsel %vm927, %v1028, 0.0
  %v1120 = vsel %vm928, %v1032, 0.0
  %v1121 = vsel %vm929, %v1032, 0.0
  %v1122 = vsel %vm930, %v1036, 0.0
  %v1123 = vsel %vm931, %v1036, 0.0
  %v1124 = vsel %vm932, %v1040, 0.0
  %v1125 = vsel %vm933, %v1040, 0.0
  %v1126 = vsel %vm934, %v1044, 0.0
  %v1127 = vsel %vm935, %v1044, 0.0
  %v1128 = vsel %vm936, %v1048, 0.0
  %v1129 = vsel %vm937, %v1048, 0.0
  %v1130 = vsel %vm938, %v1052, 0.0
  %v1131 = vsel %vm939, %v1052, 0.0
  %v1132 = vsel %vm940, %v1056, 0.0
  %v1133 = vsel %vm941, %v1056, 0.0
  %v1134 = vsel %vm942, %v1060, 0.0
  %v1135 = vsel %vm943, %v1060, 0.0
  %v1136 = vsel %vm944, %v1064, 0.0
  %v1137 = vsel %vm945, %v1064, 0.0
  %v1138 = vsel %vm946, %v1068, 0.0
  %v1139 = vsel %vm947, %v1068, 0.0
  %v1140 = vsel %vm948, %v1072, 0.0
  %v1141 = vsel %vm949, %v1072, 0.0
  %v1142 = vsel %vm950, %v1076, 0.0
  %v1143 = vsel %vm951, %v1076, 0.0
  %v1144 = vsel %vm952, %v1080, 0.0
  %v1145 = vsel %vm953, %v1080, 0.0
  %v1146 = vadd.f32 %v690, %v1082
  %v1147 = vadd.f32 %v691, %v1083
  %v1148 = vadd.f32 %v692, %v1084
  %v1149 = vadd.f32 %v693, %v1085
  %v1150 = vadd.f32 %v694, %v1086
  %v1151 = vadd.f32 %v695, %v1087
  %v1152 = vadd.f32 %v696, %v1088
  %v1153 = vadd.f32 %v697, %v1089
  %v1154 = vadd.f32 %v698, %v1090
  %v1155 = vadd.f32 %v699, %v1091
  %v1156 = vadd.f32 %v700, %v1092
  %v1157 = vadd.f32 %v701, %v1093
  %v1158 = vadd.f32 %v702, %v1094
  %v1159 = vadd.f32 %v703, %v1095
  %v1160 = vadd.f32 %v704, %v1096
  %v1161 = vadd.f32 %v705, %v1097
  %v1162 = vadd.f32 %v706, %v1098
  %v1163 = vadd.f32 %v707, %v1099
  %v1164 = vadd.f32 %v708, %v1100
  %v1165 = vadd.f32 %v709, %v1101
  %v1166 = vadd.f32 %v710, %v1102
  %v1167 = vadd.f32 %v711, %v1103
  %v1168 = vadd.f32 %v712, %v1104
  %v1169 = vadd.f32 %v713, %v1105
  %v1170 = vadd.f32 %v714, %v1106
  %v1171 = vadd.f32 %v715, %v1107
  %v1172 = vadd.f32 %v716, %v1108
  %v1173 = vadd.f32 %v717, %v1109
  %v1174 = vadd.f32 %v718, %v1110
  %v1175 = vadd.f32 %v719, %v1111
  %v1176 = vadd.f32 %v720, %v1112
  %v1177 = vadd.f32 %v721, %v1113
  %v1178 = vadd.f32 %v722, %v1114
  %v1179 = vadd.f32 %v723, %v1115
  %v1180 = vadd.f32 %v724, %v1116
  %v1181 = vadd.f32 %v725, %v1117
  %v1182 = vadd.f32 %v726, %v1118
  %v1183 = vadd.f32 %v727, %v1119
  %v1184 = vadd.f32 %v728, %v1120
  %v1185 = vadd.f32 %v729, %v1121
  %v1186 = vadd.f32 %v730, %v1122
  %v1187 = vadd.f32 %v731, %v1123
  %v1188 = vadd.f32 %v732, %v1124
  %v1189 = vadd.f32 %v733, %v1125
  %v1190 = vadd.f32 %v734, %v1126
  %v1191 = vadd.f32 %v735, %v1127
  %v1192 = vadd.f32 %v736, %v1128
  %v1193 = vadd.f32 %v737, %v1129
  %v1194 = vadd.f32 %v738, %v1130
  %v1195 = vadd.f32 %v739, %v1131
  %v1196 = vadd.f32 %v740, %v1132
  %v1197 = vadd.f32 %v741, %v1133
  %v1198 = vadd.f32 %v742, %v1134
  %v1199 = vadd.f32 %v743, %v1135
  %v1200 = vadd.f32 %v744, %v1136
  %v1201 = vadd.f32 %v745, %v1137
  %v1202 = vadd.f32 %v746, %v1138
  %v1203 = vadd.f32 %v747, %v1139
  %v1204 = vadd.f32 %v748, %v1140
  %v1205 = vadd.f32 %v749, %v1141
  %v1206 = vadd.f32 %v750, %v1142
  %v1207 = vadd.f32 %v751, %v1143
  %v1208 = vadd.f32 %v752, %v1144
  %v1209 = vadd.f32 %v753, %v1145
  %1210 = vset.pattern.permute.xlu0 2
  %1211 = vperm.xlu0 %1210, %v16
  %v1212 = vpop.permute.xlu0 %1211
  %1214 = vset.pattern.permute.xlu0 2
  %1215 = vperm.xlu0 %1214, %v17
  %v1216 = vpop.permute.xlu0 %1215
  %1218 = vset.pattern.permute.xlu0 2
  %1219 = vperm.xlu0 %1218, %v18
  %v1220 = vpop.permute.xlu0 %1219
  %1222 = vset.pattern.permute.xlu0 2
  %1223 = vperm.xlu0 %1222, %v19
  %v1224 = vpop.permute.xlu0 %1223
  %1226 = vset.pattern.permute.xlu0 2
  %1227 = vperm.xlu0 %1226, %v20
  %v1228 = vpop.permute.xlu0 %1227
  %1230 = vset.pattern.permute.xlu0 2
  %1231 = vperm.xlu0 %1230, %v21
  %v1232 = vpop.permute.xlu0 %1231
  %1234 = vset.pattern.permute.xlu0 2
  %1235 = vperm.xlu0 %1234, %v22
  %v1236 = vpop.permute.xlu0 %1235
  %1238 = vset.pattern.permute.xlu0 2
  %1239 = vperm.xlu0 %1238, %v23
  %v1240 = vpop.permute.xlu0 %1239
  %1242 = vset.pattern.permute.xlu0 2
  %1243 = vperm.xlu0 %1242, %v24
  %v1244 = vpop.permute.xlu0 %1243
  %1246 = vset.pattern.permute.xlu0 2
  %1247 = vperm.xlu0 %1246, %v25
  %v1248 = vpop.permute.xlu0 %1247
  %1250 = vset.pattern.permute.xlu0 2
  %1251 = vperm.xlu0 %1250, %v26
  %v1252 = vpop.permute.xlu0 %1251
  %1254 = vset.pattern.permute.xlu0 2
  %1255 = vperm.xlu0 %1254, %v27
  %v1256 = vpop.permute.xlu0 %1255
  %1258 = vset.pattern.permute.xlu0 2
  %1259 = vperm.xlu0 %1258, %v28
  %v1260 = vpop.permute.xlu0 %1259
  %1262 = vset.pattern.permute.xlu0 2
  %1263 = vperm.xlu0 %1262, %v29
  %v1264 = vpop.permute.xlu0 %1263
  %1266 = vset.pattern.permute.xlu0 2
  %1267 = vperm.xlu0 %1266, %v30
  %v1268 = vpop.permute.xlu0 %1267
  %1270 = vset.pattern.permute.xlu0 2
  %1271 = vperm.xlu0 %1270, %v31
  %v1272 = vpop.permute.xlu0 %1271
  %1274 = vset.pattern.permute.xlu0 2
  %1275 = vperm.xlu0 %1274, %v32
  %v1276 = vpop.permute.xlu0 %1275
  %1278 = vset.pattern.permute.xlu0 2
  %1279 = vperm.xlu0 %1278, %v33
  %v1280 = vpop.permute.xlu0 %1279
  %1282 = vset.pattern.permute.xlu0 2
  %1283 = vperm.xlu0 %1282, %v34
  %v1284 = vpop.permute.xlu0 %1283
  %1286 = vset.pattern.permute.xlu0 2
  %1287 = vperm.xlu0 %1286, %v35
  %v1288 = vpop.permute.xlu0 %1287
  %1290 = vset.pattern.permute.xlu0 2
  %1291 = vperm.xlu0 %1290, %v36
  %v1292 = vpop.permute.xlu0 %1291
  %1294 = vset.pattern.permute.xlu0 2
  %1295 = vperm.xlu0 %1294, %v37
  %v1296 = vpop.permute.xlu0 %1295
  %1298 = vset.pattern.permute.xlu0 2
  %1299 = vperm.xlu0 %1298, %v38
  %v1300 = vpop.permute.xlu0 %1299
  %1302 = vset.pattern.permute.xlu0 2
  %1303 = vperm.xlu0 %1302, %v39
  %v1304 = vpop.permute.xlu0 %1303
  %1306 = vset.pattern.permute.xlu0 2
  %1307 = vperm.xlu0 %1306, %v40
  %v1308 = vpop.permute.xlu0 %1307
  %1310 = vset.pattern.permute.xlu0 2
  %1311 = vperm.xlu0 %1310, %v41
  %v1312 = vpop.permute.xlu0 %1311
  %1314 = vset.pattern.permute.xlu0 2
  %1315 = vperm.xlu0 %1314, %v42
  %v1316 = vpop.permute.xlu0 %1315
  %1318 = vset.pattern.permute.xlu0 2
  %1319 = vperm.xlu0 %1318, %v43
  %v1320 = vpop.permute.xlu0 %1319
  %1322 = vset.pattern.permute.xlu0 2
  %1323 = vperm.xlu0 %1322, %v44
  %v1324 = vpop.permute.xlu0 %1323
  %1326 = vset.pattern.permute.xlu0 2
  %1327 = vperm.xlu0 %1326, %v45
  %v1328 = vpop.permute.xlu0 %1327
  %1330 = vset.pattern.permute.xlu0 2
  %1331 = vperm.xlu0 %1330, %v46
  %v1332 = vpop.permute.xlu0 %1331
  %1334 = vset.pattern.permute.xlu0 2
  %1335 = vperm.xlu0 %1334, %v47
  %v1336 = vpop.permute.xlu0 %1335
  %v1338 = vlaneseq
  %v1339 = vshrl.u32 %v1338, 7
  %v1340 = vsub.s32 2, %v1339
  %v1341 = vrot.slane %v48, %v1340
  %v1342 = vlaneseq
  %v1343 = vshrl.u32 %v1342, 7
  %v1344 = vsub.s32 2, %v1343
  %v1345 = vrot.slane %v49, %v1344
  %vm1346 = vcmp.eq.f32.partialorder %v1212, %v1341
  %vm1347 = vcmp.eq.f32.partialorder %v1212, %v1345
  %vm1348 = vcmp.eq.f32.partialorder %v1216, %v1341
  %vm1349 = vcmp.eq.f32.partialorder %v1216, %v1345
  %vm1350 = vcmp.eq.f32.partialorder %v1220, %v1341
  %vm1351 = vcmp.eq.f32.partialorder %v1220, %v1345
  %vm1352 = vcmp.eq.f32.partialorder %v1224, %v1341
  %vm1353 = vcmp.eq.f32.partialorder %v1224, %v1345
  %vm1354 = vcmp.eq.f32.partialorder %v1228, %v1341
  %vm1355 = vcmp.eq.f32.partialorder %v1228, %v1345
  %vm1356 = vcmp.eq.f32.partialorder %v1232, %v1341
  %vm1357 = vcmp.eq.f32.partialorder %v1232, %v1345
  %vm1358 = vcmp.eq.f32.partialorder %v1236, %v1341
  %vm1359 = vcmp.eq.f32.partialorder %v1236, %v1345
  %vm1360 = vcmp.eq.f32.partialorder %v1240, %v1341
  %vm1361 = vcmp.eq.f32.partialorder %v1240, %v1345
  %vm1362 = vcmp.eq.f32.partialorder %v1244, %v1341
  %vm1363 = vcmp.eq.f32.partialorder %v1244, %v1345
  %vm1364 = vcmp.eq.f32.partialorder %v1248, %v1341
  %vm1365 = vcmp.eq.f32.partialorder %v1248, %v1345
  %vm1366 = vcmp.eq.f32.partialorder %v1252, %v1341
  %vm1367 = vcmp.eq.f32.partialorder %v1252, %v1345
  %vm1368 = vcmp.eq.f32.partialorder %v1256, %v1341
  %vm1369 = vcmp.eq.f32.partialorder %v1256, %v1345
  %vm1370 = vcmp.eq.f32.partialorder %v1260, %v1341
  %vm1371 = vcmp.eq.f32.partialorder %v1260, %v1345
  %vm1372 = vcmp.eq.f32.partialorder %v1264, %v1341
  %vm1373 = vcmp.eq.f32.partialorder %v1264, %v1345
  %vm1374 = vcmp.eq.f32.partialorder %v1268, %v1341
  %vm1375 = vcmp.eq.f32.partialorder %v1268, %v1345
  %vm1376 = vcmp.eq.f32.partialorder %v1272, %v1341
  %vm1377 = vcmp.eq.f32.partialorder %v1272, %v1345
  %vm1378 = vcmp.eq.f32.partialorder %v1276, %v1341
  %vm1379 = vcmp.eq.f32.partialorder %v1276, %v1345
  %vm1380 = vcmp.eq.f32.partialorder %v1280, %v1341
  %vm1381 = vcmp.eq.f32.partialorder %v1280, %v1345
  %vm1382 = vcmp.eq.f32.partialorder %v1284, %v1341
  %vm1383 = vcmp.eq.f32.partialorder %v1284, %v1345
  %vm1384 = vcmp.eq.f32.partialorder %v1288, %v1341
  %vm1385 = vcmp.eq.f32.partialorder %v1288, %v1345
  %vm1386 = vcmp.eq.f32.partialorder %v1292, %v1341
  %vm1387 = vcmp.eq.f32.partialorder %v1292, %v1345
  %vm1388 = vcmp.eq.f32.partialorder %v1296, %v1341
  %vm1389 = vcmp.eq.f32.partialorder %v1296, %v1345
  %vm1390 = vcmp.eq.f32.partialorder %v1300, %v1341
  %vm1391 = vcmp.eq.f32.partialorder %v1300, %v1345
  %vm1392 = vcmp.eq.f32.partialorder %v1304, %v1341
  %vm1393 = vcmp.eq.f32.partialorder %v1304, %v1345
  %vm1394 = vcmp.eq.f32.partialorder %v1308, %v1341
  %vm1395 = vcmp.eq.f32.partialorder %v1308, %v1345
  %vm1396 = vcmp.eq.f32.partialorder %v1312, %v1341
  %vm1397 = vcmp.eq.f32.partialorder %v1312, %v1345
  %vm1398 = vcmp.eq.f32.partialorder %v1316, %v1341
  %vm1399 = vcmp.eq.f32.partialorder %v1316, %v1345
  %vm1400 = vcmp.eq.f32.partialorder %v1320, %v1341
  %vm1401 = vcmp.eq.f32.partialorder %v1320, %v1345
  %vm1402 = vcmp.eq.f32.partialorder %v1324, %v1341
  %vm1403 = vcmp.eq.f32.partialorder %v1324, %v1345
  %vm1404 = vcmp.eq.f32.partialorder %v1328, %v1341
  %vm1405 = vcmp.eq.f32.partialorder %v1328, %v1345
  %vm1406 = vcmp.eq.f32.partialorder %v1332, %v1341
  %vm1407 = vcmp.eq.f32.partialorder %v1332, %v1345
  %vm1408 = vcmp.eq.f32.partialorder %v1336, %v1341
  %vm1409 = vcmp.eq.f32.partialorder %v1336, %v1345
  %1410 = vset.pattern.permute.xlu0 2
  %1411 = vperm.xlu0 %1410, %v202
  %v1412 = vpop.permute.xlu0 %1411
  %1414 = vset.pattern.permute.xlu0 2
  %1415 = vperm.xlu0 %1414, %v203
  %v1416 = vpop.permute.xlu0 %1415
  %1418 = vset.pattern.permute.xlu0 2
  %1419 = vperm.xlu0 %1418, %v204
  %v1420 = vpop.permute.xlu0 %1419
  %1422 = vset.pattern.permute.xlu0 2
  %1423 = vperm.xlu0 %1422, %v205
  %v1424 = vpop.permute.xlu0 %1423
  %1426 = vset.pattern.permute.xlu0 2
  %1427 = vperm.xlu0 %1426, %v206
  %v1428 = vpop.permute.xlu0 %1427
  %1430 = vset.pattern.permute.xlu0 2
  %1431 = vperm.xlu0 %1430, %v207
  %v1432 = vpop.permute.xlu0 %1431
  %1434 = vset.pattern.permute.xlu0 2
  %1435 = vperm.xlu0 %1434, %v208
  %v1436 = vpop.permute.xlu0 %1435
  %1438 = vset.pattern.permute.xlu0 2
  %1439 = vperm.xlu0 %1438, %v209
  %v1440 = vpop.permute.xlu0 %1439
  %1442 = vset.pattern.permute.xlu0 2
  %1443 = vperm.xlu0 %1442, %v210
  %v1444 = vpop.permute.xlu0 %1443
  %1446 = vset.pattern.permute.xlu0 2
  %1447 = vperm.xlu0 %1446, %v211
  %v1448 = vpop.permute.xlu0 %1447
  %1450 = vset.pattern.permute.xlu0 2
  %1451 = vperm.xlu0 %1450, %v212
  %v1452 = vpop.permute.xlu0 %1451
  %1454 = vset.pattern.permute.xlu0 2
  %1455 = vperm.xlu0 %1454, %v213
  %v1456 = vpop.permute.xlu0 %1455
  %1458 = vset.pattern.permute.xlu0 2
  %1459 = vperm.xlu0 %1458, %v214
  %v1460 = vpop.permute.xlu0 %1459
  %1462 = vset.pattern.permute.xlu0 2
  %1463 = vperm.xlu0 %1462, %v215
  %v1464 = vpop.permute.xlu0 %1463
  %1466 = vset.pattern.permute.xlu0 2
  %1467 = vperm.xlu0 %1466, %v216
  %v1468 = vpop.permute.xlu0 %1467
  %1470 = vset.pattern.permute.xlu0 2
  %1471 = vperm.xlu0 %1470, %v217
  %v1472 = vpop.permute.xlu0 %1471
  %1474 = vset.pattern.permute.xlu0 2
  %1475 = vperm.xlu0 %1474, %v218
  %v1476 = vpop.permute.xlu0 %1475
  %1478 = vset.pattern.permute.xlu0 2
  %1479 = vperm.xlu0 %1478, %v219
  %v1480 = vpop.permute.xlu0 %1479
  %1482 = vset.pattern.permute.xlu0 2
  %1483 = vperm.xlu0 %1482, %v220
  %v1484 = vpop.permute.xlu0 %1483
  %1486 = vset.pattern.permute.xlu0 2
  %1487 = vperm.xlu0 %1486, %v221
  %v1488 = vpop.permute.xlu0 %1487
  %1490 = vset.pattern.permute.xlu0 2
  %1491 = vperm.xlu0 %1490, %v222
  %v1492 = vpop.permute.xlu0 %1491
  %1494 = vset.pattern.permute.xlu0 2
  %1495 = vperm.xlu0 %1494, %v223
  %v1496 = vpop.permute.xlu0 %1495
  %1498 = vset.pattern.permute.xlu0 2
  %1499 = vperm.xlu0 %1498, %v224
  %v1500 = vpop.permute.xlu0 %1499
  %1502 = vset.pattern.permute.xlu0 2
  %1503 = vperm.xlu0 %1502, %v225
  %v1504 = vpop.permute.xlu0 %1503
  %1506 = vset.pattern.permute.xlu0 2
  %1507 = vperm.xlu0 %1506, %v226
  %v1508 = vpop.permute.xlu0 %1507
  %1510 = vset.pattern.permute.xlu0 2
  %1511 = vperm.xlu0 %1510, %v227
  %v1512 = vpop.permute.xlu0 %1511
  %1514 = vset.pattern.permute.xlu0 2
  %1515 = vperm.xlu0 %1514, %v228
  %v1516 = vpop.permute.xlu0 %1515
  %1518 = vset.pattern.permute.xlu0 2
  %1519 = vperm.xlu0 %1518, %v229
  %v1520 = vpop.permute.xlu0 %1519
  %1522 = vset.pattern.permute.xlu0 2
  %1523 = vperm.xlu0 %1522, %v230
  %v1524 = vpop.permute.xlu0 %1523
  %1526 = vset.pattern.permute.xlu0 2
  %1527 = vperm.xlu0 %1526, %v231
  %v1528 = vpop.permute.xlu0 %1527
  %1530 = vset.pattern.permute.xlu0 2
  %1531 = vperm.xlu0 %1530, %v232
  %v1532 = vpop.permute.xlu0 %1531
  %1534 = vset.pattern.permute.xlu0 2
  %1535 = vperm.xlu0 %1534, %v233
  %v1536 = vpop.permute.xlu0 %1535
  %v1538 = vsel %vm1346, %v1412, 0.0
  %v1539 = vsel %vm1347, %v1412, 0.0
  %v1540 = vsel %vm1348, %v1416, 0.0
  %v1541 = vsel %vm1349, %v1416, 0.0
  %v1542 = vsel %vm1350, %v1420, 0.0
  %v1543 = vsel %vm1351, %v1420, 0.0
  %v1544 = vsel %vm1352, %v1424, 0.0
  %v1545 = vsel %vm1353, %v1424, 0.0
  %v1546 = vsel %vm1354, %v1428, 0.0
  %v1547 = vsel %vm1355, %v1428, 0.0
  %v1548 = vsel %vm1356, %v1432, 0.0
  %v1549 = vsel %vm1357, %v1432, 0.0
  %v1550 = vsel %vm1358, %v1436, 0.0
  %v1551 = vsel %vm1359, %v1436, 0.0
  %v1552 = vsel %vm1360, %v1440, 0.0
  %v1553 = vsel %vm1361, %v1440, 0.0
  %v1554 = vsel %vm1362, %v1444, 0.0
  %v1555 = vsel %vm1363, %v1444, 0.0
  %v1556 = vsel %vm1364, %v1448, 0.0
  %v1557 = vsel %vm1365, %v1448, 0.0
  %v1558 = vsel %vm1366, %v1452, 0.0
  %v1559 = vsel %vm1367, %v1452, 0.0
  %v1560 = vsel %vm1368, %v1456, 0.0
  %v1561 = vsel %vm1369, %v1456, 0.0
  %v1562 = vsel %vm1370, %v1460, 0.0
  %v1563 = vsel %vm1371, %v1460, 0.0
  %v1564 = vsel %vm1372, %v1464, 0.0
  %v1565 = vsel %vm1373, %v1464, 0.0
  %v1566 = vsel %vm1374, %v1468, 0.0
  %v1567 = vsel %vm1375, %v1468, 0.0
  %v1568 = vsel %vm1376, %v1472, 0.0
  %v1569 = vsel %vm1377, %v1472, 0.0
  %v1570 = vsel %vm1378, %v1476, 0.0
  %v1571 = vsel %vm1379, %v1476, 0.0
  %v1572 = vsel %vm1380, %v1480, 0.0
  %v1573 = vsel %vm1381, %v1480, 0.0
  %v1574 = vsel %vm1382, %v1484, 0.0
  %v1575 = vsel %vm1383, %v1484, 0.0
  %v1576 = vsel %vm1384, %v1488, 0.0
  %v1577 = vsel %vm1385, %v1488, 0.0
  %v1578 = vsel %vm1386, %v1492, 0.0
  %v1579 = vsel %vm1387, %v1492, 0.0
  %v1580 = vsel %vm1388, %v1496, 0.0
  %v1581 = vsel %vm1389, %v1496, 0.0
  %v1582 = vsel %vm1390, %v1500, 0.0
  %v1583 = vsel %vm1391, %v1500, 0.0
  %v1584 = vsel %vm1392, %v1504, 0.0
  %v1585 = vsel %vm1393, %v1504, 0.0
  %v1586 = vsel %vm1394, %v1508, 0.0
  %v1587 = vsel %vm1395, %v1508, 0.0
  %v1588 = vsel %vm1396, %v1512, 0.0
  %v1589 = vsel %vm1397, %v1512, 0.0
  %v1590 = vsel %vm1398, %v1516, 0.0
  %v1591 = vsel %vm1399, %v1516, 0.0
  %v1592 = vsel %vm1400, %v1520, 0.0
  %v1593 = vsel %vm1401, %v1520, 0.0
  %v1594 = vsel %vm1402, %v1524, 0.0
  %v1595 = vsel %vm1403, %v1524, 0.0
  %v1596 = vsel %vm1404, %v1528, 0.0
  %v1597 = vsel %vm1405, %v1528, 0.0
  %v1598 = vsel %vm1406, %v1532, 0.0
  %v1599 = vsel %vm1407, %v1532, 0.0
  %v1600 = vsel %vm1408, %v1536, 0.0
  %v1601 = vsel %vm1409, %v1536, 0.0
  %v1602 = vadd.f32 %v1146, %v1538
  %v1603 = vadd.f32 %v1147, %v1539
  %v1604 = vadd.f32 %v1148, %v1540
  %v1605 = vadd.f32 %v1149, %v1541
  %v1606 = vadd.f32 %v1150, %v1542
  %v1607 = vadd.f32 %v1151, %v1543
  %v1608 = vadd.f32 %v1152, %v1544
  %v1609 = vadd.f32 %v1153, %v1545
  %v1610 = vadd.f32 %v1154, %v1546
  %v1611 = vadd.f32 %v1155, %v1547
  %v1612 = vadd.f32 %v1156, %v1548
  %v1613 = vadd.f32 %v1157, %v1549
  %v1614 = vadd.f32 %v1158, %v1550
  %v1615 = vadd.f32 %v1159, %v1551
  %v1616 = vadd.f32 %v1160, %v1552
  %v1617 = vadd.f32 %v1161, %v1553
  %v1618 = vadd.f32 %v1162, %v1554
  %v1619 = vadd.f32 %v1163, %v1555
  %v1620 = vadd.f32 %v1164, %v1556
  %v1621 = vadd.f32 %v1165, %v1557
  %v1622 = vadd.f32 %v1166, %v1558
  %v1623 = vadd.f32 %v1167, %v1559
  %v1624 = vadd.f32 %v1168, %v1560
  %v1625 = vadd.f32 %v1169, %v1561
  %v1626 = vadd.f32 %v1170, %v1562
  %v1627 = vadd.f32 %v1171, %v1563
  %v1628 = vadd.f32 %v1172, %v1564
  %v1629 = vadd.f32 %v1173, %v1565
  %v1630 = vadd.f32 %v1174, %v1566
  %v1631 = vadd.f32 %v1175, %v1567
  %v1632 = vadd.f32 %v1176, %v1568
  %v1633 = vadd.f32 %v1177, %v1569
  %v1634 = vadd.f32 %v1178, %v1570
  %v1635 = vadd.f32 %v1179, %v1571
  %v1636 = vadd.f32 %v1180, %v1572
  %v1637 = vadd.f32 %v1181, %v1573
  %v1638 = vadd.f32 %v1182, %v1574
  %v1639 = vadd.f32 %v1183, %v1575
  %v1640 = vadd.f32 %v1184, %v1576
  %v1641 = vadd.f32 %v1185, %v1577
  %v1642 = vadd.f32 %v1186, %v1578
  %v1643 = vadd.f32 %v1187, %v1579
  %v1644 = vadd.f32 %v1188, %v1580
  %v1645 = vadd.f32 %v1189, %v1581
  %v1646 = vadd.f32 %v1190, %v1582
  %v1647 = vadd.f32 %v1191, %v1583
  %v1648 = vadd.f32 %v1192, %v1584
  %v1649 = vadd.f32 %v1193, %v1585
  %v1650 = vadd.f32 %v1194, %v1586
  %v1651 = vadd.f32 %v1195, %v1587
  %v1652 = vadd.f32 %v1196, %v1588
  %v1653 = vadd.f32 %v1197, %v1589
  %v1654 = vadd.f32 %v1198, %v1590
  %v1655 = vadd.f32 %v1199, %v1591
  %v1656 = vadd.f32 %v1200, %v1592
  %v1657 = vadd.f32 %v1201, %v1593
  %v1658 = vadd.f32 %v1202, %v1594
  %v1659 = vadd.f32 %v1203, %v1595
  %v1660 = vadd.f32 %v1204, %v1596
  %v1661 = vadd.f32 %v1205, %v1597
  %v1662 = vadd.f32 %v1206, %v1598
  %v1663 = vadd.f32 %v1207, %v1599
  %v1664 = vadd.f32 %v1208, %v1600
  %v1665 = vadd.f32 %v1209, %v1601
  %1666 = vset.pattern.permute.xlu0 3
  %1667 = vperm.xlu0 %1666, %v16
  %v1668 = vpop.permute.xlu0 %1667
  %1670 = vset.pattern.permute.xlu0 3
  %1671 = vperm.xlu0 %1670, %v17
  %v1672 = vpop.permute.xlu0 %1671
  %1674 = vset.pattern.permute.xlu0 3
  %1675 = vperm.xlu0 %1674, %v18
  %v1676 = vpop.permute.xlu0 %1675
  %1678 = vset.pattern.permute.xlu0 3
  %1679 = vperm.xlu0 %1678, %v19
  %v1680 = vpop.permute.xlu0 %1679
  %1682 = vset.pattern.permute.xlu0 3
  %1683 = vperm.xlu0 %1682, %v20
  %v1684 = vpop.permute.xlu0 %1683
  %1686 = vset.pattern.permute.xlu0 3
  %1687 = vperm.xlu0 %1686, %v21
  %v1688 = vpop.permute.xlu0 %1687
  %1690 = vset.pattern.permute.xlu0 3
  %1691 = vperm.xlu0 %1690, %v22
  %v1692 = vpop.permute.xlu0 %1691
  %1694 = vset.pattern.permute.xlu0 3
  %1695 = vperm.xlu0 %1694, %v23
  %v1696 = vpop.permute.xlu0 %1695
  %1698 = vset.pattern.permute.xlu0 3
  %1699 = vperm.xlu0 %1698, %v24
  %v1700 = vpop.permute.xlu0 %1699
  %1702 = vset.pattern.permute.xlu0 3
  %1703 = vperm.xlu0 %1702, %v25
  %v1704 = vpop.permute.xlu0 %1703
  %1706 = vset.pattern.permute.xlu0 3
  %1707 = vperm.xlu0 %1706, %v26
  %v1708 = vpop.permute.xlu0 %1707
  %1710 = vset.pattern.permute.xlu0 3
  %1711 = vperm.xlu0 %1710, %v27
  %v1712 = vpop.permute.xlu0 %1711
  %1714 = vset.pattern.permute.xlu0 3
  %1715 = vperm.xlu0 %1714, %v28
  %v1716 = vpop.permute.xlu0 %1715
  %1718 = vset.pattern.permute.xlu0 3
  %1719 = vperm.xlu0 %1718, %v29
  %v1720 = vpop.permute.xlu0 %1719
  %1722 = vset.pattern.permute.xlu0 3
  %1723 = vperm.xlu0 %1722, %v30
  %v1724 = vpop.permute.xlu0 %1723
  %1726 = vset.pattern.permute.xlu0 3
  %1727 = vperm.xlu0 %1726, %v31
  %v1728 = vpop.permute.xlu0 %1727
  %1730 = vset.pattern.permute.xlu0 3
  %1731 = vperm.xlu0 %1730, %v32
  %v1732 = vpop.permute.xlu0 %1731
  %1734 = vset.pattern.permute.xlu0 3
  %1735 = vperm.xlu0 %1734, %v33
  %v1736 = vpop.permute.xlu0 %1735
  %1738 = vset.pattern.permute.xlu0 3
  %1739 = vperm.xlu0 %1738, %v34
  %v1740 = vpop.permute.xlu0 %1739
  %1742 = vset.pattern.permute.xlu0 3
  %1743 = vperm.xlu0 %1742, %v35
  %v1744 = vpop.permute.xlu0 %1743
  %1746 = vset.pattern.permute.xlu0 3
  %1747 = vperm.xlu0 %1746, %v36
  %v1748 = vpop.permute.xlu0 %1747
  %1750 = vset.pattern.permute.xlu0 3
  %1751 = vperm.xlu0 %1750, %v37
  %v1752 = vpop.permute.xlu0 %1751
  %1754 = vset.pattern.permute.xlu0 3
  %1755 = vperm.xlu0 %1754, %v38
  %v1756 = vpop.permute.xlu0 %1755
  %1758 = vset.pattern.permute.xlu0 3
  %1759 = vperm.xlu0 %1758, %v39
  %v1760 = vpop.permute.xlu0 %1759
  %1762 = vset.pattern.permute.xlu0 3
  %1763 = vperm.xlu0 %1762, %v40
  %v1764 = vpop.permute.xlu0 %1763
  %1766 = vset.pattern.permute.xlu0 3
  %1767 = vperm.xlu0 %1766, %v41
  %v1768 = vpop.permute.xlu0 %1767
  %1770 = vset.pattern.permute.xlu0 3
  %1771 = vperm.xlu0 %1770, %v42
  %v1772 = vpop.permute.xlu0 %1771
  %1774 = vset.pattern.permute.xlu0 3
  %1775 = vperm.xlu0 %1774, %v43
  %v1776 = vpop.permute.xlu0 %1775
  %1778 = vset.pattern.permute.xlu0 3
  %1779 = vperm.xlu0 %1778, %v44
  %v1780 = vpop.permute.xlu0 %1779
  %1782 = vset.pattern.permute.xlu0 3
  %1783 = vperm.xlu0 %1782, %v45
  %v1784 = vpop.permute.xlu0 %1783
  %1786 = vset.pattern.permute.xlu0 3
  %1787 = vperm.xlu0 %1786, %v46
  %v1788 = vpop.permute.xlu0 %1787
  %1790 = vset.pattern.permute.xlu0 3
  %1791 = vperm.xlu0 %1790, %v47
  %v1792 = vpop.permute.xlu0 %1791
  %v1794 = vlaneseq
  %v1795 = vshrl.u32 %v1794, 7
  %v1796 = vsub.s32 3, %v1795
  %v1797 = vrot.slane %v48, %v1796
  %v1798 = vlaneseq
  %v1799 = vshrl.u32 %v1798, 7
  %v1800 = vsub.s32 3, %v1799
  %v1801 = vrot.slane %v49, %v1800
  %vm1802 = vcmp.eq.f32.partialorder %v1668, %v1797
  %vm1803 = vcmp.eq.f32.partialorder %v1668, %v1801
  %vm1804 = vcmp.eq.f32.partialorder %v1672, %v1797
  %vm1805 = vcmp.eq.f32.partialorder %v1672, %v1801
  %vm1806 = vcmp.eq.f32.partialorder %v1676, %v1797
  %vm1807 = vcmp.eq.f32.partialorder %v1676, %v1801
  %vm1808 = vcmp.eq.f32.partialorder %v1680, %v1797
  %vm1809 = vcmp.eq.f32.partialorder %v1680, %v1801
  %vm1810 = vcmp.eq.f32.partialorder %v1684, %v1797
  %vm1811 = vcmp.eq.f32.partialorder %v1684, %v1801
  %vm1812 = vcmp.eq.f32.partialorder %v1688, %v1797
  %vm1813 = vcmp.eq.f32.partialorder %v1688, %v1801
  %vm1814 = vcmp.eq.f32.partialorder %v1692, %v1797
  %vm1815 = vcmp.eq.f32.partialorder %v1692, %v1801
  %vm1816 = vcmp.eq.f32.partialorder %v1696, %v1797
  %vm1817 = vcmp.eq.f32.partialorder %v1696, %v1801
  %vm1818 = vcmp.eq.f32.partialorder %v1700, %v1797
  %vm1819 = vcmp.eq.f32.partialorder %v1700, %v1801
  %vm1820 = vcmp.eq.f32.partialorder %v1704, %v1797
  %vm1821 = vcmp.eq.f32.partialorder %v1704, %v1801
  %vm1822 = vcmp.eq.f32.partialorder %v1708, %v1797
  %vm1823 = vcmp.eq.f32.partialorder %v1708, %v1801
  %vm1824 = vcmp.eq.f32.partialorder %v1712, %v1797
  %vm1825 = vcmp.eq.f32.partialorder %v1712, %v1801
  %vm1826 = vcmp.eq.f32.partialorder %v1716, %v1797
  %vm1827 = vcmp.eq.f32.partialorder %v1716, %v1801
  %vm1828 = vcmp.eq.f32.partialorder %v1720, %v1797
  %vm1829 = vcmp.eq.f32.partialorder %v1720, %v1801
  %vm1830 = vcmp.eq.f32.partialorder %v1724, %v1797
  %vm1831 = vcmp.eq.f32.partialorder %v1724, %v1801
  %vm1832 = vcmp.eq.f32.partialorder %v1728, %v1797
  %vm1833 = vcmp.eq.f32.partialorder %v1728, %v1801
  %vm1834 = vcmp.eq.f32.partialorder %v1732, %v1797
  %vm1835 = vcmp.eq.f32.partialorder %v1732, %v1801
  %vm1836 = vcmp.eq.f32.partialorder %v1736, %v1797
  %vm1837 = vcmp.eq.f32.partialorder %v1736, %v1801
  %vm1838 = vcmp.eq.f32.partialorder %v1740, %v1797
  %vm1839 = vcmp.eq.f32.partialorder %v1740, %v1801
  %vm1840 = vcmp.eq.f32.partialorder %v1744, %v1797
  %vm1841 = vcmp.eq.f32.partialorder %v1744, %v1801
  %vm1842 = vcmp.eq.f32.partialorder %v1748, %v1797
  %vm1843 = vcmp.eq.f32.partialorder %v1748, %v1801
  %vm1844 = vcmp.eq.f32.partialorder %v1752, %v1797
  %vm1845 = vcmp.eq.f32.partialorder %v1752, %v1801
  %vm1846 = vcmp.eq.f32.partialorder %v1756, %v1797
  %vm1847 = vcmp.eq.f32.partialorder %v1756, %v1801
  %vm1848 = vcmp.eq.f32.partialorder %v1760, %v1797
  %vm1849 = vcmp.eq.f32.partialorder %v1760, %v1801
  %vm1850 = vcmp.eq.f32.partialorder %v1764, %v1797
  %vm1851 = vcmp.eq.f32.partialorder %v1764, %v1801
  %vm1852 = vcmp.eq.f32.partialorder %v1768, %v1797
  %vm1853 = vcmp.eq.f32.partialorder %v1768, %v1801
  %vm1854 = vcmp.eq.f32.partialorder %v1772, %v1797
  %vm1855 = vcmp.eq.f32.partialorder %v1772, %v1801
  %vm1856 = vcmp.eq.f32.partialorder %v1776, %v1797
  %vm1857 = vcmp.eq.f32.partialorder %v1776, %v1801
  %vm1858 = vcmp.eq.f32.partialorder %v1780, %v1797
  %vm1859 = vcmp.eq.f32.partialorder %v1780, %v1801
  %vm1860 = vcmp.eq.f32.partialorder %v1784, %v1797
  %vm1861 = vcmp.eq.f32.partialorder %v1784, %v1801
  %vm1862 = vcmp.eq.f32.partialorder %v1788, %v1797
  %vm1863 = vcmp.eq.f32.partialorder %v1788, %v1801
  %vm1864 = vcmp.eq.f32.partialorder %v1792, %v1797
  %vm1865 = vcmp.eq.f32.partialorder %v1792, %v1801
  %1866 = vset.pattern.permute.xlu0 3
  %1867 = vperm.xlu0 %1866, %v202
  %v1868 = vpop.permute.xlu0 %1867
  %1870 = vset.pattern.permute.xlu0 3
  %1871 = vperm.xlu0 %1870, %v203
  %v1872 = vpop.permute.xlu0 %1871
  %1874 = vset.pattern.permute.xlu0 3
  %1875 = vperm.xlu0 %1874, %v204
  %v1876 = vpop.permute.xlu0 %1875
  %1878 = vset.pattern.permute.xlu0 3
  %1879 = vperm.xlu0 %1878, %v205
  %v1880 = vpop.permute.xlu0 %1879
  %1882 = vset.pattern.permute.xlu0 3
  %1883 = vperm.xlu0 %1882, %v206
  %v1884 = vpop.permute.xlu0 %1883
  %1886 = vset.pattern.permute.xlu0 3
  %1887 = vperm.xlu0 %1886, %v207
  %v1888 = vpop.permute.xlu0 %1887
  %1890 = vset.pattern.permute.xlu0 3
  %1891 = vperm.xlu0 %1890, %v208
  %v1892 = vpop.permute.xlu0 %1891
  %1894 = vset.pattern.permute.xlu0 3
  %1895 = vperm.xlu0 %1894, %v209
  %v1896 = vpop.permute.xlu0 %1895
  %1898 = vset.pattern.permute.xlu0 3
  %1899 = vperm.xlu0 %1898, %v210
  %v1900 = vpop.permute.xlu0 %1899
  %1902 = vset.pattern.permute.xlu0 3
  %1903 = vperm.xlu0 %1902, %v211
  %v1904 = vpop.permute.xlu0 %1903
  %1906 = vset.pattern.permute.xlu0 3
  %1907 = vperm.xlu0 %1906, %v212
  %v1908 = vpop.permute.xlu0 %1907
  %1910 = vset.pattern.permute.xlu0 3
  %1911 = vperm.xlu0 %1910, %v213
  %v1912 = vpop.permute.xlu0 %1911
  %1914 = vset.pattern.permute.xlu0 3
  %1915 = vperm.xlu0 %1914, %v214
  %v1916 = vpop.permute.xlu0 %1915
  %1918 = vset.pattern.permute.xlu0 3
  %1919 = vperm.xlu0 %1918, %v215
  %v1920 = vpop.permute.xlu0 %1919
  %1922 = vset.pattern.permute.xlu0 3
  %1923 = vperm.xlu0 %1922, %v216
  %v1924 = vpop.permute.xlu0 %1923
  %1926 = vset.pattern.permute.xlu0 3
  %1927 = vperm.xlu0 %1926, %v217
  %v1928 = vpop.permute.xlu0 %1927
  %1930 = vset.pattern.permute.xlu0 3
  %1931 = vperm.xlu0 %1930, %v218
  %v1932 = vpop.permute.xlu0 %1931
  %1934 = vset.pattern.permute.xlu0 3
  %1935 = vperm.xlu0 %1934, %v219
  %v1936 = vpop.permute.xlu0 %1935
  %1938 = vset.pattern.permute.xlu0 3
  %1939 = vperm.xlu0 %1938, %v220
  %v1940 = vpop.permute.xlu0 %1939
  %1942 = vset.pattern.permute.xlu0 3
  %1943 = vperm.xlu0 %1942, %v221
  %v1944 = vpop.permute.xlu0 %1943
  %1946 = vset.pattern.permute.xlu0 3
  %1947 = vperm.xlu0 %1946, %v222
  %v1948 = vpop.permute.xlu0 %1947
  %1950 = vset.pattern.permute.xlu0 3
  %1951 = vperm.xlu0 %1950, %v223
  %v1952 = vpop.permute.xlu0 %1951
  %1954 = vset.pattern.permute.xlu0 3
  %1955 = vperm.xlu0 %1954, %v224
  %v1956 = vpop.permute.xlu0 %1955
  %1958 = vset.pattern.permute.xlu0 3
  %1959 = vperm.xlu0 %1958, %v225
  %v1960 = vpop.permute.xlu0 %1959
  %1962 = vset.pattern.permute.xlu0 3
  %1963 = vperm.xlu0 %1962, %v226
  %v1964 = vpop.permute.xlu0 %1963
  %1966 = vset.pattern.permute.xlu0 3
  %1967 = vperm.xlu0 %1966, %v227
  %v1968 = vpop.permute.xlu0 %1967
  %1970 = vset.pattern.permute.xlu0 3
  %1971 = vperm.xlu0 %1970, %v228
  %v1972 = vpop.permute.xlu0 %1971
  %1974 = vset.pattern.permute.xlu0 3
  %1975 = vperm.xlu0 %1974, %v229
  %v1976 = vpop.permute.xlu0 %1975
  %1978 = vset.pattern.permute.xlu0 3
  %1979 = vperm.xlu0 %1978, %v230
  %v1980 = vpop.permute.xlu0 %1979
  %1982 = vset.pattern.permute.xlu0 3
  %1983 = vperm.xlu0 %1982, %v231
  %v1984 = vpop.permute.xlu0 %1983
  %1986 = vset.pattern.permute.xlu0 3
  %1987 = vperm.xlu0 %1986, %v232
  %v1988 = vpop.permute.xlu0 %1987
  %1990 = vset.pattern.permute.xlu0 3
  %1991 = vperm.xlu0 %1990, %v233
  %v1992 = vpop.permute.xlu0 %1991
  %v1994 = vsel %vm1802, %v1868, 0.0
  %v1995 = vsel %vm1803, %v1868, 0.0
  %v1996 = vsel %vm1804, %v1872, 0.0
  %v1997 = vsel %vm1805, %v1872, 0.0
  %v1998 = vsel %vm1806, %v1876, 0.0
  %v1999 = vsel %vm1807, %v1876, 0.0
  %v2000 = vsel %vm1808, %v1880, 0.0
  %v2001 = vsel %vm1809, %v1880, 0.0
  %v2002 = vsel %vm1810, %v1884, 0.0
  %v2003 = vsel %vm1811, %v1884, 0.0
  %v2004 = vsel %vm1812, %v1888, 0.0
  %v2005 = vsel %vm1813, %v1888, 0.0
  %v2006 = vsel %vm1814, %v1892, 0.0
  %v2007 = vsel %vm1815, %v1892, 0.0
  %v2008 = vsel %vm1816, %v1896, 0.0
  %v2009 = vsel %vm1817, %v1896, 0.0
  %v2010 = vsel %vm1818, %v1900, 0.0
  %v2011 = vsel %vm1819, %v1900, 0.0
  %v2012 = vsel %vm1820, %v1904, 0.0
  %v2013 = vsel %vm1821, %v1904, 0.0
  %v2014 = vsel %vm1822, %v1908, 0.0
  %v2015 = vsel %vm1823, %v1908, 0.0
  %v2016 = vsel %vm1824, %v1912, 0.0
  %v2017 = vsel %vm1825, %v1912, 0.0
  %v2018 = vsel %vm1826, %v1916, 0.0
  %v2019 = vsel %vm1827, %v1916, 0.0
  %v2020 = vsel %vm1828, %v1920, 0.0
  %v2021 = vsel %vm1829, %v1920, 0.0
  %v2022 = vsel %vm1830, %v1924, 0.0
  %v2023 = vsel %vm1831, %v1924, 0.0
  %v2024 = vsel %vm1832, %v1928, 0.0
  %v2025 = vsel %vm1833, %v1928, 0.0
  %v2026 = vsel %vm1834, %v1932, 0.0
  %v2027 = vsel %vm1835, %v1932, 0.0
  %v2028 = vsel %vm1836, %v1936, 0.0
  %v2029 = vsel %vm1837, %v1936, 0.0
  %v2030 = vsel %vm1838, %v1940, 0.0
  %v2031 = vsel %vm1839, %v1940, 0.0
  %v2032 = vsel %vm1840, %v1944, 0.0
  %v2033 = vsel %vm1841, %v1944, 0.0
  %v2034 = vsel %vm1842, %v1948, 0.0
  %v2035 = vsel %vm1843, %v1948, 0.0
  %v2036 = vsel %vm1844, %v1952, 0.0
  %v2037 = vsel %vm1845, %v1952, 0.0
  %v2038 = vsel %vm1846, %v1956, 0.0
  %v2039 = vsel %vm1847, %v1956, 0.0
  %v2040 = vsel %vm1848, %v1960, 0.0
  %v2041 = vsel %vm1849, %v1960, 0.0
  %v2042 = vsel %vm1850, %v1964, 0.0
  %v2043 = vsel %vm1851, %v1964, 0.0
  %v2044 = vsel %vm1852, %v1968, 0.0
  %v2045 = vsel %vm1853, %v1968, 0.0
  %v2046 = vsel %vm1854, %v1972, 0.0
  %v2047 = vsel %vm1855, %v1972, 0.0
  %v2048 = vsel %vm1856, %v1976, 0.0
  %v2049 = vsel %vm1857, %v1976, 0.0
  %v2050 = vsel %vm1858, %v1980, 0.0
  %v2051 = vsel %vm1859, %v1980, 0.0
  %v2052 = vsel %vm1860, %v1984, 0.0
  %v2053 = vsel %vm1861, %v1984, 0.0
  %v2054 = vsel %vm1862, %v1988, 0.0
  %v2055 = vsel %vm1863, %v1988, 0.0
  %v2056 = vsel %vm1864, %v1992, 0.0
  %v2057 = vsel %vm1865, %v1992, 0.0
  %v2058 = vadd.f32 %v1602, %v1994
  %v2059 = vadd.f32 %v1603, %v1995
  %v2060 = vadd.f32 %v1604, %v1996
  %v2061 = vadd.f32 %v1605, %v1997
  %v2062 = vadd.f32 %v1606, %v1998
  %v2063 = vadd.f32 %v1607, %v1999
  %v2064 = vadd.f32 %v1608, %v2000
  %v2065 = vadd.f32 %v1609, %v2001
  %v2066 = vadd.f32 %v1610, %v2002
  %v2067 = vadd.f32 %v1611, %v2003
  %v2068 = vadd.f32 %v1612, %v2004
  %v2069 = vadd.f32 %v1613, %v2005
  %v2070 = vadd.f32 %v1614, %v2006
  %v2071 = vadd.f32 %v1615, %v2007
  %v2072 = vadd.f32 %v1616, %v2008
  %v2073 = vadd.f32 %v1617, %v2009
  %v2074 = vadd.f32 %v1618, %v2010
  %v2075 = vadd.f32 %v1619, %v2011
  %v2076 = vadd.f32 %v1620, %v2012
  %v2077 = vadd.f32 %v1621, %v2013
  %v2078 = vadd.f32 %v1622, %v2014
  %v2079 = vadd.f32 %v1623, %v2015
  %v2080 = vadd.f32 %v1624, %v2016
  %v2081 = vadd.f32 %v1625, %v2017
  %v2082 = vadd.f32 %v1626, %v2018
  %v2083 = vadd.f32 %v1627, %v2019
  %v2084 = vadd.f32 %v1628, %v2020
  %v2085 = vadd.f32 %v1629, %v2021
  %v2086 = vadd.f32 %v1630, %v2022
  %v2087 = vadd.f32 %v1631, %v2023
  %v2088 = vadd.f32 %v1632, %v2024
  %v2089 = vadd.f32 %v1633, %v2025
  %v2090 = vadd.f32 %v1634, %v2026
  %v2091 = vadd.f32 %v1635, %v2027
  %v2092 = vadd.f32 %v1636, %v2028
  %v2093 = vadd.f32 %v1637, %v2029
  %v2094 = vadd.f32 %v1638, %v2030
  %v2095 = vadd.f32 %v1639, %v2031
  %v2096 = vadd.f32 %v1640, %v2032
  %v2097 = vadd.f32 %v1641, %v2033
  %v2098 = vadd.f32 %v1642, %v2034
  %v2099 = vadd.f32 %v1643, %v2035
  %v2100 = vadd.f32 %v1644, %v2036
  %v2101 = vadd.f32 %v1645, %v2037
  %v2102 = vadd.f32 %v1646, %v2038
  %v2103 = vadd.f32 %v1647, %v2039
  %v2104 = vadd.f32 %v1648, %v2040
  %v2105 = vadd.f32 %v1649, %v2041
  %v2106 = vadd.f32 %v1650, %v2042
  %v2107 = vadd.f32 %v1651, %v2043
  %v2108 = vadd.f32 %v1652, %v2044
  %v2109 = vadd.f32 %v1653, %v2045
  %v2110 = vadd.f32 %v1654, %v2046
  %v2111 = vadd.f32 %v1655, %v2047
  %v2112 = vadd.f32 %v1656, %v2048
  %v2113 = vadd.f32 %v1657, %v2049
  %v2114 = vadd.f32 %v1658, %v2050
  %v2115 = vadd.f32 %v1659, %v2051
  %v2116 = vadd.f32 %v1660, %v2052
  %v2117 = vadd.f32 %v1661, %v2053
  %v2118 = vadd.f32 %v1662, %v2054
  %v2119 = vadd.f32 %v1663, %v2055
  %v2120 = vadd.f32 %v1664, %v2056
  %v2121 = vadd.f32 %v1665, %v2057
  %2122 = vset.pattern.permute.xlu0 4
  %2123 = vperm.xlu0 %2122, %v16
  %v2124 = vpop.permute.xlu0 %2123
  %2126 = vset.pattern.permute.xlu0 4
  %2127 = vperm.xlu0 %2126, %v17
  %v2128 = vpop.permute.xlu0 %2127
  %2130 = vset.pattern.permute.xlu0 4
  %2131 = vperm.xlu0 %2130, %v18
  %v2132 = vpop.permute.xlu0 %2131
  %2134 = vset.pattern.permute.xlu0 4
  %2135 = vperm.xlu0 %2134, %v19
  %v2136 = vpop.permute.xlu0 %2135
  %2138 = vset.pattern.permute.xlu0 4
  %2139 = vperm.xlu0 %2138, %v20
  %v2140 = vpop.permute.xlu0 %2139
  %2142 = vset.pattern.permute.xlu0 4
  %2143 = vperm.xlu0 %2142, %v21
  %v2144 = vpop.permute.xlu0 %2143
  %2146 = vset.pattern.permute.xlu0 4
  %2147 = vperm.xlu0 %2146, %v22
  %v2148 = vpop.permute.xlu0 %2147
  %2150 = vset.pattern.permute.xlu0 4
  %2151 = vperm.xlu0 %2150, %v23
  %v2152 = vpop.permute.xlu0 %2151
  %2154 = vset.pattern.permute.xlu0 4
  %2155 = vperm.xlu0 %2154, %v24
  %v2156 = vpop.permute.xlu0 %2155
  %2158 = vset.pattern.permute.xlu0 4
  %2159 = vperm.xlu0 %2158, %v25
  %v2160 = vpop.permute.xlu0 %2159
  %2162 = vset.pattern.permute.xlu0 4
  %2163 = vperm.xlu0 %2162, %v26
  %v2164 = vpop.permute.xlu0 %2163
  %2166 = vset.pattern.permute.xlu0 4
  %2167 = vperm.xlu0 %2166, %v27
  %v2168 = vpop.permute.xlu0 %2167
  %2170 = vset.pattern.permute.xlu0 4
  %2171 = vperm.xlu0 %2170, %v28
  %v2172 = vpop.permute.xlu0 %2171
  %2174 = vset.pattern.permute.xlu0 4
  %2175 = vperm.xlu0 %2174, %v29
  %v2176 = vpop.permute.xlu0 %2175
  %2178 = vset.pattern.permute.xlu0 4
  %2179 = vperm.xlu0 %2178, %v30
  %v2180 = vpop.permute.xlu0 %2179
  %2182 = vset.pattern.permute.xlu0 4
  %2183 = vperm.xlu0 %2182, %v31
  %v2184 = vpop.permute.xlu0 %2183
  %2186 = vset.pattern.permute.xlu0 4
  %2187 = vperm.xlu0 %2186, %v32
  %v2188 = vpop.permute.xlu0 %2187
  %2190 = vset.pattern.permute.xlu0 4
  %2191 = vperm.xlu0 %2190, %v33
  %v2192 = vpop.permute.xlu0 %2191
  %2194 = vset.pattern.permute.xlu0 4
  %2195 = vperm.xlu0 %2194, %v34
  %v2196 = vpop.permute.xlu0 %2195
  %2198 = vset.pattern.permute.xlu0 4
  %2199 = vperm.xlu0 %2198, %v35
  %v2200 = vpop.permute.xlu0 %2199
  %2202 = vset.pattern.permute.xlu0 4
  %2203 = vperm.xlu0 %2202, %v36
  %v2204 = vpop.permute.xlu0 %2203
  %2206 = vset.pattern.permute.xlu0 4
  %2207 = vperm.xlu0 %2206, %v37
  %v2208 = vpop.permute.xlu0 %2207
  %2210 = vset.pattern.permute.xlu0 4
  %2211 = vperm.xlu0 %2210, %v38
  %v2212 = vpop.permute.xlu0 %2211
  %2214 = vset.pattern.permute.xlu0 4
  %2215 = vperm.xlu0 %2214, %v39
  %v2216 = vpop.permute.xlu0 %2215
  %2218 = vset.pattern.permute.xlu0 4
  %2219 = vperm.xlu0 %2218, %v40
  %v2220 = vpop.permute.xlu0 %2219
  %2222 = vset.pattern.permute.xlu0 4
  %2223 = vperm.xlu0 %2222, %v41
  %v2224 = vpop.permute.xlu0 %2223
  %2226 = vset.pattern.permute.xlu0 4
  %2227 = vperm.xlu0 %2226, %v42
  %v2228 = vpop.permute.xlu0 %2227
  %2230 = vset.pattern.permute.xlu0 4
  %2231 = vperm.xlu0 %2230, %v43
  %v2232 = vpop.permute.xlu0 %2231
  %2234 = vset.pattern.permute.xlu0 4
  %2235 = vperm.xlu0 %2234, %v44
  %v2236 = vpop.permute.xlu0 %2235
  %2238 = vset.pattern.permute.xlu0 4
  %2239 = vperm.xlu0 %2238, %v45
  %v2240 = vpop.permute.xlu0 %2239
  %2242 = vset.pattern.permute.xlu0 4
  %2243 = vperm.xlu0 %2242, %v46
  %v2244 = vpop.permute.xlu0 %2243
  %2246 = vset.pattern.permute.xlu0 4
  %2247 = vperm.xlu0 %2246, %v47
  %v2248 = vpop.permute.xlu0 %2247
  %v2250 = vlaneseq
  %v2251 = vshrl.u32 %v2250, 7
  %v2252 = vsub.s32 4, %v2251
  %v2253 = vrot.slane %v48, %v2252
  %v2254 = vlaneseq
  %v2255 = vshrl.u32 %v2254, 7
  %v2256 = vsub.s32 4, %v2255
  %v2257 = vrot.slane %v49, %v2256
  %vm2258 = vcmp.eq.f32.partialorder %v2124, %v2253
  %vm2259 = vcmp.eq.f32.partialorder %v2124, %v2257
  %vm2260 = vcmp.eq.f32.partialorder %v2128, %v2253
  %vm2261 = vcmp.eq.f32.partialorder %v2128, %v2257
  %vm2262 = vcmp.eq.f32.partialorder %v2132, %v2253
  %vm2263 = vcmp.eq.f32.partialorder %v2132, %v2257
  %vm2264 = vcmp.eq.f32.partialorder %v2136, %v2253
  %vm2265 = vcmp.eq.f32.partialorder %v2136, %v2257
  %vm2266 = vcmp.eq.f32.partialorder %v2140, %v2253
  %vm2267 = vcmp.eq.f32.partialorder %v2140, %v2257
  %vm2268 = vcmp.eq.f32.partialorder %v2144, %v2253
  %vm2269 = vcmp.eq.f32.partialorder %v2144, %v2257
  %vm2270 = vcmp.eq.f32.partialorder %v2148, %v2253
  %vm2271 = vcmp.eq.f32.partialorder %v2148, %v2257
  %vm2272 = vcmp.eq.f32.partialorder %v2152, %v2253
  %vm2273 = vcmp.eq.f32.partialorder %v2152, %v2257
  %vm2274 = vcmp.eq.f32.partialorder %v2156, %v2253
  %vm2275 = vcmp.eq.f32.partialorder %v2156, %v2257
  %vm2276 = vcmp.eq.f32.partialorder %v2160, %v2253
  %vm2277 = vcmp.eq.f32.partialorder %v2160, %v2257
  %vm2278 = vcmp.eq.f32.partialorder %v2164, %v2253
  %vm2279 = vcmp.eq.f32.partialorder %v2164, %v2257
  %vm2280 = vcmp.eq.f32.partialorder %v2168, %v2253
  %vm2281 = vcmp.eq.f32.partialorder %v2168, %v2257
  %vm2282 = vcmp.eq.f32.partialorder %v2172, %v2253
  %vm2283 = vcmp.eq.f32.partialorder %v2172, %v2257
  %vm2284 = vcmp.eq.f32.partialorder %v2176, %v2253
  %vm2285 = vcmp.eq.f32.partialorder %v2176, %v2257
  %vm2286 = vcmp.eq.f32.partialorder %v2180, %v2253
  %vm2287 = vcmp.eq.f32.partialorder %v2180, %v2257
  %vm2288 = vcmp.eq.f32.partialorder %v2184, %v2253
  %vm2289 = vcmp.eq.f32.partialorder %v2184, %v2257
  %vm2290 = vcmp.eq.f32.partialorder %v2188, %v2253
  %vm2291 = vcmp.eq.f32.partialorder %v2188, %v2257
  %vm2292 = vcmp.eq.f32.partialorder %v2192, %v2253
  %vm2293 = vcmp.eq.f32.partialorder %v2192, %v2257
  %vm2294 = vcmp.eq.f32.partialorder %v2196, %v2253
  %vm2295 = vcmp.eq.f32.partialorder %v2196, %v2257
  %vm2296 = vcmp.eq.f32.partialorder %v2200, %v2253
  %vm2297 = vcmp.eq.f32.partialorder %v2200, %v2257
  %vm2298 = vcmp.eq.f32.partialorder %v2204, %v2253
  %vm2299 = vcmp.eq.f32.partialorder %v2204, %v2257
  %vm2300 = vcmp.eq.f32.partialorder %v2208, %v2253
  %vm2301 = vcmp.eq.f32.partialorder %v2208, %v2257
  %vm2302 = vcmp.eq.f32.partialorder %v2212, %v2253
  %vm2303 = vcmp.eq.f32.partialorder %v2212, %v2257
  %vm2304 = vcmp.eq.f32.partialorder %v2216, %v2253
  %vm2305 = vcmp.eq.f32.partialorder %v2216, %v2257
  %vm2306 = vcmp.eq.f32.partialorder %v2220, %v2253
  %vm2307 = vcmp.eq.f32.partialorder %v2220, %v2257
  %vm2308 = vcmp.eq.f32.partialorder %v2224, %v2253
  %vm2309 = vcmp.eq.f32.partialorder %v2224, %v2257
  %vm2310 = vcmp.eq.f32.partialorder %v2228, %v2253
  %vm2311 = vcmp.eq.f32.partialorder %v2228, %v2257
  %vm2312 = vcmp.eq.f32.partialorder %v2232, %v2253
  %vm2313 = vcmp.eq.f32.partialorder %v2232, %v2257
  %vm2314 = vcmp.eq.f32.partialorder %v2236, %v2253
  %vm2315 = vcmp.eq.f32.partialorder %v2236, %v2257
  %vm2316 = vcmp.eq.f32.partialorder %v2240, %v2253
  %vm2317 = vcmp.eq.f32.partialorder %v2240, %v2257
  %vm2318 = vcmp.eq.f32.partialorder %v2244, %v2253
  %vm2319 = vcmp.eq.f32.partialorder %v2244, %v2257
  %vm2320 = vcmp.eq.f32.partialorder %v2248, %v2253
  %vm2321 = vcmp.eq.f32.partialorder %v2248, %v2257
  %2322 = vset.pattern.permute.xlu0 4
  %2323 = vperm.xlu0 %2322, %v202
  %v2324 = vpop.permute.xlu0 %2323
  %2326 = vset.pattern.permute.xlu0 4
  %2327 = vperm.xlu0 %2326, %v203
  %v2328 = vpop.permute.xlu0 %2327
  %2330 = vset.pattern.permute.xlu0 4
  %2331 = vperm.xlu0 %2330, %v204
  %v2332 = vpop.permute.xlu0 %2331
  %2334 = vset.pattern.permute.xlu0 4
  %2335 = vperm.xlu0 %2334, %v205
  %v2336 = vpop.permute.xlu0 %2335
  %2338 = vset.pattern.permute.xlu0 4
  %2339 = vperm.xlu0 %2338, %v206
  %v2340 = vpop.permute.xlu0 %2339
  %2342 = vset.pattern.permute.xlu0 4
  %2343 = vperm.xlu0 %2342, %v207
  %v2344 = vpop.permute.xlu0 %2343
  %2346 = vset.pattern.permute.xlu0 4
  %2347 = vperm.xlu0 %2346, %v208
  %v2348 = vpop.permute.xlu0 %2347
  %2350 = vset.pattern.permute.xlu0 4
  %2351 = vperm.xlu0 %2350, %v209
  %v2352 = vpop.permute.xlu0 %2351
  %2354 = vset.pattern.permute.xlu0 4
  %2355 = vperm.xlu0 %2354, %v210
  %v2356 = vpop.permute.xlu0 %2355
  %2358 = vset.pattern.permute.xlu0 4
  %2359 = vperm.xlu0 %2358, %v211
  %v2360 = vpop.permute.xlu0 %2359
  %2362 = vset.pattern.permute.xlu0 4
  %2363 = vperm.xlu0 %2362, %v212
  %v2364 = vpop.permute.xlu0 %2363
  %2366 = vset.pattern.permute.xlu0 4
  %2367 = vperm.xlu0 %2366, %v213
  %v2368 = vpop.permute.xlu0 %2367
  %2370 = vset.pattern.permute.xlu0 4
  %2371 = vperm.xlu0 %2370, %v214
  %v2372 = vpop.permute.xlu0 %2371
  %2374 = vset.pattern.permute.xlu0 4
  %2375 = vperm.xlu0 %2374, %v215
  %v2376 = vpop.permute.xlu0 %2375
  %2378 = vset.pattern.permute.xlu0 4
  %2379 = vperm.xlu0 %2378, %v216
  %v2380 = vpop.permute.xlu0 %2379
  %2382 = vset.pattern.permute.xlu0 4
  %2383 = vperm.xlu0 %2382, %v217
  %v2384 = vpop.permute.xlu0 %2383
  %2386 = vset.pattern.permute.xlu0 4
  %2387 = vperm.xlu0 %2386, %v218
  %v2388 = vpop.permute.xlu0 %2387
  %2390 = vset.pattern.permute.xlu0 4
  %2391 = vperm.xlu0 %2390, %v219
  %v2392 = vpop.permute.xlu0 %2391
  %2394 = vset.pattern.permute.xlu0 4
  %2395 = vperm.xlu0 %2394, %v220
  %v2396 = vpop.permute.xlu0 %2395
  %2398 = vset.pattern.permute.xlu0 4
  %2399 = vperm.xlu0 %2398, %v221
  %v2400 = vpop.permute.xlu0 %2399
  %2402 = vset.pattern.permute.xlu0 4
  %2403 = vperm.xlu0 %2402, %v222
  %v2404 = vpop.permute.xlu0 %2403
  %2406 = vset.pattern.permute.xlu0 4
  %2407 = vperm.xlu0 %2406, %v223
  %v2408 = vpop.permute.xlu0 %2407
  %2410 = vset.pattern.permute.xlu0 4
  %2411 = vperm.xlu0 %2410, %v224
  %v2412 = vpop.permute.xlu0 %2411
  %2414 = vset.pattern.permute.xlu0 4
  %2415 = vperm.xlu0 %2414, %v225
  %v2416 = vpop.permute.xlu0 %2415
  %2418 = vset.pattern.permute.xlu0 4
  %2419 = vperm.xlu0 %2418, %v226
  %v2420 = vpop.permute.xlu0 %2419
  %2422 = vset.pattern.permute.xlu0 4
  %2423 = vperm.xlu0 %2422, %v227
  %v2424 = vpop.permute.xlu0 %2423
  %2426 = vset.pattern.permute.xlu0 4
  %2427 = vperm.xlu0 %2426, %v228
  %v2428 = vpop.permute.xlu0 %2427
  %2430 = vset.pattern.permute.xlu0 4
  %2431 = vperm.xlu0 %2430, %v229
  %v2432 = vpop.permute.xlu0 %2431
  %2434 = vset.pattern.permute.xlu0 4
  %2435 = vperm.xlu0 %2434, %v230
  %v2436 = vpop.permute.xlu0 %2435
  %2438 = vset.pattern.permute.xlu0 4
  %2439 = vperm.xlu0 %2438, %v231
  %v2440 = vpop.permute.xlu0 %2439
  %2442 = vset.pattern.permute.xlu0 4
  %2443 = vperm.xlu0 %2442, %v232
  %v2444 = vpop.permute.xlu0 %2443
  %2446 = vset.pattern.permute.xlu0 4
  %2447 = vperm.xlu0 %2446, %v233
  %v2448 = vpop.permute.xlu0 %2447
  %v2450 = vsel %vm2258, %v2324, 0.0
  %v2451 = vsel %vm2259, %v2324, 0.0
  %v2452 = vsel %vm2260, %v2328, 0.0
  %v2453 = vsel %vm2261, %v2328, 0.0
  %v2454 = vsel %vm2262, %v2332, 0.0
  %v2455 = vsel %vm2263, %v2332, 0.0
  %v2456 = vsel %vm2264, %v2336, 0.0
  %v2457 = vsel %vm2265, %v2336, 0.0
  %v2458 = vsel %vm2266, %v2340, 0.0
  %v2459 = vsel %vm2267, %v2340, 0.0
  %v2460 = vsel %vm2268, %v2344, 0.0
  %v2461 = vsel %vm2269, %v2344, 0.0
  %v2462 = vsel %vm2270, %v2348, 0.0
  %v2463 = vsel %vm2271, %v2348, 0.0
  %v2464 = vsel %vm2272, %v2352, 0.0
  %v2465 = vsel %vm2273, %v2352, 0.0
  %v2466 = vsel %vm2274, %v2356, 0.0
  %v2467 = vsel %vm2275, %v2356, 0.0
  %v2468 = vsel %vm2276, %v2360, 0.0
  %v2469 = vsel %vm2277, %v2360, 0.0
  %v2470 = vsel %vm2278, %v2364, 0.0
  %v2471 = vsel %vm2279, %v2364, 0.0
  %v2472 = vsel %vm2280, %v2368, 0.0
  %v2473 = vsel %vm2281, %v2368, 0.0
  %v2474 = vsel %vm2282, %v2372, 0.0
  %v2475 = vsel %vm2283, %v2372, 0.0
  %v2476 = vsel %vm2284, %v2376, 0.0
  %v2477 = vsel %vm2285, %v2376, 0.0
  %v2478 = vsel %vm2286, %v2380, 0.0
  %v2479 = vsel %vm2287, %v2380, 0.0
  %v2480 = vsel %vm2288, %v2384, 0.0
  %v2481 = vsel %vm2289, %v2384, 0.0
  %v2482 = vsel %vm2290, %v2388, 0.0
  %v2483 = vsel %vm2291, %v2388, 0.0
  %v2484 = vsel %vm2292, %v2392, 0.0
  %v2485 = vsel %vm2293, %v2392, 0.0
  %v2486 = vsel %vm2294, %v2396, 0.0
  %v2487 = vsel %vm2295, %v2396, 0.0
  %v2488 = vsel %vm2296, %v2400, 0.0
  %v2489 = vsel %vm2297, %v2400, 0.0
  %v2490 = vsel %vm2298, %v2404, 0.0
  %v2491 = vsel %vm2299, %v2404, 0.0
  %v2492 = vsel %vm2300, %v2408, 0.0
  %v2493 = vsel %vm2301, %v2408, 0.0
  %v2494 = vsel %vm2302, %v2412, 0.0
  %v2495 = vsel %vm2303, %v2412, 0.0
  %v2496 = vsel %vm2304, %v2416, 0.0
  %v2497 = vsel %vm2305, %v2416, 0.0
  %v2498 = vsel %vm2306, %v2420, 0.0
  %v2499 = vsel %vm2307, %v2420, 0.0
  %v2500 = vsel %vm2308, %v2424, 0.0
  %v2501 = vsel %vm2309, %v2424, 0.0
  %v2502 = vsel %vm2310, %v2428, 0.0
  %v2503 = vsel %vm2311, %v2428, 0.0
  %v2504 = vsel %vm2312, %v2432, 0.0
  %v2505 = vsel %vm2313, %v2432, 0.0
  %v2506 = vsel %vm2314, %v2436, 0.0
  %v2507 = vsel %vm2315, %v2436, 0.0
  %v2508 = vsel %vm2316, %v2440, 0.0
  %v2509 = vsel %vm2317, %v2440, 0.0
  %v2510 = vsel %vm2318, %v2444, 0.0
  %v2511 = vsel %vm2319, %v2444, 0.0
  %v2512 = vsel %vm2320, %v2448, 0.0
  %v2513 = vsel %vm2321, %v2448, 0.0
  %v2514 = vadd.f32 %v2058, %v2450
  %v2515 = vadd.f32 %v2059, %v2451
  %v2516 = vadd.f32 %v2060, %v2452
  %v2517 = vadd.f32 %v2061, %v2453
  %v2518 = vadd.f32 %v2062, %v2454
  %v2519 = vadd.f32 %v2063, %v2455
  %v2520 = vadd.f32 %v2064, %v2456
  %v2521 = vadd.f32 %v2065, %v2457
  %v2522 = vadd.f32 %v2066, %v2458
  %v2523 = vadd.f32 %v2067, %v2459
  %v2524 = vadd.f32 %v2068, %v2460
  %v2525 = vadd.f32 %v2069, %v2461
  %v2526 = vadd.f32 %v2070, %v2462
  %v2527 = vadd.f32 %v2071, %v2463
  %v2528 = vadd.f32 %v2072, %v2464
  %v2529 = vadd.f32 %v2073, %v2465
  %v2530 = vadd.f32 %v2074, %v2466
  %v2531 = vadd.f32 %v2075, %v2467
  %v2532 = vadd.f32 %v2076, %v2468
  %v2533 = vadd.f32 %v2077, %v2469
  %v2534 = vadd.f32 %v2078, %v2470
  %v2535 = vadd.f32 %v2079, %v2471
  %v2536 = vadd.f32 %v2080, %v2472
  %v2537 = vadd.f32 %v2081, %v2473
  %v2538 = vadd.f32 %v2082, %v2474
  %v2539 = vadd.f32 %v2083, %v2475
  %v2540 = vadd.f32 %v2084, %v2476
  %v2541 = vadd.f32 %v2085, %v2477
  %v2542 = vadd.f32 %v2086, %v2478
  %v2543 = vadd.f32 %v2087, %v2479
  %v2544 = vadd.f32 %v2088, %v2480
  %v2545 = vadd.f32 %v2089, %v2481
  %v2546 = vadd.f32 %v2090, %v2482
  %v2547 = vadd.f32 %v2091, %v2483
  %v2548 = vadd.f32 %v2092, %v2484
  %v2549 = vadd.f32 %v2093, %v2485
  %v2550 = vadd.f32 %v2094, %v2486
  %v2551 = vadd.f32 %v2095, %v2487
  %v2552 = vadd.f32 %v2096, %v2488
  %v2553 = vadd.f32 %v2097, %v2489
  %v2554 = vadd.f32 %v2098, %v2490
  %v2555 = vadd.f32 %v2099, %v2491
  %v2556 = vadd.f32 %v2100, %v2492
  %v2557 = vadd.f32 %v2101, %v2493
  %v2558 = vadd.f32 %v2102, %v2494
  %v2559 = vadd.f32 %v2103, %v2495
  %v2560 = vadd.f32 %v2104, %v2496
  %v2561 = vadd.f32 %v2105, %v2497
  %v2562 = vadd.f32 %v2106, %v2498
  %v2563 = vadd.f32 %v2107, %v2499
  %v2564 = vadd.f32 %v2108, %v2500
  %v2565 = vadd.f32 %v2109, %v2501
  %v2566 = vadd.f32 %v2110, %v2502
  %v2567 = vadd.f32 %v2111, %v2503
  %v2568 = vadd.f32 %v2112, %v2504
  %v2569 = vadd.f32 %v2113, %v2505
  %v2570 = vadd.f32 %v2114, %v2506
  %v2571 = vadd.f32 %v2115, %v2507
  %v2572 = vadd.f32 %v2116, %v2508
  %v2573 = vadd.f32 %v2117, %v2509
  %v2574 = vadd.f32 %v2118, %v2510
  %v2575 = vadd.f32 %v2119, %v2511
  %v2576 = vadd.f32 %v2120, %v2512
  %v2577 = vadd.f32 %v2121, %v2513
  %2578 = vset.pattern.permute.xlu0 5
  %2579 = vperm.xlu0 %2578, %v16
  %v2580 = vpop.permute.xlu0 %2579
  %2582 = vset.pattern.permute.xlu0 5
  %2583 = vperm.xlu0 %2582, %v17
  %v2584 = vpop.permute.xlu0 %2583
  %2586 = vset.pattern.permute.xlu0 5
  %2587 = vperm.xlu0 %2586, %v18
  %v2588 = vpop.permute.xlu0 %2587
  %2590 = vset.pattern.permute.xlu0 5
  %2591 = vperm.xlu0 %2590, %v19
  %v2592 = vpop.permute.xlu0 %2591
  %2594 = vset.pattern.permute.xlu0 5
  %2595 = vperm.xlu0 %2594, %v20
  %v2596 = vpop.permute.xlu0 %2595
  %2598 = vset.pattern.permute.xlu0 5
  %2599 = vperm.xlu0 %2598, %v21
  %v2600 = vpop.permute.xlu0 %2599
  %2602 = vset.pattern.permute.xlu0 5
  %2603 = vperm.xlu0 %2602, %v22
  %v2604 = vpop.permute.xlu0 %2603
  %2606 = vset.pattern.permute.xlu0 5
  %2607 = vperm.xlu0 %2606, %v23
  %v2608 = vpop.permute.xlu0 %2607
  %2610 = vset.pattern.permute.xlu0 5
  %2611 = vperm.xlu0 %2610, %v24
  %v2612 = vpop.permute.xlu0 %2611
  %2614 = vset.pattern.permute.xlu0 5
  %2615 = vperm.xlu0 %2614, %v25
  %v2616 = vpop.permute.xlu0 %2615
  %2618 = vset.pattern.permute.xlu0 5
  %2619 = vperm.xlu0 %2618, %v26
  %v2620 = vpop.permute.xlu0 %2619
  %2622 = vset.pattern.permute.xlu0 5
  %2623 = vperm.xlu0 %2622, %v27
  %v2624 = vpop.permute.xlu0 %2623
  %2626 = vset.pattern.permute.xlu0 5
  %2627 = vperm.xlu0 %2626, %v28
  %v2628 = vpop.permute.xlu0 %2627
  %2630 = vset.pattern.permute.xlu0 5
  %2631 = vperm.xlu0 %2630, %v29
  %v2632 = vpop.permute.xlu0 %2631
  %2634 = vset.pattern.permute.xlu0 5
  %2635 = vperm.xlu0 %2634, %v30
  %v2636 = vpop.permute.xlu0 %2635
  %2638 = vset.pattern.permute.xlu0 5
  %2639 = vperm.xlu0 %2638, %v31
  %v2640 = vpop.permute.xlu0 %2639
  %2642 = vset.pattern.permute.xlu0 5
  %2643 = vperm.xlu0 %2642, %v32
  %v2644 = vpop.permute.xlu0 %2643
  %2646 = vset.pattern.permute.xlu0 5
  %2647 = vperm.xlu0 %2646, %v33
  %v2648 = vpop.permute.xlu0 %2647
  %2650 = vset.pattern.permute.xlu0 5
  %2651 = vperm.xlu0 %2650, %v34
  %v2652 = vpop.permute.xlu0 %2651
  %2654 = vset.pattern.permute.xlu0 5
  %2655 = vperm.xlu0 %2654, %v35
  %v2656 = vpop.permute.xlu0 %2655
  %2658 = vset.pattern.permute.xlu0 5
  %2659 = vperm.xlu0 %2658, %v36
  %v2660 = vpop.permute.xlu0 %2659
  %2662 = vset.pattern.permute.xlu0 5
  %2663 = vperm.xlu0 %2662, %v37
  %v2664 = vpop.permute.xlu0 %2663
  %2666 = vset.pattern.permute.xlu0 5
  %2667 = vperm.xlu0 %2666, %v38
  %v2668 = vpop.permute.xlu0 %2667
  %2670 = vset.pattern.permute.xlu0 5
  %2671 = vperm.xlu0 %2670, %v39
  %v2672 = vpop.permute.xlu0 %2671
  %2674 = vset.pattern.permute.xlu0 5
  %2675 = vperm.xlu0 %2674, %v40
  %v2676 = vpop.permute.xlu0 %2675
  %2678 = vset.pattern.permute.xlu0 5
  %2679 = vperm.xlu0 %2678, %v41
  %v2680 = vpop.permute.xlu0 %2679
  %2682 = vset.pattern.permute.xlu0 5
  %2683 = vperm.xlu0 %2682, %v42
  %v2684 = vpop.permute.xlu0 %2683
  %2686 = vset.pattern.permute.xlu0 5
  %2687 = vperm.xlu0 %2686, %v43
  %v2688 = vpop.permute.xlu0 %2687
  %2690 = vset.pattern.permute.xlu0 5
  %2691 = vperm.xlu0 %2690, %v44
  %v2692 = vpop.permute.xlu0 %2691
  %2694 = vset.pattern.permute.xlu0 5
  %2695 = vperm.xlu0 %2694, %v45
  %v2696 = vpop.permute.xlu0 %2695
  %2698 = vset.pattern.permute.xlu0 5
  %2699 = vperm.xlu0 %2698, %v46
  %v2700 = vpop.permute.xlu0 %2699
  %2702 = vset.pattern.permute.xlu0 5
  %2703 = vperm.xlu0 %2702, %v47
  %v2704 = vpop.permute.xlu0 %2703
  %v2706 = vlaneseq
  %v2707 = vshrl.u32 %v2706, 7
  %v2708 = vsub.s32 5, %v2707
  %v2709 = vrot.slane %v48, %v2708
  %v2710 = vlaneseq
  %v2711 = vshrl.u32 %v2710, 7
  %v2712 = vsub.s32 5, %v2711
  %v2713 = vrot.slane %v49, %v2712
  %vm2714 = vcmp.eq.f32.partialorder %v2580, %v2709
  %vm2715 = vcmp.eq.f32.partialorder %v2580, %v2713
  %vm2716 = vcmp.eq.f32.partialorder %v2584, %v2709
  %vm2717 = vcmp.eq.f32.partialorder %v2584, %v2713
  %vm2718 = vcmp.eq.f32.partialorder %v2588, %v2709
  %vm2719 = vcmp.eq.f32.partialorder %v2588, %v2713
  %vm2720 = vcmp.eq.f32.partialorder %v2592, %v2709
  %vm2721 = vcmp.eq.f32.partialorder %v2592, %v2713
  %vm2722 = vcmp.eq.f32.partialorder %v2596, %v2709
  %vm2723 = vcmp.eq.f32.partialorder %v2596, %v2713
  %vm2724 = vcmp.eq.f32.partialorder %v2600, %v2709
  %vm2725 = vcmp.eq.f32.partialorder %v2600, %v2713
  %vm2726 = vcmp.eq.f32.partialorder %v2604, %v2709
  %vm2727 = vcmp.eq.f32.partialorder %v2604, %v2713
  %vm2728 = vcmp.eq.f32.partialorder %v2608, %v2709
  %vm2729 = vcmp.eq.f32.partialorder %v2608, %v2713
  %vm2730 = vcmp.eq.f32.partialorder %v2612, %v2709
  %vm2731 = vcmp.eq.f32.partialorder %v2612, %v2713
  %vm2732 = vcmp.eq.f32.partialorder %v2616, %v2709
  %vm2733 = vcmp.eq.f32.partialorder %v2616, %v2713
  %vm2734 = vcmp.eq.f32.partialorder %v2620, %v2709
  %vm2735 = vcmp.eq.f32.partialorder %v2620, %v2713
  %vm2736 = vcmp.eq.f32.partialorder %v2624, %v2709
  %vm2737 = vcmp.eq.f32.partialorder %v2624, %v2713
  %vm2738 = vcmp.eq.f32.partialorder %v2628, %v2709
  %vm2739 = vcmp.eq.f32.partialorder %v2628, %v2713
  %vm2740 = vcmp.eq.f32.partialorder %v2632, %v2709
  %vm2741 = vcmp.eq.f32.partialorder %v2632, %v2713
  %vm2742 = vcmp.eq.f32.partialorder %v2636, %v2709
  %vm2743 = vcmp.eq.f32.partialorder %v2636, %v2713
  %vm2744 = vcmp.eq.f32.partialorder %v2640, %v2709
  %vm2745 = vcmp.eq.f32.partialorder %v2640, %v2713
  %vm2746 = vcmp.eq.f32.partialorder %v2644, %v2709
  %vm2747 = vcmp.eq.f32.partialorder %v2644, %v2713
  %vm2748 = vcmp.eq.f32.partialorder %v2648, %v2709
  %vm2749 = vcmp.eq.f32.partialorder %v2648, %v2713
  %vm2750 = vcmp.eq.f32.partialorder %v2652, %v2709
  %vm2751 = vcmp.eq.f32.partialorder %v2652, %v2713
  %vm2752 = vcmp.eq.f32.partialorder %v2656, %v2709
  %vm2753 = vcmp.eq.f32.partialorder %v2656, %v2713
  %vm2754 = vcmp.eq.f32.partialorder %v2660, %v2709
  %vm2755 = vcmp.eq.f32.partialorder %v2660, %v2713
  %vm2756 = vcmp.eq.f32.partialorder %v2664, %v2709
  %vm2757 = vcmp.eq.f32.partialorder %v2664, %v2713
  %vm2758 = vcmp.eq.f32.partialorder %v2668, %v2709
  %vm2759 = vcmp.eq.f32.partialorder %v2668, %v2713
  %vm2760 = vcmp.eq.f32.partialorder %v2672, %v2709
  %vm2761 = vcmp.eq.f32.partialorder %v2672, %v2713
  %vm2762 = vcmp.eq.f32.partialorder %v2676, %v2709
  %vm2763 = vcmp.eq.f32.partialorder %v2676, %v2713
  %vm2764 = vcmp.eq.f32.partialorder %v2680, %v2709
  %vm2765 = vcmp.eq.f32.partialorder %v2680, %v2713
  %vm2766 = vcmp.eq.f32.partialorder %v2684, %v2709
  %vm2767 = vcmp.eq.f32.partialorder %v2684, %v2713
  %vm2768 = vcmp.eq.f32.partialorder %v2688, %v2709
  %vm2769 = vcmp.eq.f32.partialorder %v2688, %v2713
  %vm2770 = vcmp.eq.f32.partialorder %v2692, %v2709
  %vm2771 = vcmp.eq.f32.partialorder %v2692, %v2713
  %vm2772 = vcmp.eq.f32.partialorder %v2696, %v2709
  %vm2773 = vcmp.eq.f32.partialorder %v2696, %v2713
  %vm2774 = vcmp.eq.f32.partialorder %v2700, %v2709
  %vm2775 = vcmp.eq.f32.partialorder %v2700, %v2713
  %vm2776 = vcmp.eq.f32.partialorder %v2704, %v2709
  %vm2777 = vcmp.eq.f32.partialorder %v2704, %v2713
  %2778 = vset.pattern.permute.xlu0 5
  %2779 = vperm.xlu0 %2778, %v202
  %v2780 = vpop.permute.xlu0 %2779
  %2782 = vset.pattern.permute.xlu0 5
  %2783 = vperm.xlu0 %2782, %v203
  %v2784 = vpop.permute.xlu0 %2783
  %2786 = vset.pattern.permute.xlu0 5
  %2787 = vperm.xlu0 %2786, %v204
  %v2788 = vpop.permute.xlu0 %2787
  %2790 = vset.pattern.permute.xlu0 5
  %2791 = vperm.xlu0 %2790, %v205
  %v2792 = vpop.permute.xlu0 %2791
  %2794 = vset.pattern.permute.xlu0 5
  %2795 = vperm.xlu0 %2794, %v206
  %v2796 = vpop.permute.xlu0 %2795
  %2798 = vset.pattern.permute.xlu0 5
  %2799 = vperm.xlu0 %2798, %v207
  %v2800 = vpop.permute.xlu0 %2799
  %2802 = vset.pattern.permute.xlu0 5
  %2803 = vperm.xlu0 %2802, %v208
  %v2804 = vpop.permute.xlu0 %2803
  %2806 = vset.pattern.permute.xlu0 5
  %2807 = vperm.xlu0 %2806, %v209
  %v2808 = vpop.permute.xlu0 %2807
  %2810 = vset.pattern.permute.xlu0 5
  %2811 = vperm.xlu0 %2810, %v210
  %v2812 = vpop.permute.xlu0 %2811
  %2814 = vset.pattern.permute.xlu0 5
  %2815 = vperm.xlu0 %2814, %v211
  %v2816 = vpop.permute.xlu0 %2815
  %2818 = vset.pattern.permute.xlu0 5
  %2819 = vperm.xlu0 %2818, %v212
  %v2820 = vpop.permute.xlu0 %2819
  %2822 = vset.pattern.permute.xlu0 5
  %2823 = vperm.xlu0 %2822, %v213
  %v2824 = vpop.permute.xlu0 %2823
  %2826 = vset.pattern.permute.xlu0 5
  %2827 = vperm.xlu0 %2826, %v214
  %v2828 = vpop.permute.xlu0 %2827
  %2830 = vset.pattern.permute.xlu0 5
  %2831 = vperm.xlu0 %2830, %v215
  %v2832 = vpop.permute.xlu0 %2831
  %2834 = vset.pattern.permute.xlu0 5
  %2835 = vperm.xlu0 %2834, %v216
  %v2836 = vpop.permute.xlu0 %2835
  %2838 = vset.pattern.permute.xlu0 5
  %2839 = vperm.xlu0 %2838, %v217
  %v2840 = vpop.permute.xlu0 %2839
  %2842 = vset.pattern.permute.xlu0 5
  %2843 = vperm.xlu0 %2842, %v218
  %v2844 = vpop.permute.xlu0 %2843
  %2846 = vset.pattern.permute.xlu0 5
  %2847 = vperm.xlu0 %2846, %v219
  %v2848 = vpop.permute.xlu0 %2847
  %2850 = vset.pattern.permute.xlu0 5
  %2851 = vperm.xlu0 %2850, %v220
  %v2852 = vpop.permute.xlu0 %2851
  %2854 = vset.pattern.permute.xlu0 5
  %2855 = vperm.xlu0 %2854, %v221
  %v2856 = vpop.permute.xlu0 %2855
  %2858 = vset.pattern.permute.xlu0 5
  %2859 = vperm.xlu0 %2858, %v222
  %v2860 = vpop.permute.xlu0 %2859
  %2862 = vset.pattern.permute.xlu0 5
  %2863 = vperm.xlu0 %2862, %v223
  %v2864 = vpop.permute.xlu0 %2863
  %2866 = vset.pattern.permute.xlu0 5
  %2867 = vperm.xlu0 %2866, %v224
  %v2868 = vpop.permute.xlu0 %2867
  %2870 = vset.pattern.permute.xlu0 5
  %2871 = vperm.xlu0 %2870, %v225
  %v2872 = vpop.permute.xlu0 %2871
  %2874 = vset.pattern.permute.xlu0 5
  %2875 = vperm.xlu0 %2874, %v226
  %v2876 = vpop.permute.xlu0 %2875
  %2878 = vset.pattern.permute.xlu0 5
  %2879 = vperm.xlu0 %2878, %v227
  %v2880 = vpop.permute.xlu0 %2879
  %2882 = vset.pattern.permute.xlu0 5
  %2883 = vperm.xlu0 %2882, %v228
  %v2884 = vpop.permute.xlu0 %2883
  %2886 = vset.pattern.permute.xlu0 5
  %2887 = vperm.xlu0 %2886, %v229
  %v2888 = vpop.permute.xlu0 %2887
  %2890 = vset.pattern.permute.xlu0 5
  %2891 = vperm.xlu0 %2890, %v230
  %v2892 = vpop.permute.xlu0 %2891
  %2894 = vset.pattern.permute.xlu0 5
  %2895 = vperm.xlu0 %2894, %v231
  %v2896 = vpop.permute.xlu0 %2895
  %2898 = vset.pattern.permute.xlu0 5
  %2899 = vperm.xlu0 %2898, %v232
  %v2900 = vpop.permute.xlu0 %2899
  %2902 = vset.pattern.permute.xlu0 5
  %2903 = vperm.xlu0 %2902, %v233
  %v2904 = vpop.permute.xlu0 %2903
  %v2906 = vsel %vm2714, %v2780, 0.0
  %v2907 = vsel %vm2715, %v2780, 0.0
  %v2908 = vsel %vm2716, %v2784, 0.0
  %v2909 = vsel %vm2717, %v2784, 0.0
  %v2910 = vsel %vm2718, %v2788, 0.0
  %v2911 = vsel %vm2719, %v2788, 0.0
  %v2912 = vsel %vm2720, %v2792, 0.0
  %v2913 = vsel %vm2721, %v2792, 0.0
  %v2914 = vsel %vm2722, %v2796, 0.0
  %v2915 = vsel %vm2723, %v2796, 0.0
  %v2916 = vsel %vm2724, %v2800, 0.0
  %v2917 = vsel %vm2725, %v2800, 0.0
  %v2918 = vsel %vm2726, %v2804, 0.0
  %v2919 = vsel %vm2727, %v2804, 0.0
  %v2920 = vsel %vm2728, %v2808, 0.0
  %v2921 = vsel %vm2729, %v2808, 0.0
  %v2922 = vsel %vm2730, %v2812, 0.0
  %v2923 = vsel %vm2731, %v2812, 0.0
  %v2924 = vsel %vm2732, %v2816, 0.0
  %v2925 = vsel %vm2733, %v2816, 0.0
  %v2926 = vsel %vm2734, %v2820, 0.0
  %v2927 = vsel %vm2735, %v2820, 0.0
  %v2928 = vsel %vm2736, %v2824, 0.0
  %v2929 = vsel %vm2737, %v2824, 0.0
  %v2930 = vsel %vm2738, %v2828, 0.0
  %v2931 = vsel %vm2739, %v2828, 0.0
  %v2932 = vsel %vm2740, %v2832, 0.0
  %v2933 = vsel %vm2741, %v2832, 0.0
  %v2934 = vsel %vm2742, %v2836, 0.0
  %v2935 = vsel %vm2743, %v2836, 0.0
  %v2936 = vsel %vm2744, %v2840, 0.0
  %v2937 = vsel %vm2745, %v2840, 0.0
  %v2938 = vsel %vm2746, %v2844, 0.0
  %v2939 = vsel %vm2747, %v2844, 0.0
  %v2940 = vsel %vm2748, %v2848, 0.0
  %v2941 = vsel %vm2749, %v2848, 0.0
  %v2942 = vsel %vm2750, %v2852, 0.0
  %v2943 = vsel %vm2751, %v2852, 0.0
  %v2944 = vsel %vm2752, %v2856, 0.0
  %v2945 = vsel %vm2753, %v2856, 0.0
  %v2946 = vsel %vm2754, %v2860, 0.0
  %v2947 = vsel %vm2755, %v2860, 0.0
  %v2948 = vsel %vm2756, %v2864, 0.0
  %v2949 = vsel %vm2757, %v2864, 0.0
  %v2950 = vsel %vm2758, %v2868, 0.0
  %v2951 = vsel %vm2759, %v2868, 0.0
  %v2952 = vsel %vm2760, %v2872, 0.0
  %v2953 = vsel %vm2761, %v2872, 0.0
  %v2954 = vsel %vm2762, %v2876, 0.0
  %v2955 = vsel %vm2763, %v2876, 0.0
  %v2956 = vsel %vm2764, %v2880, 0.0
  %v2957 = vsel %vm2765, %v2880, 0.0
  %v2958 = vsel %vm2766, %v2884, 0.0
  %v2959 = vsel %vm2767, %v2884, 0.0
  %v2960 = vsel %vm2768, %v2888, 0.0
  %v2961 = vsel %vm2769, %v2888, 0.0
  %v2962 = vsel %vm2770, %v2892, 0.0
  %v2963 = vsel %vm2771, %v2892, 0.0
  %v2964 = vsel %vm2772, %v2896, 0.0
  %v2965 = vsel %vm2773, %v2896, 0.0
  %v2966 = vsel %vm2774, %v2900, 0.0
  %v2967 = vsel %vm2775, %v2900, 0.0
  %v2968 = vsel %vm2776, %v2904, 0.0
  %v2969 = vsel %vm2777, %v2904, 0.0
  %v2970 = vadd.f32 %v2514, %v2906
  %v2971 = vadd.f32 %v2515, %v2907
  %v2972 = vadd.f32 %v2516, %v2908
  %v2973 = vadd.f32 %v2517, %v2909
  %v2974 = vadd.f32 %v2518, %v2910
  %v2975 = vadd.f32 %v2519, %v2911
  %v2976 = vadd.f32 %v2520, %v2912
  %v2977 = vadd.f32 %v2521, %v2913
  %v2978 = vadd.f32 %v2522, %v2914
  %v2979 = vadd.f32 %v2523, %v2915
  %v2980 = vadd.f32 %v2524, %v2916
  %v2981 = vadd.f32 %v2525, %v2917
  %v2982 = vadd.f32 %v2526, %v2918
  %v2983 = vadd.f32 %v2527, %v2919
  %v2984 = vadd.f32 %v2528, %v2920
  %v2985 = vadd.f32 %v2529, %v2921
  %v2986 = vadd.f32 %v2530, %v2922
  %v2987 = vadd.f32 %v2531, %v2923
  %v2988 = vadd.f32 %v2532, %v2924
  %v2989 = vadd.f32 %v2533, %v2925
  %v2990 = vadd.f32 %v2534, %v2926
  %v2991 = vadd.f32 %v2535, %v2927
  %v2992 = vadd.f32 %v2536, %v2928
  %v2993 = vadd.f32 %v2537, %v2929
  %v2994 = vadd.f32 %v2538, %v2930
  %v2995 = vadd.f32 %v2539, %v2931
  %v2996 = vadd.f32 %v2540, %v2932
  %v2997 = vadd.f32 %v2541, %v2933
  %v2998 = vadd.f32 %v2542, %v2934
  %v2999 = vadd.f32 %v2543, %v2935
  %v3000 = vadd.f32 %v2544, %v2936
  %v3001 = vadd.f32 %v2545, %v2937
  %v3002 = vadd.f32 %v2546, %v2938
  %v3003 = vadd.f32 %v2547, %v2939
  %v3004 = vadd.f32 %v2548, %v2940
  %v3005 = vadd.f32 %v2549, %v2941
  %v3006 = vadd.f32 %v2550, %v2942
  %v3007 = vadd.f32 %v2551, %v2943
  %v3008 = vadd.f32 %v2552, %v2944
  %v3009 = vadd.f32 %v2553, %v2945
  %v3010 = vadd.f32 %v2554, %v2946
  %v3011 = vadd.f32 %v2555, %v2947
  %v3012 = vadd.f32 %v2556, %v2948
  %v3013 = vadd.f32 %v2557, %v2949
  %v3014 = vadd.f32 %v2558, %v2950
  %v3015 = vadd.f32 %v2559, %v2951
  %v3016 = vadd.f32 %v2560, %v2952
  %v3017 = vadd.f32 %v2561, %v2953
  %v3018 = vadd.f32 %v2562, %v2954
  %v3019 = vadd.f32 %v2563, %v2955
  %v3020 = vadd.f32 %v2564, %v2956
  %v3021 = vadd.f32 %v2565, %v2957
  %v3022 = vadd.f32 %v2566, %v2958
  %v3023 = vadd.f32 %v2567, %v2959
  %v3024 = vadd.f32 %v2568, %v2960
  %v3025 = vadd.f32 %v2569, %v2961
  %v3026 = vadd.f32 %v2570, %v2962
  %v3027 = vadd.f32 %v2571, %v2963
  %v3028 = vadd.f32 %v2572, %v2964
  %v3029 = vadd.f32 %v2573, %v2965
  %v3030 = vadd.f32 %v2574, %v2966
  %v3031 = vadd.f32 %v2575, %v2967
  %v3032 = vadd.f32 %v2576, %v2968
  %v3033 = vadd.f32 %v2577, %v2969
  %3034 = vset.pattern.permute.xlu0 6
  %3035 = vperm.xlu0 %3034, %v16
  %v3036 = vpop.permute.xlu0 %3035
  %3038 = vset.pattern.permute.xlu0 6
  %3039 = vperm.xlu0 %3038, %v17
  %v3040 = vpop.permute.xlu0 %3039
  %3042 = vset.pattern.permute.xlu0 6
  %3043 = vperm.xlu0 %3042, %v18
  %v3044 = vpop.permute.xlu0 %3043
  %3046 = vset.pattern.permute.xlu0 6
  %3047 = vperm.xlu0 %3046, %v19
  %v3048 = vpop.permute.xlu0 %3047
  %3050 = vset.pattern.permute.xlu0 6
  %3051 = vperm.xlu0 %3050, %v20
  %v3052 = vpop.permute.xlu0 %3051
  %3054 = vset.pattern.permute.xlu0 6
  %3055 = vperm.xlu0 %3054, %v21
  %v3056 = vpop.permute.xlu0 %3055
  %3058 = vset.pattern.permute.xlu0 6
  %3059 = vperm.xlu0 %3058, %v22
  %v3060 = vpop.permute.xlu0 %3059
  %3062 = vset.pattern.permute.xlu0 6
  %3063 = vperm.xlu0 %3062, %v23
  %v3064 = vpop.permute.xlu0 %3063
  %3066 = vset.pattern.permute.xlu0 6
  %3067 = vperm.xlu0 %3066, %v24
  %v3068 = vpop.permute.xlu0 %3067
  %3070 = vset.pattern.permute.xlu0 6
  %3071 = vperm.xlu0 %3070, %v25
  %v3072 = vpop.permute.xlu0 %3071
  %3074 = vset.pattern.permute.xlu0 6
  %3075 = vperm.xlu0 %3074, %v26
  %v3076 = vpop.permute.xlu0 %3075
  %3078 = vset.pattern.permute.xlu0 6
  %3079 = vperm.xlu0 %3078, %v27
  %v3080 = vpop.permute.xlu0 %3079
  %3082 = vset.pattern.permute.xlu0 6
  %3083 = vperm.xlu0 %3082, %v28
  %v3084 = vpop.permute.xlu0 %3083
  %3086 = vset.pattern.permute.xlu0 6
  %3087 = vperm.xlu0 %3086, %v29
  %v3088 = vpop.permute.xlu0 %3087
  %3090 = vset.pattern.permute.xlu0 6
  %3091 = vperm.xlu0 %3090, %v30
  %v3092 = vpop.permute.xlu0 %3091
  %3094 = vset.pattern.permute.xlu0 6
  %3095 = vperm.xlu0 %3094, %v31
  %v3096 = vpop.permute.xlu0 %3095
  %3098 = vset.pattern.permute.xlu0 6
  %3099 = vperm.xlu0 %3098, %v32
  %v3100 = vpop.permute.xlu0 %3099
  %3102 = vset.pattern.permute.xlu0 6
  %3103 = vperm.xlu0 %3102, %v33
  %v3104 = vpop.permute.xlu0 %3103
  %3106 = vset.pattern.permute.xlu0 6
  %3107 = vperm.xlu0 %3106, %v34
  %v3108 = vpop.permute.xlu0 %3107
  %3110 = vset.pattern.permute.xlu0 6
  %3111 = vperm.xlu0 %3110, %v35
  %v3112 = vpop.permute.xlu0 %3111
  %3114 = vset.pattern.permute.xlu0 6
  %3115 = vperm.xlu0 %3114, %v36
  %v3116 = vpop.permute.xlu0 %3115
  %3118 = vset.pattern.permute.xlu0 6
  %3119 = vperm.xlu0 %3118, %v37
  %v3120 = vpop.permute.xlu0 %3119
  %3122 = vset.pattern.permute.xlu0 6
  %3123 = vperm.xlu0 %3122, %v38
  %v3124 = vpop.permute.xlu0 %3123
  %3126 = vset.pattern.permute.xlu0 6
  %3127 = vperm.xlu0 %3126, %v39
  %v3128 = vpop.permute.xlu0 %3127
  %3130 = vset.pattern.permute.xlu0 6
  %3131 = vperm.xlu0 %3130, %v40
  %v3132 = vpop.permute.xlu0 %3131
  %3134 = vset.pattern.permute.xlu0 6
  %3135 = vperm.xlu0 %3134, %v41
  %v3136 = vpop.permute.xlu0 %3135
  %3138 = vset.pattern.permute.xlu0 6
  %3139 = vperm.xlu0 %3138, %v42
  %v3140 = vpop.permute.xlu0 %3139
  %3142 = vset.pattern.permute.xlu0 6
  %3143 = vperm.xlu0 %3142, %v43
  %v3144 = vpop.permute.xlu0 %3143
  %3146 = vset.pattern.permute.xlu0 6
  %3147 = vperm.xlu0 %3146, %v44
  %v3148 = vpop.permute.xlu0 %3147
  %3150 = vset.pattern.permute.xlu0 6
  %3151 = vperm.xlu0 %3150, %v45
  %v3152 = vpop.permute.xlu0 %3151
  %3154 = vset.pattern.permute.xlu0 6
  %3155 = vperm.xlu0 %3154, %v46
  %v3156 = vpop.permute.xlu0 %3155
  %3158 = vset.pattern.permute.xlu0 6
  %3159 = vperm.xlu0 %3158, %v47
  %v3160 = vpop.permute.xlu0 %3159
  %v3162 = vlaneseq
  %v3163 = vshrl.u32 %v3162, 7
  %v3164 = vsub.s32 6, %v3163
  %v3165 = vrot.slane %v48, %v3164
  %v3166 = vlaneseq
  %v3167 = vshrl.u32 %v3166, 7
  %v3168 = vsub.s32 6, %v3167
  %v3169 = vrot.slane %v49, %v3168
  %vm3170 = vcmp.eq.f32.partialorder %v3036, %v3165
  %vm3171 = vcmp.eq.f32.partialorder %v3036, %v3169
  %vm3172 = vcmp.eq.f32.partialorder %v3040, %v3165
  %vm3173 = vcmp.eq.f32.partialorder %v3040, %v3169
  %vm3174 = vcmp.eq.f32.partialorder %v3044, %v3165
  %vm3175 = vcmp.eq.f32.partialorder %v3044, %v3169
  %vm3176 = vcmp.eq.f32.partialorder %v3048, %v3165
  %vm3177 = vcmp.eq.f32.partialorder %v3048, %v3169
  %vm3178 = vcmp.eq.f32.partialorder %v3052, %v3165
  %vm3179 = vcmp.eq.f32.partialorder %v3052, %v3169
  %vm3180 = vcmp.eq.f32.partialorder %v3056, %v3165
  %vm3181 = vcmp.eq.f32.partialorder %v3056, %v3169
  %vm3182 = vcmp.eq.f32.partialorder %v3060, %v3165
  %vm3183 = vcmp.eq.f32.partialorder %v3060, %v3169
  %vm3184 = vcmp.eq.f32.partialorder %v3064, %v3165
  %vm3185 = vcmp.eq.f32.partialorder %v3064, %v3169
  %vm3186 = vcmp.eq.f32.partialorder %v3068, %v3165
  %vm3187 = vcmp.eq.f32.partialorder %v3068, %v3169
  %vm3188 = vcmp.eq.f32.partialorder %v3072, %v3165
  %vm3189 = vcmp.eq.f32.partialorder %v3072, %v3169
  %vm3190 = vcmp.eq.f32.partialorder %v3076, %v3165
  %vm3191 = vcmp.eq.f32.partialorder %v3076, %v3169
  %vm3192 = vcmp.eq.f32.partialorder %v3080, %v3165
  %vm3193 = vcmp.eq.f32.partialorder %v3080, %v3169
  %vm3194 = vcmp.eq.f32.partialorder %v3084, %v3165
  %vm3195 = vcmp.eq.f32.partialorder %v3084, %v3169
  %vm3196 = vcmp.eq.f32.partialorder %v3088, %v3165
  %vm3197 = vcmp.eq.f32.partialorder %v3088, %v3169
  %vm3198 = vcmp.eq.f32.partialorder %v3092, %v3165
  %vm3199 = vcmp.eq.f32.partialorder %v3092, %v3169
  %vm3200 = vcmp.eq.f32.partialorder %v3096, %v3165
  %vm3201 = vcmp.eq.f32.partialorder %v3096, %v3169
  %vm3202 = vcmp.eq.f32.partialorder %v3100, %v3165
  %vm3203 = vcmp.eq.f32.partialorder %v3100, %v3169
  %vm3204 = vcmp.eq.f32.partialorder %v3104, %v3165
  %vm3205 = vcmp.eq.f32.partialorder %v3104, %v3169
  %vm3206 = vcmp.eq.f32.partialorder %v3108, %v3165
  %vm3207 = vcmp.eq.f32.partialorder %v3108, %v3169
  %vm3208 = vcmp.eq.f32.partialorder %v3112, %v3165
  %vm3209 = vcmp.eq.f32.partialorder %v3112, %v3169
  %vm3210 = vcmp.eq.f32.partialorder %v3116, %v3165
  %vm3211 = vcmp.eq.f32.partialorder %v3116, %v3169
  %vm3212 = vcmp.eq.f32.partialorder %v3120, %v3165
  %vm3213 = vcmp.eq.f32.partialorder %v3120, %v3169
  %vm3214 = vcmp.eq.f32.partialorder %v3124, %v3165
  %vm3215 = vcmp.eq.f32.partialorder %v3124, %v3169
  %vm3216 = vcmp.eq.f32.partialorder %v3128, %v3165
  %vm3217 = vcmp.eq.f32.partialorder %v3128, %v3169
  %vm3218 = vcmp.eq.f32.partialorder %v3132, %v3165
  %vm3219 = vcmp.eq.f32.partialorder %v3132, %v3169
  %vm3220 = vcmp.eq.f32.partialorder %v3136, %v3165
  %vm3221 = vcmp.eq.f32.partialorder %v3136, %v3169
  %vm3222 = vcmp.eq.f32.partialorder %v3140, %v3165
  %vm3223 = vcmp.eq.f32.partialorder %v3140, %v3169
  %vm3224 = vcmp.eq.f32.partialorder %v3144, %v3165
  %vm3225 = vcmp.eq.f32.partialorder %v3144, %v3169
  %vm3226 = vcmp.eq.f32.partialorder %v3148, %v3165
  %vm3227 = vcmp.eq.f32.partialorder %v3148, %v3169
  %vm3228 = vcmp.eq.f32.partialorder %v3152, %v3165
  %vm3229 = vcmp.eq.f32.partialorder %v3152, %v3169
  %vm3230 = vcmp.eq.f32.partialorder %v3156, %v3165
  %vm3231 = vcmp.eq.f32.partialorder %v3156, %v3169
  %vm3232 = vcmp.eq.f32.partialorder %v3160, %v3165
  %vm3233 = vcmp.eq.f32.partialorder %v3160, %v3169
  %3234 = vset.pattern.permute.xlu0 6
  %3235 = vperm.xlu0 %3234, %v202
  %v3236 = vpop.permute.xlu0 %3235
  %3238 = vset.pattern.permute.xlu0 6
  %3239 = vperm.xlu0 %3238, %v203
  %v3240 = vpop.permute.xlu0 %3239
  %3242 = vset.pattern.permute.xlu0 6
  %3243 = vperm.xlu0 %3242, %v204
  %v3244 = vpop.permute.xlu0 %3243
  %3246 = vset.pattern.permute.xlu0 6
  %3247 = vperm.xlu0 %3246, %v205
  %v3248 = vpop.permute.xlu0 %3247
  %3250 = vset.pattern.permute.xlu0 6
  %3251 = vperm.xlu0 %3250, %v206
  %v3252 = vpop.permute.xlu0 %3251
  %3254 = vset.pattern.permute.xlu0 6
  %3255 = vperm.xlu0 %3254, %v207
  %v3256 = vpop.permute.xlu0 %3255
  %3258 = vset.pattern.permute.xlu0 6
  %3259 = vperm.xlu0 %3258, %v208
  %v3260 = vpop.permute.xlu0 %3259
  %3262 = vset.pattern.permute.xlu0 6
  %3263 = vperm.xlu0 %3262, %v209
  %v3264 = vpop.permute.xlu0 %3263
  %3266 = vset.pattern.permute.xlu0 6
  %3267 = vperm.xlu0 %3266, %v210
  %v3268 = vpop.permute.xlu0 %3267
  %3270 = vset.pattern.permute.xlu0 6
  %3271 = vperm.xlu0 %3270, %v211
  %v3272 = vpop.permute.xlu0 %3271
  %3274 = vset.pattern.permute.xlu0 6
  %3275 = vperm.xlu0 %3274, %v212
  %v3276 = vpop.permute.xlu0 %3275
  %3278 = vset.pattern.permute.xlu0 6
  %3279 = vperm.xlu0 %3278, %v213
  %v3280 = vpop.permute.xlu0 %3279
  %3282 = vset.pattern.permute.xlu0 6
  %3283 = vperm.xlu0 %3282, %v214
  %v3284 = vpop.permute.xlu0 %3283
  %3286 = vset.pattern.permute.xlu0 6
  %3287 = vperm.xlu0 %3286, %v215
  %v3288 = vpop.permute.xlu0 %3287
  %3290 = vset.pattern.permute.xlu0 6
  %3291 = vperm.xlu0 %3290, %v216
  %v3292 = vpop.permute.xlu0 %3291
  %3294 = vset.pattern.permute.xlu0 6
  %3295 = vperm.xlu0 %3294, %v217
  %v3296 = vpop.permute.xlu0 %3295
  %3298 = vset.pattern.permute.xlu0 6
  %3299 = vperm.xlu0 %3298, %v218
  %v3300 = vpop.permute.xlu0 %3299
  %3302 = vset.pattern.permute.xlu0 6
  %3303 = vperm.xlu0 %3302, %v219
  %v3304 = vpop.permute.xlu0 %3303
  %3306 = vset.pattern.permute.xlu0 6
  %3307 = vperm.xlu0 %3306, %v220
  %v3308 = vpop.permute.xlu0 %3307
  %3310 = vset.pattern.permute.xlu0 6
  %3311 = vperm.xlu0 %3310, %v221
  %v3312 = vpop.permute.xlu0 %3311
  %3314 = vset.pattern.permute.xlu0 6
  %3315 = vperm.xlu0 %3314, %v222
  %v3316 = vpop.permute.xlu0 %3315
  %3318 = vset.pattern.permute.xlu0 6
  %3319 = vperm.xlu0 %3318, %v223
  %v3320 = vpop.permute.xlu0 %3319
  %3322 = vset.pattern.permute.xlu0 6
  %3323 = vperm.xlu0 %3322, %v224
  %v3324 = vpop.permute.xlu0 %3323
  %3326 = vset.pattern.permute.xlu0 6
  %3327 = vperm.xlu0 %3326, %v225
  %v3328 = vpop.permute.xlu0 %3327
  %3330 = vset.pattern.permute.xlu0 6
  %3331 = vperm.xlu0 %3330, %v226
  %v3332 = vpop.permute.xlu0 %3331
  %3334 = vset.pattern.permute.xlu0 6
  %3335 = vperm.xlu0 %3334, %v227
  %v3336 = vpop.permute.xlu0 %3335
  %3338 = vset.pattern.permute.xlu0 6
  %3339 = vperm.xlu0 %3338, %v228
  %v3340 = vpop.permute.xlu0 %3339
  %3342 = vset.pattern.permute.xlu0 6
  %3343 = vperm.xlu0 %3342, %v229
  %v3344 = vpop.permute.xlu0 %3343
  %3346 = vset.pattern.permute.xlu0 6
  %3347 = vperm.xlu0 %3346, %v230
  %v3348 = vpop.permute.xlu0 %3347
  %3350 = vset.pattern.permute.xlu0 6
  %3351 = vperm.xlu0 %3350, %v231
  %v3352 = vpop.permute.xlu0 %3351
  %3354 = vset.pattern.permute.xlu0 6
  %3355 = vperm.xlu0 %3354, %v232
  %v3356 = vpop.permute.xlu0 %3355
  %3358 = vset.pattern.permute.xlu0 6
  %3359 = vperm.xlu0 %3358, %v233
  %v3360 = vpop.permute.xlu0 %3359
  %v3362 = vsel %vm3170, %v3236, 0.0
  %v3363 = vsel %vm3171, %v3236, 0.0
  %v3364 = vsel %vm3172, %v3240, 0.0
  %v3365 = vsel %vm3173, %v3240, 0.0
  %v3366 = vsel %vm3174, %v3244, 0.0
  %v3367 = vsel %vm3175, %v3244, 0.0
  %v3368 = vsel %vm3176, %v3248, 0.0
  %v3369 = vsel %vm3177, %v3248, 0.0
  %v3370 = vsel %vm3178, %v3252, 0.0
  %v3371 = vsel %vm3179, %v3252, 0.0
  %v3372 = vsel %vm3180, %v3256, 0.0
  %v3373 = vsel %vm3181, %v3256, 0.0
  %v3374 = vsel %vm3182, %v3260, 0.0
  %v3375 = vsel %vm3183, %v3260, 0.0
  %v3376 = vsel %vm3184, %v3264, 0.0
  %v3377 = vsel %vm3185, %v3264, 0.0
  %v3378 = vsel %vm3186, %v3268, 0.0
  %v3379 = vsel %vm3187, %v3268, 0.0
  %v3380 = vsel %vm3188, %v3272, 0.0
  %v3381 = vsel %vm3189, %v3272, 0.0
  %v3382 = vsel %vm3190, %v3276, 0.0
  %v3383 = vsel %vm3191, %v3276, 0.0
  %v3384 = vsel %vm3192, %v3280, 0.0
  %v3385 = vsel %vm3193, %v3280, 0.0
  %v3386 = vsel %vm3194, %v3284, 0.0
  %v3387 = vsel %vm3195, %v3284, 0.0
  %v3388 = vsel %vm3196, %v3288, 0.0
  %v3389 = vsel %vm3197, %v3288, 0.0
  %v3390 = vsel %vm3198, %v3292, 0.0
  %v3391 = vsel %vm3199, %v3292, 0.0
  %v3392 = vsel %vm3200, %v3296, 0.0
  %v3393 = vsel %vm3201, %v3296, 0.0
  %v3394 = vsel %vm3202, %v3300, 0.0
  %v3395 = vsel %vm3203, %v3300, 0.0
  %v3396 = vsel %vm3204, %v3304, 0.0
  %v3397 = vsel %vm3205, %v3304, 0.0
  %v3398 = vsel %vm3206, %v3308, 0.0
  %v3399 = vsel %vm3207, %v3308, 0.0
  %v3400 = vsel %vm3208, %v3312, 0.0
  %v3401 = vsel %vm3209, %v3312, 0.0
  %v3402 = vsel %vm3210, %v3316, 0.0
  %v3403 = vsel %vm3211, %v3316, 0.0
  %v3404 = vsel %vm3212, %v3320, 0.0
  %v3405 = vsel %vm3213, %v3320, 0.0
  %v3406 = vsel %vm3214, %v3324, 0.0
  %v3407 = vsel %vm3215, %v3324, 0.0
  %v3408 = vsel %vm3216, %v3328, 0.0
  %v3409 = vsel %vm3217, %v3328, 0.0
  %v3410 = vsel %vm3218, %v3332, 0.0
  %v3411 = vsel %vm3219, %v3332, 0.0
  %v3412 = vsel %vm3220, %v3336, 0.0
  %v3413 = vsel %vm3221, %v3336, 0.0
  %v3414 = vsel %vm3222, %v3340, 0.0
  %v3415 = vsel %vm3223, %v3340, 0.0
  %v3416 = vsel %vm3224, %v3344, 0.0
  %v3417 = vsel %vm3225, %v3344, 0.0
  %v3418 = vsel %vm3226, %v3348, 0.0
  %v3419 = vsel %vm3227, %v3348, 0.0
  %v3420 = vsel %vm3228, %v3352, 0.0
  %v3421 = vsel %vm3229, %v3352, 0.0
  %v3422 = vsel %vm3230, %v3356, 0.0
  %v3423 = vsel %vm3231, %v3356, 0.0
  %v3424 = vsel %vm3232, %v3360, 0.0
  %v3425 = vsel %vm3233, %v3360, 0.0
  %v3426 = vadd.f32 %v2970, %v3362
  %v3427 = vadd.f32 %v2971, %v3363
  %v3428 = vadd.f32 %v2972, %v3364
  %v3429 = vadd.f32 %v2973, %v3365
  %v3430 = vadd.f32 %v2974, %v3366
  %v3431 = vadd.f32 %v2975, %v3367
  %v3432 = vadd.f32 %v2976, %v3368
  %v3433 = vadd.f32 %v2977, %v3369
  %v3434 = vadd.f32 %v2978, %v3370
  %v3435 = vadd.f32 %v2979, %v3371
  %v3436 = vadd.f32 %v2980, %v3372
  %v3437 = vadd.f32 %v2981, %v3373
  %v3438 = vadd.f32 %v2982, %v3374
  %v3439 = vadd.f32 %v2983, %v3375
  %v3440 = vadd.f32 %v2984, %v3376
  %v3441 = vadd.f32 %v2985, %v3377
  %v3442 = vadd.f32 %v2986, %v3378
  %v3443 = vadd.f32 %v2987, %v3379
  %v3444 = vadd.f32 %v2988, %v3380
  %v3445 = vadd.f32 %v2989, %v3381
  %v3446 = vadd.f32 %v2990, %v3382
  %v3447 = vadd.f32 %v2991, %v3383
  %v3448 = vadd.f32 %v2992, %v3384
  %v3449 = vadd.f32 %v2993, %v3385
  %v3450 = vadd.f32 %v2994, %v3386
  %v3451 = vadd.f32 %v2995, %v3387
  %v3452 = vadd.f32 %v2996, %v3388
  %v3453 = vadd.f32 %v2997, %v3389
  %v3454 = vadd.f32 %v2998, %v3390
  %v3455 = vadd.f32 %v2999, %v3391
  %v3456 = vadd.f32 %v3000, %v3392
  %v3457 = vadd.f32 %v3001, %v3393
  %v3458 = vadd.f32 %v3002, %v3394
  %v3459 = vadd.f32 %v3003, %v3395
  %v3460 = vadd.f32 %v3004, %v3396
  %v3461 = vadd.f32 %v3005, %v3397
  %v3462 = vadd.f32 %v3006, %v3398
  %v3463 = vadd.f32 %v3007, %v3399
  %v3464 = vadd.f32 %v3008, %v3400
  %v3465 = vadd.f32 %v3009, %v3401
  %v3466 = vadd.f32 %v3010, %v3402
  %v3467 = vadd.f32 %v3011, %v3403
  %v3468 = vadd.f32 %v3012, %v3404
  %v3469 = vadd.f32 %v3013, %v3405
  %v3470 = vadd.f32 %v3014, %v3406
  %v3471 = vadd.f32 %v3015, %v3407
  %v3472 = vadd.f32 %v3016, %v3408
  %v3473 = vadd.f32 %v3017, %v3409
  %v3474 = vadd.f32 %v3018, %v3410
  %v3475 = vadd.f32 %v3019, %v3411
  %v3476 = vadd.f32 %v3020, %v3412
  %v3477 = vadd.f32 %v3021, %v3413
  %v3478 = vadd.f32 %v3022, %v3414
  %v3479 = vadd.f32 %v3023, %v3415
  %v3480 = vadd.f32 %v3024, %v3416
  %v3481 = vadd.f32 %v3025, %v3417
  %v3482 = vadd.f32 %v3026, %v3418
  %v3483 = vadd.f32 %v3027, %v3419
  %v3484 = vadd.f32 %v3028, %v3420
  %v3485 = vadd.f32 %v3029, %v3421
  %v3486 = vadd.f32 %v3030, %v3422
  %v3487 = vadd.f32 %v3031, %v3423
  %v3488 = vadd.f32 %v3032, %v3424
  %v3489 = vadd.f32 %v3033, %v3425
  %3490 = vset.pattern.permute.xlu0 7
  %3491 = vperm.xlu0 %3490, %v16
  %v3492 = vpop.permute.xlu0 %3491
  %3494 = vset.pattern.permute.xlu0 7
  %3495 = vperm.xlu0 %3494, %v17
  %v3496 = vpop.permute.xlu0 %3495
  %3498 = vset.pattern.permute.xlu0 7
  %3499 = vperm.xlu0 %3498, %v18
  %v3500 = vpop.permute.xlu0 %3499
  %3502 = vset.pattern.permute.xlu0 7
  %3503 = vperm.xlu0 %3502, %v19
  %v3504 = vpop.permute.xlu0 %3503
  %3506 = vset.pattern.permute.xlu0 7
  %3507 = vperm.xlu0 %3506, %v20
  %v3508 = vpop.permute.xlu0 %3507
  %3510 = vset.pattern.permute.xlu0 7
  %3511 = vperm.xlu0 %3510, %v21
  %v3512 = vpop.permute.xlu0 %3511
  %3514 = vset.pattern.permute.xlu0 7
  %3515 = vperm.xlu0 %3514, %v22
  %v3516 = vpop.permute.xlu0 %3515
  %3518 = vset.pattern.permute.xlu0 7
  %3519 = vperm.xlu0 %3518, %v23
  %v3520 = vpop.permute.xlu0 %3519
  %3522 = vset.pattern.permute.xlu0 7
  %3523 = vperm.xlu0 %3522, %v24
  %v3524 = vpop.permute.xlu0 %3523
  %3526 = vset.pattern.permute.xlu0 7
  %3527 = vperm.xlu0 %3526, %v25
  %v3528 = vpop.permute.xlu0 %3527
  %3530 = vset.pattern.permute.xlu0 7
  %3531 = vperm.xlu0 %3530, %v26
  %v3532 = vpop.permute.xlu0 %3531
  %3534 = vset.pattern.permute.xlu0 7
  %3535 = vperm.xlu0 %3534, %v27
  %v3536 = vpop.permute.xlu0 %3535
  %3538 = vset.pattern.permute.xlu0 7
  %3539 = vperm.xlu0 %3538, %v28
  %v3540 = vpop.permute.xlu0 %3539
  %3542 = vset.pattern.permute.xlu0 7
  %3543 = vperm.xlu0 %3542, %v29
  %v3544 = vpop.permute.xlu0 %3543
  %3546 = vset.pattern.permute.xlu0 7
  %3547 = vperm.xlu0 %3546, %v30
  %v3548 = vpop.permute.xlu0 %3547
  %3550 = vset.pattern.permute.xlu0 7
  %3551 = vperm.xlu0 %3550, %v31
  %v3552 = vpop.permute.xlu0 %3551
  %3554 = vset.pattern.permute.xlu0 7
  %3555 = vperm.xlu0 %3554, %v32
  %v3556 = vpop.permute.xlu0 %3555
  %3558 = vset.pattern.permute.xlu0 7
  %3559 = vperm.xlu0 %3558, %v33
  %v3560 = vpop.permute.xlu0 %3559
  %3562 = vset.pattern.permute.xlu0 7
  %3563 = vperm.xlu0 %3562, %v34
  %v3564 = vpop.permute.xlu0 %3563
  %3566 = vset.pattern.permute.xlu0 7
  %3567 = vperm.xlu0 %3566, %v35
  %v3568 = vpop.permute.xlu0 %3567
  %3570 = vset.pattern.permute.xlu0 7
  %3571 = vperm.xlu0 %3570, %v36
  %v3572 = vpop.permute.xlu0 %3571
  %3574 = vset.pattern.permute.xlu0 7
  %3575 = vperm.xlu0 %3574, %v37
  %v3576 = vpop.permute.xlu0 %3575
  %3578 = vset.pattern.permute.xlu0 7
  %3579 = vperm.xlu0 %3578, %v38
  %v3580 = vpop.permute.xlu0 %3579
  %3582 = vset.pattern.permute.xlu0 7
  %3583 = vperm.xlu0 %3582, %v39
  %v3584 = vpop.permute.xlu0 %3583
  %3586 = vset.pattern.permute.xlu0 7
  %3587 = vperm.xlu0 %3586, %v40
  %v3588 = vpop.permute.xlu0 %3587
  %3590 = vset.pattern.permute.xlu0 7
  %3591 = vperm.xlu0 %3590, %v41
  %v3592 = vpop.permute.xlu0 %3591
  %3594 = vset.pattern.permute.xlu0 7
  %3595 = vperm.xlu0 %3594, %v42
  %v3596 = vpop.permute.xlu0 %3595
  %3598 = vset.pattern.permute.xlu0 7
  %3599 = vperm.xlu0 %3598, %v43
  %v3600 = vpop.permute.xlu0 %3599
  %3602 = vset.pattern.permute.xlu0 7
  %3603 = vperm.xlu0 %3602, %v44
  %v3604 = vpop.permute.xlu0 %3603
  %3606 = vset.pattern.permute.xlu0 7
  %3607 = vperm.xlu0 %3606, %v45
  %v3608 = vpop.permute.xlu0 %3607
  %3610 = vset.pattern.permute.xlu0 7
  %3611 = vperm.xlu0 %3610, %v46
  %v3612 = vpop.permute.xlu0 %3611
  %3614 = vset.pattern.permute.xlu0 7
  %3615 = vperm.xlu0 %3614, %v47
  %v3616 = vpop.permute.xlu0 %3615
  %v3618 = vlaneseq
  %v3619 = vshrl.u32 %v3618, 7
  %v3620 = vsub.s32 7, %v3619
  %v3621 = vrot.slane %v48, %v3620
  %v3622 = vlaneseq
  %v3623 = vshrl.u32 %v3622, 7
  %v3624 = vsub.s32 7, %v3623
  %v3625 = vrot.slane %v49, %v3624
  %vm3626 = vcmp.eq.f32.partialorder %v3492, %v3621
  %vm3627 = vcmp.eq.f32.partialorder %v3492, %v3625
  %vm3628 = vcmp.eq.f32.partialorder %v3496, %v3621
  %vm3629 = vcmp.eq.f32.partialorder %v3496, %v3625
  %vm3630 = vcmp.eq.f32.partialorder %v3500, %v3621
  %vm3631 = vcmp.eq.f32.partialorder %v3500, %v3625
  %vm3632 = vcmp.eq.f32.partialorder %v3504, %v3621
  %vm3633 = vcmp.eq.f32.partialorder %v3504, %v3625
  %vm3634 = vcmp.eq.f32.partialorder %v3508, %v3621
  %vm3635 = vcmp.eq.f32.partialorder %v3508, %v3625
  %vm3636 = vcmp.eq.f32.partialorder %v3512, %v3621
  %vm3637 = vcmp.eq.f32.partialorder %v3512, %v3625
  %vm3638 = vcmp.eq.f32.partialorder %v3516, %v3621
  %vm3639 = vcmp.eq.f32.partialorder %v3516, %v3625
  %vm3640 = vcmp.eq.f32.partialorder %v3520, %v3621
  %vm3641 = vcmp.eq.f32.partialorder %v3520, %v3625
  %vm3642 = vcmp.eq.f32.partialorder %v3524, %v3621
  %vm3643 = vcmp.eq.f32.partialorder %v3524, %v3625
  %vm3644 = vcmp.eq.f32.partialorder %v3528, %v3621
  %vm3645 = vcmp.eq.f32.partialorder %v3528, %v3625
  %vm3646 = vcmp.eq.f32.partialorder %v3532, %v3621
  %vm3647 = vcmp.eq.f32.partialorder %v3532, %v3625
  %vm3648 = vcmp.eq.f32.partialorder %v3536, %v3621
  %vm3649 = vcmp.eq.f32.partialorder %v3536, %v3625
  %vm3650 = vcmp.eq.f32.partialorder %v3540, %v3621
  %vm3651 = vcmp.eq.f32.partialorder %v3540, %v3625
  %vm3652 = vcmp.eq.f32.partialorder %v3544, %v3621
  %vm3653 = vcmp.eq.f32.partialorder %v3544, %v3625
  %vm3654 = vcmp.eq.f32.partialorder %v3548, %v3621
  %vm3655 = vcmp.eq.f32.partialorder %v3548, %v3625
  %vm3656 = vcmp.eq.f32.partialorder %v3552, %v3621
  %vm3657 = vcmp.eq.f32.partialorder %v3552, %v3625
  %vm3658 = vcmp.eq.f32.partialorder %v3556, %v3621
  %vm3659 = vcmp.eq.f32.partialorder %v3556, %v3625
  %vm3660 = vcmp.eq.f32.partialorder %v3560, %v3621
  %vm3661 = vcmp.eq.f32.partialorder %v3560, %v3625
  %vm3662 = vcmp.eq.f32.partialorder %v3564, %v3621
  %vm3663 = vcmp.eq.f32.partialorder %v3564, %v3625
  %vm3664 = vcmp.eq.f32.partialorder %v3568, %v3621
  %vm3665 = vcmp.eq.f32.partialorder %v3568, %v3625
  %vm3666 = vcmp.eq.f32.partialorder %v3572, %v3621
  %vm3667 = vcmp.eq.f32.partialorder %v3572, %v3625
  %vm3668 = vcmp.eq.f32.partialorder %v3576, %v3621
  %vm3669 = vcmp.eq.f32.partialorder %v3576, %v3625
  %vm3670 = vcmp.eq.f32.partialorder %v3580, %v3621
  %vm3671 = vcmp.eq.f32.partialorder %v3580, %v3625
  %vm3672 = vcmp.eq.f32.partialorder %v3584, %v3621
  %vm3673 = vcmp.eq.f32.partialorder %v3584, %v3625
  %vm3674 = vcmp.eq.f32.partialorder %v3588, %v3621
  %vm3675 = vcmp.eq.f32.partialorder %v3588, %v3625
  %vm3676 = vcmp.eq.f32.partialorder %v3592, %v3621
  %vm3677 = vcmp.eq.f32.partialorder %v3592, %v3625
  %vm3678 = vcmp.eq.f32.partialorder %v3596, %v3621
  %vm3679 = vcmp.eq.f32.partialorder %v3596, %v3625
  %vm3680 = vcmp.eq.f32.partialorder %v3600, %v3621
  %vm3681 = vcmp.eq.f32.partialorder %v3600, %v3625
  %vm3682 = vcmp.eq.f32.partialorder %v3604, %v3621
  %vm3683 = vcmp.eq.f32.partialorder %v3604, %v3625
  %vm3684 = vcmp.eq.f32.partialorder %v3608, %v3621
  %vm3685 = vcmp.eq.f32.partialorder %v3608, %v3625
  %vm3686 = vcmp.eq.f32.partialorder %v3612, %v3621
  %vm3687 = vcmp.eq.f32.partialorder %v3612, %v3625
  %vm3688 = vcmp.eq.f32.partialorder %v3616, %v3621
  %vm3689 = vcmp.eq.f32.partialorder %v3616, %v3625
  %3690 = vset.pattern.permute.xlu0 7
  %3691 = vperm.xlu0 %3690, %v202
  %v3692 = vpop.permute.xlu0 %3691
  %3694 = vset.pattern.permute.xlu0 7
  %3695 = vperm.xlu0 %3694, %v203
  %v3696 = vpop.permute.xlu0 %3695
  %3698 = vset.pattern.permute.xlu0 7
  %3699 = vperm.xlu0 %3698, %v204
  %v3700 = vpop.permute.xlu0 %3699
  %3702 = vset.pattern.permute.xlu0 7
  %3703 = vperm.xlu0 %3702, %v205
  %v3704 = vpop.permute.xlu0 %3703
  %3706 = vset.pattern.permute.xlu0 7
  %3707 = vperm.xlu0 %3706, %v206
  %v3708 = vpop.permute.xlu0 %3707
  %3710 = vset.pattern.permute.xlu0 7
  %3711 = vperm.xlu0 %3710, %v207
  %v3712 = vpop.permute.xlu0 %3711
  %3714 = vset.pattern.permute.xlu0 7
  %3715 = vperm.xlu0 %3714, %v208
  %v3716 = vpop.permute.xlu0 %3715
  %3718 = vset.pattern.permute.xlu0 7
  %3719 = vperm.xlu0 %3718, %v209
  %v3720 = vpop.permute.xlu0 %3719
  %3722 = vset.pattern.permute.xlu0 7
  %3723 = vperm.xlu0 %3722, %v210
  %v3724 = vpop.permute.xlu0 %3723
  %3726 = vset.pattern.permute.xlu0 7
  %3727 = vperm.xlu0 %3726, %v211
  %v3728 = vpop.permute.xlu0 %3727
  %3730 = vset.pattern.permute.xlu0 7
  %3731 = vperm.xlu0 %3730, %v212
  %v3732 = vpop.permute.xlu0 %3731
  %3734 = vset.pattern.permute.xlu0 7
  %3735 = vperm.xlu0 %3734, %v213
  %v3736 = vpop.permute.xlu0 %3735
  %3738 = vset.pattern.permute.xlu0 7
  %3739 = vperm.xlu0 %3738, %v214
  %v3740 = vpop.permute.xlu0 %3739
  %3742 = vset.pattern.permute.xlu0 7
  %3743 = vperm.xlu0 %3742, %v215
  %v3744 = vpop.permute.xlu0 %3743
  %3746 = vset.pattern.permute.xlu0 7
  %3747 = vperm.xlu0 %3746, %v216
  %v3748 = vpop.permute.xlu0 %3747
  %3750 = vset.pattern.permute.xlu0 7
  %3751 = vperm.xlu0 %3750, %v217
  %v3752 = vpop.permute.xlu0 %3751
  %3754 = vset.pattern.permute.xlu0 7
  %3755 = vperm.xlu0 %3754, %v218
  %v3756 = vpop.permute.xlu0 %3755
  %3758 = vset.pattern.permute.xlu0 7
  %3759 = vperm.xlu0 %3758, %v219
  %v3760 = vpop.permute.xlu0 %3759
  %3762 = vset.pattern.permute.xlu0 7
  %3763 = vperm.xlu0 %3762, %v220
  %v3764 = vpop.permute.xlu0 %3763
  %3766 = vset.pattern.permute.xlu0 7
  %3767 = vperm.xlu0 %3766, %v221
  %v3768 = vpop.permute.xlu0 %3767
  %3770 = vset.pattern.permute.xlu0 7
  %3771 = vperm.xlu0 %3770, %v222
  %v3772 = vpop.permute.xlu0 %3771
  %3774 = vset.pattern.permute.xlu0 7
  %3775 = vperm.xlu0 %3774, %v223
  %v3776 = vpop.permute.xlu0 %3775
  %3778 = vset.pattern.permute.xlu0 7
  %3779 = vperm.xlu0 %3778, %v224
  %v3780 = vpop.permute.xlu0 %3779
  %3782 = vset.pattern.permute.xlu0 7
  %3783 = vperm.xlu0 %3782, %v225
  %v3784 = vpop.permute.xlu0 %3783
  %3786 = vset.pattern.permute.xlu0 7
  %3787 = vperm.xlu0 %3786, %v226
  %v3788 = vpop.permute.xlu0 %3787
  %3790 = vset.pattern.permute.xlu0 7
  %3791 = vperm.xlu0 %3790, %v227
  %v3792 = vpop.permute.xlu0 %3791
  %3794 = vset.pattern.permute.xlu0 7
  %3795 = vperm.xlu0 %3794, %v228
  %v3796 = vpop.permute.xlu0 %3795
  %3798 = vset.pattern.permute.xlu0 7
  %3799 = vperm.xlu0 %3798, %v229
  %v3800 = vpop.permute.xlu0 %3799
  %3802 = vset.pattern.permute.xlu0 7
  %3803 = vperm.xlu0 %3802, %v230
  %v3804 = vpop.permute.xlu0 %3803
  %3806 = vset.pattern.permute.xlu0 7
  %3807 = vperm.xlu0 %3806, %v231
  %v3808 = vpop.permute.xlu0 %3807
  %3810 = vset.pattern.permute.xlu0 7
  %3811 = vperm.xlu0 %3810, %v232
  %v3812 = vpop.permute.xlu0 %3811
  %3814 = vset.pattern.permute.xlu0 7
  %3815 = vperm.xlu0 %3814, %v233
  %v3816 = vpop.permute.xlu0 %3815
  %v3818 = vsel %vm3626, %v3692, 0.0
  %v3819 = vsel %vm3627, %v3692, 0.0
  %v3820 = vsel %vm3628, %v3696, 0.0
  %v3821 = vsel %vm3629, %v3696, 0.0
  %v3822 = vsel %vm3630, %v3700, 0.0
  %v3823 = vsel %vm3631, %v3700, 0.0
  %v3824 = vsel %vm3632, %v3704, 0.0
  %v3825 = vsel %vm3633, %v3704, 0.0
  %v3826 = vsel %vm3634, %v3708, 0.0
  %v3827 = vsel %vm3635, %v3708, 0.0
  %v3828 = vsel %vm3636, %v3712, 0.0
  %v3829 = vsel %vm3637, %v3712, 0.0
  %v3830 = vsel %vm3638, %v3716, 0.0
  %v3831 = vsel %vm3639, %v3716, 0.0
  %v3832 = vsel %vm3640, %v3720, 0.0
  %v3833 = vsel %vm3641, %v3720, 0.0
  %v3834 = vsel %vm3642, %v3724, 0.0
  %v3835 = vsel %vm3643, %v3724, 0.0
  %v3836 = vsel %vm3644, %v3728, 0.0
  %v3837 = vsel %vm3645, %v3728, 0.0
  %v3838 = vsel %vm3646, %v3732, 0.0
  %v3839 = vsel %vm3647, %v3732, 0.0
  %v3840 = vsel %vm3648, %v3736, 0.0
  %v3841 = vsel %vm3649, %v3736, 0.0
  %v3842 = vsel %vm3650, %v3740, 0.0
  %v3843 = vsel %vm3651, %v3740, 0.0
  %v3844 = vsel %vm3652, %v3744, 0.0
  %v3845 = vsel %vm3653, %v3744, 0.0
  %v3846 = vsel %vm3654, %v3748, 0.0
  %v3847 = vsel %vm3655, %v3748, 0.0
  %v3848 = vsel %vm3656, %v3752, 0.0
  %v3849 = vsel %vm3657, %v3752, 0.0
  %v3850 = vsel %vm3658, %v3756, 0.0
  %v3851 = vsel %vm3659, %v3756, 0.0
  %v3852 = vsel %vm3660, %v3760, 0.0
  %v3853 = vsel %vm3661, %v3760, 0.0
  %v3854 = vsel %vm3662, %v3764, 0.0
  %v3855 = vsel %vm3663, %v3764, 0.0
  %v3856 = vsel %vm3664, %v3768, 0.0
  %v3857 = vsel %vm3665, %v3768, 0.0
  %v3858 = vsel %vm3666, %v3772, 0.0
  %v3859 = vsel %vm3667, %v3772, 0.0
  %v3860 = vsel %vm3668, %v3776, 0.0
  %v3861 = vsel %vm3669, %v3776, 0.0
  %v3862 = vsel %vm3670, %v3780, 0.0
  %v3863 = vsel %vm3671, %v3780, 0.0
  %v3864 = vsel %vm3672, %v3784, 0.0
  %v3865 = vsel %vm3673, %v3784, 0.0
  %v3866 = vsel %vm3674, %v3788, 0.0
  %v3867 = vsel %vm3675, %v3788, 0.0
  %v3868 = vsel %vm3676, %v3792, 0.0
  %v3869 = vsel %vm3677, %v3792, 0.0
  %v3870 = vsel %vm3678, %v3796, 0.0
  %v3871 = vsel %vm3679, %v3796, 0.0
  %v3872 = vsel %vm3680, %v3800, 0.0
  %v3873 = vsel %vm3681, %v3800, 0.0
  %v3874 = vsel %vm3682, %v3804, 0.0
  %v3875 = vsel %vm3683, %v3804, 0.0
  %v3876 = vsel %vm3684, %v3808, 0.0
  %v3877 = vsel %vm3685, %v3808, 0.0
  %v3878 = vsel %vm3686, %v3812, 0.0
  %v3879 = vsel %vm3687, %v3812, 0.0
  %v3880 = vsel %vm3688, %v3816, 0.0
  %v3881 = vsel %vm3689, %v3816, 0.0
  %v3882 = vadd.f32 %v3426, %v3818
  %v3883 = vadd.f32 %v3427, %v3819
  %v3884 = vadd.f32 %v3428, %v3820
  %v3885 = vadd.f32 %v3429, %v3821
  %v3886 = vadd.f32 %v3430, %v3822
  %v3887 = vadd.f32 %v3431, %v3823
  %v3888 = vadd.f32 %v3432, %v3824
  %v3889 = vadd.f32 %v3433, %v3825
  %v3890 = vadd.f32 %v3434, %v3826
  %v3891 = vadd.f32 %v3435, %v3827
  %v3892 = vadd.f32 %v3436, %v3828
  %v3893 = vadd.f32 %v3437, %v3829
  %v3894 = vadd.f32 %v3438, %v3830
  %v3895 = vadd.f32 %v3439, %v3831
  %v3896 = vadd.f32 %v3440, %v3832
  %v3897 = vadd.f32 %v3441, %v3833
  %v3898 = vadd.f32 %v3442, %v3834
  %v3899 = vadd.f32 %v3443, %v3835
  %v3900 = vadd.f32 %v3444, %v3836
  %v3901 = vadd.f32 %v3445, %v3837
  %v3902 = vadd.f32 %v3446, %v3838
  %v3903 = vadd.f32 %v3447, %v3839
  %v3904 = vadd.f32 %v3448, %v3840
  %v3905 = vadd.f32 %v3449, %v3841
  %v3906 = vadd.f32 %v3450, %v3842
  %v3907 = vadd.f32 %v3451, %v3843
  %v3908 = vadd.f32 %v3452, %v3844
  %v3909 = vadd.f32 %v3453, %v3845
  %v3910 = vadd.f32 %v3454, %v3846
  %v3911 = vadd.f32 %v3455, %v3847
  %v3912 = vadd.f32 %v3456, %v3848
  %v3913 = vadd.f32 %v3457, %v3849
  %v3914 = vadd.f32 %v3458, %v3850
  %v3915 = vadd.f32 %v3459, %v3851
  %v3916 = vadd.f32 %v3460, %v3852
  %v3917 = vadd.f32 %v3461, %v3853
  %v3918 = vadd.f32 %v3462, %v3854
  %v3919 = vadd.f32 %v3463, %v3855
  %v3920 = vadd.f32 %v3464, %v3856
  %v3921 = vadd.f32 %v3465, %v3857
  %v3922 = vadd.f32 %v3466, %v3858
  %v3923 = vadd.f32 %v3467, %v3859
  %v3924 = vadd.f32 %v3468, %v3860
  %v3925 = vadd.f32 %v3469, %v3861
  %v3926 = vadd.f32 %v3470, %v3862
  %v3927 = vadd.f32 %v3471, %v3863
  %v3928 = vadd.f32 %v3472, %v3864
  %v3929 = vadd.f32 %v3473, %v3865
  %v3930 = vadd.f32 %v3474, %v3866
  %v3931 = vadd.f32 %v3475, %v3867
  %v3932 = vadd.f32 %v3476, %v3868
  %v3933 = vadd.f32 %v3477, %v3869
  %v3934 = vadd.f32 %v3478, %v3870
  %v3935 = vadd.f32 %v3479, %v3871
  %v3936 = vadd.f32 %v3480, %v3872
  %v3937 = vadd.f32 %v3481, %v3873
  %v3938 = vadd.f32 %v3482, %v3874
  %v3939 = vadd.f32 %v3483, %v3875
  %v3940 = vadd.f32 %v3484, %v3876
  %v3941 = vadd.f32 %v3485, %v3877
  %v3942 = vadd.f32 %v3486, %v3878
  %v3943 = vadd.f32 %v3487, %v3879
  %v3944 = vadd.f32 %v3488, %v3880
  %v3945 = vadd.f32 %v3489, %v3881
  %3946 = vset.pattern.permute.xlu0 8
  %3947 = vperm.xlu0 %3946, %v16
  %v3948 = vpop.permute.xlu0 %3947
  %3950 = vset.pattern.permute.xlu0 8
  %3951 = vperm.xlu0 %3950, %v17
  %v3952 = vpop.permute.xlu0 %3951
  %3954 = vset.pattern.permute.xlu0 8
  %3955 = vperm.xlu0 %3954, %v18
  %v3956 = vpop.permute.xlu0 %3955
  %3958 = vset.pattern.permute.xlu0 8
  %3959 = vperm.xlu0 %3958, %v19
  %v3960 = vpop.permute.xlu0 %3959
  %3962 = vset.pattern.permute.xlu0 8
  %3963 = vperm.xlu0 %3962, %v20
  %v3964 = vpop.permute.xlu0 %3963
  %3966 = vset.pattern.permute.xlu0 8
  %3967 = vperm.xlu0 %3966, %v21
  %v3968 = vpop.permute.xlu0 %3967
  %3970 = vset.pattern.permute.xlu0 8
  %3971 = vperm.xlu0 %3970, %v22
  %v3972 = vpop.permute.xlu0 %3971
  %3974 = vset.pattern.permute.xlu0 8
  %3975 = vperm.xlu0 %3974, %v23
  %v3976 = vpop.permute.xlu0 %3975
  %3978 = vset.pattern.permute.xlu0 8
  %3979 = vperm.xlu0 %3978, %v24
  %v3980 = vpop.permute.xlu0 %3979
  %3982 = vset.pattern.permute.xlu0 8
  %3983 = vperm.xlu0 %3982, %v25
  %v3984 = vpop.permute.xlu0 %3983
  %3986 = vset.pattern.permute.xlu0 8
  %3987 = vperm.xlu0 %3986, %v26
  %v3988 = vpop.permute.xlu0 %3987
  %3990 = vset.pattern.permute.xlu0 8
  %3991 = vperm.xlu0 %3990, %v27
  %v3992 = vpop.permute.xlu0 %3991
  %3994 = vset.pattern.permute.xlu0 8
  %3995 = vperm.xlu0 %3994, %v28
  %v3996 = vpop.permute.xlu0 %3995
  %3998 = vset.pattern.permute.xlu0 8
  %3999 = vperm.xlu0 %3998, %v29
  %v4000 = vpop.permute.xlu0 %3999
  %4002 = vset.pattern.permute.xlu0 8
  %4003 = vperm.xlu0 %4002, %v30
  %v4004 = vpop.permute.xlu0 %4003
  %4006 = vset.pattern.permute.xlu0 8
  %4007 = vperm.xlu0 %4006, %v31
  %v4008 = vpop.permute.xlu0 %4007
  %4010 = vset.pattern.permute.xlu0 8
  %4011 = vperm.xlu0 %4010, %v32
  %v4012 = vpop.permute.xlu0 %4011
  %4014 = vset.pattern.permute.xlu0 8
  %4015 = vperm.xlu0 %4014, %v33
  %v4016 = vpop.permute.xlu0 %4015
  %4018 = vset.pattern.permute.xlu0 8
  %4019 = vperm.xlu0 %4018, %v34
  %v4020 = vpop.permute.xlu0 %4019
  %4022 = vset.pattern.permute.xlu0 8
  %4023 = vperm.xlu0 %4022, %v35
  %v4024 = vpop.permute.xlu0 %4023
  %4026 = vset.pattern.permute.xlu0 8
  %4027 = vperm.xlu0 %4026, %v36
  %v4028 = vpop.permute.xlu0 %4027
  %4030 = vset.pattern.permute.xlu0 8
  %4031 = vperm.xlu0 %4030, %v37
  %v4032 = vpop.permute.xlu0 %4031
  %4034 = vset.pattern.permute.xlu0 8
  %4035 = vperm.xlu0 %4034, %v38
  %v4036 = vpop.permute.xlu0 %4035
  %4038 = vset.pattern.permute.xlu0 8
  %4039 = vperm.xlu0 %4038, %v39
  %v4040 = vpop.permute.xlu0 %4039
  %4042 = vset.pattern.permute.xlu0 8
  %4043 = vperm.xlu0 %4042, %v40
  %v4044 = vpop.permute.xlu0 %4043
  %4046 = vset.pattern.permute.xlu0 8
  %4047 = vperm.xlu0 %4046, %v41
  %v4048 = vpop.permute.xlu0 %4047
  %4050 = vset.pattern.permute.xlu0 8
  %4051 = vperm.xlu0 %4050, %v42
  %v4052 = vpop.permute.xlu0 %4051
  %4054 = vset.pattern.permute.xlu0 8
  %4055 = vperm.xlu0 %4054, %v43
  %v4056 = vpop.permute.xlu0 %4055
  %4058 = vset.pattern.permute.xlu0 8
  %4059 = vperm.xlu0 %4058, %v44
  %v4060 = vpop.permute.xlu0 %4059
  %4062 = vset.pattern.permute.xlu0 8
  %4063 = vperm.xlu0 %4062, %v45
  %v4064 = vpop.permute.xlu0 %4063
  %4066 = vset.pattern.permute.xlu0 8
  %4067 = vperm.xlu0 %4066, %v46
  %v4068 = vpop.permute.xlu0 %4067
  %4070 = vset.pattern.permute.xlu0 8
  %4071 = vperm.xlu0 %4070, %v47
  %v4072 = vpop.permute.xlu0 %4071
  %v4074 = vlaneseq
  %v4075 = vshrl.u32 %v4074, 7
  %v4076 = vsub.s32 0, %v4075
  %v4077 = vrot.slane %v50, %v4076
  %v4078 = vlaneseq
  %v4079 = vshrl.u32 %v4078, 7
  %v4080 = vsub.s32 0, %v4079
  %v4081 = vrot.slane %v51, %v4080
  %vm4082 = vcmp.eq.f32.partialorder %v3948, %v4077
  %vm4083 = vcmp.eq.f32.partialorder %v3948, %v4081
  %vm4084 = vcmp.eq.f32.partialorder %v3952, %v4077
  %vm4085 = vcmp.eq.f32.partialorder %v3952, %v4081
  %vm4086 = vcmp.eq.f32.partialorder %v3956, %v4077
  %vm4087 = vcmp.eq.f32.partialorder %v3956, %v4081
  %vm4088 = vcmp.eq.f32.partialorder %v3960, %v4077
  %vm4089 = vcmp.eq.f32.partialorder %v3960, %v4081
  %vm4090 = vcmp.eq.f32.partialorder %v3964, %v4077
  %vm4091 = vcmp.eq.f32.partialorder %v3964, %v4081
  %vm4092 = vcmp.eq.f32.partialorder %v3968, %v4077
  %vm4093 = vcmp.eq.f32.partialorder %v3968, %v4081
  %vm4094 = vcmp.eq.f32.partialorder %v3972, %v4077
  %vm4095 = vcmp.eq.f32.partialorder %v3972, %v4081
  %vm4096 = vcmp.eq.f32.partialorder %v3976, %v4077
  %vm4097 = vcmp.eq.f32.partialorder %v3976, %v4081
  %vm4098 = vcmp.eq.f32.partialorder %v3980, %v4077
  %vm4099 = vcmp.eq.f32.partialorder %v3980, %v4081
  %vm4100 = vcmp.eq.f32.partialorder %v3984, %v4077
  %vm4101 = vcmp.eq.f32.partialorder %v3984, %v4081
  %vm4102 = vcmp.eq.f32.partialorder %v3988, %v4077
  %vm4103 = vcmp.eq.f32.partialorder %v3988, %v4081
  %vm4104 = vcmp.eq.f32.partialorder %v3992, %v4077
  %vm4105 = vcmp.eq.f32.partialorder %v3992, %v4081
  %vm4106 = vcmp.eq.f32.partialorder %v3996, %v4077
  %vm4107 = vcmp.eq.f32.partialorder %v3996, %v4081
  %vm4108 = vcmp.eq.f32.partialorder %v4000, %v4077
  %vm4109 = vcmp.eq.f32.partialorder %v4000, %v4081
  %vm4110 = vcmp.eq.f32.partialorder %v4004, %v4077
  %vm4111 = vcmp.eq.f32.partialorder %v4004, %v4081
  %vm4112 = vcmp.eq.f32.partialorder %v4008, %v4077
  %vm4113 = vcmp.eq.f32.partialorder %v4008, %v4081
  %vm4114 = vcmp.eq.f32.partialorder %v4012, %v4077
  %vm4115 = vcmp.eq.f32.partialorder %v4012, %v4081
  %vm4116 = vcmp.eq.f32.partialorder %v4016, %v4077
  %vm4117 = vcmp.eq.f32.partialorder %v4016, %v4081
  %vm4118 = vcmp.eq.f32.partialorder %v4020, %v4077
  %vm4119 = vcmp.eq.f32.partialorder %v4020, %v4081
  %vm4120 = vcmp.eq.f32.partialorder %v4024, %v4077
  %vm4121 = vcmp.eq.f32.partialorder %v4024, %v4081
  %vm4122 = vcmp.eq.f32.partialorder %v4028, %v4077
  %vm4123 = vcmp.eq.f32.partialorder %v4028, %v4081
  %vm4124 = vcmp.eq.f32.partialorder %v4032, %v4077
  %vm4125 = vcmp.eq.f32.partialorder %v4032, %v4081
  %vm4126 = vcmp.eq.f32.partialorder %v4036, %v4077
  %vm4127 = vcmp.eq.f32.partialorder %v4036, %v4081
  %vm4128 = vcmp.eq.f32.partialorder %v4040, %v4077
  %vm4129 = vcmp.eq.f32.partialorder %v4040, %v4081
  %vm4130 = vcmp.eq.f32.partialorder %v4044, %v4077
  %vm4131 = vcmp.eq.f32.partialorder %v4044, %v4081
  %vm4132 = vcmp.eq.f32.partialorder %v4048, %v4077
  %vm4133 = vcmp.eq.f32.partialorder %v4048, %v4081
  %vm4134 = vcmp.eq.f32.partialorder %v4052, %v4077
  %vm4135 = vcmp.eq.f32.partialorder %v4052, %v4081
  %vm4136 = vcmp.eq.f32.partialorder %v4056, %v4077
  %vm4137 = vcmp.eq.f32.partialorder %v4056, %v4081
  %vm4138 = vcmp.eq.f32.partialorder %v4060, %v4077
  %vm4139 = vcmp.eq.f32.partialorder %v4060, %v4081
  %vm4140 = vcmp.eq.f32.partialorder %v4064, %v4077
  %vm4141 = vcmp.eq.f32.partialorder %v4064, %v4081
  %vm4142 = vcmp.eq.f32.partialorder %v4068, %v4077
  %vm4143 = vcmp.eq.f32.partialorder %v4068, %v4081
  %vm4144 = vcmp.eq.f32.partialorder %v4072, %v4077
  %vm4145 = vcmp.eq.f32.partialorder %v4072, %v4081
  %4146 = vset.pattern.permute.xlu0 8
  %4147 = vperm.xlu0 %4146, %v202
  %v4148 = vpop.permute.xlu0 %4147
  %4150 = vset.pattern.permute.xlu0 8
  %4151 = vperm.xlu0 %4150, %v203
  %v4152 = vpop.permute.xlu0 %4151
  %4154 = vset.pattern.permute.xlu0 8
  %4155 = vperm.xlu0 %4154, %v204
  %v4156 = vpop.permute.xlu0 %4155
  %4158 = vset.pattern.permute.xlu0 8
  %4159 = vperm.xlu0 %4158, %v205
  %v4160 = vpop.permute.xlu0 %4159
  %4162 = vset.pattern.permute.xlu0 8
  %4163 = vperm.xlu0 %4162, %v206
  %v4164 = vpop.permute.xlu0 %4163
  %4166 = vset.pattern.permute.xlu0 8
  %4167 = vperm.xlu0 %4166, %v207
  %v4168 = vpop.permute.xlu0 %4167
  %4170 = vset.pattern.permute.xlu0 8
  %4171 = vperm.xlu0 %4170, %v208
  %v4172 = vpop.permute.xlu0 %4171
  %4174 = vset.pattern.permute.xlu0 8
  %4175 = vperm.xlu0 %4174, %v209
  %v4176 = vpop.permute.xlu0 %4175
  %4178 = vset.pattern.permute.xlu0 8
  %4179 = vperm.xlu0 %4178, %v210
  %v4180 = vpop.permute.xlu0 %4179
  %4182 = vset.pattern.permute.xlu0 8
  %4183 = vperm.xlu0 %4182, %v211
  %v4184 = vpop.permute.xlu0 %4183
  %4186 = vset.pattern.permute.xlu0 8
  %4187 = vperm.xlu0 %4186, %v212
  %v4188 = vpop.permute.xlu0 %4187
  %4190 = vset.pattern.permute.xlu0 8
  %4191 = vperm.xlu0 %4190, %v213
  %v4192 = vpop.permute.xlu0 %4191
  %4194 = vset.pattern.permute.xlu0 8
  %4195 = vperm.xlu0 %4194, %v214
  %v4196 = vpop.permute.xlu0 %4195
  %4198 = vset.pattern.permute.xlu0 8
  %4199 = vperm.xlu0 %4198, %v215
  %v4200 = vpop.permute.xlu0 %4199
  %4202 = vset.pattern.permute.xlu0 8
  %4203 = vperm.xlu0 %4202, %v216
  %v4204 = vpop.permute.xlu0 %4203
  %4206 = vset.pattern.permute.xlu0 8
  %4207 = vperm.xlu0 %4206, %v217
  %v4208 = vpop.permute.xlu0 %4207
  %4210 = vset.pattern.permute.xlu0 8
  %4211 = vperm.xlu0 %4210, %v218
  %v4212 = vpop.permute.xlu0 %4211
  %4214 = vset.pattern.permute.xlu0 8
  %4215 = vperm.xlu0 %4214, %v219
  %v4216 = vpop.permute.xlu0 %4215
  %4218 = vset.pattern.permute.xlu0 8
  %4219 = vperm.xlu0 %4218, %v220
  %v4220 = vpop.permute.xlu0 %4219
  %4222 = vset.pattern.permute.xlu0 8
  %4223 = vperm.xlu0 %4222, %v221
  %v4224 = vpop.permute.xlu0 %4223
  %4226 = vset.pattern.permute.xlu0 8
  %4227 = vperm.xlu0 %4226, %v222
  %v4228 = vpop.permute.xlu0 %4227
  %4230 = vset.pattern.permute.xlu0 8
  %4231 = vperm.xlu0 %4230, %v223
  %v4232 = vpop.permute.xlu0 %4231
  %4234 = vset.pattern.permute.xlu0 8
  %4235 = vperm.xlu0 %4234, %v224
  %v4236 = vpop.permute.xlu0 %4235
  %4238 = vset.pattern.permute.xlu0 8
  %4239 = vperm.xlu0 %4238, %v225
  %v4240 = vpop.permute.xlu0 %4239
  %4242 = vset.pattern.permute.xlu0 8
  %4243 = vperm.xlu0 %4242, %v226
  %v4244 = vpop.permute.xlu0 %4243
  %4246 = vset.pattern.permute.xlu0 8
  %4247 = vperm.xlu0 %4246, %v227
  %v4248 = vpop.permute.xlu0 %4247
  %4250 = vset.pattern.permute.xlu0 8
  %4251 = vperm.xlu0 %4250, %v228
  %v4252 = vpop.permute.xlu0 %4251
  %4254 = vset.pattern.permute.xlu0 8
  %4255 = vperm.xlu0 %4254, %v229
  %v4256 = vpop.permute.xlu0 %4255
  %4258 = vset.pattern.permute.xlu0 8
  %4259 = vperm.xlu0 %4258, %v230
  %v4260 = vpop.permute.xlu0 %4259
  %4262 = vset.pattern.permute.xlu0 8
  %4263 = vperm.xlu0 %4262, %v231
  %v4264 = vpop.permute.xlu0 %4263
  %4266 = vset.pattern.permute.xlu0 8
  %4267 = vperm.xlu0 %4266, %v232
  %v4268 = vpop.permute.xlu0 %4267
  %4270 = vset.pattern.permute.xlu0 8
  %4271 = vperm.xlu0 %4270, %v233
  %v4272 = vpop.permute.xlu0 %4271
  %v4274 = vsel %vm4082, %v4148, 0.0
  %v4275 = vsel %vm4083, %v4148, 0.0
  %v4276 = vsel %vm4084, %v4152, 0.0
  %v4277 = vsel %vm4085, %v4152, 0.0
  %v4278 = vsel %vm4086, %v4156, 0.0
  %v4279 = vsel %vm4087, %v4156, 0.0
  %v4280 = vsel %vm4088, %v4160, 0.0
  %v4281 = vsel %vm4089, %v4160, 0.0
  %v4282 = vsel %vm4090, %v4164, 0.0
  %v4283 = vsel %vm4091, %v4164, 0.0
  %v4284 = vsel %vm4092, %v4168, 0.0
  %v4285 = vsel %vm4093, %v4168, 0.0
  %v4286 = vsel %vm4094, %v4172, 0.0
  %v4287 = vsel %vm4095, %v4172, 0.0
  %v4288 = vsel %vm4096, %v4176, 0.0
  %v4289 = vsel %vm4097, %v4176, 0.0
  %v4290 = vsel %vm4098, %v4180, 0.0
  %v4291 = vsel %vm4099, %v4180, 0.0
  %v4292 = vsel %vm4100, %v4184, 0.0
  %v4293 = vsel %vm4101, %v4184, 0.0
  %v4294 = vsel %vm4102, %v4188, 0.0
  %v4295 = vsel %vm4103, %v4188, 0.0
  %v4296 = vsel %vm4104, %v4192, 0.0
  %v4297 = vsel %vm4105, %v4192, 0.0
  %v4298 = vsel %vm4106, %v4196, 0.0
  %v4299 = vsel %vm4107, %v4196, 0.0
  %v4300 = vsel %vm4108, %v4200, 0.0
  %v4301 = vsel %vm4109, %v4200, 0.0
  %v4302 = vsel %vm4110, %v4204, 0.0
  %v4303 = vsel %vm4111, %v4204, 0.0
  %v4304 = vsel %vm4112, %v4208, 0.0
  %v4305 = vsel %vm4113, %v4208, 0.0
  %v4306 = vsel %vm4114, %v4212, 0.0
  %v4307 = vsel %vm4115, %v4212, 0.0
  %v4308 = vsel %vm4116, %v4216, 0.0
  %v4309 = vsel %vm4117, %v4216, 0.0
  %v4310 = vsel %vm4118, %v4220, 0.0
  %v4311 = vsel %vm4119, %v4220, 0.0
  %v4312 = vsel %vm4120, %v4224, 0.0
  %v4313 = vsel %vm4121, %v4224, 0.0
  %v4314 = vsel %vm4122, %v4228, 0.0
  %v4315 = vsel %vm4123, %v4228, 0.0
  %v4316 = vsel %vm4124, %v4232, 0.0
  %v4317 = vsel %vm4125, %v4232, 0.0
  %v4318 = vsel %vm4126, %v4236, 0.0
  %v4319 = vsel %vm4127, %v4236, 0.0
  %v4320 = vsel %vm4128, %v4240, 0.0
  %v4321 = vsel %vm4129, %v4240, 0.0
  %v4322 = vsel %vm4130, %v4244, 0.0
  %v4323 = vsel %vm4131, %v4244, 0.0
  %v4324 = vsel %vm4132, %v4248, 0.0
  %v4325 = vsel %vm4133, %v4248, 0.0
  %v4326 = vsel %vm4134, %v4252, 0.0
  %v4327 = vsel %vm4135, %v4252, 0.0
  %v4328 = vsel %vm4136, %v4256, 0.0
  %v4329 = vsel %vm4137, %v4256, 0.0
  %v4330 = vsel %vm4138, %v4260, 0.0
  %v4331 = vsel %vm4139, %v4260, 0.0
  %v4332 = vsel %vm4140, %v4264, 0.0
  %v4333 = vsel %vm4141, %v4264, 0.0
  %v4334 = vsel %vm4142, %v4268, 0.0
  %v4335 = vsel %vm4143, %v4268, 0.0
  %v4336 = vsel %vm4144, %v4272, 0.0
  %v4337 = vsel %vm4145, %v4272, 0.0
  %v4338 = vadd.f32 %v3882, %v4274
  %v4339 = vadd.f32 %v3883, %v4275
  %v4340 = vadd.f32 %v3884, %v4276
  %v4341 = vadd.f32 %v3885, %v4277
  %v4342 = vadd.f32 %v3886, %v4278
  %v4343 = vadd.f32 %v3887, %v4279
  %v4344 = vadd.f32 %v3888, %v4280
  %v4345 = vadd.f32 %v3889, %v4281
  %v4346 = vadd.f32 %v3890, %v4282
  %v4347 = vadd.f32 %v3891, %v4283
  %v4348 = vadd.f32 %v3892, %v4284
  %v4349 = vadd.f32 %v3893, %v4285
  %v4350 = vadd.f32 %v3894, %v4286
  %v4351 = vadd.f32 %v3895, %v4287
  %v4352 = vadd.f32 %v3896, %v4288
  %v4353 = vadd.f32 %v3897, %v4289
  %v4354 = vadd.f32 %v3898, %v4290
  %v4355 = vadd.f32 %v3899, %v4291
  %v4356 = vadd.f32 %v3900, %v4292
  %v4357 = vadd.f32 %v3901, %v4293
  %v4358 = vadd.f32 %v3902, %v4294
  %v4359 = vadd.f32 %v3903, %v4295
  %v4360 = vadd.f32 %v3904, %v4296
  %v4361 = vadd.f32 %v3905, %v4297
  %v4362 = vadd.f32 %v3906, %v4298
  %v4363 = vadd.f32 %v3907, %v4299
  %v4364 = vadd.f32 %v3908, %v4300
  %v4365 = vadd.f32 %v3909, %v4301
  %v4366 = vadd.f32 %v3910, %v4302
  %v4367 = vadd.f32 %v3911, %v4303
  %v4368 = vadd.f32 %v3912, %v4304
  %v4369 = vadd.f32 %v3913, %v4305
  %v4370 = vadd.f32 %v3914, %v4306
  %v4371 = vadd.f32 %v3915, %v4307
  %v4372 = vadd.f32 %v3916, %v4308
  %v4373 = vadd.f32 %v3917, %v4309
  %v4374 = vadd.f32 %v3918, %v4310
  %v4375 = vadd.f32 %v3919, %v4311
  %v4376 = vadd.f32 %v3920, %v4312
  %v4377 = vadd.f32 %v3921, %v4313
  %v4378 = vadd.f32 %v3922, %v4314
  %v4379 = vadd.f32 %v3923, %v4315
  %v4380 = vadd.f32 %v3924, %v4316
  %v4381 = vadd.f32 %v3925, %v4317
  %v4382 = vadd.f32 %v3926, %v4318
  %v4383 = vadd.f32 %v3927, %v4319
  %v4384 = vadd.f32 %v3928, %v4320
  %v4385 = vadd.f32 %v3929, %v4321
  %v4386 = vadd.f32 %v3930, %v4322
  %v4387 = vadd.f32 %v3931, %v4323
  %v4388 = vadd.f32 %v3932, %v4324
  %v4389 = vadd.f32 %v3933, %v4325
  %v4390 = vadd.f32 %v3934, %v4326
  %v4391 = vadd.f32 %v3935, %v4327
  %v4392 = vadd.f32 %v3936, %v4328
  %v4393 = vadd.f32 %v3937, %v4329
  %v4394 = vadd.f32 %v3938, %v4330
  %v4395 = vadd.f32 %v3939, %v4331
  %v4396 = vadd.f32 %v3940, %v4332
  %v4397 = vadd.f32 %v3941, %v4333
  %v4398 = vadd.f32 %v3942, %v4334
  %v4399 = vadd.f32 %v3943, %v4335
  %v4400 = vadd.f32 %v3944, %v4336
  %v4401 = vadd.f32 %v3945, %v4337
  %4402 = vset.pattern.permute.xlu0 9
  %4403 = vperm.xlu0 %4402, %v16
  %v4404 = vpop.permute.xlu0 %4403
  %4406 = vset.pattern.permute.xlu0 9
  %4407 = vperm.xlu0 %4406, %v17
  %v4408 = vpop.permute.xlu0 %4407
  %4410 = vset.pattern.permute.xlu0 9
  %4411 = vperm.xlu0 %4410, %v18
  %v4412 = vpop.permute.xlu0 %4411
  %4414 = vset.pattern.permute.xlu0 9
  %4415 = vperm.xlu0 %4414, %v19
  %v4416 = vpop.permute.xlu0 %4415
  %4418 = vset.pattern.permute.xlu0 9
  %4419 = vperm.xlu0 %4418, %v20
  %v4420 = vpop.permute.xlu0 %4419
  %4422 = vset.pattern.permute.xlu0 9
  %4423 = vperm.xlu0 %4422, %v21
  %v4424 = vpop.permute.xlu0 %4423
  %4426 = vset.pattern.permute.xlu0 9
  %4427 = vperm.xlu0 %4426, %v22
  %v4428 = vpop.permute.xlu0 %4427
  %4430 = vset.pattern.permute.xlu0 9
  %4431 = vperm.xlu0 %4430, %v23
  %v4432 = vpop.permute.xlu0 %4431
  %4434 = vset.pattern.permute.xlu0 9
  %4435 = vperm.xlu0 %4434, %v24
  %v4436 = vpop.permute.xlu0 %4435
  %4438 = vset.pattern.permute.xlu0 9
  %4439 = vperm.xlu0 %4438, %v25
  %v4440 = vpop.permute.xlu0 %4439
  %4442 = vset.pattern.permute.xlu0 9
  %4443 = vperm.xlu0 %4442, %v26
  %v4444 = vpop.permute.xlu0 %4443
  %4446 = vset.pattern.permute.xlu0 9
  %4447 = vperm.xlu0 %4446, %v27
  %v4448 = vpop.permute.xlu0 %4447
  %4450 = vset.pattern.permute.xlu0 9
  %4451 = vperm.xlu0 %4450, %v28
  %v4452 = vpop.permute.xlu0 %4451
  %4454 = vset.pattern.permute.xlu0 9
  %4455 = vperm.xlu0 %4454, %v29
  %v4456 = vpop.permute.xlu0 %4455
  %4458 = vset.pattern.permute.xlu0 9
  %4459 = vperm.xlu0 %4458, %v30
  %v4460 = vpop.permute.xlu0 %4459
  %4462 = vset.pattern.permute.xlu0 9
  %4463 = vperm.xlu0 %4462, %v31
  %v4464 = vpop.permute.xlu0 %4463
  %4466 = vset.pattern.permute.xlu0 9
  %4467 = vperm.xlu0 %4466, %v32
  %v4468 = vpop.permute.xlu0 %4467
  %4470 = vset.pattern.permute.xlu0 9
  %4471 = vperm.xlu0 %4470, %v33
  %v4472 = vpop.permute.xlu0 %4471
  %4474 = vset.pattern.permute.xlu0 9
  %4475 = vperm.xlu0 %4474, %v34
  %v4476 = vpop.permute.xlu0 %4475
  %4478 = vset.pattern.permute.xlu0 9
  %4479 = vperm.xlu0 %4478, %v35
  %v4480 = vpop.permute.xlu0 %4479
  %4482 = vset.pattern.permute.xlu0 9
  %4483 = vperm.xlu0 %4482, %v36
  %v4484 = vpop.permute.xlu0 %4483
  %4486 = vset.pattern.permute.xlu0 9
  %4487 = vperm.xlu0 %4486, %v37
  %v4488 = vpop.permute.xlu0 %4487
  %4490 = vset.pattern.permute.xlu0 9
  %4491 = vperm.xlu0 %4490, %v38
  %v4492 = vpop.permute.xlu0 %4491
  %4494 = vset.pattern.permute.xlu0 9
  %4495 = vperm.xlu0 %4494, %v39
  %v4496 = vpop.permute.xlu0 %4495
  %4498 = vset.pattern.permute.xlu0 9
  %4499 = vperm.xlu0 %4498, %v40
  %v4500 = vpop.permute.xlu0 %4499
  %4502 = vset.pattern.permute.xlu0 9
  %4503 = vperm.xlu0 %4502, %v41
  %v4504 = vpop.permute.xlu0 %4503
  %4506 = vset.pattern.permute.xlu0 9
  %4507 = vperm.xlu0 %4506, %v42
  %v4508 = vpop.permute.xlu0 %4507
  %4510 = vset.pattern.permute.xlu0 9
  %4511 = vperm.xlu0 %4510, %v43
  %v4512 = vpop.permute.xlu0 %4511
  %4514 = vset.pattern.permute.xlu0 9
  %4515 = vperm.xlu0 %4514, %v44
  %v4516 = vpop.permute.xlu0 %4515
  %4518 = vset.pattern.permute.xlu0 9
  %4519 = vperm.xlu0 %4518, %v45
  %v4520 = vpop.permute.xlu0 %4519
  %4522 = vset.pattern.permute.xlu0 9
  %4523 = vperm.xlu0 %4522, %v46
  %v4524 = vpop.permute.xlu0 %4523
  %4526 = vset.pattern.permute.xlu0 9
  %4527 = vperm.xlu0 %4526, %v47
  %v4528 = vpop.permute.xlu0 %4527
  %v4530 = vlaneseq
  %v4531 = vshrl.u32 %v4530, 7
  %v4532 = vsub.s32 1, %v4531
  %v4533 = vrot.slane %v50, %v4532
  %v4534 = vlaneseq
  %v4535 = vshrl.u32 %v4534, 7
  %v4536 = vsub.s32 1, %v4535
  %v4537 = vrot.slane %v51, %v4536
  %vm4538 = vcmp.eq.f32.partialorder %v4404, %v4533
  %vm4539 = vcmp.eq.f32.partialorder %v4404, %v4537
  %vm4540 = vcmp.eq.f32.partialorder %v4408, %v4533
  %vm4541 = vcmp.eq.f32.partialorder %v4408, %v4537
  %vm4542 = vcmp.eq.f32.partialorder %v4412, %v4533
  %vm4543 = vcmp.eq.f32.partialorder %v4412, %v4537
  %vm4544 = vcmp.eq.f32.partialorder %v4416, %v4533
  %vm4545 = vcmp.eq.f32.partialorder %v4416, %v4537
  %vm4546 = vcmp.eq.f32.partialorder %v4420, %v4533
  %vm4547 = vcmp.eq.f32.partialorder %v4420, %v4537
  %vm4548 = vcmp.eq.f32.partialorder %v4424, %v4533
  %vm4549 = vcmp.eq.f32.partialorder %v4424, %v4537
  %vm4550 = vcmp.eq.f32.partialorder %v4428, %v4533
  %vm4551 = vcmp.eq.f32.partialorder %v4428, %v4537
  %vm4552 = vcmp.eq.f32.partialorder %v4432, %v4533
  %vm4553 = vcmp.eq.f32.partialorder %v4432, %v4537
  %vm4554 = vcmp.eq.f32.partialorder %v4436, %v4533
  %vm4555 = vcmp.eq.f32.partialorder %v4436, %v4537
  %vm4556 = vcmp.eq.f32.partialorder %v4440, %v4533
  %vm4557 = vcmp.eq.f32.partialorder %v4440, %v4537
  %vm4558 = vcmp.eq.f32.partialorder %v4444, %v4533
  %vm4559 = vcmp.eq.f32.partialorder %v4444, %v4537
  %vm4560 = vcmp.eq.f32.partialorder %v4448, %v4533
  %vm4561 = vcmp.eq.f32.partialorder %v4448, %v4537
  %vm4562 = vcmp.eq.f32.partialorder %v4452, %v4533
  %vm4563 = vcmp.eq.f32.partialorder %v4452, %v4537
  %vm4564 = vcmp.eq.f32.partialorder %v4456, %v4533
  %vm4565 = vcmp.eq.f32.partialorder %v4456, %v4537
  %vm4566 = vcmp.eq.f32.partialorder %v4460, %v4533
  %vm4567 = vcmp.eq.f32.partialorder %v4460, %v4537
  %vm4568 = vcmp.eq.f32.partialorder %v4464, %v4533
  %vm4569 = vcmp.eq.f32.partialorder %v4464, %v4537
  %vm4570 = vcmp.eq.f32.partialorder %v4468, %v4533
  %vm4571 = vcmp.eq.f32.partialorder %v4468, %v4537
  %vm4572 = vcmp.eq.f32.partialorder %v4472, %v4533
  %vm4573 = vcmp.eq.f32.partialorder %v4472, %v4537
  %vm4574 = vcmp.eq.f32.partialorder %v4476, %v4533
  %vm4575 = vcmp.eq.f32.partialorder %v4476, %v4537
  %vm4576 = vcmp.eq.f32.partialorder %v4480, %v4533
  %vm4577 = vcmp.eq.f32.partialorder %v4480, %v4537
  %vm4578 = vcmp.eq.f32.partialorder %v4484, %v4533
  %vm4579 = vcmp.eq.f32.partialorder %v4484, %v4537
  %vm4580 = vcmp.eq.f32.partialorder %v4488, %v4533
  %vm4581 = vcmp.eq.f32.partialorder %v4488, %v4537
  %vm4582 = vcmp.eq.f32.partialorder %v4492, %v4533
  %vm4583 = vcmp.eq.f32.partialorder %v4492, %v4537
  %vm4584 = vcmp.eq.f32.partialorder %v4496, %v4533
  %vm4585 = vcmp.eq.f32.partialorder %v4496, %v4537
  %vm4586 = vcmp.eq.f32.partialorder %v4500, %v4533
  %vm4587 = vcmp.eq.f32.partialorder %v4500, %v4537
  %vm4588 = vcmp.eq.f32.partialorder %v4504, %v4533
  %vm4589 = vcmp.eq.f32.partialorder %v4504, %v4537
  %vm4590 = vcmp.eq.f32.partialorder %v4508, %v4533
  %vm4591 = vcmp.eq.f32.partialorder %v4508, %v4537
  %vm4592 = vcmp.eq.f32.partialorder %v4512, %v4533
  %vm4593 = vcmp.eq.f32.partialorder %v4512, %v4537
  %vm4594 = vcmp.eq.f32.partialorder %v4516, %v4533
  %vm4595 = vcmp.eq.f32.partialorder %v4516, %v4537
  %vm4596 = vcmp.eq.f32.partialorder %v4520, %v4533
  %vm4597 = vcmp.eq.f32.partialorder %v4520, %v4537
  %vm4598 = vcmp.eq.f32.partialorder %v4524, %v4533
  %vm4599 = vcmp.eq.f32.partialorder %v4524, %v4537
  %vm4600 = vcmp.eq.f32.partialorder %v4528, %v4533
  %vm4601 = vcmp.eq.f32.partialorder %v4528, %v4537
  %4602 = vset.pattern.permute.xlu0 9
  %4603 = vperm.xlu0 %4602, %v202
  %v4604 = vpop.permute.xlu0 %4603
  %4606 = vset.pattern.permute.xlu0 9
  %4607 = vperm.xlu0 %4606, %v203
  %v4608 = vpop.permute.xlu0 %4607
  %4610 = vset.pattern.permute.xlu0 9
  %4611 = vperm.xlu0 %4610, %v204
  %v4612 = vpop.permute.xlu0 %4611
  %4614 = vset.pattern.permute.xlu0 9
  %4615 = vperm.xlu0 %4614, %v205
  %v4616 = vpop.permute.xlu0 %4615
  %4618 = vset.pattern.permute.xlu0 9
  %4619 = vperm.xlu0 %4618, %v206
  %v4620 = vpop.permute.xlu0 %4619
  %4622 = vset.pattern.permute.xlu0 9
  %4623 = vperm.xlu0 %4622, %v207
  %v4624 = vpop.permute.xlu0 %4623
  %4626 = vset.pattern.permute.xlu0 9
  %4627 = vperm.xlu0 %4626, %v208
  %v4628 = vpop.permute.xlu0 %4627
  %4630 = vset.pattern.permute.xlu0 9
  %4631 = vperm.xlu0 %4630, %v209
  %v4632 = vpop.permute.xlu0 %4631
  %4634 = vset.pattern.permute.xlu0 9
  %4635 = vperm.xlu0 %4634, %v210
  %v4636 = vpop.permute.xlu0 %4635
  %4638 = vset.pattern.permute.xlu0 9
  %4639 = vperm.xlu0 %4638, %v211
  %v4640 = vpop.permute.xlu0 %4639
  %4642 = vset.pattern.permute.xlu0 9
  %4643 = vperm.xlu0 %4642, %v212
  %v4644 = vpop.permute.xlu0 %4643
  %4646 = vset.pattern.permute.xlu0 9
  %4647 = vperm.xlu0 %4646, %v213
  %v4648 = vpop.permute.xlu0 %4647
  %4650 = vset.pattern.permute.xlu0 9
  %4651 = vperm.xlu0 %4650, %v214
  %v4652 = vpop.permute.xlu0 %4651
  %4654 = vset.pattern.permute.xlu0 9
  %4655 = vperm.xlu0 %4654, %v215
  %v4656 = vpop.permute.xlu0 %4655
  %4658 = vset.pattern.permute.xlu0 9
  %4659 = vperm.xlu0 %4658, %v216
  %v4660 = vpop.permute.xlu0 %4659
  %4662 = vset.pattern.permute.xlu0 9
  %4663 = vperm.xlu0 %4662, %v217
  %v4664 = vpop.permute.xlu0 %4663
  %4666 = vset.pattern.permute.xlu0 9
  %4667 = vperm.xlu0 %4666, %v218
  %v4668 = vpop.permute.xlu0 %4667
  %4670 = vset.pattern.permute.xlu0 9
  %4671 = vperm.xlu0 %4670, %v219
  %v4672 = vpop.permute.xlu0 %4671
  %4674 = vset.pattern.permute.xlu0 9
  %4675 = vperm.xlu0 %4674, %v220
  %v4676 = vpop.permute.xlu0 %4675
  %4678 = vset.pattern.permute.xlu0 9
  %4679 = vperm.xlu0 %4678, %v221
  %v4680 = vpop.permute.xlu0 %4679
  %4682 = vset.pattern.permute.xlu0 9
  %4683 = vperm.xlu0 %4682, %v222
  %v4684 = vpop.permute.xlu0 %4683
  %4686 = vset.pattern.permute.xlu0 9
  %4687 = vperm.xlu0 %4686, %v223
  %v4688 = vpop.permute.xlu0 %4687
  %4690 = vset.pattern.permute.xlu0 9
  %4691 = vperm.xlu0 %4690, %v224
  %v4692 = vpop.permute.xlu0 %4691
  %4694 = vset.pattern.permute.xlu0 9
  %4695 = vperm.xlu0 %4694, %v225
  %v4696 = vpop.permute.xlu0 %4695
  %4698 = vset.pattern.permute.xlu0 9
  %4699 = vperm.xlu0 %4698, %v226
  %v4700 = vpop.permute.xlu0 %4699
  %4702 = vset.pattern.permute.xlu0 9
  %4703 = vperm.xlu0 %4702, %v227
  %v4704 = vpop.permute.xlu0 %4703
  %4706 = vset.pattern.permute.xlu0 9
  %4707 = vperm.xlu0 %4706, %v228
  %v4708 = vpop.permute.xlu0 %4707
  %4710 = vset.pattern.permute.xlu0 9
  %4711 = vperm.xlu0 %4710, %v229
  %v4712 = vpop.permute.xlu0 %4711
  %4714 = vset.pattern.permute.xlu0 9
  %4715 = vperm.xlu0 %4714, %v230
  %v4716 = vpop.permute.xlu0 %4715
  %4718 = vset.pattern.permute.xlu0 9
  %4719 = vperm.xlu0 %4718, %v231
  %v4720 = vpop.permute.xlu0 %4719
  %4722 = vset.pattern.permute.xlu0 9
  %4723 = vperm.xlu0 %4722, %v232
  %v4724 = vpop.permute.xlu0 %4723
  %4726 = vset.pattern.permute.xlu0 9
  %4727 = vperm.xlu0 %4726, %v233
  %v4728 = vpop.permute.xlu0 %4727
  %v4730 = vsel %vm4538, %v4604, 0.0
  %v4731 = vsel %vm4539, %v4604, 0.0
  %v4732 = vsel %vm4540, %v4608, 0.0
  %v4733 = vsel %vm4541, %v4608, 0.0
  %v4734 = vsel %vm4542, %v4612, 0.0
  %v4735 = vsel %vm4543, %v4612, 0.0
  %v4736 = vsel %vm4544, %v4616, 0.0
  %v4737 = vsel %vm4545, %v4616, 0.0
  %v4738 = vsel %vm4546, %v4620, 0.0
  %v4739 = vsel %vm4547, %v4620, 0.0
  %v4740 = vsel %vm4548, %v4624, 0.0
  %v4741 = vsel %vm4549, %v4624, 0.0
  %v4742 = vsel %vm4550, %v4628, 0.0
  %v4743 = vsel %vm4551, %v4628, 0.0
  %v4744 = vsel %vm4552, %v4632, 0.0
  %v4745 = vsel %vm4553, %v4632, 0.0
  %v4746 = vsel %vm4554, %v4636, 0.0
  %v4747 = vsel %vm4555, %v4636, 0.0
  %v4748 = vsel %vm4556, %v4640, 0.0
  %v4749 = vsel %vm4557, %v4640, 0.0
  %v4750 = vsel %vm4558, %v4644, 0.0
  %v4751 = vsel %vm4559, %v4644, 0.0
  %v4752 = vsel %vm4560, %v4648, 0.0
  %v4753 = vsel %vm4561, %v4648, 0.0
  %v4754 = vsel %vm4562, %v4652, 0.0
  %v4755 = vsel %vm4563, %v4652, 0.0
  %v4756 = vsel %vm4564, %v4656, 0.0
  %v4757 = vsel %vm4565, %v4656, 0.0
  %v4758 = vsel %vm4566, %v4660, 0.0
  %v4759 = vsel %vm4567, %v4660, 0.0
  %v4760 = vsel %vm4568, %v4664, 0.0
  %v4761 = vsel %vm4569, %v4664, 0.0
  %v4762 = vsel %vm4570, %v4668, 0.0
  %v4763 = vsel %vm4571, %v4668, 0.0
  %v4764 = vsel %vm4572, %v4672, 0.0
  %v4765 = vsel %vm4573, %v4672, 0.0
  %v4766 = vsel %vm4574, %v4676, 0.0
  %v4767 = vsel %vm4575, %v4676, 0.0
  %v4768 = vsel %vm4576, %v4680, 0.0
  %v4769 = vsel %vm4577, %v4680, 0.0
  %v4770 = vsel %vm4578, %v4684, 0.0
  %v4771 = vsel %vm4579, %v4684, 0.0
  %v4772 = vsel %vm4580, %v4688, 0.0
  %v4773 = vsel %vm4581, %v4688, 0.0
  %v4774 = vsel %vm4582, %v4692, 0.0
  %v4775 = vsel %vm4583, %v4692, 0.0
  %v4776 = vsel %vm4584, %v4696, 0.0
  %v4777 = vsel %vm4585, %v4696, 0.0
  %v4778 = vsel %vm4586, %v4700, 0.0
  %v4779 = vsel %vm4587, %v4700, 0.0
  %v4780 = vsel %vm4588, %v4704, 0.0
  %v4781 = vsel %vm4589, %v4704, 0.0
  %v4782 = vsel %vm4590, %v4708, 0.0
  %v4783 = vsel %vm4591, %v4708, 0.0
  %v4784 = vsel %vm4592, %v4712, 0.0
  %v4785 = vsel %vm4593, %v4712, 0.0
  %v4786 = vsel %vm4594, %v4716, 0.0
  %v4787 = vsel %vm4595, %v4716, 0.0
  %v4788 = vsel %vm4596, %v4720, 0.0
  %v4789 = vsel %vm4597, %v4720, 0.0
  %v4790 = vsel %vm4598, %v4724, 0.0
  %v4791 = vsel %vm4599, %v4724, 0.0
  %v4792 = vsel %vm4600, %v4728, 0.0
  %v4793 = vsel %vm4601, %v4728, 0.0
  %v4794 = vadd.f32 %v4338, %v4730
  %v4795 = vadd.f32 %v4339, %v4731
  %v4796 = vadd.f32 %v4340, %v4732
  %v4797 = vadd.f32 %v4341, %v4733
  %v4798 = vadd.f32 %v4342, %v4734
  %v4799 = vadd.f32 %v4343, %v4735
  %v4800 = vadd.f32 %v4344, %v4736
  %v4801 = vadd.f32 %v4345, %v4737
  %v4802 = vadd.f32 %v4346, %v4738
  %v4803 = vadd.f32 %v4347, %v4739
  %v4804 = vadd.f32 %v4348, %v4740
  %v4805 = vadd.f32 %v4349, %v4741
  %v4806 = vadd.f32 %v4350, %v4742
  %v4807 = vadd.f32 %v4351, %v4743
  %v4808 = vadd.f32 %v4352, %v4744
  %v4809 = vadd.f32 %v4353, %v4745
  %v4810 = vadd.f32 %v4354, %v4746
  %v4811 = vadd.f32 %v4355, %v4747
  %v4812 = vadd.f32 %v4356, %v4748
  %v4813 = vadd.f32 %v4357, %v4749
  %v4814 = vadd.f32 %v4358, %v4750
  %v4815 = vadd.f32 %v4359, %v4751
  %v4816 = vadd.f32 %v4360, %v4752
  %v4817 = vadd.f32 %v4361, %v4753
  %v4818 = vadd.f32 %v4362, %v4754
  %v4819 = vadd.f32 %v4363, %v4755
  %v4820 = vadd.f32 %v4364, %v4756
  %v4821 = vadd.f32 %v4365, %v4757
  %v4822 = vadd.f32 %v4366, %v4758
  %v4823 = vadd.f32 %v4367, %v4759
  %v4824 = vadd.f32 %v4368, %v4760
  %v4825 = vadd.f32 %v4369, %v4761
  %v4826 = vadd.f32 %v4370, %v4762
  %v4827 = vadd.f32 %v4371, %v4763
  %v4828 = vadd.f32 %v4372, %v4764
  %v4829 = vadd.f32 %v4373, %v4765
  %v4830 = vadd.f32 %v4374, %v4766
  %v4831 = vadd.f32 %v4375, %v4767
  %v4832 = vadd.f32 %v4376, %v4768
  %v4833 = vadd.f32 %v4377, %v4769
  %v4834 = vadd.f32 %v4378, %v4770
  %v4835 = vadd.f32 %v4379, %v4771
  %v4836 = vadd.f32 %v4380, %v4772
  %v4837 = vadd.f32 %v4381, %v4773
  %v4838 = vadd.f32 %v4382, %v4774
  %v4839 = vadd.f32 %v4383, %v4775
  %v4840 = vadd.f32 %v4384, %v4776
  %v4841 = vadd.f32 %v4385, %v4777
  %v4842 = vadd.f32 %v4386, %v4778
  %v4843 = vadd.f32 %v4387, %v4779
  %v4844 = vadd.f32 %v4388, %v4780
  %v4845 = vadd.f32 %v4389, %v4781
  %v4846 = vadd.f32 %v4390, %v4782
  %v4847 = vadd.f32 %v4391, %v4783
  %v4848 = vadd.f32 %v4392, %v4784
  %v4849 = vadd.f32 %v4393, %v4785
  %v4850 = vadd.f32 %v4394, %v4786
  %v4851 = vadd.f32 %v4395, %v4787
  %v4852 = vadd.f32 %v4396, %v4788
  %v4853 = vadd.f32 %v4397, %v4789
  %v4854 = vadd.f32 %v4398, %v4790
  %v4855 = vadd.f32 %v4399, %v4791
  %v4856 = vadd.f32 %v4400, %v4792
  %v4857 = vadd.f32 %v4401, %v4793
  %4858 = vset.pattern.permute.xlu0 10
  %4859 = vperm.xlu0 %4858, %v16
  %v4860 = vpop.permute.xlu0 %4859
  %4862 = vset.pattern.permute.xlu0 10
  %4863 = vperm.xlu0 %4862, %v17
  %v4864 = vpop.permute.xlu0 %4863
  %4866 = vset.pattern.permute.xlu0 10
  %4867 = vperm.xlu0 %4866, %v18
  %v4868 = vpop.permute.xlu0 %4867
  %4870 = vset.pattern.permute.xlu0 10
  %4871 = vperm.xlu0 %4870, %v19
  %v4872 = vpop.permute.xlu0 %4871
  %4874 = vset.pattern.permute.xlu0 10
  %4875 = vperm.xlu0 %4874, %v20
  %v4876 = vpop.permute.xlu0 %4875
  %4878 = vset.pattern.permute.xlu0 10
  %4879 = vperm.xlu0 %4878, %v21
  %v4880 = vpop.permute.xlu0 %4879
  %4882 = vset.pattern.permute.xlu0 10
  %4883 = vperm.xlu0 %4882, %v22
  %v4884 = vpop.permute.xlu0 %4883
  %4886 = vset.pattern.permute.xlu0 10
  %4887 = vperm.xlu0 %4886, %v23
  %v4888 = vpop.permute.xlu0 %4887
  %4890 = vset.pattern.permute.xlu0 10
  %4891 = vperm.xlu0 %4890, %v24
  %v4892 = vpop.permute.xlu0 %4891
  %4894 = vset.pattern.permute.xlu0 10
  %4895 = vperm.xlu0 %4894, %v25
  %v4896 = vpop.permute.xlu0 %4895
  %4898 = vset.pattern.permute.xlu0 10
  %4899 = vperm.xlu0 %4898, %v26
  %v4900 = vpop.permute.xlu0 %4899
  %4902 = vset.pattern.permute.xlu0 10
  %4903 = vperm.xlu0 %4902, %v27
  %v4904 = vpop.permute.xlu0 %4903
  %4906 = vset.pattern.permute.xlu0 10
  %4907 = vperm.xlu0 %4906, %v28
  %v4908 = vpop.permute.xlu0 %4907
  %4910 = vset.pattern.permute.xlu0 10
  %4911 = vperm.xlu0 %4910, %v29
  %v4912 = vpop.permute.xlu0 %4911
  %4914 = vset.pattern.permute.xlu0 10
  %4915 = vperm.xlu0 %4914, %v30
  %v4916 = vpop.permute.xlu0 %4915
  %4918 = vset.pattern.permute.xlu0 10
  %4919 = vperm.xlu0 %4918, %v31
  %v4920 = vpop.permute.xlu0 %4919
  %4922 = vset.pattern.permute.xlu0 10
  %4923 = vperm.xlu0 %4922, %v32
  %v4924 = vpop.permute.xlu0 %4923
  %4926 = vset.pattern.permute.xlu0 10
  %4927 = vperm.xlu0 %4926, %v33
  %v4928 = vpop.permute.xlu0 %4927
  %4930 = vset.pattern.permute.xlu0 10
  %4931 = vperm.xlu0 %4930, %v34
  %v4932 = vpop.permute.xlu0 %4931
  %4934 = vset.pattern.permute.xlu0 10
  %4935 = vperm.xlu0 %4934, %v35
  %v4936 = vpop.permute.xlu0 %4935
  %4938 = vset.pattern.permute.xlu0 10
  %4939 = vperm.xlu0 %4938, %v36
  %v4940 = vpop.permute.xlu0 %4939
  %4942 = vset.pattern.permute.xlu0 10
  %4943 = vperm.xlu0 %4942, %v37
  %v4944 = vpop.permute.xlu0 %4943
  %4946 = vset.pattern.permute.xlu0 10
  %4947 = vperm.xlu0 %4946, %v38
  %v4948 = vpop.permute.xlu0 %4947
  %4950 = vset.pattern.permute.xlu0 10
  %4951 = vperm.xlu0 %4950, %v39
  %v4952 = vpop.permute.xlu0 %4951
  %4954 = vset.pattern.permute.xlu0 10
  %4955 = vperm.xlu0 %4954, %v40
  %v4956 = vpop.permute.xlu0 %4955
  %4958 = vset.pattern.permute.xlu0 10
  %4959 = vperm.xlu0 %4958, %v41
  %v4960 = vpop.permute.xlu0 %4959
  %4962 = vset.pattern.permute.xlu0 10
  %4963 = vperm.xlu0 %4962, %v42
  %v4964 = vpop.permute.xlu0 %4963
  %4966 = vset.pattern.permute.xlu0 10
  %4967 = vperm.xlu0 %4966, %v43
  %v4968 = vpop.permute.xlu0 %4967
  %4970 = vset.pattern.permute.xlu0 10
  %4971 = vperm.xlu0 %4970, %v44
  %v4972 = vpop.permute.xlu0 %4971
  %4974 = vset.pattern.permute.xlu0 10
  %4975 = vperm.xlu0 %4974, %v45
  %v4976 = vpop.permute.xlu0 %4975
  %4978 = vset.pattern.permute.xlu0 10
  %4979 = vperm.xlu0 %4978, %v46
  %v4980 = vpop.permute.xlu0 %4979
  %4982 = vset.pattern.permute.xlu0 10
  %4983 = vperm.xlu0 %4982, %v47
  %v4984 = vpop.permute.xlu0 %4983
  %v4986 = vlaneseq
  %v4987 = vshrl.u32 %v4986, 7
  %v4988 = vsub.s32 2, %v4987
  %v4989 = vrot.slane %v50, %v4988
  %v4990 = vlaneseq
  %v4991 = vshrl.u32 %v4990, 7
  %v4992 = vsub.s32 2, %v4991
  %v4993 = vrot.slane %v51, %v4992
  %vm4994 = vcmp.eq.f32.partialorder %v4860, %v4989
  %vm4995 = vcmp.eq.f32.partialorder %v4860, %v4993
  %vm4996 = vcmp.eq.f32.partialorder %v4864, %v4989
  %vm4997 = vcmp.eq.f32.partialorder %v4864, %v4993
  %vm4998 = vcmp.eq.f32.partialorder %v4868, %v4989
  %vm4999 = vcmp.eq.f32.partialorder %v4868, %v4993
  %vm5000 = vcmp.eq.f32.partialorder %v4872, %v4989
  %vm5001 = vcmp.eq.f32.partialorder %v4872, %v4993
  %vm5002 = vcmp.eq.f32.partialorder %v4876, %v4989
  %vm5003 = vcmp.eq.f32.partialorder %v4876, %v4993
  %vm5004 = vcmp.eq.f32.partialorder %v4880, %v4989
  %vm5005 = vcmp.eq.f32.partialorder %v4880, %v4993
  %vm5006 = vcmp.eq.f32.partialorder %v4884, %v4989
  %vm5007 = vcmp.eq.f32.partialorder %v4884, %v4993
  %vm5008 = vcmp.eq.f32.partialorder %v4888, %v4989
  %vm5009 = vcmp.eq.f32.partialorder %v4888, %v4993
  %vm5010 = vcmp.eq.f32.partialorder %v4892, %v4989
  %vm5011 = vcmp.eq.f32.partialorder %v4892, %v4993
  %vm5012 = vcmp.eq.f32.partialorder %v4896, %v4989
  %vm5013 = vcmp.eq.f32.partialorder %v4896, %v4993
  %vm5014 = vcmp.eq.f32.partialorder %v4900, %v4989
  %vm5015 = vcmp.eq.f32.partialorder %v4900, %v4993
  %vm5016 = vcmp.eq.f32.partialorder %v4904, %v4989
  %vm5017 = vcmp.eq.f32.partialorder %v4904, %v4993
  %vm5018 = vcmp.eq.f32.partialorder %v4908, %v4989
  %vm5019 = vcmp.eq.f32.partialorder %v4908, %v4993
  %vm5020 = vcmp.eq.f32.partialorder %v4912, %v4989
  %vm5021 = vcmp.eq.f32.partialorder %v4912, %v4993
  %vm5022 = vcmp.eq.f32.partialorder %v4916, %v4989
  %vm5023 = vcmp.eq.f32.partialorder %v4916, %v4993
  %vm5024 = vcmp.eq.f32.partialorder %v4920, %v4989
  %vm5025 = vcmp.eq.f32.partialorder %v4920, %v4993
  %vm5026 = vcmp.eq.f32.partialorder %v4924, %v4989
  %vm5027 = vcmp.eq.f32.partialorder %v4924, %v4993
  %vm5028 = vcmp.eq.f32.partialorder %v4928, %v4989
  %vm5029 = vcmp.eq.f32.partialorder %v4928, %v4993
  %vm5030 = vcmp.eq.f32.partialorder %v4932, %v4989
  %vm5031 = vcmp.eq.f32.partialorder %v4932, %v4993
  %vm5032 = vcmp.eq.f32.partialorder %v4936, %v4989
  %vm5033 = vcmp.eq.f32.partialorder %v4936, %v4993
  %vm5034 = vcmp.eq.f32.partialorder %v4940, %v4989
  %vm5035 = vcmp.eq.f32.partialorder %v4940, %v4993
  %vm5036 = vcmp.eq.f32.partialorder %v4944, %v4989
  %vm5037 = vcmp.eq.f32.partialorder %v4944, %v4993
  %vm5038 = vcmp.eq.f32.partialorder %v4948, %v4989
  %vm5039 = vcmp.eq.f32.partialorder %v4948, %v4993
  %vm5040 = vcmp.eq.f32.partialorder %v4952, %v4989
  %vm5041 = vcmp.eq.f32.partialorder %v4952, %v4993
  %vm5042 = vcmp.eq.f32.partialorder %v4956, %v4989
  %vm5043 = vcmp.eq.f32.partialorder %v4956, %v4993
  %vm5044 = vcmp.eq.f32.partialorder %v4960, %v4989
  %vm5045 = vcmp.eq.f32.partialorder %v4960, %v4993
  %vm5046 = vcmp.eq.f32.partialorder %v4964, %v4989
  %vm5047 = vcmp.eq.f32.partialorder %v4964, %v4993
  %vm5048 = vcmp.eq.f32.partialorder %v4968, %v4989
  %vm5049 = vcmp.eq.f32.partialorder %v4968, %v4993
  %vm5050 = vcmp.eq.f32.partialorder %v4972, %v4989
  %vm5051 = vcmp.eq.f32.partialorder %v4972, %v4993
  %vm5052 = vcmp.eq.f32.partialorder %v4976, %v4989
  %vm5053 = vcmp.eq.f32.partialorder %v4976, %v4993
  %vm5054 = vcmp.eq.f32.partialorder %v4980, %v4989
  %vm5055 = vcmp.eq.f32.partialorder %v4980, %v4993
  %vm5056 = vcmp.eq.f32.partialorder %v4984, %v4989
  %vm5057 = vcmp.eq.f32.partialorder %v4984, %v4993
  %5058 = vset.pattern.permute.xlu0 10
  %5059 = vperm.xlu0 %5058, %v202
  %v5060 = vpop.permute.xlu0 %5059
  %5062 = vset.pattern.permute.xlu0 10
  %5063 = vperm.xlu0 %5062, %v203
  %v5064 = vpop.permute.xlu0 %5063
  %5066 = vset.pattern.permute.xlu0 10
  %5067 = vperm.xlu0 %5066, %v204
  %v5068 = vpop.permute.xlu0 %5067
  %5070 = vset.pattern.permute.xlu0 10
  %5071 = vperm.xlu0 %5070, %v205
  %v5072 = vpop.permute.xlu0 %5071
  %5074 = vset.pattern.permute.xlu0 10
  %5075 = vperm.xlu0 %5074, %v206
  %v5076 = vpop.permute.xlu0 %5075
  %5078 = vset.pattern.permute.xlu0 10
  %5079 = vperm.xlu0 %5078, %v207
  %v5080 = vpop.permute.xlu0 %5079
  %5082 = vset.pattern.permute.xlu0 10
  %5083 = vperm.xlu0 %5082, %v208
  %v5084 = vpop.permute.xlu0 %5083
  %5086 = vset.pattern.permute.xlu0 10
  %5087 = vperm.xlu0 %5086, %v209
  %v5088 = vpop.permute.xlu0 %5087
  %5090 = vset.pattern.permute.xlu0 10
  %5091 = vperm.xlu0 %5090, %v210
  %v5092 = vpop.permute.xlu0 %5091
  %5094 = vset.pattern.permute.xlu0 10
  %5095 = vperm.xlu0 %5094, %v211
  %v5096 = vpop.permute.xlu0 %5095
  %5098 = vset.pattern.permute.xlu0 10
  %5099 = vperm.xlu0 %5098, %v212
  %v5100 = vpop.permute.xlu0 %5099
  %5102 = vset.pattern.permute.xlu0 10
  %5103 = vperm.xlu0 %5102, %v213
  %v5104 = vpop.permute.xlu0 %5103
  %5106 = vset.pattern.permute.xlu0 10
  %5107 = vperm.xlu0 %5106, %v214
  %v5108 = vpop.permute.xlu0 %5107
  %5110 = vset.pattern.permute.xlu0 10
  %5111 = vperm.xlu0 %5110, %v215
  %v5112 = vpop.permute.xlu0 %5111
  %5114 = vset.pattern.permute.xlu0 10
  %5115 = vperm.xlu0 %5114, %v216
  %v5116 = vpop.permute.xlu0 %5115
  %5118 = vset.pattern.permute.xlu0 10
  %5119 = vperm.xlu0 %5118, %v217
  %v5120 = vpop.permute.xlu0 %5119
  %5122 = vset.pattern.permute.xlu0 10
  %5123 = vperm.xlu0 %5122, %v218
  %v5124 = vpop.permute.xlu0 %5123
  %5126 = vset.pattern.permute.xlu0 10
  %5127 = vperm.xlu0 %5126, %v219
  %v5128 = vpop.permute.xlu0 %5127
  %5130 = vset.pattern.permute.xlu0 10
  %5131 = vperm.xlu0 %5130, %v220
  %v5132 = vpop.permute.xlu0 %5131
  %5134 = vset.pattern.permute.xlu0 10
  %5135 = vperm.xlu0 %5134, %v221
  %v5136 = vpop.permute.xlu0 %5135
  %5138 = vset.pattern.permute.xlu0 10
  %5139 = vperm.xlu0 %5138, %v222
  %v5140 = vpop.permute.xlu0 %5139
  %5142 = vset.pattern.permute.xlu0 10
  %5143 = vperm.xlu0 %5142, %v223
  %v5144 = vpop.permute.xlu0 %5143
  %5146 = vset.pattern.permute.xlu0 10
  %5147 = vperm.xlu0 %5146, %v224
  %v5148 = vpop.permute.xlu0 %5147
  %5150 = vset.pattern.permute.xlu0 10
  %5151 = vperm.xlu0 %5150, %v225
  %v5152 = vpop.permute.xlu0 %5151
  %5154 = vset.pattern.permute.xlu0 10
  %5155 = vperm.xlu0 %5154, %v226
  %v5156 = vpop.permute.xlu0 %5155
  %5158 = vset.pattern.permute.xlu0 10
  %5159 = vperm.xlu0 %5158, %v227
  %v5160 = vpop.permute.xlu0 %5159
  %5162 = vset.pattern.permute.xlu0 10
  %5163 = vperm.xlu0 %5162, %v228
  %v5164 = vpop.permute.xlu0 %5163
  %5166 = vset.pattern.permute.xlu0 10
  %5167 = vperm.xlu0 %5166, %v229
  %v5168 = vpop.permute.xlu0 %5167
  %5170 = vset.pattern.permute.xlu0 10
  %5171 = vperm.xlu0 %5170, %v230
  %v5172 = vpop.permute.xlu0 %5171
  %5174 = vset.pattern.permute.xlu0 10
  %5175 = vperm.xlu0 %5174, %v231
  %v5176 = vpop.permute.xlu0 %5175
  %5178 = vset.pattern.permute.xlu0 10
  %5179 = vperm.xlu0 %5178, %v232
  %v5180 = vpop.permute.xlu0 %5179
  %5182 = vset.pattern.permute.xlu0 10
  %5183 = vperm.xlu0 %5182, %v233
  %v5184 = vpop.permute.xlu0 %5183
  %v5186 = vsel %vm4994, %v5060, 0.0
  %v5187 = vsel %vm4995, %v5060, 0.0
  %v5188 = vsel %vm4996, %v5064, 0.0
  %v5189 = vsel %vm4997, %v5064, 0.0
  %v5190 = vsel %vm4998, %v5068, 0.0
  %v5191 = vsel %vm4999, %v5068, 0.0
  %v5192 = vsel %vm5000, %v5072, 0.0
  %v5193 = vsel %vm5001, %v5072, 0.0
  %v5194 = vsel %vm5002, %v5076, 0.0
  %v5195 = vsel %vm5003, %v5076, 0.0
  %v5196 = vsel %vm5004, %v5080, 0.0
  %v5197 = vsel %vm5005, %v5080, 0.0
  %v5198 = vsel %vm5006, %v5084, 0.0
  %v5199 = vsel %vm5007, %v5084, 0.0
  %v5200 = vsel %vm5008, %v5088, 0.0
  %v5201 = vsel %vm5009, %v5088, 0.0
  %v5202 = vsel %vm5010, %v5092, 0.0
  %v5203 = vsel %vm5011, %v5092, 0.0
  %v5204 = vsel %vm5012, %v5096, 0.0
  %v5205 = vsel %vm5013, %v5096, 0.0
  %v5206 = vsel %vm5014, %v5100, 0.0
  %v5207 = vsel %vm5015, %v5100, 0.0
  %v5208 = vsel %vm5016, %v5104, 0.0
  %v5209 = vsel %vm5017, %v5104, 0.0
  %v5210 = vsel %vm5018, %v5108, 0.0
  %v5211 = vsel %vm5019, %v5108, 0.0
  %v5212 = vsel %vm5020, %v5112, 0.0
  %v5213 = vsel %vm5021, %v5112, 0.0
  %v5214 = vsel %vm5022, %v5116, 0.0
  %v5215 = vsel %vm5023, %v5116, 0.0
  %v5216 = vsel %vm5024, %v5120, 0.0
  %v5217 = vsel %vm5025, %v5120, 0.0
  %v5218 = vsel %vm5026, %v5124, 0.0
  %v5219 = vsel %vm5027, %v5124, 0.0
  %v5220 = vsel %vm5028, %v5128, 0.0
  %v5221 = vsel %vm5029, %v5128, 0.0
  %v5222 = vsel %vm5030, %v5132, 0.0
  %v5223 = vsel %vm5031, %v5132, 0.0
  %v5224 = vsel %vm5032, %v5136, 0.0
  %v5225 = vsel %vm5033, %v5136, 0.0
  %v5226 = vsel %vm5034, %v5140, 0.0
  %v5227 = vsel %vm5035, %v5140, 0.0
  %v5228 = vsel %vm5036, %v5144, 0.0
  %v5229 = vsel %vm5037, %v5144, 0.0
  %v5230 = vsel %vm5038, %v5148, 0.0
  %v5231 = vsel %vm5039, %v5148, 0.0
  %v5232 = vsel %vm5040, %v5152, 0.0
  %v5233 = vsel %vm5041, %v5152, 0.0
  %v5234 = vsel %vm5042, %v5156, 0.0
  %v5235 = vsel %vm5043, %v5156, 0.0
  %v5236 = vsel %vm5044, %v5160, 0.0
  %v5237 = vsel %vm5045, %v5160, 0.0
  %v5238 = vsel %vm5046, %v5164, 0.0
  %v5239 = vsel %vm5047, %v5164, 0.0
  %v5240 = vsel %vm5048, %v5168, 0.0
  %v5241 = vsel %vm5049, %v5168, 0.0
  %v5242 = vsel %vm5050, %v5172, 0.0
  %v5243 = vsel %vm5051, %v5172, 0.0
  %v5244 = vsel %vm5052, %v5176, 0.0
  %v5245 = vsel %vm5053, %v5176, 0.0
  %v5246 = vsel %vm5054, %v5180, 0.0
  %v5247 = vsel %vm5055, %v5180, 0.0
  %v5248 = vsel %vm5056, %v5184, 0.0
  %v5249 = vsel %vm5057, %v5184, 0.0
  %v5250 = vadd.f32 %v4794, %v5186
  %v5251 = vadd.f32 %v4795, %v5187
  %v5252 = vadd.f32 %v4796, %v5188
  %v5253 = vadd.f32 %v4797, %v5189
  %v5254 = vadd.f32 %v4798, %v5190
  %v5255 = vadd.f32 %v4799, %v5191
  %v5256 = vadd.f32 %v4800, %v5192
  %v5257 = vadd.f32 %v4801, %v5193
  %v5258 = vadd.f32 %v4802, %v5194
  %v5259 = vadd.f32 %v4803, %v5195
  %v5260 = vadd.f32 %v4804, %v5196
  %v5261 = vadd.f32 %v4805, %v5197
  %v5262 = vadd.f32 %v4806, %v5198
  %v5263 = vadd.f32 %v4807, %v5199
  %v5264 = vadd.f32 %v4808, %v5200
  %v5265 = vadd.f32 %v4809, %v5201
  %v5266 = vadd.f32 %v4810, %v5202
  %v5267 = vadd.f32 %v4811, %v5203
  %v5268 = vadd.f32 %v4812, %v5204
  %v5269 = vadd.f32 %v4813, %v5205
  %v5270 = vadd.f32 %v4814, %v5206
  %v5271 = vadd.f32 %v4815, %v5207
  %v5272 = vadd.f32 %v4816, %v5208
  %v5273 = vadd.f32 %v4817, %v5209
  %v5274 = vadd.f32 %v4818, %v5210
  %v5275 = vadd.f32 %v4819, %v5211
  %v5276 = vadd.f32 %v4820, %v5212
  %v5277 = vadd.f32 %v4821, %v5213
  %v5278 = vadd.f32 %v4822, %v5214
  %v5279 = vadd.f32 %v4823, %v5215
  %v5280 = vadd.f32 %v4824, %v5216
  %v5281 = vadd.f32 %v4825, %v5217
  %v5282 = vadd.f32 %v4826, %v5218
  %v5283 = vadd.f32 %v4827, %v5219
  %v5284 = vadd.f32 %v4828, %v5220
  %v5285 = vadd.f32 %v4829, %v5221
  %v5286 = vadd.f32 %v4830, %v5222
  %v5287 = vadd.f32 %v4831, %v5223
  %v5288 = vadd.f32 %v4832, %v5224
  %v5289 = vadd.f32 %v4833, %v5225
  %v5290 = vadd.f32 %v4834, %v5226
  %v5291 = vadd.f32 %v4835, %v5227
  %v5292 = vadd.f32 %v4836, %v5228
  %v5293 = vadd.f32 %v4837, %v5229
  %v5294 = vadd.f32 %v4838, %v5230
  %v5295 = vadd.f32 %v4839, %v5231
  %v5296 = vadd.f32 %v4840, %v5232
  %v5297 = vadd.f32 %v4841, %v5233
  %v5298 = vadd.f32 %v4842, %v5234
  %v5299 = vadd.f32 %v4843, %v5235
  %v5300 = vadd.f32 %v4844, %v5236
  %v5301 = vadd.f32 %v4845, %v5237
  %v5302 = vadd.f32 %v4846, %v5238
  %v5303 = vadd.f32 %v4847, %v5239
  %v5304 = vadd.f32 %v4848, %v5240
  %v5305 = vadd.f32 %v4849, %v5241
  %v5306 = vadd.f32 %v4850, %v5242
  %v5307 = vadd.f32 %v4851, %v5243
  %v5308 = vadd.f32 %v4852, %v5244
  %v5309 = vadd.f32 %v4853, %v5245
  %v5310 = vadd.f32 %v4854, %v5246
  %v5311 = vadd.f32 %v4855, %v5247
  %v5312 = vadd.f32 %v4856, %v5248
  %v5313 = vadd.f32 %v4857, %v5249
  %5314 = vset.pattern.permute.xlu0 11
  %5315 = vperm.xlu0 %5314, %v16
  %v5316 = vpop.permute.xlu0 %5315
  %5318 = vset.pattern.permute.xlu0 11
  %5319 = vperm.xlu0 %5318, %v17
  %v5320 = vpop.permute.xlu0 %5319
  %5322 = vset.pattern.permute.xlu0 11
  %5323 = vperm.xlu0 %5322, %v18
  %v5324 = vpop.permute.xlu0 %5323
  %5326 = vset.pattern.permute.xlu0 11
  %5327 = vperm.xlu0 %5326, %v19
  %v5328 = vpop.permute.xlu0 %5327
  %5330 = vset.pattern.permute.xlu0 11
  %5331 = vperm.xlu0 %5330, %v20
  %v5332 = vpop.permute.xlu0 %5331
  %5334 = vset.pattern.permute.xlu0 11
  %5335 = vperm.xlu0 %5334, %v21
  %v5336 = vpop.permute.xlu0 %5335
  %5338 = vset.pattern.permute.xlu0 11
  %5339 = vperm.xlu0 %5338, %v22
  %v5340 = vpop.permute.xlu0 %5339
  %5342 = vset.pattern.permute.xlu0 11
  %5343 = vperm.xlu0 %5342, %v23
  %v5344 = vpop.permute.xlu0 %5343
  %5346 = vset.pattern.permute.xlu0 11
  %5347 = vperm.xlu0 %5346, %v24
  %v5348 = vpop.permute.xlu0 %5347
  %5350 = vset.pattern.permute.xlu0 11
  %5351 = vperm.xlu0 %5350, %v25
  %v5352 = vpop.permute.xlu0 %5351
  %5354 = vset.pattern.permute.xlu0 11
  %5355 = vperm.xlu0 %5354, %v26
  %v5356 = vpop.permute.xlu0 %5355
  %5358 = vset.pattern.permute.xlu0 11
  %5359 = vperm.xlu0 %5358, %v27
  %v5360 = vpop.permute.xlu0 %5359
  %5362 = vset.pattern.permute.xlu0 11
  %5363 = vperm.xlu0 %5362, %v28
  %v5364 = vpop.permute.xlu0 %5363
  %5366 = vset.pattern.permute.xlu0 11
  %5367 = vperm.xlu0 %5366, %v29
  %v5368 = vpop.permute.xlu0 %5367
  %5370 = vset.pattern.permute.xlu0 11
  %5371 = vperm.xlu0 %5370, %v30
  %v5372 = vpop.permute.xlu0 %5371
  %5374 = vset.pattern.permute.xlu0 11
  %5375 = vperm.xlu0 %5374, %v31
  %v5376 = vpop.permute.xlu0 %5375
  %5378 = vset.pattern.permute.xlu0 11
  %5379 = vperm.xlu0 %5378, %v32
  %v5380 = vpop.permute.xlu0 %5379
  %5382 = vset.pattern.permute.xlu0 11
  %5383 = vperm.xlu0 %5382, %v33
  %v5384 = vpop.permute.xlu0 %5383
  %5386 = vset.pattern.permute.xlu0 11
  %5387 = vperm.xlu0 %5386, %v34
  %v5388 = vpop.permute.xlu0 %5387
  %5390 = vset.pattern.permute.xlu0 11
  %5391 = vperm.xlu0 %5390, %v35
  %v5392 = vpop.permute.xlu0 %5391
  %5394 = vset.pattern.permute.xlu0 11
  %5395 = vperm.xlu0 %5394, %v36
  %v5396 = vpop.permute.xlu0 %5395
  %5398 = vset.pattern.permute.xlu0 11
  %5399 = vperm.xlu0 %5398, %v37
  %v5400 = vpop.permute.xlu0 %5399
  %5402 = vset.pattern.permute.xlu0 11
  %5403 = vperm.xlu0 %5402, %v38
  %v5404 = vpop.permute.xlu0 %5403
  %5406 = vset.pattern.permute.xlu0 11
  %5407 = vperm.xlu0 %5406, %v39
  %v5408 = vpop.permute.xlu0 %5407
  %5410 = vset.pattern.permute.xlu0 11
  %5411 = vperm.xlu0 %5410, %v40
  %v5412 = vpop.permute.xlu0 %5411
  %5414 = vset.pattern.permute.xlu0 11
  %5415 = vperm.xlu0 %5414, %v41
  %v5416 = vpop.permute.xlu0 %5415
  %5418 = vset.pattern.permute.xlu0 11
  %5419 = vperm.xlu0 %5418, %v42
  %v5420 = vpop.permute.xlu0 %5419
  %5422 = vset.pattern.permute.xlu0 11
  %5423 = vperm.xlu0 %5422, %v43
  %v5424 = vpop.permute.xlu0 %5423
  %5426 = vset.pattern.permute.xlu0 11
  %5427 = vperm.xlu0 %5426, %v44
  %v5428 = vpop.permute.xlu0 %5427
  %5430 = vset.pattern.permute.xlu0 11
  %5431 = vperm.xlu0 %5430, %v45
  %v5432 = vpop.permute.xlu0 %5431
  %5434 = vset.pattern.permute.xlu0 11
  %5435 = vperm.xlu0 %5434, %v46
  %v5436 = vpop.permute.xlu0 %5435
  %5438 = vset.pattern.permute.xlu0 11
  %5439 = vperm.xlu0 %5438, %v47
  %v5440 = vpop.permute.xlu0 %5439
  %v5442 = vlaneseq
  %v5443 = vshrl.u32 %v5442, 7
  %v5444 = vsub.s32 3, %v5443
  %v5445 = vrot.slane %v50, %v5444
  %v5446 = vlaneseq
  %v5447 = vshrl.u32 %v5446, 7
  %v5448 = vsub.s32 3, %v5447
  %v5449 = vrot.slane %v51, %v5448
  %vm5450 = vcmp.eq.f32.partialorder %v5316, %v5445
  %vm5451 = vcmp.eq.f32.partialorder %v5316, %v5449
  %vm5452 = vcmp.eq.f32.partialorder %v5320, %v5445
  %vm5453 = vcmp.eq.f32.partialorder %v5320, %v5449
  %vm5454 = vcmp.eq.f32.partialorder %v5324, %v5445
  %vm5455 = vcmp.eq.f32.partialorder %v5324, %v5449
  %vm5456 = vcmp.eq.f32.partialorder %v5328, %v5445
  %vm5457 = vcmp.eq.f32.partialorder %v5328, %v5449
  %vm5458 = vcmp.eq.f32.partialorder %v5332, %v5445
  %vm5459 = vcmp.eq.f32.partialorder %v5332, %v5449
  %vm5460 = vcmp.eq.f32.partialorder %v5336, %v5445
  %vm5461 = vcmp.eq.f32.partialorder %v5336, %v5449
  %vm5462 = vcmp.eq.f32.partialorder %v5340, %v5445
  %vm5463 = vcmp.eq.f32.partialorder %v5340, %v5449
  %vm5464 = vcmp.eq.f32.partialorder %v5344, %v5445
  %vm5465 = vcmp.eq.f32.partialorder %v5344, %v5449
  %vm5466 = vcmp.eq.f32.partialorder %v5348, %v5445
  %vm5467 = vcmp.eq.f32.partialorder %v5348, %v5449
  %vm5468 = vcmp.eq.f32.partialorder %v5352, %v5445
  %vm5469 = vcmp.eq.f32.partialorder %v5352, %v5449
  %vm5470 = vcmp.eq.f32.partialorder %v5356, %v5445
  %vm5471 = vcmp.eq.f32.partialorder %v5356, %v5449
  %vm5472 = vcmp.eq.f32.partialorder %v5360, %v5445
  %vm5473 = vcmp.eq.f32.partialorder %v5360, %v5449
  %vm5474 = vcmp.eq.f32.partialorder %v5364, %v5445
  %vm5475 = vcmp.eq.f32.partialorder %v5364, %v5449
  %vm5476 = vcmp.eq.f32.partialorder %v5368, %v5445
  %vm5477 = vcmp.eq.f32.partialorder %v5368, %v5449
  %vm5478 = vcmp.eq.f32.partialorder %v5372, %v5445
  %vm5479 = vcmp.eq.f32.partialorder %v5372, %v5449
  %vm5480 = vcmp.eq.f32.partialorder %v5376, %v5445
  %vm5481 = vcmp.eq.f32.partialorder %v5376, %v5449
  %vm5482 = vcmp.eq.f32.partialorder %v5380, %v5445
  %vm5483 = vcmp.eq.f32.partialorder %v5380, %v5449
  %vm5484 = vcmp.eq.f32.partialorder %v5384, %v5445
  %vm5485 = vcmp.eq.f32.partialorder %v5384, %v5449
  %vm5486 = vcmp.eq.f32.partialorder %v5388, %v5445
  %vm5487 = vcmp.eq.f32.partialorder %v5388, %v5449
  %vm5488 = vcmp.eq.f32.partialorder %v5392, %v5445
  %vm5489 = vcmp.eq.f32.partialorder %v5392, %v5449
  %vm5490 = vcmp.eq.f32.partialorder %v5396, %v5445
  %vm5491 = vcmp.eq.f32.partialorder %v5396, %v5449
  %vm5492 = vcmp.eq.f32.partialorder %v5400, %v5445
  %vm5493 = vcmp.eq.f32.partialorder %v5400, %v5449
  %vm5494 = vcmp.eq.f32.partialorder %v5404, %v5445
  %vm5495 = vcmp.eq.f32.partialorder %v5404, %v5449
  %vm5496 = vcmp.eq.f32.partialorder %v5408, %v5445
  %vm5497 = vcmp.eq.f32.partialorder %v5408, %v5449
  %vm5498 = vcmp.eq.f32.partialorder %v5412, %v5445
  %vm5499 = vcmp.eq.f32.partialorder %v5412, %v5449
  %vm5500 = vcmp.eq.f32.partialorder %v5416, %v5445
  %vm5501 = vcmp.eq.f32.partialorder %v5416, %v5449
  %vm5502 = vcmp.eq.f32.partialorder %v5420, %v5445
  %vm5503 = vcmp.eq.f32.partialorder %v5420, %v5449
  %vm5504 = vcmp.eq.f32.partialorder %v5424, %v5445
  %vm5505 = vcmp.eq.f32.partialorder %v5424, %v5449
  %vm5506 = vcmp.eq.f32.partialorder %v5428, %v5445
  %vm5507 = vcmp.eq.f32.partialorder %v5428, %v5449
  %vm5508 = vcmp.eq.f32.partialorder %v5432, %v5445
  %vm5509 = vcmp.eq.f32.partialorder %v5432, %v5449
  %vm5510 = vcmp.eq.f32.partialorder %v5436, %v5445
  %vm5511 = vcmp.eq.f32.partialorder %v5436, %v5449
  %vm5512 = vcmp.eq.f32.partialorder %v5440, %v5445
  %vm5513 = vcmp.eq.f32.partialorder %v5440, %v5449
  %5514 = vset.pattern.permute.xlu0 11
  %5515 = vperm.xlu0 %5514, %v202
  %v5516 = vpop.permute.xlu0 %5515
  %5518 = vset.pattern.permute.xlu0 11
  %5519 = vperm.xlu0 %5518, %v203
  %v5520 = vpop.permute.xlu0 %5519
  %5522 = vset.pattern.permute.xlu0 11
  %5523 = vperm.xlu0 %5522, %v204
  %v5524 = vpop.permute.xlu0 %5523
  %5526 = vset.pattern.permute.xlu0 11
  %5527 = vperm.xlu0 %5526, %v205
  %v5528 = vpop.permute.xlu0 %5527
  %5530 = vset.pattern.permute.xlu0 11
  %5531 = vperm.xlu0 %5530, %v206
  %v5532 = vpop.permute.xlu0 %5531
  %5534 = vset.pattern.permute.xlu0 11
  %5535 = vperm.xlu0 %5534, %v207
  %v5536 = vpop.permute.xlu0 %5535
  %5538 = vset.pattern.permute.xlu0 11
  %5539 = vperm.xlu0 %5538, %v208
  %v5540 = vpop.permute.xlu0 %5539
  %5542 = vset.pattern.permute.xlu0 11
  %5543 = vperm.xlu0 %5542, %v209
  %v5544 = vpop.permute.xlu0 %5543
  %5546 = vset.pattern.permute.xlu0 11
  %5547 = vperm.xlu0 %5546, %v210
  %v5548 = vpop.permute.xlu0 %5547
  %5550 = vset.pattern.permute.xlu0 11
  %5551 = vperm.xlu0 %5550, %v211
  %v5552 = vpop.permute.xlu0 %5551
  %5554 = vset.pattern.permute.xlu0 11
  %5555 = vperm.xlu0 %5554, %v212
  %v5556 = vpop.permute.xlu0 %5555
  %5558 = vset.pattern.permute.xlu0 11
  %5559 = vperm.xlu0 %5558, %v213
  %v5560 = vpop.permute.xlu0 %5559
  %5562 = vset.pattern.permute.xlu0 11
  %5563 = vperm.xlu0 %5562, %v214
  %v5564 = vpop.permute.xlu0 %5563
  %5566 = vset.pattern.permute.xlu0 11
  %5567 = vperm.xlu0 %5566, %v215
  %v5568 = vpop.permute.xlu0 %5567
  %5570 = vset.pattern.permute.xlu0 11
  %5571 = vperm.xlu0 %5570, %v216
  %v5572 = vpop.permute.xlu0 %5571
  %5574 = vset.pattern.permute.xlu0 11
  %5575 = vperm.xlu0 %5574, %v217
  %v5576 = vpop.permute.xlu0 %5575
  %5578 = vset.pattern.permute.xlu0 11
  %5579 = vperm.xlu0 %5578, %v218
  %v5580 = vpop.permute.xlu0 %5579
  %5582 = vset.pattern.permute.xlu0 11
  %5583 = vperm.xlu0 %5582, %v219
  %v5584 = vpop.permute.xlu0 %5583
  %5586 = vset.pattern.permute.xlu0 11
  %5587 = vperm.xlu0 %5586, %v220
  %v5588 = vpop.permute.xlu0 %5587
  %5590 = vset.pattern.permute.xlu0 11
  %5591 = vperm.xlu0 %5590, %v221
  %v5592 = vpop.permute.xlu0 %5591
  %5594 = vset.pattern.permute.xlu0 11
  %5595 = vperm.xlu0 %5594, %v222
  %v5596 = vpop.permute.xlu0 %5595
  %5598 = vset.pattern.permute.xlu0 11
  %5599 = vperm.xlu0 %5598, %v223
  %v5600 = vpop.permute.xlu0 %5599
  %5602 = vset.pattern.permute.xlu0 11
  %5603 = vperm.xlu0 %5602, %v224
  %v5604 = vpop.permute.xlu0 %5603
  %5606 = vset.pattern.permute.xlu0 11
  %5607 = vperm.xlu0 %5606, %v225
  %v5608 = vpop.permute.xlu0 %5607
  %5610 = vset.pattern.permute.xlu0 11
  %5611 = vperm.xlu0 %5610, %v226
  %v5612 = vpop.permute.xlu0 %5611
  %5614 = vset.pattern.permute.xlu0 11
  %5615 = vperm.xlu0 %5614, %v227
  %v5616 = vpop.permute.xlu0 %5615
  %5618 = vset.pattern.permute.xlu0 11
  %5619 = vperm.xlu0 %5618, %v228
  %v5620 = vpop.permute.xlu0 %5619
  %5622 = vset.pattern.permute.xlu0 11
  %5623 = vperm.xlu0 %5622, %v229
  %v5624 = vpop.permute.xlu0 %5623
  %5626 = vset.pattern.permute.xlu0 11
  %5627 = vperm.xlu0 %5626, %v230
  %v5628 = vpop.permute.xlu0 %5627
  %5630 = vset.pattern.permute.xlu0 11
  %5631 = vperm.xlu0 %5630, %v231
  %v5632 = vpop.permute.xlu0 %5631
  %5634 = vset.pattern.permute.xlu0 11
  %5635 = vperm.xlu0 %5634, %v232
  %v5636 = vpop.permute.xlu0 %5635
  %5638 = vset.pattern.permute.xlu0 11
  %5639 = vperm.xlu0 %5638, %v233
  %v5640 = vpop.permute.xlu0 %5639
  %v5642 = vsel %vm5450, %v5516, 0.0
  %v5643 = vsel %vm5451, %v5516, 0.0
  %v5644 = vsel %vm5452, %v5520, 0.0
  %v5645 = vsel %vm5453, %v5520, 0.0
  %v5646 = vsel %vm5454, %v5524, 0.0
  %v5647 = vsel %vm5455, %v5524, 0.0
  %v5648 = vsel %vm5456, %v5528, 0.0
  %v5649 = vsel %vm5457, %v5528, 0.0
  %v5650 = vsel %vm5458, %v5532, 0.0
  %v5651 = vsel %vm5459, %v5532, 0.0
  %v5652 = vsel %vm5460, %v5536, 0.0
  %v5653 = vsel %vm5461, %v5536, 0.0
  %v5654 = vsel %vm5462, %v5540, 0.0
  %v5655 = vsel %vm5463, %v5540, 0.0
  %v5656 = vsel %vm5464, %v5544, 0.0
  %v5657 = vsel %vm5465, %v5544, 0.0
  %v5658 = vsel %vm5466, %v5548, 0.0
  %v5659 = vsel %vm5467, %v5548, 0.0
  %v5660 = vsel %vm5468, %v5552, 0.0
  %v5661 = vsel %vm5469, %v5552, 0.0
  %v5662 = vsel %vm5470, %v5556, 0.0
  %v5663 = vsel %vm5471, %v5556, 0.0
  %v5664 = vsel %vm5472, %v5560, 0.0
  %v5665 = vsel %vm5473, %v5560, 0.0
  %v5666 = vsel %vm5474, %v5564, 0.0
  %v5667 = vsel %vm5475, %v5564, 0.0
  %v5668 = vsel %vm5476, %v5568, 0.0
  %v5669 = vsel %vm5477, %v5568, 0.0
  %v5670 = vsel %vm5478, %v5572, 0.0
  %v5671 = vsel %vm5479, %v5572, 0.0
  %v5672 = vsel %vm5480, %v5576, 0.0
  %v5673 = vsel %vm5481, %v5576, 0.0
  %v5674 = vsel %vm5482, %v5580, 0.0
  %v5675 = vsel %vm5483, %v5580, 0.0
  %v5676 = vsel %vm5484, %v5584, 0.0
  %v5677 = vsel %vm5485, %v5584, 0.0
  %v5678 = vsel %vm5486, %v5588, 0.0
  %v5679 = vsel %vm5487, %v5588, 0.0
  %v5680 = vsel %vm5488, %v5592, 0.0
  %v5681 = vsel %vm5489, %v5592, 0.0
  %v5682 = vsel %vm5490, %v5596, 0.0
  %v5683 = vsel %vm5491, %v5596, 0.0
  %v5684 = vsel %vm5492, %v5600, 0.0
  %v5685 = vsel %vm5493, %v5600, 0.0
  %v5686 = vsel %vm5494, %v5604, 0.0
  %v5687 = vsel %vm5495, %v5604, 0.0
  %v5688 = vsel %vm5496, %v5608, 0.0
  %v5689 = vsel %vm5497, %v5608, 0.0
  %v5690 = vsel %vm5498, %v5612, 0.0
  %v5691 = vsel %vm5499, %v5612, 0.0
  %v5692 = vsel %vm5500, %v5616, 0.0
  %v5693 = vsel %vm5501, %v5616, 0.0
  %v5694 = vsel %vm5502, %v5620, 0.0
  %v5695 = vsel %vm5503, %v5620, 0.0
  %v5696 = vsel %vm5504, %v5624, 0.0
  %v5697 = vsel %vm5505, %v5624, 0.0
  %v5698 = vsel %vm5506, %v5628, 0.0
  %v5699 = vsel %vm5507, %v5628, 0.0
  %v5700 = vsel %vm5508, %v5632, 0.0
  %v5701 = vsel %vm5509, %v5632, 0.0
  %v5702 = vsel %vm5510, %v5636, 0.0
  %v5703 = vsel %vm5511, %v5636, 0.0
  %v5704 = vsel %vm5512, %v5640, 0.0
  %v5705 = vsel %vm5513, %v5640, 0.0
  %v5706 = vadd.f32 %v5250, %v5642
  %v5707 = vadd.f32 %v5251, %v5643
  %v5708 = vadd.f32 %v5252, %v5644
  %v5709 = vadd.f32 %v5253, %v5645
  %v5710 = vadd.f32 %v5254, %v5646
  %v5711 = vadd.f32 %v5255, %v5647
  %v5712 = vadd.f32 %v5256, %v5648
  %v5713 = vadd.f32 %v5257, %v5649
  %v5714 = vadd.f32 %v5258, %v5650
  %v5715 = vadd.f32 %v5259, %v5651
  %v5716 = vadd.f32 %v5260, %v5652
  %v5717 = vadd.f32 %v5261, %v5653
  %v5718 = vadd.f32 %v5262, %v5654
  %v5719 = vadd.f32 %v5263, %v5655
  %v5720 = vadd.f32 %v5264, %v5656
  %v5721 = vadd.f32 %v5265, %v5657
  %v5722 = vadd.f32 %v5266, %v5658
  %v5723 = vadd.f32 %v5267, %v5659
  %v5724 = vadd.f32 %v5268, %v5660
  %v5725 = vadd.f32 %v5269, %v5661
  %v5726 = vadd.f32 %v5270, %v5662
  %v5727 = vadd.f32 %v5271, %v5663
  %v5728 = vadd.f32 %v5272, %v5664
  %v5729 = vadd.f32 %v5273, %v5665
  %v5730 = vadd.f32 %v5274, %v5666
  %v5731 = vadd.f32 %v5275, %v5667
  %v5732 = vadd.f32 %v5276, %v5668
  %v5733 = vadd.f32 %v5277, %v5669
  %v5734 = vadd.f32 %v5278, %v5670
  %v5735 = vadd.f32 %v5279, %v5671
  %v5736 = vadd.f32 %v5280, %v5672
  %v5737 = vadd.f32 %v5281, %v5673
  %v5738 = vadd.f32 %v5282, %v5674
  %v5739 = vadd.f32 %v5283, %v5675
  %v5740 = vadd.f32 %v5284, %v5676
  %v5741 = vadd.f32 %v5285, %v5677
  %v5742 = vadd.f32 %v5286, %v5678
  %v5743 = vadd.f32 %v5287, %v5679
  %v5744 = vadd.f32 %v5288, %v5680
  %v5745 = vadd.f32 %v5289, %v5681
  %v5746 = vadd.f32 %v5290, %v5682
  %v5747 = vadd.f32 %v5291, %v5683
  %v5748 = vadd.f32 %v5292, %v5684
  %v5749 = vadd.f32 %v5293, %v5685
  %v5750 = vadd.f32 %v5294, %v5686
  %v5751 = vadd.f32 %v5295, %v5687
  %v5752 = vadd.f32 %v5296, %v5688
  %v5753 = vadd.f32 %v5297, %v5689
  %v5754 = vadd.f32 %v5298, %v5690
  %v5755 = vadd.f32 %v5299, %v5691
  %v5756 = vadd.f32 %v5300, %v5692
  %v5757 = vadd.f32 %v5301, %v5693
  %v5758 = vadd.f32 %v5302, %v5694
  %v5759 = vadd.f32 %v5303, %v5695
  %v5760 = vadd.f32 %v5304, %v5696
  %v5761 = vadd.f32 %v5305, %v5697
  %v5762 = vadd.f32 %v5306, %v5698
  %v5763 = vadd.f32 %v5307, %v5699
  %v5764 = vadd.f32 %v5308, %v5700
  %v5765 = vadd.f32 %v5309, %v5701
  %v5766 = vadd.f32 %v5310, %v5702
  %v5767 = vadd.f32 %v5311, %v5703
  %v5768 = vadd.f32 %v5312, %v5704
  %v5769 = vadd.f32 %v5313, %v5705
  %5770 = vset.pattern.permute.xlu0 12
  %5771 = vperm.xlu0 %5770, %v16
  %v5772 = vpop.permute.xlu0 %5771
  %5774 = vset.pattern.permute.xlu0 12
  %5775 = vperm.xlu0 %5774, %v17
  %v5776 = vpop.permute.xlu0 %5775
  %5778 = vset.pattern.permute.xlu0 12
  %5779 = vperm.xlu0 %5778, %v18
  %v5780 = vpop.permute.xlu0 %5779
  %5782 = vset.pattern.permute.xlu0 12
  %5783 = vperm.xlu0 %5782, %v19
  %v5784 = vpop.permute.xlu0 %5783
  %5786 = vset.pattern.permute.xlu0 12
  %5787 = vperm.xlu0 %5786, %v20
  %v5788 = vpop.permute.xlu0 %5787
  %5790 = vset.pattern.permute.xlu0 12
  %5791 = vperm.xlu0 %5790, %v21
  %v5792 = vpop.permute.xlu0 %5791
  %5794 = vset.pattern.permute.xlu0 12
  %5795 = vperm.xlu0 %5794, %v22
  %v5796 = vpop.permute.xlu0 %5795
  %5798 = vset.pattern.permute.xlu0 12
  %5799 = vperm.xlu0 %5798, %v23
  %v5800 = vpop.permute.xlu0 %5799
  %5802 = vset.pattern.permute.xlu0 12
  %5803 = vperm.xlu0 %5802, %v24
  %v5804 = vpop.permute.xlu0 %5803
  %5806 = vset.pattern.permute.xlu0 12
  %5807 = vperm.xlu0 %5806, %v25
  %v5808 = vpop.permute.xlu0 %5807
  %5810 = vset.pattern.permute.xlu0 12
  %5811 = vperm.xlu0 %5810, %v26
  %v5812 = vpop.permute.xlu0 %5811
  %5814 = vset.pattern.permute.xlu0 12
  %5815 = vperm.xlu0 %5814, %v27
  %v5816 = vpop.permute.xlu0 %5815
  %5818 = vset.pattern.permute.xlu0 12
  %5819 = vperm.xlu0 %5818, %v28
  %v5820 = vpop.permute.xlu0 %5819
  %5822 = vset.pattern.permute.xlu0 12
  %5823 = vperm.xlu0 %5822, %v29
  %v5824 = vpop.permute.xlu0 %5823
  %5826 = vset.pattern.permute.xlu0 12
  %5827 = vperm.xlu0 %5826, %v30
  %v5828 = vpop.permute.xlu0 %5827
  %5830 = vset.pattern.permute.xlu0 12
  %5831 = vperm.xlu0 %5830, %v31
  %v5832 = vpop.permute.xlu0 %5831
  %5834 = vset.pattern.permute.xlu0 12
  %5835 = vperm.xlu0 %5834, %v32
  %v5836 = vpop.permute.xlu0 %5835
  %5838 = vset.pattern.permute.xlu0 12
  %5839 = vperm.xlu0 %5838, %v33
  %v5840 = vpop.permute.xlu0 %5839
  %5842 = vset.pattern.permute.xlu0 12
  %5843 = vperm.xlu0 %5842, %v34
  %v5844 = vpop.permute.xlu0 %5843
  %5846 = vset.pattern.permute.xlu0 12
  %5847 = vperm.xlu0 %5846, %v35
  %v5848 = vpop.permute.xlu0 %5847
  %5850 = vset.pattern.permute.xlu0 12
  %5851 = vperm.xlu0 %5850, %v36
  %v5852 = vpop.permute.xlu0 %5851
  %5854 = vset.pattern.permute.xlu0 12
  %5855 = vperm.xlu0 %5854, %v37
  %v5856 = vpop.permute.xlu0 %5855
  %5858 = vset.pattern.permute.xlu0 12
  %5859 = vperm.xlu0 %5858, %v38
  %v5860 = vpop.permute.xlu0 %5859
  %5862 = vset.pattern.permute.xlu0 12
  %5863 = vperm.xlu0 %5862, %v39
  %v5864 = vpop.permute.xlu0 %5863
  %5866 = vset.pattern.permute.xlu0 12
  %5867 = vperm.xlu0 %5866, %v40
  %v5868 = vpop.permute.xlu0 %5867
  %5870 = vset.pattern.permute.xlu0 12
  %5871 = vperm.xlu0 %5870, %v41
  %v5872 = vpop.permute.xlu0 %5871
  %5874 = vset.pattern.permute.xlu0 12
  %5875 = vperm.xlu0 %5874, %v42
  %v5876 = vpop.permute.xlu0 %5875
  %5878 = vset.pattern.permute.xlu0 12
  %5879 = vperm.xlu0 %5878, %v43
  %v5880 = vpop.permute.xlu0 %5879
  %5882 = vset.pattern.permute.xlu0 12
  %5883 = vperm.xlu0 %5882, %v44
  %v5884 = vpop.permute.xlu0 %5883
  %5886 = vset.pattern.permute.xlu0 12
  %5887 = vperm.xlu0 %5886, %v45
  %v5888 = vpop.permute.xlu0 %5887
  %5890 = vset.pattern.permute.xlu0 12
  %5891 = vperm.xlu0 %5890, %v46
  %v5892 = vpop.permute.xlu0 %5891
  %5894 = vset.pattern.permute.xlu0 12
  %5895 = vperm.xlu0 %5894, %v47
  %v5896 = vpop.permute.xlu0 %5895
  %v5898 = vlaneseq
  %v5899 = vshrl.u32 %v5898, 7
  %v5900 = vsub.s32 4, %v5899
  %v5901 = vrot.slane %v50, %v5900
  %v5902 = vlaneseq
  %v5903 = vshrl.u32 %v5902, 7
  %v5904 = vsub.s32 4, %v5903
  %v5905 = vrot.slane %v51, %v5904
  %vm5906 = vcmp.eq.f32.partialorder %v5772, %v5901
  %vm5907 = vcmp.eq.f32.partialorder %v5772, %v5905
  %vm5908 = vcmp.eq.f32.partialorder %v5776, %v5901
  %vm5909 = vcmp.eq.f32.partialorder %v5776, %v5905
  %vm5910 = vcmp.eq.f32.partialorder %v5780, %v5901
  %vm5911 = vcmp.eq.f32.partialorder %v5780, %v5905
  %vm5912 = vcmp.eq.f32.partialorder %v5784, %v5901
  %vm5913 = vcmp.eq.f32.partialorder %v5784, %v5905
  %vm5914 = vcmp.eq.f32.partialorder %v5788, %v5901
  %vm5915 = vcmp.eq.f32.partialorder %v5788, %v5905
  %vm5916 = vcmp.eq.f32.partialorder %v5792, %v5901
  %vm5917 = vcmp.eq.f32.partialorder %v5792, %v5905
  %vm5918 = vcmp.eq.f32.partialorder %v5796, %v5901
  %vm5919 = vcmp.eq.f32.partialorder %v5796, %v5905
  %vm5920 = vcmp.eq.f32.partialorder %v5800, %v5901
  %vm5921 = vcmp.eq.f32.partialorder %v5800, %v5905
  %vm5922 = vcmp.eq.f32.partialorder %v5804, %v5901
  %vm5923 = vcmp.eq.f32.partialorder %v5804, %v5905
  %vm5924 = vcmp.eq.f32.partialorder %v5808, %v5901
  %vm5925 = vcmp.eq.f32.partialorder %v5808, %v5905
  %vm5926 = vcmp.eq.f32.partialorder %v5812, %v5901
  %vm5927 = vcmp.eq.f32.partialorder %v5812, %v5905
  %vm5928 = vcmp.eq.f32.partialorder %v5816, %v5901
  %vm5929 = vcmp.eq.f32.partialorder %v5816, %v5905
  %vm5930 = vcmp.eq.f32.partialorder %v5820, %v5901
  %vm5931 = vcmp.eq.f32.partialorder %v5820, %v5905
  %vm5932 = vcmp.eq.f32.partialorder %v5824, %v5901
  %vm5933 = vcmp.eq.f32.partialorder %v5824, %v5905
  %vm5934 = vcmp.eq.f32.partialorder %v5828, %v5901
  %vm5935 = vcmp.eq.f32.partialorder %v5828, %v5905
  %vm5936 = vcmp.eq.f32.partialorder %v5832, %v5901
  %vm5937 = vcmp.eq.f32.partialorder %v5832, %v5905
  %vm5938 = vcmp.eq.f32.partialorder %v5836, %v5901
  %vm5939 = vcmp.eq.f32.partialorder %v5836, %v5905
  %vm5940 = vcmp.eq.f32.partialorder %v5840, %v5901
  %vm5941 = vcmp.eq.f32.partialorder %v5840, %v5905
  %vm5942 = vcmp.eq.f32.partialorder %v5844, %v5901
  %vm5943 = vcmp.eq.f32.partialorder %v5844, %v5905
  %vm5944 = vcmp.eq.f32.partialorder %v5848, %v5901
  %vm5945 = vcmp.eq.f32.partialorder %v5848, %v5905
  %vm5946 = vcmp.eq.f32.partialorder %v5852, %v5901
  %vm5947 = vcmp.eq.f32.partialorder %v5852, %v5905
  %vm5948 = vcmp.eq.f32.partialorder %v5856, %v5901
  %vm5949 = vcmp.eq.f32.partialorder %v5856, %v5905
  %vm5950 = vcmp.eq.f32.partialorder %v5860, %v5901
  %vm5951 = vcmp.eq.f32.partialorder %v5860, %v5905
  %vm5952 = vcmp.eq.f32.partialorder %v5864, %v5901
  %vm5953 = vcmp.eq.f32.partialorder %v5864, %v5905
  %vm5954 = vcmp.eq.f32.partialorder %v5868, %v5901
  %vm5955 = vcmp.eq.f32.partialorder %v5868, %v5905
  %vm5956 = vcmp.eq.f32.partialorder %v5872, %v5901
  %vm5957 = vcmp.eq.f32.partialorder %v5872, %v5905
  %vm5958 = vcmp.eq.f32.partialorder %v5876, %v5901
  %vm5959 = vcmp.eq.f32.partialorder %v5876, %v5905
  %vm5960 = vcmp.eq.f32.partialorder %v5880, %v5901
  %vm5961 = vcmp.eq.f32.partialorder %v5880, %v5905
  %vm5962 = vcmp.eq.f32.partialorder %v5884, %v5901
  %vm5963 = vcmp.eq.f32.partialorder %v5884, %v5905
  %vm5964 = vcmp.eq.f32.partialorder %v5888, %v5901
  %vm5965 = vcmp.eq.f32.partialorder %v5888, %v5905
  %vm5966 = vcmp.eq.f32.partialorder %v5892, %v5901
  %vm5967 = vcmp.eq.f32.partialorder %v5892, %v5905
  %vm5968 = vcmp.eq.f32.partialorder %v5896, %v5901
  %vm5969 = vcmp.eq.f32.partialorder %v5896, %v5905
  %5970 = vset.pattern.permute.xlu0 12
  %5971 = vperm.xlu0 %5970, %v202
  %v5972 = vpop.permute.xlu0 %5971
  %5974 = vset.pattern.permute.xlu0 12
  %5975 = vperm.xlu0 %5974, %v203
  %v5976 = vpop.permute.xlu0 %5975
  %5978 = vset.pattern.permute.xlu0 12
  %5979 = vperm.xlu0 %5978, %v204
  %v5980 = vpop.permute.xlu0 %5979
  %5982 = vset.pattern.permute.xlu0 12
  %5983 = vperm.xlu0 %5982, %v205
  %v5984 = vpop.permute.xlu0 %5983
  %5986 = vset.pattern.permute.xlu0 12
  %5987 = vperm.xlu0 %5986, %v206
  %v5988 = vpop.permute.xlu0 %5987
  %5990 = vset.pattern.permute.xlu0 12
  %5991 = vperm.xlu0 %5990, %v207
  %v5992 = vpop.permute.xlu0 %5991
  %5994 = vset.pattern.permute.xlu0 12
  %5995 = vperm.xlu0 %5994, %v208
  %v5996 = vpop.permute.xlu0 %5995
  %5998 = vset.pattern.permute.xlu0 12
  %5999 = vperm.xlu0 %5998, %v209
  %v6000 = vpop.permute.xlu0 %5999
  %6002 = vset.pattern.permute.xlu0 12
  %6003 = vperm.xlu0 %6002, %v210
  %v6004 = vpop.permute.xlu0 %6003
  %6006 = vset.pattern.permute.xlu0 12
  %6007 = vperm.xlu0 %6006, %v211
  %v6008 = vpop.permute.xlu0 %6007
  %6010 = vset.pattern.permute.xlu0 12
  %6011 = vperm.xlu0 %6010, %v212
  %v6012 = vpop.permute.xlu0 %6011
  %6014 = vset.pattern.permute.xlu0 12
  %6015 = vperm.xlu0 %6014, %v213
  %v6016 = vpop.permute.xlu0 %6015
  %6018 = vset.pattern.permute.xlu0 12
  %6019 = vperm.xlu0 %6018, %v214
  %v6020 = vpop.permute.xlu0 %6019
  %6022 = vset.pattern.permute.xlu0 12
  %6023 = vperm.xlu0 %6022, %v215
  %v6024 = vpop.permute.xlu0 %6023
  %6026 = vset.pattern.permute.xlu0 12
  %6027 = vperm.xlu0 %6026, %v216
  %v6028 = vpop.permute.xlu0 %6027
  %6030 = vset.pattern.permute.xlu0 12
  %6031 = vperm.xlu0 %6030, %v217
  %v6032 = vpop.permute.xlu0 %6031
  %6034 = vset.pattern.permute.xlu0 12
  %6035 = vperm.xlu0 %6034, %v218
  %v6036 = vpop.permute.xlu0 %6035
  %6038 = vset.pattern.permute.xlu0 12
  %6039 = vperm.xlu0 %6038, %v219
  %v6040 = vpop.permute.xlu0 %6039
  %6042 = vset.pattern.permute.xlu0 12
  %6043 = vperm.xlu0 %6042, %v220
  %v6044 = vpop.permute.xlu0 %6043
  %6046 = vset.pattern.permute.xlu0 12
  %6047 = vperm.xlu0 %6046, %v221
  %v6048 = vpop.permute.xlu0 %6047
  %6050 = vset.pattern.permute.xlu0 12
  %6051 = vperm.xlu0 %6050, %v222
  %v6052 = vpop.permute.xlu0 %6051
  %6054 = vset.pattern.permute.xlu0 12
  %6055 = vperm.xlu0 %6054, %v223
  %v6056 = vpop.permute.xlu0 %6055
  %6058 = vset.pattern.permute.xlu0 12
  %6059 = vperm.xlu0 %6058, %v224
  %v6060 = vpop.permute.xlu0 %6059
  %6062 = vset.pattern.permute.xlu0 12
  %6063 = vperm.xlu0 %6062, %v225
  %v6064 = vpop.permute.xlu0 %6063
  %6066 = vset.pattern.permute.xlu0 12
  %6067 = vperm.xlu0 %6066, %v226
  %v6068 = vpop.permute.xlu0 %6067
  %6070 = vset.pattern.permute.xlu0 12
  %6071 = vperm.xlu0 %6070, %v227
  %v6072 = vpop.permute.xlu0 %6071
  %6074 = vset.pattern.permute.xlu0 12
  %6075 = vperm.xlu0 %6074, %v228
  %v6076 = vpop.permute.xlu0 %6075
  %6078 = vset.pattern.permute.xlu0 12
  %6079 = vperm.xlu0 %6078, %v229
  %v6080 = vpop.permute.xlu0 %6079
  %6082 = vset.pattern.permute.xlu0 12
  %6083 = vperm.xlu0 %6082, %v230
  %v6084 = vpop.permute.xlu0 %6083
  %6086 = vset.pattern.permute.xlu0 12
  %6087 = vperm.xlu0 %6086, %v231
  %v6088 = vpop.permute.xlu0 %6087
  %6090 = vset.pattern.permute.xlu0 12
  %6091 = vperm.xlu0 %6090, %v232
  %v6092 = vpop.permute.xlu0 %6091
  %6094 = vset.pattern.permute.xlu0 12
  %6095 = vperm.xlu0 %6094, %v233
  %v6096 = vpop.permute.xlu0 %6095
  %v6098 = vsel %vm5906, %v5972, 0.0
  %v6099 = vsel %vm5907, %v5972, 0.0
  %v6100 = vsel %vm5908, %v5976, 0.0
  %v6101 = vsel %vm5909, %v5976, 0.0
  %v6102 = vsel %vm5910, %v5980, 0.0
  %v6103 = vsel %vm5911, %v5980, 0.0
  %v6104 = vsel %vm5912, %v5984, 0.0
  %v6105 = vsel %vm5913, %v5984, 0.0
  %v6106 = vsel %vm5914, %v5988, 0.0
  %v6107 = vsel %vm5915, %v5988, 0.0
  %v6108 = vsel %vm5916, %v5992, 0.0
  %v6109 = vsel %vm5917, %v5992, 0.0
  %v6110 = vsel %vm5918, %v5996, 0.0
  %v6111 = vsel %vm5919, %v5996, 0.0
  %v6112 = vsel %vm5920, %v6000, 0.0
  %v6113 = vsel %vm5921, %v6000, 0.0
  %v6114 = vsel %vm5922, %v6004, 0.0
  %v6115 = vsel %vm5923, %v6004, 0.0
  %v6116 = vsel %vm5924, %v6008, 0.0
  %v6117 = vsel %vm5925, %v6008, 0.0
  %v6118 = vsel %vm5926, %v6012, 0.0
  %v6119 = vsel %vm5927, %v6012, 0.0
  %v6120 = vsel %vm5928, %v6016, 0.0
  %v6121 = vsel %vm5929, %v6016, 0.0
  %v6122 = vsel %vm5930, %v6020, 0.0
  %v6123 = vsel %vm5931, %v6020, 0.0
  %v6124 = vsel %vm5932, %v6024, 0.0
  %v6125 = vsel %vm5933, %v6024, 0.0
  %v6126 = vsel %vm5934, %v6028, 0.0
  %v6127 = vsel %vm5935, %v6028, 0.0
  %v6128 = vsel %vm5936, %v6032, 0.0
  %v6129 = vsel %vm5937, %v6032, 0.0
  %v6130 = vsel %vm5938, %v6036, 0.0
  %v6131 = vsel %vm5939, %v6036, 0.0
  %v6132 = vsel %vm5940, %v6040, 0.0
  %v6133 = vsel %vm5941, %v6040, 0.0
  %v6134 = vsel %vm5942, %v6044, 0.0
  %v6135 = vsel %vm5943, %v6044, 0.0
  %v6136 = vsel %vm5944, %v6048, 0.0
  %v6137 = vsel %vm5945, %v6048, 0.0
  %v6138 = vsel %vm5946, %v6052, 0.0
  %v6139 = vsel %vm5947, %v6052, 0.0
  %v6140 = vsel %vm5948, %v6056, 0.0
  %v6141 = vsel %vm5949, %v6056, 0.0
  %v6142 = vsel %vm5950, %v6060, 0.0
  %v6143 = vsel %vm5951, %v6060, 0.0
  %v6144 = vsel %vm5952, %v6064, 0.0
  %v6145 = vsel %vm5953, %v6064, 0.0
  %v6146 = vsel %vm5954, %v6068, 0.0
  %v6147 = vsel %vm5955, %v6068, 0.0
  %v6148 = vsel %vm5956, %v6072, 0.0
  %v6149 = vsel %vm5957, %v6072, 0.0
  %v6150 = vsel %vm5958, %v6076, 0.0
  %v6151 = vsel %vm5959, %v6076, 0.0
  %v6152 = vsel %vm5960, %v6080, 0.0
  %v6153 = vsel %vm5961, %v6080, 0.0
  %v6154 = vsel %vm5962, %v6084, 0.0
  %v6155 = vsel %vm5963, %v6084, 0.0
  %v6156 = vsel %vm5964, %v6088, 0.0
  %v6157 = vsel %vm5965, %v6088, 0.0
  %v6158 = vsel %vm5966, %v6092, 0.0
  %v6159 = vsel %vm5967, %v6092, 0.0
  %v6160 = vsel %vm5968, %v6096, 0.0
  %v6161 = vsel %vm5969, %v6096, 0.0
  %v6162 = vadd.f32 %v5706, %v6098
  %v6163 = vadd.f32 %v5707, %v6099
  %v6164 = vadd.f32 %v5708, %v6100
  %v6165 = vadd.f32 %v5709, %v6101
  %v6166 = vadd.f32 %v5710, %v6102
  %v6167 = vadd.f32 %v5711, %v6103
  %v6168 = vadd.f32 %v5712, %v6104
  %v6169 = vadd.f32 %v5713, %v6105
  %v6170 = vadd.f32 %v5714, %v6106
  %v6171 = vadd.f32 %v5715, %v6107
  %v6172 = vadd.f32 %v5716, %v6108
  %v6173 = vadd.f32 %v5717, %v6109
  %v6174 = vadd.f32 %v5718, %v6110
  %v6175 = vadd.f32 %v5719, %v6111
  %v6176 = vadd.f32 %v5720, %v6112
  %v6177 = vadd.f32 %v5721, %v6113
  %v6178 = vadd.f32 %v5722, %v6114
  %v6179 = vadd.f32 %v5723, %v6115
  %v6180 = vadd.f32 %v5724, %v6116
  %v6181 = vadd.f32 %v5725, %v6117
  %v6182 = vadd.f32 %v5726, %v6118
  %v6183 = vadd.f32 %v5727, %v6119
  %v6184 = vadd.f32 %v5728, %v6120
  %v6185 = vadd.f32 %v5729, %v6121
  %v6186 = vadd.f32 %v5730, %v6122
  %v6187 = vadd.f32 %v5731, %v6123
  %v6188 = vadd.f32 %v5732, %v6124
  %v6189 = vadd.f32 %v5733, %v6125
  %v6190 = vadd.f32 %v5734, %v6126
  %v6191 = vadd.f32 %v5735, %v6127
  %v6192 = vadd.f32 %v5736, %v6128
  %v6193 = vadd.f32 %v5737, %v6129
  %v6194 = vadd.f32 %v5738, %v6130
  %v6195 = vadd.f32 %v5739, %v6131
  %v6196 = vadd.f32 %v5740, %v6132
  %v6197 = vadd.f32 %v5741, %v6133
  %v6198 = vadd.f32 %v5742, %v6134
  %v6199 = vadd.f32 %v5743, %v6135
  %v6200 = vadd.f32 %v5744, %v6136
  %v6201 = vadd.f32 %v5745, %v6137
  %v6202 = vadd.f32 %v5746, %v6138
  %v6203 = vadd.f32 %v5747, %v6139
  %v6204 = vadd.f32 %v5748, %v6140
  %v6205 = vadd.f32 %v5749, %v6141
  %v6206 = vadd.f32 %v5750, %v6142
  %v6207 = vadd.f32 %v5751, %v6143
  %v6208 = vadd.f32 %v5752, %v6144
  %v6209 = vadd.f32 %v5753, %v6145
  %v6210 = vadd.f32 %v5754, %v6146
  %v6211 = vadd.f32 %v5755, %v6147
  %v6212 = vadd.f32 %v5756, %v6148
  %v6213 = vadd.f32 %v5757, %v6149
  %v6214 = vadd.f32 %v5758, %v6150
  %v6215 = vadd.f32 %v5759, %v6151
  %v6216 = vadd.f32 %v5760, %v6152
  %v6217 = vadd.f32 %v5761, %v6153
  %v6218 = vadd.f32 %v5762, %v6154
  %v6219 = vadd.f32 %v5763, %v6155
  %v6220 = vadd.f32 %v5764, %v6156
  %v6221 = vadd.f32 %v5765, %v6157
  %v6222 = vadd.f32 %v5766, %v6158
  %v6223 = vadd.f32 %v5767, %v6159
  %v6224 = vadd.f32 %v5768, %v6160
  %v6225 = vadd.f32 %v5769, %v6161
  %6226 = vset.pattern.permute.xlu0 13
  %6227 = vperm.xlu0 %6226, %v16
  %v6228 = vpop.permute.xlu0 %6227
  %6230 = vset.pattern.permute.xlu0 13
  %6231 = vperm.xlu0 %6230, %v17
  %v6232 = vpop.permute.xlu0 %6231
  %6234 = vset.pattern.permute.xlu0 13
  %6235 = vperm.xlu0 %6234, %v18
  %v6236 = vpop.permute.xlu0 %6235
  %6238 = vset.pattern.permute.xlu0 13
  %6239 = vperm.xlu0 %6238, %v19
  %v6240 = vpop.permute.xlu0 %6239
  %6242 = vset.pattern.permute.xlu0 13
  %6243 = vperm.xlu0 %6242, %v20
  %v6244 = vpop.permute.xlu0 %6243
  %6246 = vset.pattern.permute.xlu0 13
  %6247 = vperm.xlu0 %6246, %v21
  %v6248 = vpop.permute.xlu0 %6247
  %6250 = vset.pattern.permute.xlu0 13
  %6251 = vperm.xlu0 %6250, %v22
  %v6252 = vpop.permute.xlu0 %6251
  %6254 = vset.pattern.permute.xlu0 13
  %6255 = vperm.xlu0 %6254, %v23
  %v6256 = vpop.permute.xlu0 %6255
  %6258 = vset.pattern.permute.xlu0 13
  %6259 = vperm.xlu0 %6258, %v24
  %v6260 = vpop.permute.xlu0 %6259
  %6262 = vset.pattern.permute.xlu0 13
  %6263 = vperm.xlu0 %6262, %v25
  %v6264 = vpop.permute.xlu0 %6263
  %6266 = vset.pattern.permute.xlu0 13
  %6267 = vperm.xlu0 %6266, %v26
  %v6268 = vpop.permute.xlu0 %6267
  %6270 = vset.pattern.permute.xlu0 13
  %6271 = vperm.xlu0 %6270, %v27
  %v6272 = vpop.permute.xlu0 %6271
  %6274 = vset.pattern.permute.xlu0 13
  %6275 = vperm.xlu0 %6274, %v28
  %v6276 = vpop.permute.xlu0 %6275
  %6278 = vset.pattern.permute.xlu0 13
  %6279 = vperm.xlu0 %6278, %v29
  %v6280 = vpop.permute.xlu0 %6279
  %6282 = vset.pattern.permute.xlu0 13
  %6283 = vperm.xlu0 %6282, %v30
  %v6284 = vpop.permute.xlu0 %6283
  %6286 = vset.pattern.permute.xlu0 13
  %6287 = vperm.xlu0 %6286, %v31
  %v6288 = vpop.permute.xlu0 %6287
  %6290 = vset.pattern.permute.xlu0 13
  %6291 = vperm.xlu0 %6290, %v32
  %v6292 = vpop.permute.xlu0 %6291
  %6294 = vset.pattern.permute.xlu0 13
  %6295 = vperm.xlu0 %6294, %v33
  %v6296 = vpop.permute.xlu0 %6295
  %6298 = vset.pattern.permute.xlu0 13
  %6299 = vperm.xlu0 %6298, %v34
  %v6300 = vpop.permute.xlu0 %6299
  %6302 = vset.pattern.permute.xlu0 13
  %6303 = vperm.xlu0 %6302, %v35
  %v6304 = vpop.permute.xlu0 %6303
  %6306 = vset.pattern.permute.xlu0 13
  %6307 = vperm.xlu0 %6306, %v36
  %v6308 = vpop.permute.xlu0 %6307
  %6310 = vset.pattern.permute.xlu0 13
  %6311 = vperm.xlu0 %6310, %v37
  %v6312 = vpop.permute.xlu0 %6311
  %6314 = vset.pattern.permute.xlu0 13
  %6315 = vperm.xlu0 %6314, %v38
  %v6316 = vpop.permute.xlu0 %6315
  %6318 = vset.pattern.permute.xlu0 13
  %6319 = vperm.xlu0 %6318, %v39
  %v6320 = vpop.permute.xlu0 %6319
  %6322 = vset.pattern.permute.xlu0 13
  %6323 = vperm.xlu0 %6322, %v40
  %v6324 = vpop.permute.xlu0 %6323
  %6326 = vset.pattern.permute.xlu0 13
  %6327 = vperm.xlu0 %6326, %v41
  %v6328 = vpop.permute.xlu0 %6327
  %6330 = vset.pattern.permute.xlu0 13
  %6331 = vperm.xlu0 %6330, %v42
  %v6332 = vpop.permute.xlu0 %6331
  %6334 = vset.pattern.permute.xlu0 13
  %6335 = vperm.xlu0 %6334, %v43
  %v6336 = vpop.permute.xlu0 %6335
  %6338 = vset.pattern.permute.xlu0 13
  %6339 = vperm.xlu0 %6338, %v44
  %v6340 = vpop.permute.xlu0 %6339
  %6342 = vset.pattern.permute.xlu0 13
  %6343 = vperm.xlu0 %6342, %v45
  %v6344 = vpop.permute.xlu0 %6343
  %6346 = vset.pattern.permute.xlu0 13
  %6347 = vperm.xlu0 %6346, %v46
  %v6348 = vpop.permute.xlu0 %6347
  %6350 = vset.pattern.permute.xlu0 13
  %6351 = vperm.xlu0 %6350, %v47
  %v6352 = vpop.permute.xlu0 %6351
  %v6354 = vlaneseq
  %v6355 = vshrl.u32 %v6354, 7
  %v6356 = vsub.s32 5, %v6355
  %v6357 = vrot.slane %v50, %v6356
  %v6358 = vlaneseq
  %v6359 = vshrl.u32 %v6358, 7
  %v6360 = vsub.s32 5, %v6359
  %v6361 = vrot.slane %v51, %v6360
  %vm6362 = vcmp.eq.f32.partialorder %v6228, %v6357
  %vm6363 = vcmp.eq.f32.partialorder %v6228, %v6361
  %vm6364 = vcmp.eq.f32.partialorder %v6232, %v6357
  %vm6365 = vcmp.eq.f32.partialorder %v6232, %v6361
  %vm6366 = vcmp.eq.f32.partialorder %v6236, %v6357
  %vm6367 = vcmp.eq.f32.partialorder %v6236, %v6361
  %vm6368 = vcmp.eq.f32.partialorder %v6240, %v6357
  %vm6369 = vcmp.eq.f32.partialorder %v6240, %v6361
  %vm6370 = vcmp.eq.f32.partialorder %v6244, %v6357
  %vm6371 = vcmp.eq.f32.partialorder %v6244, %v6361
  %vm6372 = vcmp.eq.f32.partialorder %v6248, %v6357
  %vm6373 = vcmp.eq.f32.partialorder %v6248, %v6361
  %vm6374 = vcmp.eq.f32.partialorder %v6252, %v6357
  %vm6375 = vcmp.eq.f32.partialorder %v6252, %v6361
  %vm6376 = vcmp.eq.f32.partialorder %v6256, %v6357
  %vm6377 = vcmp.eq.f32.partialorder %v6256, %v6361
  %vm6378 = vcmp.eq.f32.partialorder %v6260, %v6357
  %vm6379 = vcmp.eq.f32.partialorder %v6260, %v6361
  %vm6380 = vcmp.eq.f32.partialorder %v6264, %v6357
  %vm6381 = vcmp.eq.f32.partialorder %v6264, %v6361
  %vm6382 = vcmp.eq.f32.partialorder %v6268, %v6357
  %vm6383 = vcmp.eq.f32.partialorder %v6268, %v6361
  %vm6384 = vcmp.eq.f32.partialorder %v6272, %v6357
  %vm6385 = vcmp.eq.f32.partialorder %v6272, %v6361
  %vm6386 = vcmp.eq.f32.partialorder %v6276, %v6357
  %vm6387 = vcmp.eq.f32.partialorder %v6276, %v6361
  %vm6388 = vcmp.eq.f32.partialorder %v6280, %v6357
  %vm6389 = vcmp.eq.f32.partialorder %v6280, %v6361
  %vm6390 = vcmp.eq.f32.partialorder %v6284, %v6357
  %vm6391 = vcmp.eq.f32.partialorder %v6284, %v6361
  %vm6392 = vcmp.eq.f32.partialorder %v6288, %v6357
  %vm6393 = vcmp.eq.f32.partialorder %v6288, %v6361
  %vm6394 = vcmp.eq.f32.partialorder %v6292, %v6357
  %vm6395 = vcmp.eq.f32.partialorder %v6292, %v6361
  %vm6396 = vcmp.eq.f32.partialorder %v6296, %v6357
  %vm6397 = vcmp.eq.f32.partialorder %v6296, %v6361
  %vm6398 = vcmp.eq.f32.partialorder %v6300, %v6357
  %vm6399 = vcmp.eq.f32.partialorder %v6300, %v6361
  %vm6400 = vcmp.eq.f32.partialorder %v6304, %v6357
  %vm6401 = vcmp.eq.f32.partialorder %v6304, %v6361
  %vm6402 = vcmp.eq.f32.partialorder %v6308, %v6357
  %vm6403 = vcmp.eq.f32.partialorder %v6308, %v6361
  %vm6404 = vcmp.eq.f32.partialorder %v6312, %v6357
  %vm6405 = vcmp.eq.f32.partialorder %v6312, %v6361
  %vm6406 = vcmp.eq.f32.partialorder %v6316, %v6357
  %vm6407 = vcmp.eq.f32.partialorder %v6316, %v6361
  %vm6408 = vcmp.eq.f32.partialorder %v6320, %v6357
  %vm6409 = vcmp.eq.f32.partialorder %v6320, %v6361
  %vm6410 = vcmp.eq.f32.partialorder %v6324, %v6357
  %vm6411 = vcmp.eq.f32.partialorder %v6324, %v6361
  %vm6412 = vcmp.eq.f32.partialorder %v6328, %v6357
  %vm6413 = vcmp.eq.f32.partialorder %v6328, %v6361
  %vm6414 = vcmp.eq.f32.partialorder %v6332, %v6357
  %vm6415 = vcmp.eq.f32.partialorder %v6332, %v6361
  %vm6416 = vcmp.eq.f32.partialorder %v6336, %v6357
  %vm6417 = vcmp.eq.f32.partialorder %v6336, %v6361
  %vm6418 = vcmp.eq.f32.partialorder %v6340, %v6357
  %vm6419 = vcmp.eq.f32.partialorder %v6340, %v6361
  %vm6420 = vcmp.eq.f32.partialorder %v6344, %v6357
  %vm6421 = vcmp.eq.f32.partialorder %v6344, %v6361
  %vm6422 = vcmp.eq.f32.partialorder %v6348, %v6357
  %vm6423 = vcmp.eq.f32.partialorder %v6348, %v6361
  %vm6424 = vcmp.eq.f32.partialorder %v6352, %v6357
  %vm6425 = vcmp.eq.f32.partialorder %v6352, %v6361
  %6426 = vset.pattern.permute.xlu0 13
  %6427 = vperm.xlu0 %6426, %v202
  %v6428 = vpop.permute.xlu0 %6427
  %6430 = vset.pattern.permute.xlu0 13
  %6431 = vperm.xlu0 %6430, %v203
  %v6432 = vpop.permute.xlu0 %6431
  %6434 = vset.pattern.permute.xlu0 13
  %6435 = vperm.xlu0 %6434, %v204
  %v6436 = vpop.permute.xlu0 %6435
  %6438 = vset.pattern.permute.xlu0 13
  %6439 = vperm.xlu0 %6438, %v205
  %v6440 = vpop.permute.xlu0 %6439
  %6442 = vset.pattern.permute.xlu0 13
  %6443 = vperm.xlu0 %6442, %v206
  %v6444 = vpop.permute.xlu0 %6443
  %6446 = vset.pattern.permute.xlu0 13
  %6447 = vperm.xlu0 %6446, %v207
  %v6448 = vpop.permute.xlu0 %6447
  %6450 = vset.pattern.permute.xlu0 13
  %6451 = vperm.xlu0 %6450, %v208
  %v6452 = vpop.permute.xlu0 %6451
  %6454 = vset.pattern.permute.xlu0 13
  %6455 = vperm.xlu0 %6454, %v209
  %v6456 = vpop.permute.xlu0 %6455
  %6458 = vset.pattern.permute.xlu0 13
  %6459 = vperm.xlu0 %6458, %v210
  %v6460 = vpop.permute.xlu0 %6459
  %6462 = vset.pattern.permute.xlu0 13
  %6463 = vperm.xlu0 %6462, %v211
  %v6464 = vpop.permute.xlu0 %6463
  %6466 = vset.pattern.permute.xlu0 13
  %6467 = vperm.xlu0 %6466, %v212
  %v6468 = vpop.permute.xlu0 %6467
  %6470 = vset.pattern.permute.xlu0 13
  %6471 = vperm.xlu0 %6470, %v213
  %v6472 = vpop.permute.xlu0 %6471
  %6474 = vset.pattern.permute.xlu0 13
  %6475 = vperm.xlu0 %6474, %v214
  %v6476 = vpop.permute.xlu0 %6475
  %6478 = vset.pattern.permute.xlu0 13
  %6479 = vperm.xlu0 %6478, %v215
  %v6480 = vpop.permute.xlu0 %6479
  %6482 = vset.pattern.permute.xlu0 13
  %6483 = vperm.xlu0 %6482, %v216
  %v6484 = vpop.permute.xlu0 %6483
  %6486 = vset.pattern.permute.xlu0 13
  %6487 = vperm.xlu0 %6486, %v217
  %v6488 = vpop.permute.xlu0 %6487
  %6490 = vset.pattern.permute.xlu0 13
  %6491 = vperm.xlu0 %6490, %v218
  %v6492 = vpop.permute.xlu0 %6491
  %6494 = vset.pattern.permute.xlu0 13
  %6495 = vperm.xlu0 %6494, %v219
  %v6496 = vpop.permute.xlu0 %6495
  %6498 = vset.pattern.permute.xlu0 13
  %6499 = vperm.xlu0 %6498, %v220
  %v6500 = vpop.permute.xlu0 %6499
  %6502 = vset.pattern.permute.xlu0 13
  %6503 = vperm.xlu0 %6502, %v221
  %v6504 = vpop.permute.xlu0 %6503
  %6506 = vset.pattern.permute.xlu0 13
  %6507 = vperm.xlu0 %6506, %v222
  %v6508 = vpop.permute.xlu0 %6507
  %6510 = vset.pattern.permute.xlu0 13
  %6511 = vperm.xlu0 %6510, %v223
  %v6512 = vpop.permute.xlu0 %6511
  %6514 = vset.pattern.permute.xlu0 13
  %6515 = vperm.xlu0 %6514, %v224
  %v6516 = vpop.permute.xlu0 %6515
  %6518 = vset.pattern.permute.xlu0 13
  %6519 = vperm.xlu0 %6518, %v225
  %v6520 = vpop.permute.xlu0 %6519
  %6522 = vset.pattern.permute.xlu0 13
  %6523 = vperm.xlu0 %6522, %v226
  %v6524 = vpop.permute.xlu0 %6523
  %6526 = vset.pattern.permute.xlu0 13
  %6527 = vperm.xlu0 %6526, %v227
  %v6528 = vpop.permute.xlu0 %6527
  %6530 = vset.pattern.permute.xlu0 13
  %6531 = vperm.xlu0 %6530, %v228
  %v6532 = vpop.permute.xlu0 %6531
  %6534 = vset.pattern.permute.xlu0 13
  %6535 = vperm.xlu0 %6534, %v229
  %v6536 = vpop.permute.xlu0 %6535
  %6538 = vset.pattern.permute.xlu0 13
  %6539 = vperm.xlu0 %6538, %v230
  %v6540 = vpop.permute.xlu0 %6539
  %6542 = vset.pattern.permute.xlu0 13
  %6543 = vperm.xlu0 %6542, %v231
  %v6544 = vpop.permute.xlu0 %6543
  %6546 = vset.pattern.permute.xlu0 13
  %6547 = vperm.xlu0 %6546, %v232
  %v6548 = vpop.permute.xlu0 %6547
  %6550 = vset.pattern.permute.xlu0 13
  %6551 = vperm.xlu0 %6550, %v233
  %v6552 = vpop.permute.xlu0 %6551
  %v6554 = vsel %vm6362, %v6428, 0.0
  %v6555 = vsel %vm6363, %v6428, 0.0
  %v6556 = vsel %vm6364, %v6432, 0.0
  %v6557 = vsel %vm6365, %v6432, 0.0
  %v6558 = vsel %vm6366, %v6436, 0.0
  %v6559 = vsel %vm6367, %v6436, 0.0
  %v6560 = vsel %vm6368, %v6440, 0.0
  %v6561 = vsel %vm6369, %v6440, 0.0
  %v6562 = vsel %vm6370, %v6444, 0.0
  %v6563 = vsel %vm6371, %v6444, 0.0
  %v6564 = vsel %vm6372, %v6448, 0.0
  %v6565 = vsel %vm6373, %v6448, 0.0
  %v6566 = vsel %vm6374, %v6452, 0.0
  %v6567 = vsel %vm6375, %v6452, 0.0
  %v6568 = vsel %vm6376, %v6456, 0.0
  %v6569 = vsel %vm6377, %v6456, 0.0
  %v6570 = vsel %vm6378, %v6460, 0.0
  %v6571 = vsel %vm6379, %v6460, 0.0
  %v6572 = vsel %vm6380, %v6464, 0.0
  %v6573 = vsel %vm6381, %v6464, 0.0
  %v6574 = vsel %vm6382, %v6468, 0.0
  %v6575 = vsel %vm6383, %v6468, 0.0
  %v6576 = vsel %vm6384, %v6472, 0.0
  %v6577 = vsel %vm6385, %v6472, 0.0
  %v6578 = vsel %vm6386, %v6476, 0.0
  %v6579 = vsel %vm6387, %v6476, 0.0
  %v6580 = vsel %vm6388, %v6480, 0.0
  %v6581 = vsel %vm6389, %v6480, 0.0
  %v6582 = vsel %vm6390, %v6484, 0.0
  %v6583 = vsel %vm6391, %v6484, 0.0
  %v6584 = vsel %vm6392, %v6488, 0.0
  %v6585 = vsel %vm6393, %v6488, 0.0
  %v6586 = vsel %vm6394, %v6492, 0.0
  %v6587 = vsel %vm6395, %v6492, 0.0
  %v6588 = vsel %vm6396, %v6496, 0.0
  %v6589 = vsel %vm6397, %v6496, 0.0
  %v6590 = vsel %vm6398, %v6500, 0.0
  %v6591 = vsel %vm6399, %v6500, 0.0
  %v6592 = vsel %vm6400, %v6504, 0.0
  %v6593 = vsel %vm6401, %v6504, 0.0
  %v6594 = vsel %vm6402, %v6508, 0.0
  %v6595 = vsel %vm6403, %v6508, 0.0
  %v6596 = vsel %vm6404, %v6512, 0.0
  %v6597 = vsel %vm6405, %v6512, 0.0
  %v6598 = vsel %vm6406, %v6516, 0.0
  %v6599 = vsel %vm6407, %v6516, 0.0
  %v6600 = vsel %vm6408, %v6520, 0.0
  %v6601 = vsel %vm6409, %v6520, 0.0
  %v6602 = vsel %vm6410, %v6524, 0.0
  %v6603 = vsel %vm6411, %v6524, 0.0
  %v6604 = vsel %vm6412, %v6528, 0.0
  %v6605 = vsel %vm6413, %v6528, 0.0
  %v6606 = vsel %vm6414, %v6532, 0.0
  %v6607 = vsel %vm6415, %v6532, 0.0
  %v6608 = vsel %vm6416, %v6536, 0.0
  %v6609 = vsel %vm6417, %v6536, 0.0
  %v6610 = vsel %vm6418, %v6540, 0.0
  %v6611 = vsel %vm6419, %v6540, 0.0
  %v6612 = vsel %vm6420, %v6544, 0.0
  %v6613 = vsel %vm6421, %v6544, 0.0
  %v6614 = vsel %vm6422, %v6548, 0.0
  %v6615 = vsel %vm6423, %v6548, 0.0
  %v6616 = vsel %vm6424, %v6552, 0.0
  %v6617 = vsel %vm6425, %v6552, 0.0
  %v6618 = vadd.f32 %v6162, %v6554
  %v6619 = vadd.f32 %v6163, %v6555
  %v6620 = vadd.f32 %v6164, %v6556
  %v6621 = vadd.f32 %v6165, %v6557
  %v6622 = vadd.f32 %v6166, %v6558
  %v6623 = vadd.f32 %v6167, %v6559
  %v6624 = vadd.f32 %v6168, %v6560
  %v6625 = vadd.f32 %v6169, %v6561
  %v6626 = vadd.f32 %v6170, %v6562
  %v6627 = vadd.f32 %v6171, %v6563
  %v6628 = vadd.f32 %v6172, %v6564
  %v6629 = vadd.f32 %v6173, %v6565
  %v6630 = vadd.f32 %v6174, %v6566
  %v6631 = vadd.f32 %v6175, %v6567
  %v6632 = vadd.f32 %v6176, %v6568
  %v6633 = vadd.f32 %v6177, %v6569
  %v6634 = vadd.f32 %v6178, %v6570
  %v6635 = vadd.f32 %v6179, %v6571
  %v6636 = vadd.f32 %v6180, %v6572
  %v6637 = vadd.f32 %v6181, %v6573
  %v6638 = vadd.f32 %v6182, %v6574
  %v6639 = vadd.f32 %v6183, %v6575
  %v6640 = vadd.f32 %v6184, %v6576
  %v6641 = vadd.f32 %v6185, %v6577
  %v6642 = vadd.f32 %v6186, %v6578
  %v6643 = vadd.f32 %v6187, %v6579
  %v6644 = vadd.f32 %v6188, %v6580
  %v6645 = vadd.f32 %v6189, %v6581
  %v6646 = vadd.f32 %v6190, %v6582
  %v6647 = vadd.f32 %v6191, %v6583
  %v6648 = vadd.f32 %v6192, %v6584
  %v6649 = vadd.f32 %v6193, %v6585
  %v6650 = vadd.f32 %v6194, %v6586
  %v6651 = vadd.f32 %v6195, %v6587
  %v6652 = vadd.f32 %v6196, %v6588
  %v6653 = vadd.f32 %v6197, %v6589
  %v6654 = vadd.f32 %v6198, %v6590
  %v6655 = vadd.f32 %v6199, %v6591
  %v6656 = vadd.f32 %v6200, %v6592
  %v6657 = vadd.f32 %v6201, %v6593
  %v6658 = vadd.f32 %v6202, %v6594
  %v6659 = vadd.f32 %v6203, %v6595
  %v6660 = vadd.f32 %v6204, %v6596
  %v6661 = vadd.f32 %v6205, %v6597
  %v6662 = vadd.f32 %v6206, %v6598
  %v6663 = vadd.f32 %v6207, %v6599
  %v6664 = vadd.f32 %v6208, %v6600
  %v6665 = vadd.f32 %v6209, %v6601
  %v6666 = vadd.f32 %v6210, %v6602
  %v6667 = vadd.f32 %v6211, %v6603
  %v6668 = vadd.f32 %v6212, %v6604
  %v6669 = vadd.f32 %v6213, %v6605
  %v6670 = vadd.f32 %v6214, %v6606
  %v6671 = vadd.f32 %v6215, %v6607
  %v6672 = vadd.f32 %v6216, %v6608
  %v6673 = vadd.f32 %v6217, %v6609
  %v6674 = vadd.f32 %v6218, %v6610
  %v6675 = vadd.f32 %v6219, %v6611
  %v6676 = vadd.f32 %v6220, %v6612
  %v6677 = vadd.f32 %v6221, %v6613
  %v6678 = vadd.f32 %v6222, %v6614
  %v6679 = vadd.f32 %v6223, %v6615
  %v6680 = vadd.f32 %v6224, %v6616
  %v6681 = vadd.f32 %v6225, %v6617
  %6682 = vset.pattern.permute.xlu0 14
  %6683 = vperm.xlu0 %6682, %v16
  %v6684 = vpop.permute.xlu0 %6683
  %6686 = vset.pattern.permute.xlu0 14
  %6687 = vperm.xlu0 %6686, %v17
  %v6688 = vpop.permute.xlu0 %6687
  %6690 = vset.pattern.permute.xlu0 14
  %6691 = vperm.xlu0 %6690, %v18
  %v6692 = vpop.permute.xlu0 %6691
  %6694 = vset.pattern.permute.xlu0 14
  %6695 = vperm.xlu0 %6694, %v19
  %v6696 = vpop.permute.xlu0 %6695
  %6698 = vset.pattern.permute.xlu0 14
  %6699 = vperm.xlu0 %6698, %v20
  %v6700 = vpop.permute.xlu0 %6699
  %6702 = vset.pattern.permute.xlu0 14
  %6703 = vperm.xlu0 %6702, %v21
  %v6704 = vpop.permute.xlu0 %6703
  %6706 = vset.pattern.permute.xlu0 14
  %6707 = vperm.xlu0 %6706, %v22
  %v6708 = vpop.permute.xlu0 %6707
  %6710 = vset.pattern.permute.xlu0 14
  %6711 = vperm.xlu0 %6710, %v23
  %v6712 = vpop.permute.xlu0 %6711
  %6714 = vset.pattern.permute.xlu0 14
  %6715 = vperm.xlu0 %6714, %v24
  %v6716 = vpop.permute.xlu0 %6715
  %6718 = vset.pattern.permute.xlu0 14
  %6719 = vperm.xlu0 %6718, %v25
  %v6720 = vpop.permute.xlu0 %6719
  %6722 = vset.pattern.permute.xlu0 14
  %6723 = vperm.xlu0 %6722, %v26
  %v6724 = vpop.permute.xlu0 %6723
  %6726 = vset.pattern.permute.xlu0 14
  %6727 = vperm.xlu0 %6726, %v27
  %v6728 = vpop.permute.xlu0 %6727
  %6730 = vset.pattern.permute.xlu0 14
  %6731 = vperm.xlu0 %6730, %v28
  %v6732 = vpop.permute.xlu0 %6731
  %6734 = vset.pattern.permute.xlu0 14
  %6735 = vperm.xlu0 %6734, %v29
  %v6736 = vpop.permute.xlu0 %6735
  %6738 = vset.pattern.permute.xlu0 14
  %6739 = vperm.xlu0 %6738, %v30
  %v6740 = vpop.permute.xlu0 %6739
  %6742 = vset.pattern.permute.xlu0 14
  %6743 = vperm.xlu0 %6742, %v31
  %v6744 = vpop.permute.xlu0 %6743
  %6746 = vset.pattern.permute.xlu0 14
  %6747 = vperm.xlu0 %6746, %v32
  %v6748 = vpop.permute.xlu0 %6747
  %6750 = vset.pattern.permute.xlu0 14
  %6751 = vperm.xlu0 %6750, %v33
  %v6752 = vpop.permute.xlu0 %6751
  %6754 = vset.pattern.permute.xlu0 14
  %6755 = vperm.xlu0 %6754, %v34
  %v6756 = vpop.permute.xlu0 %6755
  %6758 = vset.pattern.permute.xlu0 14
  %6759 = vperm.xlu0 %6758, %v35
  %v6760 = vpop.permute.xlu0 %6759
  %6762 = vset.pattern.permute.xlu0 14
  %6763 = vperm.xlu0 %6762, %v36
  %v6764 = vpop.permute.xlu0 %6763
  %6766 = vset.pattern.permute.xlu0 14
  %6767 = vperm.xlu0 %6766, %v37
  %v6768 = vpop.permute.xlu0 %6767
  %6770 = vset.pattern.permute.xlu0 14
  %6771 = vperm.xlu0 %6770, %v38
  %v6772 = vpop.permute.xlu0 %6771
  %6774 = vset.pattern.permute.xlu0 14
  %6775 = vperm.xlu0 %6774, %v39
  %v6776 = vpop.permute.xlu0 %6775
  %6778 = vset.pattern.permute.xlu0 14
  %6779 = vperm.xlu0 %6778, %v40
  %v6780 = vpop.permute.xlu0 %6779
  %6782 = vset.pattern.permute.xlu0 14
  %6783 = vperm.xlu0 %6782, %v41
  %v6784 = vpop.permute.xlu0 %6783
  %6786 = vset.pattern.permute.xlu0 14
  %6787 = vperm.xlu0 %6786, %v42
  %v6788 = vpop.permute.xlu0 %6787
  %6790 = vset.pattern.permute.xlu0 14
  %6791 = vperm.xlu0 %6790, %v43
  %v6792 = vpop.permute.xlu0 %6791
  %6794 = vset.pattern.permute.xlu0 14
  %6795 = vperm.xlu0 %6794, %v44
  %v6796 = vpop.permute.xlu0 %6795
  %6798 = vset.pattern.permute.xlu0 14
  %6799 = vperm.xlu0 %6798, %v45
  %v6800 = vpop.permute.xlu0 %6799
  %6802 = vset.pattern.permute.xlu0 14
  %6803 = vperm.xlu0 %6802, %v46
  %v6804 = vpop.permute.xlu0 %6803
  %6806 = vset.pattern.permute.xlu0 14
  %6807 = vperm.xlu0 %6806, %v47
  %v6808 = vpop.permute.xlu0 %6807
  %v6810 = vlaneseq
  %v6811 = vshrl.u32 %v6810, 7
  %v6812 = vsub.s32 6, %v6811
  %v6813 = vrot.slane %v50, %v6812
  %v6814 = vlaneseq
  %v6815 = vshrl.u32 %v6814, 7
  %v6816 = vsub.s32 6, %v6815
  %v6817 = vrot.slane %v51, %v6816
  %vm6818 = vcmp.eq.f32.partialorder %v6684, %v6813
  %vm6819 = vcmp.eq.f32.partialorder %v6684, %v6817
  %vm6820 = vcmp.eq.f32.partialorder %v6688, %v6813
  %vm6821 = vcmp.eq.f32.partialorder %v6688, %v6817
  %vm6822 = vcmp.eq.f32.partialorder %v6692, %v6813
  %vm6823 = vcmp.eq.f32.partialorder %v6692, %v6817
  %vm6824 = vcmp.eq.f32.partialorder %v6696, %v6813
  %vm6825 = vcmp.eq.f32.partialorder %v6696, %v6817
  %vm6826 = vcmp.eq.f32.partialorder %v6700, %v6813
  %vm6827 = vcmp.eq.f32.partialorder %v6700, %v6817
  %vm6828 = vcmp.eq.f32.partialorder %v6704, %v6813
  %vm6829 = vcmp.eq.f32.partialorder %v6704, %v6817
  %vm6830 = vcmp.eq.f32.partialorder %v6708, %v6813
  %vm6831 = vcmp.eq.f32.partialorder %v6708, %v6817
  %vm6832 = vcmp.eq.f32.partialorder %v6712, %v6813
  %vm6833 = vcmp.eq.f32.partialorder %v6712, %v6817
  %vm6834 = vcmp.eq.f32.partialorder %v6716, %v6813
  %vm6835 = vcmp.eq.f32.partialorder %v6716, %v6817
  %vm6836 = vcmp.eq.f32.partialorder %v6720, %v6813
  %vm6837 = vcmp.eq.f32.partialorder %v6720, %v6817
  %vm6838 = vcmp.eq.f32.partialorder %v6724, %v6813
  %vm6839 = vcmp.eq.f32.partialorder %v6724, %v6817
  %vm6840 = vcmp.eq.f32.partialorder %v6728, %v6813
  %vm6841 = vcmp.eq.f32.partialorder %v6728, %v6817
  %vm6842 = vcmp.eq.f32.partialorder %v6732, %v6813
  %vm6843 = vcmp.eq.f32.partialorder %v6732, %v6817
  %vm6844 = vcmp.eq.f32.partialorder %v6736, %v6813
  %vm6845 = vcmp.eq.f32.partialorder %v6736, %v6817
  %vm6846 = vcmp.eq.f32.partialorder %v6740, %v6813
  %vm6847 = vcmp.eq.f32.partialorder %v6740, %v6817
  %vm6848 = vcmp.eq.f32.partialorder %v6744, %v6813
  %vm6849 = vcmp.eq.f32.partialorder %v6744, %v6817
  %vm6850 = vcmp.eq.f32.partialorder %v6748, %v6813
  %vm6851 = vcmp.eq.f32.partialorder %v6748, %v6817
  %vm6852 = vcmp.eq.f32.partialorder %v6752, %v6813
  %vm6853 = vcmp.eq.f32.partialorder %v6752, %v6817
  %vm6854 = vcmp.eq.f32.partialorder %v6756, %v6813
  %vm6855 = vcmp.eq.f32.partialorder %v6756, %v6817
  %vm6856 = vcmp.eq.f32.partialorder %v6760, %v6813
  %vm6857 = vcmp.eq.f32.partialorder %v6760, %v6817
  %vm6858 = vcmp.eq.f32.partialorder %v6764, %v6813
  %vm6859 = vcmp.eq.f32.partialorder %v6764, %v6817
  %vm6860 = vcmp.eq.f32.partialorder %v6768, %v6813
  %vm6861 = vcmp.eq.f32.partialorder %v6768, %v6817
  %vm6862 = vcmp.eq.f32.partialorder %v6772, %v6813
  %vm6863 = vcmp.eq.f32.partialorder %v6772, %v6817
  %vm6864 = vcmp.eq.f32.partialorder %v6776, %v6813
  %vm6865 = vcmp.eq.f32.partialorder %v6776, %v6817
  %vm6866 = vcmp.eq.f32.partialorder %v6780, %v6813
  %vm6867 = vcmp.eq.f32.partialorder %v6780, %v6817
  %vm6868 = vcmp.eq.f32.partialorder %v6784, %v6813
  %vm6869 = vcmp.eq.f32.partialorder %v6784, %v6817
  %vm6870 = vcmp.eq.f32.partialorder %v6788, %v6813
  %vm6871 = vcmp.eq.f32.partialorder %v6788, %v6817
  %vm6872 = vcmp.eq.f32.partialorder %v6792, %v6813
  %vm6873 = vcmp.eq.f32.partialorder %v6792, %v6817
  %vm6874 = vcmp.eq.f32.partialorder %v6796, %v6813
  %vm6875 = vcmp.eq.f32.partialorder %v6796, %v6817
  %vm6876 = vcmp.eq.f32.partialorder %v6800, %v6813
  %vm6877 = vcmp.eq.f32.partialorder %v6800, %v6817
  %vm6878 = vcmp.eq.f32.partialorder %v6804, %v6813
  %vm6879 = vcmp.eq.f32.partialorder %v6804, %v6817
  %vm6880 = vcmp.eq.f32.partialorder %v6808, %v6813
  %vm6881 = vcmp.eq.f32.partialorder %v6808, %v6817
  %6882 = vset.pattern.permute.xlu0 14
  %6883 = vperm.xlu0 %6882, %v202
  %v6884 = vpop.permute.xlu0 %6883
  %6886 = vset.pattern.permute.xlu0 14
  %6887 = vperm.xlu0 %6886, %v203
  %v6888 = vpop.permute.xlu0 %6887
  %6890 = vset.pattern.permute.xlu0 14
  %6891 = vperm.xlu0 %6890, %v204
  %v6892 = vpop.permute.xlu0 %6891
  %6894 = vset.pattern.permute.xlu0 14
  %6895 = vperm.xlu0 %6894, %v205
  %v6896 = vpop.permute.xlu0 %6895
  %6898 = vset.pattern.permute.xlu0 14
  %6899 = vperm.xlu0 %6898, %v206
  %v6900 = vpop.permute.xlu0 %6899
  %6902 = vset.pattern.permute.xlu0 14
  %6903 = vperm.xlu0 %6902, %v207
  %v6904 = vpop.permute.xlu0 %6903
  %6906 = vset.pattern.permute.xlu0 14
  %6907 = vperm.xlu0 %6906, %v208
  %v6908 = vpop.permute.xlu0 %6907
  %6910 = vset.pattern.permute.xlu0 14
  %6911 = vperm.xlu0 %6910, %v209
  %v6912 = vpop.permute.xlu0 %6911
  %6914 = vset.pattern.permute.xlu0 14
  %6915 = vperm.xlu0 %6914, %v210
  %v6916 = vpop.permute.xlu0 %6915
  %6918 = vset.pattern.permute.xlu0 14
  %6919 = vperm.xlu0 %6918, %v211
  %v6920 = vpop.permute.xlu0 %6919
  %6922 = vset.pattern.permute.xlu0 14
  %6923 = vperm.xlu0 %6922, %v212
  %v6924 = vpop.permute.xlu0 %6923
  %6926 = vset.pattern.permute.xlu0 14
  %6927 = vperm.xlu0 %6926, %v213
  %v6928 = vpop.permute.xlu0 %6927
  %6930 = vset.pattern.permute.xlu0 14
  %6931 = vperm.xlu0 %6930, %v214
  %v6932 = vpop.permute.xlu0 %6931
  %6934 = vset.pattern.permute.xlu0 14
  %6935 = vperm.xlu0 %6934, %v215
  %v6936 = vpop.permute.xlu0 %6935
  %6938 = vset.pattern.permute.xlu0 14
  %6939 = vperm.xlu0 %6938, %v216
  %v6940 = vpop.permute.xlu0 %6939
  %6942 = vset.pattern.permute.xlu0 14
  %6943 = vperm.xlu0 %6942, %v217
  %v6944 = vpop.permute.xlu0 %6943
  %6946 = vset.pattern.permute.xlu0 14
  %6947 = vperm.xlu0 %6946, %v218
  %v6948 = vpop.permute.xlu0 %6947
  %6950 = vset.pattern.permute.xlu0 14
  %6951 = vperm.xlu0 %6950, %v219
  %v6952 = vpop.permute.xlu0 %6951
  %6954 = vset.pattern.permute.xlu0 14
  %6955 = vperm.xlu0 %6954, %v220
  %v6956 = vpop.permute.xlu0 %6955
  %6958 = vset.pattern.permute.xlu0 14
  %6959 = vperm.xlu0 %6958, %v221
  %v6960 = vpop.permute.xlu0 %6959
  %6962 = vset.pattern.permute.xlu0 14
  %6963 = vperm.xlu0 %6962, %v222
  %v6964 = vpop.permute.xlu0 %6963
  %6966 = vset.pattern.permute.xlu0 14
  %6967 = vperm.xlu0 %6966, %v223
  %v6968 = vpop.permute.xlu0 %6967
  %6970 = vset.pattern.permute.xlu0 14
  %6971 = vperm.xlu0 %6970, %v224
  %v6972 = vpop.permute.xlu0 %6971
  %6974 = vset.pattern.permute.xlu0 14
  %6975 = vperm.xlu0 %6974, %v225
  %v6976 = vpop.permute.xlu0 %6975
  %6978 = vset.pattern.permute.xlu0 14
  %6979 = vperm.xlu0 %6978, %v226
  %v6980 = vpop.permute.xlu0 %6979
  %6982 = vset.pattern.permute.xlu0 14
  %6983 = vperm.xlu0 %6982, %v227
  %v6984 = vpop.permute.xlu0 %6983
  %6986 = vset.pattern.permute.xlu0 14
  %6987 = vperm.xlu0 %6986, %v228
  %v6988 = vpop.permute.xlu0 %6987
  %6990 = vset.pattern.permute.xlu0 14
  %6991 = vperm.xlu0 %6990, %v229
  %v6992 = vpop.permute.xlu0 %6991
  %6994 = vset.pattern.permute.xlu0 14
  %6995 = vperm.xlu0 %6994, %v230
  %v6996 = vpop.permute.xlu0 %6995
  %6998 = vset.pattern.permute.xlu0 14
  %6999 = vperm.xlu0 %6998, %v231
  %v7000 = vpop.permute.xlu0 %6999
  %7002 = vset.pattern.permute.xlu0 14
  %7003 = vperm.xlu0 %7002, %v232
  %v7004 = vpop.permute.xlu0 %7003
  %7006 = vset.pattern.permute.xlu0 14
  %7007 = vperm.xlu0 %7006, %v233
  %v7008 = vpop.permute.xlu0 %7007
  %v7010 = vsel %vm6818, %v6884, 0.0
  %v7011 = vsel %vm6819, %v6884, 0.0
  %v7012 = vsel %vm6820, %v6888, 0.0
  %v7013 = vsel %vm6821, %v6888, 0.0
  %v7014 = vsel %vm6822, %v6892, 0.0
  %v7015 = vsel %vm6823, %v6892, 0.0
  %v7016 = vsel %vm6824, %v6896, 0.0
  %v7017 = vsel %vm6825, %v6896, 0.0
  %v7018 = vsel %vm6826, %v6900, 0.0
  %v7019 = vsel %vm6827, %v6900, 0.0
  %v7020 = vsel %vm6828, %v6904, 0.0
  %v7021 = vsel %vm6829, %v6904, 0.0
  %v7022 = vsel %vm6830, %v6908, 0.0
  %v7023 = vsel %vm6831, %v6908, 0.0
  %v7024 = vsel %vm6832, %v6912, 0.0
  %v7025 = vsel %vm6833, %v6912, 0.0
  %v7026 = vsel %vm6834, %v6916, 0.0
  %v7027 = vsel %vm6835, %v6916, 0.0
  %v7028 = vsel %vm6836, %v6920, 0.0
  %v7029 = vsel %vm6837, %v6920, 0.0
  %v7030 = vsel %vm6838, %v6924, 0.0
  %v7031 = vsel %vm6839, %v6924, 0.0
  %v7032 = vsel %vm6840, %v6928, 0.0
  %v7033 = vsel %vm6841, %v6928, 0.0
  %v7034 = vsel %vm6842, %v6932, 0.0
  %v7035 = vsel %vm6843, %v6932, 0.0
  %v7036 = vsel %vm6844, %v6936, 0.0
  %v7037 = vsel %vm6845, %v6936, 0.0
  %v7038 = vsel %vm6846, %v6940, 0.0
  %v7039 = vsel %vm6847, %v6940, 0.0
  %v7040 = vsel %vm6848, %v6944, 0.0
  %v7041 = vsel %vm6849, %v6944, 0.0
  %v7042 = vsel %vm6850, %v6948, 0.0
  %v7043 = vsel %vm6851, %v6948, 0.0
  %v7044 = vsel %vm6852, %v6952, 0.0
  %v7045 = vsel %vm6853, %v6952, 0.0
  %v7046 = vsel %vm6854, %v6956, 0.0
  %v7047 = vsel %vm6855, %v6956, 0.0
  %v7048 = vsel %vm6856, %v6960, 0.0
  %v7049 = vsel %vm6857, %v6960, 0.0
  %v7050 = vsel %vm6858, %v6964, 0.0
  %v7051 = vsel %vm6859, %v6964, 0.0
  %v7052 = vsel %vm6860, %v6968, 0.0
  %v7053 = vsel %vm6861, %v6968, 0.0
  %v7054 = vsel %vm6862, %v6972, 0.0
  %v7055 = vsel %vm6863, %v6972, 0.0
  %v7056 = vsel %vm6864, %v6976, 0.0
  %v7057 = vsel %vm6865, %v6976, 0.0
  %v7058 = vsel %vm6866, %v6980, 0.0
  %v7059 = vsel %vm6867, %v6980, 0.0
  %v7060 = vsel %vm6868, %v6984, 0.0
  %v7061 = vsel %vm6869, %v6984, 0.0
  %v7062 = vsel %vm6870, %v6988, 0.0
  %v7063 = vsel %vm6871, %v6988, 0.0
  %v7064 = vsel %vm6872, %v6992, 0.0
  %v7065 = vsel %vm6873, %v6992, 0.0
  %v7066 = vsel %vm6874, %v6996, 0.0
  %v7067 = vsel %vm6875, %v6996, 0.0
  %v7068 = vsel %vm6876, %v7000, 0.0
  %v7069 = vsel %vm6877, %v7000, 0.0
  %v7070 = vsel %vm6878, %v7004, 0.0
  %v7071 = vsel %vm6879, %v7004, 0.0
  %v7072 = vsel %vm6880, %v7008, 0.0
  %v7073 = vsel %vm6881, %v7008, 0.0
  %v7074 = vadd.f32 %v6618, %v7010
  %v7075 = vadd.f32 %v6619, %v7011
  %v7076 = vadd.f32 %v6620, %v7012
  %v7077 = vadd.f32 %v6621, %v7013
  %v7078 = vadd.f32 %v6622, %v7014
  %v7079 = vadd.f32 %v6623, %v7015
  %v7080 = vadd.f32 %v6624, %v7016
  %v7081 = vadd.f32 %v6625, %v7017
  %v7082 = vadd.f32 %v6626, %v7018
  %v7083 = vadd.f32 %v6627, %v7019
  %v7084 = vadd.f32 %v6628, %v7020
  %v7085 = vadd.f32 %v6629, %v7021
  %v7086 = vadd.f32 %v6630, %v7022
  %v7087 = vadd.f32 %v6631, %v7023
  %v7088 = vadd.f32 %v6632, %v7024
  %v7089 = vadd.f32 %v6633, %v7025
  %v7090 = vadd.f32 %v6634, %v7026
  %v7091 = vadd.f32 %v6635, %v7027
  %v7092 = vadd.f32 %v6636, %v7028
  %v7093 = vadd.f32 %v6637, %v7029
  %v7094 = vadd.f32 %v6638, %v7030
  %v7095 = vadd.f32 %v6639, %v7031
  %v7096 = vadd.f32 %v6640, %v7032
  %v7097 = vadd.f32 %v6641, %v7033
  %v7098 = vadd.f32 %v6642, %v7034
  %v7099 = vadd.f32 %v6643, %v7035
  %v7100 = vadd.f32 %v6644, %v7036
  %v7101 = vadd.f32 %v6645, %v7037
  %v7102 = vadd.f32 %v6646, %v7038
  %v7103 = vadd.f32 %v6647, %v7039
  %v7104 = vadd.f32 %v6648, %v7040
  %v7105 = vadd.f32 %v6649, %v7041
  %v7106 = vadd.f32 %v6650, %v7042
  %v7107 = vadd.f32 %v6651, %v7043
  %v7108 = vadd.f32 %v6652, %v7044
  %v7109 = vadd.f32 %v6653, %v7045
  %v7110 = vadd.f32 %v6654, %v7046
  %v7111 = vadd.f32 %v6655, %v7047
  %v7112 = vadd.f32 %v6656, %v7048
  %v7113 = vadd.f32 %v6657, %v7049
  %v7114 = vadd.f32 %v6658, %v7050
  %v7115 = vadd.f32 %v6659, %v7051
  %v7116 = vadd.f32 %v6660, %v7052
  %v7117 = vadd.f32 %v6661, %v7053
  %v7118 = vadd.f32 %v6662, %v7054
  %v7119 = vadd.f32 %v6663, %v7055
  %v7120 = vadd.f32 %v6664, %v7056
  %v7121 = vadd.f32 %v6665, %v7057
  %v7122 = vadd.f32 %v6666, %v7058
  %v7123 = vadd.f32 %v6667, %v7059
  %v7124 = vadd.f32 %v6668, %v7060
  %v7125 = vadd.f32 %v6669, %v7061
  %v7126 = vadd.f32 %v6670, %v7062
  %v7127 = vadd.f32 %v6671, %v7063
  %v7128 = vadd.f32 %v6672, %v7064
  %v7129 = vadd.f32 %v6673, %v7065
  %v7130 = vadd.f32 %v6674, %v7066
  %v7131 = vadd.f32 %v6675, %v7067
  %v7132 = vadd.f32 %v6676, %v7068
  %v7133 = vadd.f32 %v6677, %v7069
  %v7134 = vadd.f32 %v6678, %v7070
  %v7135 = vadd.f32 %v6679, %v7071
  %v7136 = vadd.f32 %v6680, %v7072
  %v7137 = vadd.f32 %v6681, %v7073
  %7138 = vset.pattern.permute.xlu0 15
  %7139 = vperm.xlu0 %7138, %v16
  %v7140 = vpop.permute.xlu0 %7139
  %7142 = vset.pattern.permute.xlu0 15
  %7143 = vperm.xlu0 %7142, %v17
  %v7144 = vpop.permute.xlu0 %7143
  %7146 = vset.pattern.permute.xlu0 15
  %7147 = vperm.xlu0 %7146, %v18
  %v7148 = vpop.permute.xlu0 %7147
  %7150 = vset.pattern.permute.xlu0 15
  %7151 = vperm.xlu0 %7150, %v19
  %v7152 = vpop.permute.xlu0 %7151
  %7154 = vset.pattern.permute.xlu0 15
  %7155 = vperm.xlu0 %7154, %v20
  %v7156 = vpop.permute.xlu0 %7155
  %7158 = vset.pattern.permute.xlu0 15
  %7159 = vperm.xlu0 %7158, %v21
  %v7160 = vpop.permute.xlu0 %7159
  %7162 = vset.pattern.permute.xlu0 15
  %7163 = vperm.xlu0 %7162, %v22
  %v7164 = vpop.permute.xlu0 %7163
  %7166 = vset.pattern.permute.xlu0 15
  %7167 = vperm.xlu0 %7166, %v23
  %v7168 = vpop.permute.xlu0 %7167
  %7170 = vset.pattern.permute.xlu0 15
  %7171 = vperm.xlu0 %7170, %v24
  %v7172 = vpop.permute.xlu0 %7171
  %7174 = vset.pattern.permute.xlu0 15
  %7175 = vperm.xlu0 %7174, %v25
  %v7176 = vpop.permute.xlu0 %7175
  %7178 = vset.pattern.permute.xlu0 15
  %7179 = vperm.xlu0 %7178, %v26
  %v7180 = vpop.permute.xlu0 %7179
  %7182 = vset.pattern.permute.xlu0 15
  %7183 = vperm.xlu0 %7182, %v27
  %v7184 = vpop.permute.xlu0 %7183
  %7186 = vset.pattern.permute.xlu0 15
  %7187 = vperm.xlu0 %7186, %v28
  %v7188 = vpop.permute.xlu0 %7187
  %7190 = vset.pattern.permute.xlu0 15
  %7191 = vperm.xlu0 %7190, %v29
  %v7192 = vpop.permute.xlu0 %7191
  %7194 = vset.pattern.permute.xlu0 15
  %7195 = vperm.xlu0 %7194, %v30
  %v7196 = vpop.permute.xlu0 %7195
  %7198 = vset.pattern.permute.xlu0 15
  %7199 = vperm.xlu0 %7198, %v31
  %v7200 = vpop.permute.xlu0 %7199
  %7202 = vset.pattern.permute.xlu0 15
  %7203 = vperm.xlu0 %7202, %v32
  %v7204 = vpop.permute.xlu0 %7203
  %7206 = vset.pattern.permute.xlu0 15
  %7207 = vperm.xlu0 %7206, %v33
  %v7208 = vpop.permute.xlu0 %7207
  %7210 = vset.pattern.permute.xlu0 15
  %7211 = vperm.xlu0 %7210, %v34
  %v7212 = vpop.permute.xlu0 %7211
  %7214 = vset.pattern.permute.xlu0 15
  %7215 = vperm.xlu0 %7214, %v35
  %v7216 = vpop.permute.xlu0 %7215
  %7218 = vset.pattern.permute.xlu0 15
  %7219 = vperm.xlu0 %7218, %v36
  %v7220 = vpop.permute.xlu0 %7219
  %7222 = vset.pattern.permute.xlu0 15
  %7223 = vperm.xlu0 %7222, %v37
  %v7224 = vpop.permute.xlu0 %7223
  %7226 = vset.pattern.permute.xlu0 15
  %7227 = vperm.xlu0 %7226, %v38
  %v7228 = vpop.permute.xlu0 %7227
  %7230 = vset.pattern.permute.xlu0 15
  %7231 = vperm.xlu0 %7230, %v39
  %v7232 = vpop.permute.xlu0 %7231
  %7234 = vset.pattern.permute.xlu0 15
  %7235 = vperm.xlu0 %7234, %v40
  %v7236 = vpop.permute.xlu0 %7235
  %7238 = vset.pattern.permute.xlu0 15
  %7239 = vperm.xlu0 %7238, %v41
  %v7240 = vpop.permute.xlu0 %7239
  %7242 = vset.pattern.permute.xlu0 15
  %7243 = vperm.xlu0 %7242, %v42
  %v7244 = vpop.permute.xlu0 %7243
  %7246 = vset.pattern.permute.xlu0 15
  %7247 = vperm.xlu0 %7246, %v43
  %v7248 = vpop.permute.xlu0 %7247
  %7250 = vset.pattern.permute.xlu0 15
  %7251 = vperm.xlu0 %7250, %v44
  %v7252 = vpop.permute.xlu0 %7251
  %7254 = vset.pattern.permute.xlu0 15
  %7255 = vperm.xlu0 %7254, %v45
  %v7256 = vpop.permute.xlu0 %7255
  %7258 = vset.pattern.permute.xlu0 15
  %7259 = vperm.xlu0 %7258, %v46
  %v7260 = vpop.permute.xlu0 %7259
  %7262 = vset.pattern.permute.xlu0 15
  %7263 = vperm.xlu0 %7262, %v47
  %v7264 = vpop.permute.xlu0 %7263
  %v7266 = vlaneseq
  %v7267 = vshrl.u32 %v7266, 7
  %v7268 = vsub.s32 7, %v7267
  %v7269 = vrot.slane %v50, %v7268
  %v7270 = vlaneseq
  %v7271 = vshrl.u32 %v7270, 7
  %v7272 = vsub.s32 7, %v7271
  %v7273 = vrot.slane %v51, %v7272
  %vm7274 = vcmp.eq.f32.partialorder %v7140, %v7269
  %vm7275 = vcmp.eq.f32.partialorder %v7140, %v7273
  %vm7276 = vcmp.eq.f32.partialorder %v7144, %v7269
  %vm7277 = vcmp.eq.f32.partialorder %v7144, %v7273
  %vm7278 = vcmp.eq.f32.partialorder %v7148, %v7269
  %vm7279 = vcmp.eq.f32.partialorder %v7148, %v7273
  %vm7280 = vcmp.eq.f32.partialorder %v7152, %v7269
  %vm7281 = vcmp.eq.f32.partialorder %v7152, %v7273
  %vm7282 = vcmp.eq.f32.partialorder %v7156, %v7269
  %vm7283 = vcmp.eq.f32.partialorder %v7156, %v7273
  %vm7284 = vcmp.eq.f32.partialorder %v7160, %v7269
  %vm7285 = vcmp.eq.f32.partialorder %v7160, %v7273
  %vm7286 = vcmp.eq.f32.partialorder %v7164, %v7269
  %vm7287 = vcmp.eq.f32.partialorder %v7164, %v7273
  %vm7288 = vcmp.eq.f32.partialorder %v7168, %v7269
  %vm7289 = vcmp.eq.f32.partialorder %v7168, %v7273
  %vm7290 = vcmp.eq.f32.partialorder %v7172, %v7269
  %vm7291 = vcmp.eq.f32.partialorder %v7172, %v7273
  %vm7292 = vcmp.eq.f32.partialorder %v7176, %v7269
  %vm7293 = vcmp.eq.f32.partialorder %v7176, %v7273
  %vm7294 = vcmp.eq.f32.partialorder %v7180, %v7269
  %vm7295 = vcmp.eq.f32.partialorder %v7180, %v7273
  %vm7296 = vcmp.eq.f32.partialorder %v7184, %v7269
  %vm7297 = vcmp.eq.f32.partialorder %v7184, %v7273
  %vm7298 = vcmp.eq.f32.partialorder %v7188, %v7269
  %vm7299 = vcmp.eq.f32.partialorder %v7188, %v7273
  %vm7300 = vcmp.eq.f32.partialorder %v7192, %v7269
  %vm7301 = vcmp.eq.f32.partialorder %v7192, %v7273
  %vm7302 = vcmp.eq.f32.partialorder %v7196, %v7269
  %vm7303 = vcmp.eq.f32.partialorder %v7196, %v7273
  %vm7304 = vcmp.eq.f32.partialorder %v7200, %v7269
  %vm7305 = vcmp.eq.f32.partialorder %v7200, %v7273
  %vm7306 = vcmp.eq.f32.partialorder %v7204, %v7269
  %vm7307 = vcmp.eq.f32.partialorder %v7204, %v7273
  %vm7308 = vcmp.eq.f32.partialorder %v7208, %v7269
  %vm7309 = vcmp.eq.f32.partialorder %v7208, %v7273
  %vm7310 = vcmp.eq.f32.partialorder %v7212, %v7269
  %vm7311 = vcmp.eq.f32.partialorder %v7212, %v7273
  %vm7312 = vcmp.eq.f32.partialorder %v7216, %v7269
  %vm7313 = vcmp.eq.f32.partialorder %v7216, %v7273
  %vm7314 = vcmp.eq.f32.partialorder %v7220, %v7269
  %vm7315 = vcmp.eq.f32.partialorder %v7220, %v7273
  %vm7316 = vcmp.eq.f32.partialorder %v7224, %v7269
  %vm7317 = vcmp.eq.f32.partialorder %v7224, %v7273
  %vm7318 = vcmp.eq.f32.partialorder %v7228, %v7269
  %vm7319 = vcmp.eq.f32.partialorder %v7228, %v7273
  %vm7320 = vcmp.eq.f32.partialorder %v7232, %v7269
  %vm7321 = vcmp.eq.f32.partialorder %v7232, %v7273
  %vm7322 = vcmp.eq.f32.partialorder %v7236, %v7269
  %vm7323 = vcmp.eq.f32.partialorder %v7236, %v7273
  %vm7324 = vcmp.eq.f32.partialorder %v7240, %v7269
  %vm7325 = vcmp.eq.f32.partialorder %v7240, %v7273
  %vm7326 = vcmp.eq.f32.partialorder %v7244, %v7269
  %vm7327 = vcmp.eq.f32.partialorder %v7244, %v7273
  %vm7328 = vcmp.eq.f32.partialorder %v7248, %v7269
  %vm7329 = vcmp.eq.f32.partialorder %v7248, %v7273
  %vm7330 = vcmp.eq.f32.partialorder %v7252, %v7269
  %vm7331 = vcmp.eq.f32.partialorder %v7252, %v7273
  %vm7332 = vcmp.eq.f32.partialorder %v7256, %v7269
  %vm7333 = vcmp.eq.f32.partialorder %v7256, %v7273
  %vm7334 = vcmp.eq.f32.partialorder %v7260, %v7269
  %vm7335 = vcmp.eq.f32.partialorder %v7260, %v7273
  %vm7336 = vcmp.eq.f32.partialorder %v7264, %v7269
  %vm7337 = vcmp.eq.f32.partialorder %v7264, %v7273
  %7338 = vset.pattern.permute.xlu0 15
  %7339 = vperm.xlu0 %7338, %v202
  %v7340 = vpop.permute.xlu0 %7339
  %7342 = vset.pattern.permute.xlu0 15
  %7343 = vperm.xlu0 %7342, %v203
  %v7344 = vpop.permute.xlu0 %7343
  %7346 = vset.pattern.permute.xlu0 15
  %7347 = vperm.xlu0 %7346, %v204
  %v7348 = vpop.permute.xlu0 %7347
  %7350 = vset.pattern.permute.xlu0 15
  %7351 = vperm.xlu0 %7350, %v205
  %v7352 = vpop.permute.xlu0 %7351
  %7354 = vset.pattern.permute.xlu0 15
  %7355 = vperm.xlu0 %7354, %v206
  %v7356 = vpop.permute.xlu0 %7355
  %7358 = vset.pattern.permute.xlu0 15
  %7359 = vperm.xlu0 %7358, %v207
  %v7360 = vpop.permute.xlu0 %7359
  %7362 = vset.pattern.permute.xlu0 15
  %7363 = vperm.xlu0 %7362, %v208
  %v7364 = vpop.permute.xlu0 %7363
  %7366 = vset.pattern.permute.xlu0 15
  %7367 = vperm.xlu0 %7366, %v209
  %v7368 = vpop.permute.xlu0 %7367
  %7370 = vset.pattern.permute.xlu0 15
  %7371 = vperm.xlu0 %7370, %v210
  %v7372 = vpop.permute.xlu0 %7371
  %7374 = vset.pattern.permute.xlu0 15
  %7375 = vperm.xlu0 %7374, %v211
  %v7376 = vpop.permute.xlu0 %7375
  %7378 = vset.pattern.permute.xlu0 15
  %7379 = vperm.xlu0 %7378, %v212
  %v7380 = vpop.permute.xlu0 %7379
  %7382 = vset.pattern.permute.xlu0 15
  %7383 = vperm.xlu0 %7382, %v213
  %v7384 = vpop.permute.xlu0 %7383
  %7386 = vset.pattern.permute.xlu0 15
  %7387 = vperm.xlu0 %7386, %v214
  %v7388 = vpop.permute.xlu0 %7387
  %7390 = vset.pattern.permute.xlu0 15
  %7391 = vperm.xlu0 %7390, %v215
  %v7392 = vpop.permute.xlu0 %7391
  %7394 = vset.pattern.permute.xlu0 15
  %7395 = vperm.xlu0 %7394, %v216
  %v7396 = vpop.permute.xlu0 %7395
  %7398 = vset.pattern.permute.xlu0 15
  %7399 = vperm.xlu0 %7398, %v217
  %v7400 = vpop.permute.xlu0 %7399
  %7402 = vset.pattern.permute.xlu0 15
  %7403 = vperm.xlu0 %7402, %v218
  %v7404 = vpop.permute.xlu0 %7403
  %7406 = vset.pattern.permute.xlu0 15
  %7407 = vperm.xlu0 %7406, %v219
  %v7408 = vpop.permute.xlu0 %7407
  %7410 = vset.pattern.permute.xlu0 15
  %7411 = vperm.xlu0 %7410, %v220
  %v7412 = vpop.permute.xlu0 %7411
  %7414 = vset.pattern.permute.xlu0 15
  %7415 = vperm.xlu0 %7414, %v221
  %v7416 = vpop.permute.xlu0 %7415
  %7418 = vset.pattern.permute.xlu0 15
  %7419 = vperm.xlu0 %7418, %v222
  %v7420 = vpop.permute.xlu0 %7419
  %7422 = vset.pattern.permute.xlu0 15
  %7423 = vperm.xlu0 %7422, %v223
  %v7424 = vpop.permute.xlu0 %7423
  %7426 = vset.pattern.permute.xlu0 15
  %7427 = vperm.xlu0 %7426, %v224
  %v7428 = vpop.permute.xlu0 %7427
  %7430 = vset.pattern.permute.xlu0 15
  %7431 = vperm.xlu0 %7430, %v225
  %v7432 = vpop.permute.xlu0 %7431
  %7434 = vset.pattern.permute.xlu0 15
  %7435 = vperm.xlu0 %7434, %v226
  %v7436 = vpop.permute.xlu0 %7435
  %7438 = vset.pattern.permute.xlu0 15
  %7439 = vperm.xlu0 %7438, %v227
  %v7440 = vpop.permute.xlu0 %7439
  %7442 = vset.pattern.permute.xlu0 15
  %7443 = vperm.xlu0 %7442, %v228
  %v7444 = vpop.permute.xlu0 %7443
  %7446 = vset.pattern.permute.xlu0 15
  %7447 = vperm.xlu0 %7446, %v229
  %v7448 = vpop.permute.xlu0 %7447
  %7450 = vset.pattern.permute.xlu0 15
  %7451 = vperm.xlu0 %7450, %v230
  %v7452 = vpop.permute.xlu0 %7451
  %7454 = vset.pattern.permute.xlu0 15
  %7455 = vperm.xlu0 %7454, %v231
  %v7456 = vpop.permute.xlu0 %7455
  %7458 = vset.pattern.permute.xlu0 15
  %7459 = vperm.xlu0 %7458, %v232
  %v7460 = vpop.permute.xlu0 %7459
  %7462 = vset.pattern.permute.xlu0 15
  %7463 = vperm.xlu0 %7462, %v233
  %v7464 = vpop.permute.xlu0 %7463
  %v7466 = vsel %vm7274, %v7340, 0.0
  %v7467 = vsel %vm7275, %v7340, 0.0
  %v7468 = vsel %vm7276, %v7344, 0.0
  %v7469 = vsel %vm7277, %v7344, 0.0
  %v7470 = vsel %vm7278, %v7348, 0.0
  %v7471 = vsel %vm7279, %v7348, 0.0
  %v7472 = vsel %vm7280, %v7352, 0.0
  %v7473 = vsel %vm7281, %v7352, 0.0
  %v7474 = vsel %vm7282, %v7356, 0.0
  %v7475 = vsel %vm7283, %v7356, 0.0
  %v7476 = vsel %vm7284, %v7360, 0.0
  %v7477 = vsel %vm7285, %v7360, 0.0
  %v7478 = vsel %vm7286, %v7364, 0.0
  %v7479 = vsel %vm7287, %v7364, 0.0
  %v7480 = vsel %vm7288, %v7368, 0.0
  %v7481 = vsel %vm7289, %v7368, 0.0
  %v7482 = vsel %vm7290, %v7372, 0.0
  %v7483 = vsel %vm7291, %v7372, 0.0
  %v7484 = vsel %vm7292, %v7376, 0.0
  %v7485 = vsel %vm7293, %v7376, 0.0
  %v7486 = vsel %vm7294, %v7380, 0.0
  %v7487 = vsel %vm7295, %v7380, 0.0
  %v7488 = vsel %vm7296, %v7384, 0.0
  %v7489 = vsel %vm7297, %v7384, 0.0
  %v7490 = vsel %vm7298, %v7388, 0.0
  %v7491 = vsel %vm7299, %v7388, 0.0
  %v7492 = vsel %vm7300, %v7392, 0.0
  %v7493 = vsel %vm7301, %v7392, 0.0
  %v7494 = vsel %vm7302, %v7396, 0.0
  %v7495 = vsel %vm7303, %v7396, 0.0
  %v7496 = vsel %vm7304, %v7400, 0.0
  %v7497 = vsel %vm7305, %v7400, 0.0
  %v7498 = vsel %vm7306, %v7404, 0.0
  %v7499 = vsel %vm7307, %v7404, 0.0
  %v7500 = vsel %vm7308, %v7408, 0.0
  %v7501 = vsel %vm7309, %v7408, 0.0
  %v7502 = vsel %vm7310, %v7412, 0.0
  %v7503 = vsel %vm7311, %v7412, 0.0
  %v7504 = vsel %vm7312, %v7416, 0.0
  %v7505 = vsel %vm7313, %v7416, 0.0
  %v7506 = vsel %vm7314, %v7420, 0.0
  %v7507 = vsel %vm7315, %v7420, 0.0
  %v7508 = vsel %vm7316, %v7424, 0.0
  %v7509 = vsel %vm7317, %v7424, 0.0
  %v7510 = vsel %vm7318, %v7428, 0.0
  %v7511 = vsel %vm7319, %v7428, 0.0
  %v7512 = vsel %vm7320, %v7432, 0.0
  %v7513 = vsel %vm7321, %v7432, 0.0
  %v7514 = vsel %vm7322, %v7436, 0.0
  %v7515 = vsel %vm7323, %v7436, 0.0
  %v7516 = vsel %vm7324, %v7440, 0.0
  %v7517 = vsel %vm7325, %v7440, 0.0
  %v7518 = vsel %vm7326, %v7444, 0.0
  %v7519 = vsel %vm7327, %v7444, 0.0
  %v7520 = vsel %vm7328, %v7448, 0.0
  %v7521 = vsel %vm7329, %v7448, 0.0
  %v7522 = vsel %vm7330, %v7452, 0.0
  %v7523 = vsel %vm7331, %v7452, 0.0
  %v7524 = vsel %vm7332, %v7456, 0.0
  %v7525 = vsel %vm7333, %v7456, 0.0
  %v7526 = vsel %vm7334, %v7460, 0.0
  %v7527 = vsel %vm7335, %v7460, 0.0
  %v7528 = vsel %vm7336, %v7464, 0.0
  %v7529 = vsel %vm7337, %v7464, 0.0
  %v7530 = vadd.f32 %v7074, %v7466
  %v7531 = vadd.f32 %v7075, %v7467
  %v7532 = vadd.f32 %v7076, %v7468
  %v7533 = vadd.f32 %v7077, %v7469
  %v7534 = vadd.f32 %v7078, %v7470
  %v7535 = vadd.f32 %v7079, %v7471
  %v7536 = vadd.f32 %v7080, %v7472
  %v7537 = vadd.f32 %v7081, %v7473
  %v7538 = vadd.f32 %v7082, %v7474
  %v7539 = vadd.f32 %v7083, %v7475
  %v7540 = vadd.f32 %v7084, %v7476
  %v7541 = vadd.f32 %v7085, %v7477
  %v7542 = vadd.f32 %v7086, %v7478
  %v7543 = vadd.f32 %v7087, %v7479
  %v7544 = vadd.f32 %v7088, %v7480
  %v7545 = vadd.f32 %v7089, %v7481
  %v7546 = vadd.f32 %v7090, %v7482
  %v7547 = vadd.f32 %v7091, %v7483
  %v7548 = vadd.f32 %v7092, %v7484
  %v7549 = vadd.f32 %v7093, %v7485
  %v7550 = vadd.f32 %v7094, %v7486
  %v7551 = vadd.f32 %v7095, %v7487
  %v7552 = vadd.f32 %v7096, %v7488
  %v7553 = vadd.f32 %v7097, %v7489
  %v7554 = vadd.f32 %v7098, %v7490
  %v7555 = vadd.f32 %v7099, %v7491
  %v7556 = vadd.f32 %v7100, %v7492
  %v7557 = vadd.f32 %v7101, %v7493
  %v7558 = vadd.f32 %v7102, %v7494
  %v7559 = vadd.f32 %v7103, %v7495
  %v7560 = vadd.f32 %v7104, %v7496
  %v7561 = vadd.f32 %v7105, %v7497
  %v7562 = vadd.f32 %v7106, %v7498
  %v7563 = vadd.f32 %v7107, %v7499
  %v7564 = vadd.f32 %v7108, %v7500
  %v7565 = vadd.f32 %v7109, %v7501
  %v7566 = vadd.f32 %v7110, %v7502
  %v7567 = vadd.f32 %v7111, %v7503
  %v7568 = vadd.f32 %v7112, %v7504
  %v7569 = vadd.f32 %v7113, %v7505
  %v7570 = vadd.f32 %v7114, %v7506
  %v7571 = vadd.f32 %v7115, %v7507
  %v7572 = vadd.f32 %v7116, %v7508
  %v7573 = vadd.f32 %v7117, %v7509
  %v7574 = vadd.f32 %v7118, %v7510
  %v7575 = vadd.f32 %v7119, %v7511
  %v7576 = vadd.f32 %v7120, %v7512
  %v7577 = vadd.f32 %v7121, %v7513
  %v7578 = vadd.f32 %v7122, %v7514
  %v7579 = vadd.f32 %v7123, %v7515
  %v7580 = vadd.f32 %v7124, %v7516
  %v7581 = vadd.f32 %v7125, %v7517
  %v7582 = vadd.f32 %v7126, %v7518
  %v7583 = vadd.f32 %v7127, %v7519
  %v7584 = vadd.f32 %v7128, %v7520
  %v7585 = vadd.f32 %v7129, %v7521
  %v7586 = vadd.f32 %v7130, %v7522
  %v7587 = vadd.f32 %v7131, %v7523
  %v7588 = vadd.f32 %v7132, %v7524
  %v7589 = vadd.f32 %v7133, %v7525
  %v7590 = vadd.f32 %v7134, %v7526
  %v7591 = vadd.f32 %v7135, %v7527
  %v7592 = vadd.f32 %v7136, %v7528
  %v7593 = vadd.f32 %v7137, %v7529
  %v7594 = vmul.f32 %v56, %v156
  %v7595 = vmul.f32 %v56, %v163
  %v7596 = vmul.f32 %v59, %v156
  %v7597 = vmul.f32 %v59, %v163
  %v7598 = vmul.f32 %v62, %v156
  %v7599 = vmul.f32 %v62, %v163
  %v7600 = vmul.f32 %v65, %v156
  %v7601 = vmul.f32 %v65, %v163
  %v7602 = vmul.f32 %v68, %v156
  %v7603 = vmul.f32 %v68, %v163
  %v7604 = vmul.f32 %v71, %v156
  %v7605 = vmul.f32 %v71, %v163
  %v7606 = vmul.f32 %v74, %v156
  %v7607 = vmul.f32 %v74, %v163
  %v7608 = vmul.f32 %v77, %v156
  %v7609 = vmul.f32 %v77, %v163
  %v7610 = vmul.f32 %v80, %v156
  %v7611 = vmul.f32 %v80, %v163
  %v7612 = vmul.f32 %v83, %v156
  %v7613 = vmul.f32 %v83, %v163
  %v7614 = vmul.f32 %v86, %v156
  %v7615 = vmul.f32 %v86, %v163
  %v7616 = vmul.f32 %v89, %v156
  %v7617 = vmul.f32 %v89, %v163
  %v7618 = vmul.f32 %v92, %v156
  %v7619 = vmul.f32 %v92, %v163
  %v7620 = vmul.f32 %v95, %v156
  %v7621 = vmul.f32 %v95, %v163
  %v7622 = vmul.f32 %v98, %v156
  %v7623 = vmul.f32 %v98, %v163
  %v7624 = vmul.f32 %v101, %v156
  %v7625 = vmul.f32 %v101, %v163
  %v7626 = vmul.f32 %v104, %v156
  %v7627 = vmul.f32 %v104, %v163
  %v7628 = vmul.f32 %v107, %v156
  %v7629 = vmul.f32 %v107, %v163
  %v7630 = vmul.f32 %v110, %v156
  %v7631 = vmul.f32 %v110, %v163
  %v7632 = vmul.f32 %v113, %v156
  %v7633 = vmul.f32 %v113, %v163
  %v7634 = vmul.f32 %v116, %v156
  %v7635 = vmul.f32 %v116, %v163
  %v7636 = vmul.f32 %v119, %v156
  %v7637 = vmul.f32 %v119, %v163
  %v7638 = vmul.f32 %v122, %v156
  %v7639 = vmul.f32 %v122, %v163
  %v7640 = vmul.f32 %v125, %v156
  %v7641 = vmul.f32 %v125, %v163
  %v7642 = vmul.f32 %v128, %v156
  %v7643 = vmul.f32 %v128, %v163
  %v7644 = vmul.f32 %v131, %v156
  %v7645 = vmul.f32 %v131, %v163
  %v7646 = vmul.f32 %v134, %v156
  %v7647 = vmul.f32 %v134, %v163
  %v7648 = vmul.f32 %v137, %v156
  %v7649 = vmul.f32 %v137, %v163
  %v7650 = vmul.f32 %v140, %v156
  %v7651 = vmul.f32 %v140, %v163
  %v7652 = vmul.f32 %v143, %v156
  %v7653 = vmul.f32 %v143, %v163
  %v7654 = vmul.f32 %v146, %v156
  %v7655 = vmul.f32 %v146, %v163
  %v7656 = vmul.f32 %v149, %v156
  %v7657 = vmul.f32 %v149, %v163
  %v7658 = vmul.f32 %v7594, %v7530
  %v7659 = vmul.f32 %v7595, %v7531
  %v7660 = vmul.f32 %v7596, %v7532
  %v7661 = vmul.f32 %v7597, %v7533
  %v7662 = vmul.f32 %v7598, %v7534
  %v7663 = vmul.f32 %v7599, %v7535
  %v7664 = vmul.f32 %v7600, %v7536
  %v7665 = vmul.f32 %v7601, %v7537
  %v7666 = vmul.f32 %v7602, %v7538
  %v7667 = vmul.f32 %v7603, %v7539
  %v7668 = vmul.f32 %v7604, %v7540
  %v7669 = vmul.f32 %v7605, %v7541
  %v7670 = vmul.f32 %v7606, %v7542
  %v7671 = vmul.f32 %v7607, %v7543
  %v7672 = vmul.f32 %v7608, %v7544
  %v7673 = vmul.f32 %v7609, %v7545
  %v7674 = vmul.f32 %v7610, %v7546
  %v7675 = vmul.f32 %v7611, %v7547
  %v7676 = vmul.f32 %v7612, %v7548
  %v7677 = vmul.f32 %v7613, %v7549
  %v7678 = vmul.f32 %v7614, %v7550
  %v7679 = vmul.f32 %v7615, %v7551
  %v7680 = vmul.f32 %v7616, %v7552
  %v7681 = vmul.f32 %v7617, %v7553
  %v7682 = vmul.f32 %v7618, %v7554
  %v7683 = vmul.f32 %v7619, %v7555
  %v7684 = vmul.f32 %v7620, %v7556
  %v7685 = vmul.f32 %v7621, %v7557
  %v7686 = vmul.f32 %v7622, %v7558
  %v7687 = vmul.f32 %v7623, %v7559
  %v7688 = vmul.f32 %v7624, %v7560
  %v7689 = vmul.f32 %v7625, %v7561
  %v7690 = vmul.f32 %v7626, %v7562
  %v7691 = vmul.f32 %v7627, %v7563
  %v7692 = vmul.f32 %v7628, %v7564
  %v7693 = vmul.f32 %v7629, %v7565
  %v7694 = vmul.f32 %v7630, %v7566
  %v7695 = vmul.f32 %v7631, %v7567
  %v7696 = vmul.f32 %v7632, %v7568
  %v7697 = vmul.f32 %v7633, %v7569
  %v7698 = vmul.f32 %v7634, %v7570
  %v7699 = vmul.f32 %v7635, %v7571
  %v7700 = vmul.f32 %v7636, %v7572
  %v7701 = vmul.f32 %v7637, %v7573
  %v7702 = vmul.f32 %v7638, %v7574
  %v7703 = vmul.f32 %v7639, %v7575
  %v7704 = vmul.f32 %v7640, %v7576
  %v7705 = vmul.f32 %v7641, %v7577
  %v7706 = vmul.f32 %v7642, %v7578
  %v7707 = vmul.f32 %v7643, %v7579
  %v7708 = vmul.f32 %v7644, %v7580
  %v7709 = vmul.f32 %v7645, %v7581
  %v7710 = vmul.f32 %v7646, %v7582
  %v7711 = vmul.f32 %v7647, %v7583
  %v7712 = vmul.f32 %v7648, %v7584
  %v7713 = vmul.f32 %v7649, %v7585
  %v7714 = vmul.f32 %v7650, %v7586
  %v7715 = vmul.f32 %v7651, %v7587
  %v7716 = vmul.f32 %v7652, %v7588
  %v7717 = vmul.f32 %v7653, %v7589
  %v7718 = vmul.f32 %v7654, %v7590
  %v7719 = vmul.f32 %v7655, %v7591
  %v7720 = vmul.f32 %v7656, %v7592
  %v7721 = vmul.f32 %v7657, %v7593
  %vm7722 = vcmp.gt.f32.partialorder %v7658, 0.0
  %vm7723 = vcmp.gt.f32.partialorder %v7659, 0.0
  %vm7724 = vcmp.gt.f32.partialorder %v7660, 0.0
  %vm7725 = vcmp.gt.f32.partialorder %v7661, 0.0
  %vm7726 = vcmp.gt.f32.partialorder %v7662, 0.0
  %vm7727 = vcmp.gt.f32.partialorder %v7663, 0.0
  %vm7728 = vcmp.gt.f32.partialorder %v7664, 0.0
  %vm7729 = vcmp.gt.f32.partialorder %v7665, 0.0
  %vm7730 = vcmp.gt.f32.partialorder %v7666, 0.0
  %vm7731 = vcmp.gt.f32.partialorder %v7667, 0.0
  %vm7732 = vcmp.gt.f32.partialorder %v7668, 0.0
  %vm7733 = vcmp.gt.f32.partialorder %v7669, 0.0
  %vm7734 = vcmp.gt.f32.partialorder %v7670, 0.0
  %vm7735 = vcmp.gt.f32.partialorder %v7671, 0.0
  %vm7736 = vcmp.gt.f32.partialorder %v7672, 0.0
  %vm7737 = vcmp.gt.f32.partialorder %v7673, 0.0
  %vm7738 = vcmp.gt.f32.partialorder %v7674, 0.0
  %vm7739 = vcmp.gt.f32.partialorder %v7675, 0.0
  %vm7740 = vcmp.gt.f32.partialorder %v7676, 0.0
  %vm7741 = vcmp.gt.f32.partialorder %v7677, 0.0
  %vm7742 = vcmp.gt.f32.partialorder %v7678, 0.0
  %vm7743 = vcmp.gt.f32.partialorder %v7679, 0.0
  %vm7744 = vcmp.gt.f32.partialorder %v7680, 0.0
  %vm7745 = vcmp.gt.f32.partialorder %v7681, 0.0
  %vm7746 = vcmp.gt.f32.partialorder %v7682, 0.0
  %vm7747 = vcmp.gt.f32.partialorder %v7683, 0.0
  %vm7748 = vcmp.gt.f32.partialorder %v7684, 0.0
  %vm7749 = vcmp.gt.f32.partialorder %v7685, 0.0
  %vm7750 = vcmp.gt.f32.partialorder %v7686, 0.0
  %vm7751 = vcmp.gt.f32.partialorder %v7687, 0.0
  %vm7752 = vcmp.gt.f32.partialorder %v7688, 0.0
  %vm7753 = vcmp.gt.f32.partialorder %v7689, 0.0
  %vm7754 = vcmp.gt.f32.partialorder %v7690, 0.0
  %vm7755 = vcmp.gt.f32.partialorder %v7691, 0.0
  %vm7756 = vcmp.gt.f32.partialorder %v7692, 0.0
  %vm7757 = vcmp.gt.f32.partialorder %v7693, 0.0
  %vm7758 = vcmp.gt.f32.partialorder %v7694, 0.0
  %vm7759 = vcmp.gt.f32.partialorder %v7695, 0.0
  %vm7760 = vcmp.gt.f32.partialorder %v7696, 0.0
  %vm7761 = vcmp.gt.f32.partialorder %v7697, 0.0
  %vm7762 = vcmp.gt.f32.partialorder %v7698, 0.0
  %vm7763 = vcmp.gt.f32.partialorder %v7699, 0.0
  %vm7764 = vcmp.gt.f32.partialorder %v7700, 0.0
  %vm7765 = vcmp.gt.f32.partialorder %v7701, 0.0
  %vm7766 = vcmp.gt.f32.partialorder %v7702, 0.0
  %vm7767 = vcmp.gt.f32.partialorder %v7703, 0.0
  %vm7768 = vcmp.gt.f32.partialorder %v7704, 0.0
  %vm7769 = vcmp.gt.f32.partialorder %v7705, 0.0
  %vm7770 = vcmp.gt.f32.partialorder %v7706, 0.0
  %vm7771 = vcmp.gt.f32.partialorder %v7707, 0.0
  %vm7772 = vcmp.gt.f32.partialorder %v7708, 0.0
  %vm7773 = vcmp.gt.f32.partialorder %v7709, 0.0
  %vm7774 = vcmp.gt.f32.partialorder %v7710, 0.0
  %vm7775 = vcmp.gt.f32.partialorder %v7711, 0.0
  %vm7776 = vcmp.gt.f32.partialorder %v7712, 0.0
  %vm7777 = vcmp.gt.f32.partialorder %v7713, 0.0
  %vm7778 = vcmp.gt.f32.partialorder %v7714, 0.0
  %vm7779 = vcmp.gt.f32.partialorder %v7715, 0.0
  %vm7780 = vcmp.gt.f32.partialorder %v7716, 0.0
  %vm7781 = vcmp.gt.f32.partialorder %v7717, 0.0
  %vm7782 = vcmp.gt.f32.partialorder %v7718, 0.0
  %vm7783 = vcmp.gt.f32.partialorder %v7719, 0.0
  %vm7784 = vcmp.gt.f32.partialorder %v7720, 0.0
  %vm7785 = vcmp.gt.f32.partialorder %v7721, 0.0
  %v7786 = vadd.f32 %v7658, 1.0
  %v7787 = vadd.f32 %v7659, 1.0
  %v7788 = vadd.f32 %v7660, 1.0
  %v7789 = vadd.f32 %v7661, 1.0
  %v7790 = vadd.f32 %v7662, 1.0
  %v7791 = vadd.f32 %v7663, 1.0
  %v7792 = vadd.f32 %v7664, 1.0
  %v7793 = vadd.f32 %v7665, 1.0
  %v7794 = vadd.f32 %v7666, 1.0
  %v7795 = vadd.f32 %v7667, 1.0
  %v7796 = vadd.f32 %v7668, 1.0
  %v7797 = vadd.f32 %v7669, 1.0
  %v7798 = vadd.f32 %v7670, 1.0
  %v7799 = vadd.f32 %v7671, 1.0
  %v7800 = vadd.f32 %v7672, 1.0
  %v7801 = vadd.f32 %v7673, 1.0
  %v7802 = vadd.f32 %v7674, 1.0
  %v7803 = vadd.f32 %v7675, 1.0
  %v7804 = vadd.f32 %v7676, 1.0
  %v7805 = vadd.f32 %v7677, 1.0
  %v7806 = vadd.f32 %v7678, 1.0
  %v7807 = vadd.f32 %v7679, 1.0
  %v7808 = vadd.f32 %v7680, 1.0
  %v7809 = vadd.f32 %v7681, 1.0
  %v7810 = vadd.f32 %v7682, 1.0
  %v7811 = vadd.f32 %v7683, 1.0
  %v7812 = vadd.f32 %v7684, 1.0
  %v7813 = vadd.f32 %v7685, 1.0
  %v7814 = vadd.f32 %v7686, 1.0
  %v7815 = vadd.f32 %v7687, 1.0
  %v7816 = vadd.f32 %v7688, 1.0
  %v7817 = vadd.f32 %v7689, 1.0
  %v7818 = vadd.f32 %v7690, 1.0
  %v7819 = vadd.f32 %v7691, 1.0
  %v7820 = vadd.f32 %v7692, 1.0
  %v7821 = vadd.f32 %v7693, 1.0
  %v7822 = vadd.f32 %v7694, 1.0
  %v7823 = vadd.f32 %v7695, 1.0
  %v7824 = vadd.f32 %v7696, 1.0
  %v7825 = vadd.f32 %v7697, 1.0
  %v7826 = vadd.f32 %v7698, 1.0
  %v7827 = vadd.f32 %v7699, 1.0
  %v7828 = vadd.f32 %v7700, 1.0
  %v7829 = vadd.f32 %v7701, 1.0
  %v7830 = vadd.f32 %v7702, 1.0
  %v7831 = vadd.f32 %v7703, 1.0
  %v7832 = vadd.f32 %v7704, 1.0
  %v7833 = vadd.f32 %v7705, 1.0
  %v7834 = vadd.f32 %v7706, 1.0
  %v7835 = vadd.f32 %v7707, 1.0
  %v7836 = vadd.f32 %v7708, 1.0
  %v7837 = vadd.f32 %v7709, 1.0
  %v7838 = vadd.f32 %v7710, 1.0
  %v7839 = vadd.f32 %v7711, 1.0
  %v7840 = vadd.f32 %v7712, 1.0
  %v7841 = vadd.f32 %v7713, 1.0
  %v7842 = vadd.f32 %v7714, 1.0
  %v7843 = vadd.f32 %v7715, 1.0
  %v7844 = vadd.f32 %v7716, 1.0
  %v7845 = vadd.f32 %v7717, 1.0
  %v7846 = vadd.f32 %v7718, 1.0
  %v7847 = vadd.f32 %v7719, 1.0
  %v7848 = vadd.f32 %v7720, 1.0
  %v7849 = vadd.f32 %v7721, 1.0
  %v7850 = vlog2.pop %v7786
  %v7851 = vmul.f32 %v7850, 0.6931472
  %v7852 = vlog2.pop %v7787
  %v7853 = vmul.f32 %v7852, 0.6931472
  %v7854 = vlog2.pop %v7788
  %v7855 = vmul.f32 %v7854, 0.6931472
  %v7856 = vlog2.pop %v7789
  %v7857 = vmul.f32 %v7856, 0.6931472
  %v7858 = vlog2.pop %v7790
  %v7859 = vmul.f32 %v7858, 0.6931472
  %v7860 = vlog2.pop %v7791
  %v7861 = vmul.f32 %v7860, 0.6931472
  %v7862 = vlog2.pop %v7792
  %v7863 = vmul.f32 %v7862, 0.6931472
  %v7864 = vlog2.pop %v7793
  %v7865 = vmul.f32 %v7864, 0.6931472
  %v7866 = vlog2.pop %v7794
  %v7867 = vmul.f32 %v7866, 0.6931472
  %v7868 = vlog2.pop %v7795
  %v7869 = vmul.f32 %v7868, 0.6931472
  %v7870 = vlog2.pop %v7796
  %v7871 = vmul.f32 %v7870, 0.6931472
  %v7872 = vlog2.pop %v7797
  %v7873 = vmul.f32 %v7872, 0.6931472
  %v7874 = vlog2.pop %v7798
  %v7875 = vmul.f32 %v7874, 0.6931472
  %v7876 = vlog2.pop %v7799
  %v7877 = vmul.f32 %v7876, 0.6931472
  %v7878 = vlog2.pop %v7800
  %v7879 = vmul.f32 %v7878, 0.6931472
  %v7880 = vlog2.pop %v7801
  %v7881 = vmul.f32 %v7880, 0.6931472
  %v7882 = vlog2.pop %v7802
  %v7883 = vmul.f32 %v7882, 0.6931472
  %v7884 = vlog2.pop %v7803
  %v7885 = vmul.f32 %v7884, 0.6931472
  %v7886 = vlog2.pop %v7804
  %v7887 = vmul.f32 %v7886, 0.6931472
  %v7888 = vlog2.pop %v7805
  %v7889 = vmul.f32 %v7888, 0.6931472
  %v7890 = vlog2.pop %v7806
  %v7891 = vmul.f32 %v7890, 0.6931472
  %v7892 = vlog2.pop %v7807
  %v7893 = vmul.f32 %v7892, 0.6931472
  %v7894 = vlog2.pop %v7808
  %v7895 = vmul.f32 %v7894, 0.6931472
  %v7896 = vlog2.pop %v7809
  %v7897 = vmul.f32 %v7896, 0.6931472
  %v7898 = vlog2.pop %v7810
  %v7899 = vmul.f32 %v7898, 0.6931472
  %v7900 = vlog2.pop %v7811
  %v7901 = vmul.f32 %v7900, 0.6931472
  %v7902 = vlog2.pop %v7812
  %v7903 = vmul.f32 %v7902, 0.6931472
  %v7904 = vlog2.pop %v7813
  %v7905 = vmul.f32 %v7904, 0.6931472
  %v7906 = vlog2.pop %v7814
  %v7907 = vmul.f32 %v7906, 0.6931472
  %v7908 = vlog2.pop %v7815
  %v7909 = vmul.f32 %v7908, 0.6931472
  %v7910 = vlog2.pop %v7816
  %v7911 = vmul.f32 %v7910, 0.6931472
  %v7912 = vlog2.pop %v7817
  %v7913 = vmul.f32 %v7912, 0.6931472
  %v7914 = vlog2.pop %v7818
  %v7915 = vmul.f32 %v7914, 0.6931472
  %v7916 = vlog2.pop %v7819
  %v7917 = vmul.f32 %v7916, 0.6931472
  %v7918 = vlog2.pop %v7820
  %v7919 = vmul.f32 %v7918, 0.6931472
  %v7920 = vlog2.pop %v7821
  %v7921 = vmul.f32 %v7920, 0.6931472
  %v7922 = vlog2.pop %v7822
  %v7923 = vmul.f32 %v7922, 0.6931472
  %v7924 = vlog2.pop %v7823
  %v7925 = vmul.f32 %v7924, 0.6931472
  %v7926 = vlog2.pop %v7824
  %v7927 = vmul.f32 %v7926, 0.6931472
  %v7928 = vlog2.pop %v7825
  %v7929 = vmul.f32 %v7928, 0.6931472
  %v7930 = vlog2.pop %v7826
  %v7931 = vmul.f32 %v7930, 0.6931472
  %v7932 = vlog2.pop %v7827
  %v7933 = vmul.f32 %v7932, 0.6931472
  %v7934 = vlog2.pop %v7828
  %v7935 = vmul.f32 %v7934, 0.6931472
  %v7936 = vlog2.pop %v7829
  %v7937 = vmul.f32 %v7936, 0.6931472
  %v7938 = vlog2.pop %v7830
  %v7939 = vmul.f32 %v7938, 0.6931472
  %v7940 = vlog2.pop %v7831
  %v7941 = vmul.f32 %v7940, 0.6931472
  %v7942 = vlog2.pop %v7832
  %v7943 = vmul.f32 %v7942, 0.6931472
  %v7944 = vlog2.pop %v7833
  %v7945 = vmul.f32 %v7944, 0.6931472
  %v7946 = vlog2.pop %v7834
  %v7947 = vmul.f32 %v7946, 0.6931472
  %v7948 = vlog2.pop %v7835
  %v7949 = vmul.f32 %v7948, 0.6931472
  %v7950 = vlog2.pop %v7836
  %v7951 = vmul.f32 %v7950, 0.6931472
  %v7952 = vlog2.pop %v7837
  %v7953 = vmul.f32 %v7952, 0.6931472
  %v7954 = vlog2.pop %v7838
  %v7955 = vmul.f32 %v7954, 0.6931472
  %v7956 = vlog2.pop %v7839
  %v7957 = vmul.f32 %v7956, 0.6931472
  %v7958 = vlog2.pop %v7840
  %v7959 = vmul.f32 %v7958, 0.6931472
  %v7960 = vlog2.pop %v7841
  %v7961 = vmul.f32 %v7960, 0.6931472
  %v7962 = vlog2.pop %v7842
  %v7963 = vmul.f32 %v7962, 0.6931472
  %v7964 = vlog2.pop %v7843
  %v7965 = vmul.f32 %v7964, 0.6931472
  %v7966 = vlog2.pop %v7844
  %v7967 = vmul.f32 %v7966, 0.6931472
  %v7968 = vlog2.pop %v7845
  %v7969 = vmul.f32 %v7968, 0.6931472
  %v7970 = vlog2.pop %v7846
  %v7971 = vmul.f32 %v7970, 0.6931472
  %v7972 = vlog2.pop %v7847
  %v7973 = vmul.f32 %v7972, 0.6931472
  %v7974 = vlog2.pop %v7848
  %v7975 = vmul.f32 %v7974, 0.6931472
  %v7976 = vlog2.pop %v7849
  %v7977 = vmul.f32 %v7976, 0.6931472
  %v7978 = vsel %vm7722, %v7851, 0.0
  %v7979 = vsel %vm7723, %v7853, 0.0
  %v7980 = vsel %vm7724, %v7855, 0.0
  %v7981 = vsel %vm7725, %v7857, 0.0
  %v7982 = vsel %vm7726, %v7859, 0.0
  %v7983 = vsel %vm7727, %v7861, 0.0
  %v7984 = vsel %vm7728, %v7863, 0.0
  %v7985 = vsel %vm7729, %v7865, 0.0
  %v7986 = vsel %vm7730, %v7867, 0.0
  %v7987 = vsel %vm7731, %v7869, 0.0
  %v7988 = vsel %vm7732, %v7871, 0.0
  %v7989 = vsel %vm7733, %v7873, 0.0
  %v7990 = vsel %vm7734, %v7875, 0.0
  %v7991 = vsel %vm7735, %v7877, 0.0
  %v7992 = vsel %vm7736, %v7879, 0.0
  %v7993 = vsel %vm7737, %v7881, 0.0
  %v7994 = vsel %vm7738, %v7883, 0.0
  %v7995 = vsel %vm7739, %v7885, 0.0
  %v7996 = vsel %vm7740, %v7887, 0.0
  %v7997 = vsel %vm7741, %v7889, 0.0
  %v7998 = vsel %vm7742, %v7891, 0.0
  %v7999 = vsel %vm7743, %v7893, 0.0
  %v8000 = vsel %vm7744, %v7895, 0.0
  %v8001 = vsel %vm7745, %v7897, 0.0
  %v8002 = vsel %vm7746, %v7899, 0.0
  %v8003 = vsel %vm7747, %v7901, 0.0
  %v8004 = vsel %vm7748, %v7903, 0.0
  %v8005 = vsel %vm7749, %v7905, 0.0
  %v8006 = vsel %vm7750, %v7907, 0.0
  %v8007 = vsel %vm7751, %v7909, 0.0
  %v8008 = vsel %vm7752, %v7911, 0.0
  %v8009 = vsel %vm7753, %v7913, 0.0
  %v8010 = vsel %vm7754, %v7915, 0.0
  %v8011 = vsel %vm7755, %v7917, 0.0
  %v8012 = vsel %vm7756, %v7919, 0.0
  %v8013 = vsel %vm7757, %v7921, 0.0
  %v8014 = vsel %vm7758, %v7923, 0.0
  %v8015 = vsel %vm7759, %v7925, 0.0
  %v8016 = vsel %vm7760, %v7927, 0.0
  %v8017 = vsel %vm7761, %v7929, 0.0
  %v8018 = vsel %vm7762, %v7931, 0.0
  %v8019 = vsel %vm7763, %v7933, 0.0
  %v8020 = vsel %vm7764, %v7935, 0.0
  %v8021 = vsel %vm7765, %v7937, 0.0
  %v8022 = vsel %vm7766, %v7939, 0.0
  %v8023 = vsel %vm7767, %v7941, 0.0
  %v8024 = vsel %vm7768, %v7943, 0.0
  %v8025 = vsel %vm7769, %v7945, 0.0
  %v8026 = vsel %vm7770, %v7947, 0.0
  %v8027 = vsel %vm7771, %v7949, 0.0
  %v8028 = vsel %vm7772, %v7951, 0.0
  %v8029 = vsel %vm7773, %v7953, 0.0
  %v8030 = vsel %vm7774, %v7955, 0.0
  %v8031 = vsel %vm7775, %v7957, 0.0
  %v8032 = vsel %vm7776, %v7959, 0.0
  %v8033 = vsel %vm7777, %v7961, 0.0
  %v8034 = vsel %vm7778, %v7963, 0.0
  %v8035 = vsel %vm7779, %v7965, 0.0
  %v8036 = vsel %vm7780, %v7967, 0.0
  %v8037 = vsel %vm7781, %v7969, 0.0
  %v8038 = vsel %vm7782, %v7971, 0.0
  %v8039 = vsel %vm7783, %v7973, 0.0
  %v8040 = vsel %vm7784, %v7975, 0.0
  %v8041 = vsel %vm7785, %v7977, 0.0
  %v8042 = vpack.c.bf16 %v7980, %v7978
  %v8043 = vpack.c.bf16 %v7981, %v7979
  %v8044 = vpack.c.bf16 %v7984, %v7982
  %v8045 = vpack.c.bf16 %v7985, %v7983
  %v8046 = vpack.c.bf16 %v7988, %v7986
  %v8047 = vpack.c.bf16 %v7989, %v7987
  %v8048 = vpack.c.bf16 %v7992, %v7990
  %v8049 = vpack.c.bf16 %v7993, %v7991
  %v8050 = vpack.c.bf16 %v7996, %v7994
  %v8051 = vpack.c.bf16 %v7997, %v7995
  %v8052 = vpack.c.bf16 %v8000, %v7998
  %v8053 = vpack.c.bf16 %v8001, %v7999
  %v8054 = vpack.c.bf16 %v8004, %v8002
  %v8055 = vpack.c.bf16 %v8005, %v8003
  %v8056 = vpack.c.bf16 %v8008, %v8006
  %v8057 = vpack.c.bf16 %v8009, %v8007
  %v8058 = vpack.c.bf16 %v8012, %v8010
  %v8059 = vpack.c.bf16 %v8013, %v8011
  %v8060 = vpack.c.bf16 %v8016, %v8014
  %v8061 = vpack.c.bf16 %v8017, %v8015
  %v8062 = vpack.c.bf16 %v8020, %v8018
  %v8063 = vpack.c.bf16 %v8021, %v8019
  %v8064 = vpack.c.bf16 %v8024, %v8022
  %v8065 = vpack.c.bf16 %v8025, %v8023
  %v8066 = vpack.c.bf16 %v8028, %v8026
  %v8067 = vpack.c.bf16 %v8029, %v8027
  %v8068 = vpack.c.bf16 %v8032, %v8030
  %v8069 = vpack.c.bf16 %v8033, %v8031
  %v8070 = vpack.c.bf16 %v8036, %v8034
  %v8071 = vpack.c.bf16 %v8037, %v8035
  %v8072 = vpack.c.bf16 %v8040, %v8038
  %v8073 = vpack.c.bf16 %v8041, %v8039
  %v8106 = vunpack.c.l.b16 %v8042
  %v8107 = vunpack.c.l.b16 %v8043
  %v8108 = vunpack.c.h.b16 %v8042
  %v8109 = vunpack.c.h.b16 %v8043
  %v8110 = vunpack.c.l.b16 %v8044
  %v8111 = vunpack.c.l.b16 %v8045
  %v8112 = vunpack.c.h.b16 %v8044
  %v8113 = vunpack.c.h.b16 %v8045
  %v8114 = vunpack.c.l.b16 %v8046
  %v8115 = vunpack.c.l.b16 %v8047
  %v8116 = vunpack.c.h.b16 %v8046
  %v8117 = vunpack.c.h.b16 %v8047
  %v8118 = vunpack.c.l.b16 %v8048
  %v8119 = vunpack.c.l.b16 %v8049
  %v8120 = vunpack.c.h.b16 %v8048
  %v8121 = vunpack.c.h.b16 %v8049
  %v8122 = vunpack.c.l.b16 %v8050
  %v8123 = vunpack.c.l.b16 %v8051
  %v8124 = vunpack.c.h.b16 %v8050
  %v8125 = vunpack.c.h.b16 %v8051
  %v8126 = vunpack.c.l.b16 %v8052
  %v8127 = vunpack.c.l.b16 %v8053
  %v8128 = vunpack.c.h.b16 %v8052
  %v8129 = vunpack.c.h.b16 %v8053
  %v8130 = vunpack.c.l.b16 %v8054
  %v8131 = vunpack.c.l.b16 %v8055
  %v8132 = vunpack.c.h.b16 %v8054
  %v8133 = vunpack.c.h.b16 %v8055
  %v8134 = vunpack.c.l.b16 %v8056
  %v8135 = vunpack.c.l.b16 %v8057
  %v8136 = vunpack.c.h.b16 %v8056
  %v8137 = vunpack.c.h.b16 %v8057
  %v8138 = vunpack.c.l.b16 %v8058
  %v8139 = vunpack.c.l.b16 %v8059
  %v8140 = vunpack.c.h.b16 %v8058
  %v8141 = vunpack.c.h.b16 %v8059
  %v8142 = vunpack.c.l.b16 %v8060
  %v8143 = vunpack.c.l.b16 %v8061
  %v8144 = vunpack.c.h.b16 %v8060
  %v8145 = vunpack.c.h.b16 %v8061
  %v8146 = vunpack.c.l.b16 %v8062
  %v8147 = vunpack.c.l.b16 %v8063
  %v8148 = vunpack.c.h.b16 %v8062
  %v8149 = vunpack.c.h.b16 %v8063
  %v8150 = vunpack.c.l.b16 %v8064
  %v8151 = vunpack.c.l.b16 %v8065
  %v8152 = vunpack.c.h.b16 %v8064
  %v8153 = vunpack.c.h.b16 %v8065
  %v8154 = vunpack.c.l.b16 %v8066
  %v8155 = vunpack.c.l.b16 %v8067
  %v8156 = vunpack.c.h.b16 %v8066
  %v8157 = vunpack.c.h.b16 %v8067
  %v8158 = vunpack.c.l.b16 %v8068
  %v8159 = vunpack.c.l.b16 %v8069
  %v8160 = vunpack.c.h.b16 %v8068
  %v8161 = vunpack.c.h.b16 %v8069
  %v8162 = vunpack.c.l.b16 %v8070
  %v8163 = vunpack.c.l.b16 %v8071
  %v8164 = vunpack.c.h.b16 %v8070
  %v8165 = vunpack.c.h.b16 %v8071
  %v8166 = vunpack.c.l.b16 %v8072
  %v8167 = vunpack.c.l.b16 %v8073
  %v8168 = vunpack.c.h.b16 %v8072
  %v8169 = vunpack.c.h.b16 %v8073
  %v8170 = vpack.c.b16 %v8107, %v8106
  %v8171 = vpack.c.b16 %v8109, %v8108
  %v8172 = vpack.c.b16 %v8111, %v8110
  %v8173 = vpack.c.b16 %v8113, %v8112
  %v8174 = vpack.c.b16 %v8115, %v8114
  %v8175 = vpack.c.b16 %v8117, %v8116
  %v8176 = vpack.c.b16 %v8119, %v8118
  %v8177 = vpack.c.b16 %v8121, %v8120
  %v8178 = vpack.c.b16 %v8123, %v8122
  %v8179 = vpack.c.b16 %v8125, %v8124
  %v8180 = vpack.c.b16 %v8127, %v8126
  %v8181 = vpack.c.b16 %v8129, %v8128
  %v8182 = vpack.c.b16 %v8131, %v8130
  %v8183 = vpack.c.b16 %v8133, %v8132
  %v8184 = vpack.c.b16 %v8135, %v8134
  %v8185 = vpack.c.b16 %v8137, %v8136
  %v8186 = vpack.c.b16 %v8139, %v8138
  %v8187 = vpack.c.b16 %v8141, %v8140
  %v8188 = vpack.c.b16 %v8143, %v8142
  %v8189 = vpack.c.b16 %v8145, %v8144
  %v8190 = vpack.c.b16 %v8147, %v8146
  %v8191 = vpack.c.b16 %v8149, %v8148
  %v8192 = vpack.c.b16 %v8151, %v8150
  %v8193 = vpack.c.b16 %v8153, %v8152
  %v8194 = vpack.c.b16 %v8155, %v8154
  %v8195 = vpack.c.b16 %v8157, %v8156
  %v8196 = vpack.c.b16 %v8159, %v8158
  %v8197 = vpack.c.b16 %v8161, %v8160
  %v8198 = vpack.c.b16 %v8163, %v8162
  %v8199 = vpack.c.b16 %v8165, %v8164
  %v8200 = vpack.c.b16 %v8167, %v8166
  %v8201 = vpack.c.b16 %v8169, %v8168
  %8234 = vst [vmem:[%s3] sm:$0xff] %v8170
  %8235 = vst [vmem:[%s3 + $0x8] sm:$0xff] %v8171
  %8236 = vst [vmem:[%s3 + $0x10] sm:$0xff] %v8172
  %8237 = vst [vmem:[%s3 + $0x18] sm:$0xff] %v8173
  %8238 = vst [vmem:[%s3 + $0x20] sm:$0xff] %v8174
  %8239 = vst [vmem:[%s3 + $0x28] sm:$0xff] %v8175
  %8240 = vst [vmem:[%s3 + $0x30] sm:$0xff] %v8176
  %8241 = vst [vmem:[%s3 + $0x38] sm:$0xff] %v8177
  %8242 = vst [vmem:[%s3 + $0x40] sm:$0xff] %v8178
  %8243 = vst [vmem:[%s3 + $0x48] sm:$0xff] %v8179
  %8244 = vst [vmem:[%s3 + $0x50] sm:$0xff] %v8180
  %8245 = vst [vmem:[%s3 + $0x58] sm:$0xff] %v8181
  %8246 = vst [vmem:[%s3 + $0x60] sm:$0xff] %v8182
  %8247 = vst [vmem:[%s3 + $0x68] sm:$0xff] %v8183
  %8248 = vst [vmem:[%s3 + $0x70] sm:$0xff] %v8184
  %8249 = vst [vmem:[%s3 + $0x78] sm:$0xff] %v8185
  %8250 = vst [vmem:[%s3 + $0x80] sm:$0xff] %v8186
  %8251 = vst [vmem:[%s3 + $0x88] sm:$0xff] %v8187
  %8252 = vst [vmem:[%s3 + $0x90] sm:$0xff] %v8188
  %8253 = vst [vmem:[%s3 + $0x98] sm:$0xff] %v8189
  %8254 = vst [vmem:[%s3 + $0xa0] sm:$0xff] %v8190
  %8255 = vst [vmem:[%s3 + $0xa8] sm:$0xff] %v8191
  %8256 = vst [vmem:[%s3 + $0xb0] sm:$0xff] %v8192
  %8257 = vst [vmem:[%s3 + $0xb8] sm:$0xff] %v8193
  %8258 = vst [vmem:[%s3 + $0xc0] sm:$0xff] %v8194
  %8259 = vst [vmem:[%s3 + $0xc8] sm:$0xff] %v8195
  %8260 = vst [vmem:[%s3 + $0xd0] sm:$0xff] %v8196
  %8261 = vst [vmem:[%s3 + $0xd8] sm:$0xff] %v8197
  %8262 = vst [vmem:[%s3 + $0xe0] sm:$0xff] %v8198
  %8263 = vst [vmem:[%s3 + $0xe8] sm:$0xff] %v8199
  %8264 = vst [vmem:[%s3 + $0xf0] sm:$0xff] %v8200
  %8265 = vst [vmem:[%s3 + $0xf8] sm:$0xff] %v8201
  %v8266 = vmax.f32 %v7658, %v7662
  %v8267 = vmax.f32 %v7659, %v7663
  %v8268 = vmax.f32 %v7660, %v7664
  %v8269 = vmax.f32 %v7661, %v7665
  %v8270 = vmax.f32 %v8266, %v7666
  %v8271 = vmax.f32 %v8267, %v7667
  %v8272 = vmax.f32 %v8268, %v7668
  %v8273 = vmax.f32 %v8269, %v7669
  %v8274 = vmax.f32 %v8270, %v7670
  %v8275 = vmax.f32 %v8271, %v7671
  %v8276 = vmax.f32 %v8272, %v7672
  %v8277 = vmax.f32 %v8273, %v7673
  %v8278 = vmax.f32 %v8274, %v7674
  %v8279 = vmax.f32 %v8275, %v7675
  %v8280 = vmax.f32 %v8276, %v7676
  %v8281 = vmax.f32 %v8277, %v7677
  %v8282 = vmax.f32 %v8278, %v7678
  %v8283 = vmax.f32 %v8279, %v7679
  %v8284 = vmax.f32 %v8280, %v7680
  %v8285 = vmax.f32 %v8281, %v7681
  %v8286 = vmax.f32 %v8282, %v7682
  %v8287 = vmax.f32 %v8283, %v7683
  %v8288 = vmax.f32 %v8284, %v7684
  %v8289 = vmax.f32 %v8285, %v7685
  %v8290 = vmax.f32 %v8286, %v7686
  %v8291 = vmax.f32 %v8287, %v7687
  %v8292 = vmax.f32 %v8288, %v7688
  %v8293 = vmax.f32 %v8289, %v7689
  %v8294 = vmax.f32 %v8290, %v7690
  %v8295 = vmax.f32 %v8291, %v7691
  %v8296 = vmax.f32 %v8292, %v7692
  %v8297 = vmax.f32 %v8293, %v7693
  %v8298 = vmax.f32 %v8294, %v7694
  %v8299 = vmax.f32 %v8295, %v7695
  %v8300 = vmax.f32 %v8296, %v7696
  %v8301 = vmax.f32 %v8297, %v7697
  %v8302 = vmax.f32 %v8298, %v7698
  %v8303 = vmax.f32 %v8299, %v7699
  %v8304 = vmax.f32 %v8300, %v7700
  %v8305 = vmax.f32 %v8301, %v7701
  %v8306 = vmax.f32 %v8302, %v7702
  %v8307 = vmax.f32 %v8303, %v7703
  %v8308 = vmax.f32 %v8304, %v7704
  %v8309 = vmax.f32 %v8305, %v7705
  %v8310 = vmax.f32 %v8306, %v7706
  %v8311 = vmax.f32 %v8307, %v7707
  %v8312 = vmax.f32 %v8308, %v7708
  %v8313 = vmax.f32 %v8309, %v7709
  %v8314 = vmax.f32 %v8310, %v7710
  %v8315 = vmax.f32 %v8311, %v7711
  %v8316 = vmax.f32 %v8312, %v7712
  %v8317 = vmax.f32 %v8313, %v7713
  %v8318 = vmax.f32 %v8314, %v7714
  %v8319 = vmax.f32 %v8315, %v7715
  %v8320 = vmax.f32 %v8316, %v7716
  %v8321 = vmax.f32 %v8317, %v7717
  %v8322 = vmax.f32 %v8318, %v7718
  %v8323 = vmax.f32 %v8319, %v7719
  %v8324 = vmax.f32 %v8320, %v7720
  %v8325 = vmax.f32 %v8321, %v7721
  %v8326 = vmax.f32 %v8322, %v8323
  %v8327 = vmax.f32 %v8324, %v8325
  %v8328 = vmax.f32 %v8326, %v8327
  %8329 = vmax.xlane.f32.xlu0 %v8328
  %v8330 = vpop.xlane.xlu0 %8329
  %v8331 = vrot.slane %v8330, 4
  %v8332 = vmax.f32 %v8330, %v8331
  %v8333 = vrot.slane %v8332, 2
  %v8334 = vmax.f32 %v8332, %v8333
  %v8335 = vrot.slane %v8334, 1
  %v8336 = vmax.f32 %v8334, %v8335
  %s8337 = vtos %v8336
  %v8338 = vstv %s8337
  %8339 = vst [vmem:[%s4] sm:$0xff] %v8338
  // Predicated region
  $region14: #{_leroy_forward.2} parent=0 // pred_check
    _
  $region15: #{_leroy_forward.2} parent=0 // pred_check_branch
    %8341 = sbr.rel (0) target = $region17
  $region16: #{_leroy_forward.2} parent=0 // pred_region
    _
  $region17: #{_leroy_forward.2} parent=0 // pred_fallthru
    _
  // Predicated region
  $region18: #{_leroy_forward.2} parent=0 // pred_check
    _
  $region19: #{_leroy_forward.2} parent=0 // pred_check_branch
    %8343 = sbr.rel (0) target = $region21
  $region20: #{_leroy_forward.2} parent=0 // pred_region
    _
  $region21: #{_leroy_forward.2} parent=0 // pred_fallthru
    _
  // Predicated region
  $region22: #{_leroy_forward.2} parent=0 // pred_check
    _
  $region23: #{_leroy_forward.2} parent=0 // pred_check_branch
    %8345 = sbr.rel (0) target = $region25
  $region24: #{_leroy_forward.2} parent=0 // pred_region
    _
  $region25: #{_leroy_forward.2} parent=0 // pred_fallthru
    _
  // Predicated region
  $region26: #{_leroy_forward.2} parent=0 // pred_check
    _
  $region27: #{_leroy_forward.2} parent=0 // pred_check_branch
    %8347 = sbr.rel (0) target = $region29
  $region28: #{_leroy_forward.2} parent=0 // pred_region
    _
  $region29: #{_leroy_forward.2} parent=0 // pred_fallthru
    _

</llo_original>
